<compile_context>
chip_gen: v6e
topology: v6e:2x2x1
jax: 0.10.0
libtpu: 0.0.40
codegen_flags: <defaults>
</compile_context>

<pallas_src>
import functools

import numpy as np

import jax
import jax.numpy as jnp
from jax.experimental import pallas as pl
from jax.experimental.pallas import tpu as pltpu


# ------------------------------ Pallas kernel --------------------------------

def _fused_features_kernel(
        p1t_ref,                                    # (1, K1, P1) conv1 patches^T
        w1_ref, b1_ref, g1_ref, be1_ref,            # conv1 + GN1 params
        w2_ref, b2_ref, g2_ref, be2_ref, s2_ref,    # conv2 + GN2 + selection mats
        w3_ref, b3_ref, g3_ref, be3_ref, s3_ref,    # conv3 + GN3 + selection mats
        w4_ref, b4_ref, g4_ref, be4_ref, s4_ref,    # conv4 + GN4 + selection mats
        o_ref,                                      # (1, C4, P4) output (CHW)
        p2_scr, p3_scr, p4_scr,                     # VMEM patches^T scratch
        *, eps):
    f32 = jnp.float32

    def relu_groupnorm(y, b_ref, g_ref, be_ref):
        """y: (C, P) pre-bias conv output.  GroupNorm with 2 channels/group."""
        y = jnp.maximum(y + b_ref[...], 0.0)                   # bias + ReLU
        C, P = y.shape
        n = 2.0 * P                                            # elems per group
        chs = jnp.sum(y, axis=1, keepdims=True)                # (C, 1)
        chq = jnp.sum(y * y, axis=1, keepdims=True)            # (C, 1)
        # Pairwise (adjacent-channel) group sums via sublane roll + even/odd
        # select -- replaces the old (1,C)@(C,C) membership matmul.
        cidx = jax.lax.broadcasted_iota(jnp.int32, (C, 1), 0)
        even = (cidx % 2) == 0

        def pair_sum(v):
            nxt = pltpu.roll(v, shift=C - 1, axis=0)           # v[c+1]
            prv = pltpu.roll(v, shift=1, axis=0)               # v[c-1]
            return v + jnp.where(even, nxt, prv)

        gsum = pair_sum(chs)                                   # group sums, per ch
        gsq = pair_sum(chq)
        mean = gsum / n
        # One-pass E[x^2]-mean^2 variance: fine at these sizes (P*2 <= 512, f32).
        var = gsq / n - mean * mean
        inv = jax.lax.rsqrt(var + eps)
        # Folded affine: out = y * scale + shift  (one mul + one add per element)
        scale = inv * g_ref[...]                               # (C, 1)
        shift = be_ref[...] - mean * scale                     # (C, 1)
        return y * scale + shift                               # (C, P)

    def conv_from_selection(act, w_ref, s_ref, p_scr):
        """act: (Cin, Pin).  s_ref: (kk, Pin, Pout) 0/1 shift/stride/pad selectors.

        Builds patches^T (kk*Cin, Pout) in VMEM scratch (offset-major rows), then
        one dense weight GEMM  (Cout, kk*Cin) @ (kk*Cin, Pout)."""
        cin = act.shape[0]
        kk = s_ref.shape[0]
        for dd in range(kk):
            p_scr[dd * cin:(dd + 1) * cin, :] = jnp.dot(
                act, s_ref[dd], preferred_element_type=f32)
        return jnp.dot(w_ref[...], p_scr[...], preferred_element_type=f32)

    # conv1: patches^T were extracted by the wrapper (stride-4, 8x8 kernel).
    y1 = jnp.dot(w1_ref[...], p1t_ref[0], preferred_element_type=f32)   # (d1, 256)
    a1 = relu_groupnorm(y1, b1_ref, g1_ref, be1_ref)

    y2 = conv_from_selection(a1, w2_ref, s2_ref, p2_scr)                # (d1, 64)
    a2 = relu_groupnorm(y2, b2_ref, g2_ref, be2_ref)

    y3 = conv_from_selection(a2, w3_ref, s3_ref, p3_scr)                # (d2, 64)
    a3 = relu_groupnorm(y3, b3_ref, g3_ref, be3_ref)

    y4 = conv_from_selection(a3, w4_ref, s4_ref, p4_scr)                # (d2, 36)
    o_ref[0] = relu_groupnorm(y4, b4_ref, g4_ref, be4_ref)


# ------------------------------- wrapper glue ---------------------------------

def _conv_out(size, k, stride, pad):
    return (size + 2 * pad - k) // stride + 1


def _selection_matrices(hin, win, k, stride, pad):
    """S[dd, y*win+x, oy*wout+ox] = 1 iff (y, x) == (stride*oy+di-pad, stride*ox+dj-pad)
    with dd = di*k+dj; zero columns implement zero padding."""
    hout, wout = _conv_out(hin, k, stride, pad), _conv_out(win, k, stride, pad)
    S = np.zeros((k * k, hin * win, hout * wout), dtype=np.float32)
    for di in range(k):
        for dj in range(k):
            dd = di * k + dj
            for oy in range(hout):
                y = stride * oy + di - pad
                if 0 <= y < hin:
                    for ox in range(wout):
                        x = stride * ox + dj - pad
                        if 0 <= x < win:
                            S[dd, y * win + x, oy * wout + ox] = 1.0
    return jnp.asarray(S), hout, wout


def _im2col_conv1_T(x_nhwc, k, stride, pad):
    """Transposed im2col for conv1: (B, Cin*k*k, Ho*Wo), row order (cin, di, dj)
    matching w1.reshape(Cout, Cin*k*k)."""
    B, H, W, C = x_nhwc.shape
    xp = jnp.pad(x_nhwc, ((0, 0), (pad, pad), (pad, pad), (0, 0)))
    Ho, Wo = _conv_out(H, k, stride, pad), _conv_out(W, k, stride, pad)
    cols = []
    for i in range(k):
        for j in range(k):
            cols.append(xp[:, i:i + stride * Ho:stride, j:j + stride * Wo:stride, :])
    p = jnp.stack(cols, axis=-1)                    # (B, Ho, Wo, C, k*k)
    p = p.transpose(0, 3, 4, 1, 2)                  # (B, C, k*k, Ho, Wo)
    return p.reshape(B, C * k * k, Ho * Wo), Ho, Wo


def features_extractor_rgb(rgb, settings, params, *, eps=1e-5):
    """Forward pass matching FeaturesExtractor_RGB.  rgb: (..., C, W, H) -> (B, d2, 6, 6)."""
    c, wdt, hgt = settings["channels"], settings["width"], settings["height"]
    d1, d2 = settings["d1"], settings["d2"]
    assert d1 % 2 == 0 and d2 % 2 == 0  # GroupNorm(d/2, d) => 2 channels per group

    x = rgb.reshape(-1, c, wdt, hgt).astype(jnp.float32)   # NCHW, as in the module
    x = jnp.transpose(x, (0, 2, 3, 1))                     # NHWC for patch extraction
    B = x.shape[0]

    # conv1 (k=8, s=4, p=2): patches^T computed in the wrapper.
    p1t, H1, W1 = _im2col_conv1_T(x, 8, 4, 2)              # (B, K1, P1)
    K1, P1 = p1t.shape[1], p1t.shape[2]

    # Spatial 0/1 selection matrices for conv2..conv4 (shared across samples).
    S2, H2, W2 = _selection_matrices(H1, W1, 4, 2, 1)
    S3, H3, W3 = _selection_matrices(H2, W2, 3, 1, 1)
    S4, H4, W4 = _selection_matrices(H3, W3, 3, 1, 0)
    P2, P3, P4 = H2 * W2, H3 * W3, H4 * W4
    K2, K3, K4 = 16 * d1, 9 * d1, 9 * d2

    # Weights: conv1 flattened channel-major (cin, di, dj); conv2..4 offset-major
    # (di, dj, cin) to match the in-kernel patch row order dd*Cin + cin.
    w1f = params["w1"].reshape(d1, K1)
    w2p = jnp.transpose(params["w2"], (0, 2, 3, 1)).reshape(d1, K2)
    w3p = jnp.transpose(params["w3"], (0, 2, 3, 1)).reshape(d2, K3)
    w4p = jnp.transpose(params["w4"], (0, 2, 3, 1)).reshape(d2, K4)

    col = lambda v: v.reshape(-1, 1)          # (C,) -> (C, 1) for the (C, P) layout

    def full(*shape):                         # whole-array block, constant index map
        return pl.BlockSpec(shape, lambda b, _s=shape: (0,) * len(_s))

    kern = functools.partial(_fused_features_kernel, eps=eps)

    out = pl.pallas_call(
        kern,
        out_shape=jax.ShapeDtypeStruct((B, d2, P4), jnp.float32),
        grid_spec=pltpu.PrefetchScalarGridSpec(
            num_scalar_prefetch=0,
            grid=(B,),
            in_specs=[
                pl.BlockSpec((1, K1, P1), lambda b: (b, 0, 0)),
                full(d1, K1), full(d1, 1), full(d1, 1), full(d1, 1),
                full(d1, K2), full(d1, 1), full(d1, 1), full(d1, 1),
                full(S2.shape[0], P1, P2),
                full(d2, K3), full(d2, 1), full(d2, 1), full(d2, 1),
                full(S3.shape[0], P2, P3),
                full(d2, K4), full(d2, 1), full(d2, 1), full(d2, 1),
                full(S4.shape[0], P3, P4),
            ],
            out_specs=pl.BlockSpec((1, d2, P4), lambda b: (b, 0, 0)),
            scratch_shapes=[
                pltpu.VMEM((K2, P2), jnp.float32),
                pltpu.VMEM((K3, P3), jnp.float32),
                pltpu.VMEM((K4, P4), jnp.float32),
            ],
        ),
        compiler_params=pltpu.CompilerParams(
            dimension_semantics=("parallel",),
        ),
    )(p1t,
      w1f, col(params["b1"]), col(params["g1"]), col(params["be1"]),
      w2p, col(params["b2"]), col(params["g2"]), col(params["be2"]), S2,
      w3p, col(params["b3"]), col(params["g3"]), col(params["be3"]), S3,
      w4p, col(params["b4"]), col(params["g4"]), col(params["be4"]), S4)

    # Kernel output is already CHW per sample -> NCHW like the PyTorch module.
    return out.reshape(B, d2, H4, W4)


# ----------------------------- params & reference -----------------------------

def init_params(settings, key):
    c, d1, d2 = settings["channels"], settings["d1"], settings["d2"]

    def conv_w(k, cout, cin, ks):
        fan_in = cin * ks * ks
        return jax.random.normal(k, (cout, cin, ks, ks), jnp.float32) * (1.0 / fan_in) ** 0.5

    ks = jax.random.split(key, 8)
    return {
        "w1": conv_w(ks[0], d1, c, 8),  "b1": 0.01 * jax.random.normal(ks[1], (d1,), jnp.float32),
        "w2": conv_w(ks[2], d1, d1, 4), "b2": 0.01 * jax.random.normal(ks[3], (d1,), jnp.float32),
        "w3": conv_w(ks[4], d2, d1, 3), "b3": 0.01 * jax.random.normal(ks[5], (d2,), jnp.float32),
        "w4": conv_w(ks[6], d2, d2, 3), "b4": 0.01 * jax.random.normal(ks[7], (d2,), jnp.float32),
        "g1": jnp.ones((d1,), jnp.float32), "be1": jnp.zeros((d1,), jnp.float32),
        "g2": jnp.ones((d1,), jnp.float32), "be2": jnp.zeros((d1,), jnp.float32),
        "g3": jnp.ones((d2,), jnp.float32), "be3": jnp.zeros((d2,), jnp.float32),
        "g4": jnp.ones((d2,), jnp.float32), "be4": jnp.zeros((d2,), jnp.float32),
    }


def _reference_forward(rgb, settings, params, eps=1e-5):
    """Pure-JAX/XLA reference (conv_general_dilated + GroupNorm) for validation."""
    c, d1, d2 = settings["channels"], settings["d1"], settings["d2"]
    x = rgb.reshape(-1, c, settings["width"], settings["height"]).astype(jnp.float32)

    def conv(x, w, b, stride, pad):
        y = jax.lax.conv_general_dilated(
            x, w, window_strides=(stride, stride),
            padding=[(pad, pad), (pad, pad)],
            dimension_numbers=("NCHW", "OIHW", "NCHW"))
        return y + b.reshape(1, -1, 1, 1)

    def gn(x, gamma, beta, groups):
        B, C, H, W = x.shape
        xg = x.reshape(B, groups, C // groups, H, W)
        mean = xg.mean(axis=(2, 3, 4), keepdims=True)
        var = ((xg - mean) ** 2).mean(axis=(2, 3, 4), keepdims=True)
        xn = ((xg - mean) * jax.lax.rsqrt(var + eps)).reshape(B, C, H, W)
        return xn * gamma.reshape(1, -1, 1, 1) + beta.reshape(1, -1, 1, 1)

    x = gn(jax.nn.relu(conv(x, params["w1"], params["b1"], 4, 2)), params["g1"], params["be1"], d1 // 2)
    x = gn(jax.nn.relu(conv(x, params["w2"], params["b2"], 2, 1)), params["g2"], params["be2"], d1 // 2)
    x = gn(jax.nn.relu(conv(x, params["w3"], params["b3"], 1, 1)), params["g3"], params["be3"], d2 // 2)
    x = gn(jax.nn.relu(conv(x, params["w4"], params["b4"], 1, 0)), params["g4"], params["be4"], d2 // 2)
    return x


# ----------------------------------- main -------------------------------------

if __name__ == "__main__":
    settings = {"channels": 3, "width": 64, "height": 64, "d1": 16, "d2": 32, "d3": 256}

    key = jax.random.PRNGKey(0)
    pkey, xkey = jax.random.split(key)
    params = init_params(settings, pkey)

    batch = 2
    rgb = jax.random.uniform(
        xkey, (batch, settings["channels"], settings["width"], settings["height"]),
        dtype=jnp.float32)

    fwd = jax.jit(lambda r: features_extractor_rgb(r, settings, params))
    out = jax.block_until_ready(fwd(rgb))

    # conv1 64->16, conv2 16->8, conv3 8->8, conv4 8->6  => (B, 32, 6, 6)
    assert out.shape == (batch, settings["d2"], 6, 6), out.shape
    assert bool(jnp.all(jnp.isfinite(out)))

    ref = _reference_forward(rgb, settings, params)
    err = float(jnp.max(jnp.abs(out - ref)))
    assert err < 0.1, f"max abs error vs XLA reference: {err}"

    print("KERNEL_OK")
</pallas_src>

<mosaic_0001>
module attributes {stable_mosaic.version = 11 : i64} {
  func.func @_fused_features_kernel(%arg0: i32, %arg1: memref<1x192x256xf32, #tpu.memory_space<vmem>>, %arg2: memref<16x192xf32, #tpu.memory_space<vmem>>, %arg3: memref<16x1xf32, #tpu.memory_space<vmem>>, %arg4: memref<16x1xf32, #tpu.memory_space<vmem>>, %arg5: memref<16x1xf32, #tpu.memory_space<vmem>>, %arg6: memref<16x256xf32, #tpu.memory_space<vmem>>, %arg7: memref<16x1xf32, #tpu.memory_space<vmem>>, %arg8: memref<16x1xf32, #tpu.memory_space<vmem>>, %arg9: memref<16x1xf32, #tpu.memory_space<vmem>>, %arg10: memref<16x256x64xf32, #tpu.memory_space<vmem>>, %arg11: memref<32x144xf32, #tpu.memory_space<vmem>>, %arg12: memref<32x1xf32, #tpu.memory_space<vmem>>, %arg13: memref<32x1xf32, #tpu.memory_space<vmem>>, %arg14: memref<32x1xf32, #tpu.memory_space<vmem>>, %arg15: memref<9x64x64xf32, #tpu.memory_space<vmem>>, %arg16: memref<32x288xf32, #tpu.memory_space<vmem>>, %arg17: memref<32x1xf32, #tpu.memory_space<vmem>>, %arg18: memref<32x1xf32, #tpu.memory_space<vmem>>, %arg19: memref<32x1xf32, #tpu.memory_space<vmem>>, %arg20: memref<9x64x36xf32, #tpu.memory_space<vmem>>, %arg21: memref<1x32x36xf32, #tpu.memory_space<vmem>>, %arg22: memref<256x64xf32, #tpu.memory_space<vmem>>, %arg23: memref<144x64xf32, #tpu.memory_space<vmem>>, %arg24: memref<288x36xf32, #tpu.memory_space<vmem>>) attributes {dimension_semantics = [#tpu.dimension_semantics<parallel>], iteration_bounds = array<i64: 2>, scalar_prefetch = 0 : i64, scratch_operands = 3 : i64, tpu.core_type = #tpu.core_type<tc>, window_params = [{transform_indices = @transform_0, window_bounds = array<i64: 1, 192, 256>}, {pipeline_mode = #tpu.pipeline_mode<synchronous>, transform_indices = @transform_1, window_bounds = array<i64: 16, 192>}, {pipeline_mode = #tpu.pipeline_mode<synchronous>, transform_indices = @transform_2, window_bounds = array<i64: 16, 1>}, {pipeline_mode = #tpu.pipeline_mode<synchronous>, transform_indices = @transform_3, window_bounds = array<i64: 16, 1>}, {pipeline_mode = #tpu.pipeline_mode<synchronous>, transform_indices = @transform_4, window_bounds = array<i64: 16, 1>}, {pipeline_mode = #tpu.pipeline_mode<synchronous>, transform_indices = @transform_5, window_bounds = array<i64: 16, 256>}, {pipeline_mode = #tpu.pipeline_mode<synchronous>, transform_indices = @transform_6, window_bounds = array<i64: 16, 1>}, {pipeline_mode = #tpu.pipeline_mode<synchronous>, transform_indices = @transform_7, window_bounds = array<i64: 16, 1>}, {pipeline_mode = #tpu.pipeline_mode<synchronous>, transform_indices = @transform_8, window_bounds = array<i64: 16, 1>}, {pipeline_mode = #tpu.pipeline_mode<synchronous>, transform_indices = @transform_9, window_bounds = array<i64: 16, 256, 64>}, {pipeline_mode = #tpu.pipeline_mode<synchronous>, transform_indices = @transform_10, window_bounds = array<i64: 32, 144>}, {pipeline_mode = #tpu.pipeline_mode<synchronous>, transform_indices = @transform_11, window_bounds = array<i64: 32, 1>}, {pipeline_mode = #tpu.pipeline_mode<synchronous>, transform_indices = @transform_12, window_bounds = array<i64: 32, 1>}, {pipeline_mode = #tpu.pipeline_mode<synchronous>, transform_indices = @transform_13, window_bounds = array<i64: 32, 1>}, {pipeline_mode = #tpu.pipeline_mode<synchronous>, transform_indices = @transform_14, window_bounds = array<i64: 9, 64, 64>}, {pipeline_mode = #tpu.pipeline_mode<synchronous>, transform_indices = @transform_15, window_bounds = array<i64: 32, 288>}, {pipeline_mode = #tpu.pipeline_mode<synchronous>, transform_indices = @transform_16, window_bounds = array<i64: 32, 1>}, {pipeline_mode = #tpu.pipeline_mode<synchronous>, transform_indices = @transform_17, window_bounds = array<i64: 32, 1>}, {pipeline_mode = #tpu.pipeline_mode<synchronous>, transform_indices = @transform_18, window_bounds = array<i64: 32, 1>}, {pipeline_mode = #tpu.pipeline_mode<synchronous>, transform_indices = @transform_19, window_bounds = array<i64: 9, 64, 36>}, {transform_indices = @transform_20, window_bounds = array<i64: 1, 32, 36>}]} {
    %c0 = arith.constant 0 : index
    %c0_0 = arith.constant 0 : index
    %0 = vector.load %arg2[%c0, %c0_0] : memref<16x192xf32, #tpu.memory_space<vmem>>, vector<16x192xf32>
    %c0_1 = arith.constant 0 : index
    %c0_2 = arith.constant 0 : index
    %c0_3 = arith.constant 0 : index
    %1 = vector.load %arg1[%c0_1, %c0_2, %c0_3] : memref<1x192x256xf32, #tpu.memory_space<vmem>>, vector<1x192x256xf32>
    %2 = vector.shape_cast %1 : vector<1x192x256xf32> to vector<192x256xf32>
    %cst = arith.constant dense<0.000000e+00> : vector<16x256xf32>
    %3 = tpu.matmul %0, %2, %cst {dimension_numbers = #tpu.dot_dimension_numbers<[1], [0], [0], [1], [0, 0, 1, 1], [], []>} : vector<16x192xf32>, vector<192x256xf32>, vector<16x256xf32> -> vector<16x256xf32>
    %c0_4 = arith.constant 0 : index
    %c0_5 = arith.constant 0 : index
    %4 = vector.load %arg3[%c0_4, %c0_5] : memref<16x1xf32, #tpu.memory_space<vmem>>, vector<16x1xf32>
    %5 = vector.broadcast %4 : vector<16x1xf32> to vector<16x256xf32>
    %6 = arith.addf %3, %5 : vector<16x256xf32>
    %cst_6 = arith.constant 0.000000e+00 : f32
    %7 = vector.broadcast %cst_6 : f32 to vector<16x256xf32>
    %8 = arith.maximumf %6, %7 : vector<16x256xf32>
    %cst_7 = arith.constant dense<0.000000e+00> : vector<16xf32>
    %9 = vector.multi_reduction <add>, %8, %cst_7 [1] : vector<16x256xf32> to vector<16xf32>
    %10 = vector.shape_cast %9 : vector<16xf32> to vector<16x1xf32>
    %11 = arith.mulf %8, %8 : vector<16x256xf32>
    %cst_8 = arith.constant dense<0.000000e+00> : vector<16xf32>
    %12 = vector.multi_reduction <add>, %11, %cst_8 [1] : vector<16x256xf32> to vector<16xf32>
    %13 = vector.shape_cast %12 : vector<16xf32> to vector<16x1xf32>
    %14 = tpu.iota {dimensions = array<i32: 0>} : vector<16x1xi32>
    %c2_i32 = arith.constant 2 : i32
    %c0_i32 = arith.constant 0 : i32
    %15 = arith.cmpi eq, %c2_i32, %c0_i32 : i32
    %c1_i32 = arith.constant 1 : i32
    %16 = arith.select %15, %c1_i32, %c2_i32 : i32
    %17 = vector.broadcast %16 : i32 to vector<16x1xi32>
    %18 = arith.remsi %14, %17 : vector<16x1xi32>
    %c0_i32_9 = arith.constant 0 : i32
    %19 = vector.broadcast %c0_i32_9 : i32 to vector<16x1xi32>
    %20 = arith.cmpi ne, %18, %19 : vector<16x1xi32>
    %c0_i32_10 = arith.constant 0 : i32
    %21 = vector.broadcast %c0_i32_10 : i32 to vector<16x1xi32>
    %22 = arith.cmpi slt, %18, %21 : vector<16x1xi32>
    %c0_i32_11 = arith.constant 0 : i32
    %23 = arith.cmpi slt, %16, %c0_i32_11 : i32
    %24 = vector.broadcast %23 : i1 to vector<16x1xi1>
    %25 = vector.broadcast %24 : vector<16x1xi1> to vector<16x1xi1>
    %26 = arith.xori %22, %25 : vector<16x1xi1>
    %27 = arith.andi %26, %20 : vector<16x1xi1>
    %28 = vector.broadcast %16 : i32 to vector<16x1xi32>
    %29 = arith.addi %18, %28 : vector<16x1xi32>
    %30 = arith.select %27, %29, %18 : vector<16x1xi1>, vector<16x1xi32>
    %c0_i32_12 = arith.constant 0 : i32
    %31 = vector.broadcast %c0_i32_12 : i32 to vector<16x1xi32>
    %32 = arith.cmpi eq, %30, %31 : vector<16x1xi32>
    %c15_i32 = arith.constant 15 : i32
    %33 = tpu.dynamic_rotate %10 by %c15_i32 dim 0 : vector<16x1xf32>, i32 -> vector<16x1xf32>
    %c1_i32_13 = arith.constant 1 : i32
    %34 = tpu.dynamic_rotate %10 by %c1_i32_13 dim 0 : vector<16x1xf32>, i32 -> vector<16x1xf32>
    %35 = arith.select %32, %33, %34 : vector<16x1xi1>, vector<16x1xf32>
    %36 = arith.addf %10, %35 : vector<16x1xf32>
    %c15_i32_14 = arith.constant 15 : i32
    %37 = tpu.dynamic_rotate %13 by %c15_i32_14 dim 0 : vector<16x1xf32>, i32 -> vector<16x1xf32>
    %c1_i32_15 = arith.constant 1 : i32
    %38 = tpu.dynamic_rotate %13 by %c1_i32_15 dim 0 : vector<16x1xf32>, i32 -> vector<16x1xf32>
    %39 = arith.select %32, %37, %38 : vector<16x1xi1>, vector<16x1xf32>
    %40 = arith.addf %13, %39 : vector<16x1xf32>
    %cst_16 = arith.constant 5.120000e+02 : f32
    %41 = vector.broadcast %cst_16 : f32 to vector<16x1xf32>
    %42 = arith.divf %36, %41 : vector<16x1xf32>
    %cst_17 = arith.constant 5.120000e+02 : f32
    %43 = vector.broadcast %cst_17 : f32 to vector<16x1xf32>
    %44 = arith.divf %40, %43 : vector<16x1xf32>
    %45 = arith.mulf %42, %42 : vector<16x1xf32>
    %46 = arith.subf %44, %45 : vector<16x1xf32>
    %cst_18 = arith.constant 9.99999974E-6 : f32
    %47 = vector.broadcast %cst_18 : f32 to vector<16x1xf32>
    %48 = arith.addf %46, %47 : vector<16x1xf32>
    %49 = math.rsqrt %48 : vector<16x1xf32>
    %c0_19 = arith.constant 0 : index
    %c0_20 = arith.constant 0 : index
    %50 = vector.load %arg4[%c0_19, %c0_20] : memref<16x1xf32, #tpu.memory_space<vmem>>, vector<16x1xf32>
    %51 = arith.mulf %49, %50 : vector<16x1xf32>
    %c0_21 = arith.constant 0 : index
    %c0_22 = arith.constant 0 : index
    %52 = vector.load %arg5[%c0_21, %c0_22] : memref<16x1xf32, #tpu.memory_space<vmem>>, vector<16x1xf32>
    %53 = arith.mulf %42, %51 : vector<16x1xf32>
    %54 = arith.subf %52, %53 : vector<16x1xf32>
    %55 = vector.broadcast %51 : vector<16x1xf32> to vector<16x256xf32>
    %56 = arith.mulf %8, %55 : vector<16x256xf32>
    %57 = vector.broadcast %54 : vector<16x1xf32> to vector<16x256xf32>
    %58 = arith.addf %56, %57 : vector<16x256xf32>
    %c0_23 = arith.constant 0 : index
    %c0_24 = arith.constant 0 : index
    %c0_25 = arith.constant 0 : index
    %59 = vector.load %arg10[%c0_23, %c0_24, %c0_25] : memref<16x256x64xf32, #tpu.memory_space<vmem>>, vector<1x256x64xf32>
    %60 = vector.shape_cast %59 : vector<1x256x64xf32> to vector<256x64xf32>
    %cst_26 = arith.constant dense<0.000000e+00> : vector<16x64xf32>
    %61 = tpu.matmul %58, %60, %cst_26 {dimension_numbers = #tpu.dot_dimension_numbers<[1], [0], [0], [1], [0, 0, 1, 1], [], []>} : vector<16x256xf32>, vector<256x64xf32>, vector<16x64xf32> -> vector<16x64xf32>
    %c0_27 = arith.constant 0 : index
    %c0_28 = arith.constant 0 : index
    %62 = vector.load %arg22[%c0_27, %c0_28] : memref<256x64xf32, #tpu.memory_space<vmem>>, vector<16x64xf32>
    tpu.vector_store %arg22[%c0_27, %c0_28], %61 {strides = array<i32>} : memref<256x64xf32, #tpu.memory_space<vmem>>, vector<16x64xf32>,
    %c1 = arith.constant 1 : index
    %c0_29 = arith.constant 0 : index
    %c0_30 = arith.constant 0 : index
    %63 = vector.load %arg10[%c1, %c0_29, %c0_30] : memref<16x256x64xf32, #tpu.memory_space<vmem>>, vector<1x256x64xf32>
    %64 = vector.shape_cast %63 : vector<1x256x64xf32> to vector<256x64xf32>
    %cst_31 = arith.constant dense<0.000000e+00> : vector<16x64xf32>
    %65 = tpu.matmul %58, %64, %cst_31 {dimension_numbers = #tpu.dot_dimension_numbers<[1], [0], [0], [1], [0, 0, 1, 1], [], []>} : vector<16x256xf32>, vector<256x64xf32>, vector<16x64xf32> -> vector<16x64xf32>
    %c16 = arith.constant 16 : index
    %c0_32 = arith.constant 0 : index
    %66 = vector.load %arg22[%c16, %c0_32] : memref<256x64xf32, #tpu.memory_space<vmem>>, vector<16x64xf32>
    tpu.vector_store %arg22[%c16, %c0_32], %65 {strides = array<i32>} : memref<256x64xf32, #tpu.memory_space<vmem>>, vector<16x64xf32>,
    %c2 = arith.constant 2 : index
    %c0_33 = arith.constant 0 : index
    %c0_34 = arith.constant 0 : index
    %67 = vector.load %arg10[%c2, %c0_33, %c0_34] : memref<16x256x64xf32, #tpu.memory_space<vmem>>, vector<1x256x64xf32>
    %68 = vector.shape_cast %67 : vector<1x256x64xf32> to vector<256x64xf32>
    %cst_35 = arith.constant dense<0.000000e+00> : vector<16x64xf32>
    %69 = tpu.matmul %58, %68, %cst_35 {dimension_numbers = #tpu.dot_dimension_numbers<[1], [0], [0], [1], [0, 0, 1, 1], [], []>} : vector<16x256xf32>, vector<256x64xf32>, vector<16x64xf32> -> vector<16x64xf32>
    %c32 = arith.constant 32 : index
    %c0_36 = arith.constant 0 : index
    %70 = vector.load %arg22[%c32, %c0_36] : memref<256x64xf32, #tpu.memory_space<vmem>>, vector<16x64xf32>
    tpu.vector_store %arg22[%c32, %c0_36], %69 {strides = array<i32>} : memref<256x64xf32, #tpu.memory_space<vmem>>, vector<16x64xf32>,
    %c3 = arith.constant 3 : index
    %c0_37 = arith.constant 0 : index
    %c0_38 = arith.constant 0 : index
    %71 = vector.load %arg10[%c3, %c0_37, %c0_38] : memref<16x256x64xf32, #tpu.memory_space<vmem>>, vector<1x256x64xf32>
    %72 = vector.shape_cast %71 : vector<1x256x64xf32> to vector<256x64xf32>
    %cst_39 = arith.constant dense<0.000000e+00> : vector<16x64xf32>
    %73 = tpu.matmul %58, %72, %cst_39 {dimension_numbers = #tpu.dot_dimension_numbers<[1], [0], [0], [1], [0, 0, 1, 1], [], []>} : vector<16x256xf32>, vector<256x64xf32>, vector<16x64xf32> -> vector<16x64xf32>
    %c48 = arith.constant 48 : index
    %c0_40 = arith.constant 0 : index
    %74 = vector.load %arg22[%c48, %c0_40] : memref<256x64xf32, #tpu.memory_space<vmem>>, vector<16x64xf32>
    tpu.vector_store %arg22[%c48, %c0_40], %73 {strides = array<i32>} : memref<256x64xf32, #tpu.memory_space<vmem>>, vector<16x64xf32>,
    %c4 = arith.constant 4 : index
    %c0_41 = arith.constant 0 : index
    %c0_42 = arith.constant 0 : index
    %75 = vector.load %arg10[%c4, %c0_41, %c0_42] : memref<16x256x64xf32, #tpu.memory_space<vmem>>, vector<1x256x64xf32>
    %76 = vector.shape_cast %75 : vector<1x256x64xf32> to vector<256x64xf32>
    %cst_43 = arith.constant dense<0.000000e+00> : vector<16x64xf32>
    %77 = tpu.matmul %58, %76, %cst_43 {dimension_numbers = #tpu.dot_dimension_numbers<[1], [0], [0], [1], [0, 0, 1, 1], [], []>} : vector<16x256xf32>, vector<256x64xf32>, vector<16x64xf32> -> vector<16x64xf32>
    %c64 = arith.constant 64 : index
    %c0_44 = arith.constant 0 : index
    %78 = vector.load %arg22[%c64, %c0_44] : memref<256x64xf32, #tpu.memory_space<vmem>>, vector<16x64xf32>
    tpu.vector_store %arg22[%c64, %c0_44], %77 {strides = array<i32>} : memref<256x64xf32, #tpu.memory_space<vmem>>, vector<16x64xf32>,
    %c5 = arith.constant 5 : index
    %c0_45 = arith.constant 0 : index
    %c0_46 = arith.constant 0 : index
    %79 = vector.load %arg10[%c5, %c0_45, %c0_46] : memref<16x256x64xf32, #tpu.memory_space<vmem>>, vector<1x256x64xf32>
    %80 = vector.shape_cast %79 : vector<1x256x64xf32> to vector<256x64xf32>
    %cst_47 = arith.constant dense<0.000000e+00> : vector<16x64xf32>
    %81 = tpu.matmul %58, %80, %cst_47 {dimension_numbers = #tpu.dot_dimension_numbers<[1], [0], [0], [1], [0, 0, 1, 1], [], []>} : vector<16x256xf32>, vector<256x64xf32>, vector<16x64xf32> -> vector<16x64xf32>
    %c80 = arith.constant 80 : index
    %c0_48 = arith.constant 0 : index
    %82 = vector.load %arg22[%c80, %c0_48] : memref<256x64xf32, #tpu.memory_space<vmem>>, vector<16x64xf32>
    tpu.vector_store %arg22[%c80, %c0_48], %81 {strides = array<i32>} : memref<256x64xf32, #tpu.memory_space<vmem>>, vector<16x64xf32>,
    %c6 = arith.constant 6 : index
    %c0_49 = arith.constant 0 : index
    %c0_50 = arith.constant 0 : index
    %83 = vector.load %arg10[%c6, %c0_49, %c0_50] : memref<16x256x64xf32, #tpu.memory_space<vmem>>, vector<1x256x64xf32>
    %84 = vector.shape_cast %83 : vector<1x256x64xf32> to vector<256x64xf32>
    %cst_51 = arith.constant dense<0.000000e+00> : vector<16x64xf32>
    %85 = tpu.matmul %58, %84, %cst_51 {dimension_numbers = #tpu.dot_dimension_numbers<[1], [0], [0], [1], [0, 0, 1, 1], [], []>} : vector<16x256xf32>, vector<256x64xf32>, vector<16x64xf32> -> vector<16x64xf32>
    %c96 = arith.constant 96 : index
    %c0_52 = arith.constant 0 : index
    %86 = vector.load %arg22[%c96, %c0_52] : memref<256x64xf32, #tpu.memory_space<vmem>>, vector<16x64xf32>
    tpu.vector_store %arg22[%c96, %c0_52], %85 {strides = array<i32>} : memref<256x64xf32, #tpu.memory_space<vmem>>, vector<16x64xf32>,
    %c7 = arith.constant 7 : index
    %c0_53 = arith.constant 0 : index
    %c0_54 = arith.constant 0 : index
    %87 = vector.load %arg10[%c7, %c0_53, %c0_54] : memref<16x256x64xf32, #tpu.memory_space<vmem>>, vector<1x256x64xf32>
    %88 = vector.shape_cast %87 : vector<1x256x64xf32> to vector<256x64xf32>
    %cst_55 = arith.constant dense<0.000000e+00> : vector<16x64xf32>
    %89 = tpu.matmul %58, %88, %cst_55 {dimension_numbers = #tpu.dot_dimension_numbers<[1], [0], [0], [1], [0, 0, 1, 1], [], []>} : vector<16x256xf32>, vector<256x64xf32>, vector<16x64xf32> -> vector<16x64xf32>
    %c112 = arith.constant 112 : index
    %c0_56 = arith.constant 0 : index
    %90 = vector.load %arg22[%c112, %c0_56] : memref<256x64xf32, #tpu.memory_space<vmem>>, vector<16x64xf32>
    tpu.vector_store %arg22[%c112, %c0_56], %89 {strides = array<i32>} : memref<256x64xf32, #tpu.memory_space<vmem>>, vector<16x64xf32>,
    %c8 = arith.constant 8 : index
    %c0_57 = arith.constant 0 : index
    %c0_58 = arith.constant 0 : index
    %91 = vector.load %arg10[%c8, %c0_57, %c0_58] : memref<16x256x64xf32, #tpu.memory_space<vmem>>, vector<1x256x64xf32>
    %92 = vector.shape_cast %91 : vector<1x256x64xf32> to vector<256x64xf32>
    %cst_59 = arith.constant dense<0.000000e+00> : vector<16x64xf32>
    %93 = tpu.matmul %58, %92, %cst_59 {dimension_numbers = #tpu.dot_dimension_numbers<[1], [0], [0], [1], [0, 0, 1, 1], [], []>} : vector<16x256xf32>, vector<256x64xf32>, vector<16x64xf32> -> vector<16x64xf32>
    %c128 = arith.constant 128 : index
    %c0_60 = arith.constant 0 : index
    %94 = vector.load %arg22[%c128, %c0_60] : memref<256x64xf32, #tpu.memory_space<vmem>>, vector<16x64xf32>
    tpu.vector_store %arg22[%c128, %c0_60], %93 {strides = array<i32>} : memref<256x64xf32, #tpu.memory_space<vmem>>, vector<16x64xf32>,
    %c9 = arith.constant 9 : index
    %c0_61 = arith.constant 0 : index
    %c0_62 = arith.constant 0 : index
    %95 = vector.load %arg10[%c9, %c0_61, %c0_62] : memref<16x256x64xf32, #tpu.memory_space<vmem>>, vector<1x256x64xf32>
    %96 = vector.shape_cast %95 : vector<1x256x64xf32> to vector<256x64xf32>
    %cst_63 = arith.constant dense<0.000000e+00> : vector<16x64xf32>
    %97 = tpu.matmul %58, %96, %cst_63 {dimension_numbers = #tpu.dot_dimension_numbers<[1], [0], [0], [1], [0, 0, 1, 1], [], []>} : vector<16x256xf32>, vector<256x64xf32>, vector<16x64xf32> -> vector<16x64xf32>
    %c144 = arith.constant 144 : index
    %c0_64 = arith.constant 0 : index
    %98 = vector.load %arg22[%c144, %c0_64] : memref<256x64xf32, #tpu.memory_space<vmem>>, vector<16x64xf32>
    tpu.vector_store %arg22[%c144, %c0_64], %97 {strides = array<i32>} : memref<256x64xf32, #tpu.memory_space<vmem>>, vector<16x64xf32>,
    %c10 = arith.constant 10 : index
    %c0_65 = arith.constant 0 : index
    %c0_66 = arith.constant 0 : index
    %99 = vector.load %arg10[%c10, %c0_65, %c0_66] : memref<16x256x64xf32, #tpu.memory_space<vmem>>, vector<1x256x64xf32>
    %100 = vector.shape_cast %99 : vector<1x256x64xf32> to vector<256x64xf32>
    %cst_67 = arith.constant dense<0.000000e+00> : vector<16x64xf32>
    %101 = tpu.matmul %58, %100, %cst_67 {dimension_numbers = #tpu.dot_dimension_numbers<[1], [0], [0], [1], [0, 0, 1, 1], [], []>} : vector<16x256xf32>, vector<256x64xf32>, vector<16x64xf32> -> vector<16x64xf32>
    %c160 = arith.constant 160 : index
    %c0_68 = arith.constant 0 : index
    %102 = vector.load %arg22[%c160, %c0_68] : memref<256x64xf32, #tpu.memory_space<vmem>>, vector<16x64xf32>
    tpu.vector_store %arg22[%c160, %c0_68], %101 {strides = array<i32>} : memref<256x64xf32, #tpu.memory_space<vmem>>, vector<16x64xf32>,
    %c11 = arith.constant 11 : index
    %c0_69 = arith.constant 0 : index
    %c0_70 = arith.constant 0 : index
    %103 = vector.load %arg10[%c11, %c0_69, %c0_70] : memref<16x256x64xf32, #tpu.memory_space<vmem>>, vector<1x256x64xf32>
    %104 = vector.shape_cast %103 : vector<1x256x64xf32> to vector<256x64xf32>
    %cst_71 = arith.constant dense<0.000000e+00> : vector<16x64xf32>
    %105 = tpu.matmul %58, %104, %cst_71 {dimension_numbers = #tpu.dot_dimension_numbers<[1], [0], [0], [1], [0, 0, 1, 1], [], []>} : vector<16x256xf32>, vector<256x64xf32>, vector<16x64xf32> -> vector<16x64xf32>
    %c176 = arith.constant 176 : index
    %c0_72 = arith.constant 0 : index
    %106 = vector.load %arg22[%c176, %c0_72] : memref<256x64xf32, #tpu.memory_space<vmem>>, vector<16x64xf32>
    tpu.vector_store %arg22[%c176, %c0_72], %105 {strides = array<i32>} : memref<256x64xf32, #tpu.memory_space<vmem>>, vector<16x64xf32>,
    %c12 = arith.constant 12 : index
    %c0_73 = arith.constant 0 : index
    %c0_74 = arith.constant 0 : index
    %107 = vector.load %arg10[%c12, %c0_73, %c0_74] : memref<16x256x64xf32, #tpu.memory_space<vmem>>, vector<1x256x64xf32>
    %108 = vector.shape_cast %107 : vector<1x256x64xf32> to vector<256x64xf32>
    %cst_75 = arith.constant dense<0.000000e+00> : vector<16x64xf32>
    %109 = tpu.matmul %58, %108, %cst_75 {dimension_numbers = #tpu.dot_dimension_numbers<[1], [0], [0], [1], [0, 0, 1, 1], [], []>} : vector<16x256xf32>, vector<256x64xf32>, vector<16x64xf32> -> vector<16x64xf32>
    %c192 = arith.constant 192 : index
    %c0_76 = arith.constant 0 : index
    %110 = vector.load %arg22[%c192, %c0_76] : memref<256x64xf32, #tpu.memory_space<vmem>>, vector<16x64xf32>
    tpu.vector_store %arg22[%c192, %c0_76], %109 {strides = array<i32>} : memref<256x64xf32, #tpu.memory_space<vmem>>, vector<16x64xf32>,
    %c13 = arith.constant 13 : index
    %c0_77 = arith.constant 0 : index
    %c0_78 = arith.constant 0 : index
    %111 = vector.load %arg10[%c13, %c0_77, %c0_78] : memref<16x256x64xf32, #tpu.memory_space<vmem>>, vector<1x256x64xf32>
    %112 = vector.shape_cast %111 : vector<1x256x64xf32> to vector<256x64xf32>
    %cst_79 = arith.constant dense<0.000000e+00> : vector<16x64xf32>
    %113 = tpu.matmul %58, %112, %cst_79 {dimension_numbers = #tpu.dot_dimension_numbers<[1], [0], [0], [1], [0, 0, 1, 1], [], []>} : vector<16x256xf32>, vector<256x64xf32>, vector<16x64xf32> -> vector<16x64xf32>
    %c208 = arith.constant 208 : index
    %c0_80 = arith.constant 0 : index
    %114 = vector.load %arg22[%c208, %c0_80] : memref<256x64xf32, #tpu.memory_space<vmem>>, vector<16x64xf32>
    tpu.vector_store %arg22[%c208, %c0_80], %113 {strides = array<i32>} : memref<256x64xf32, #tpu.memory_space<vmem>>, vector<16x64xf32>,
    %c14 = arith.constant 14 : index
    %c0_81 = arith.constant 0 : index
    %c0_82 = arith.constant 0 : index
    %115 = vector.load %arg10[%c14, %c0_81, %c0_82] : memref<16x256x64xf32, #tpu.memory_space<vmem>>, vector<1x256x64xf32>
    %116 = vector.shape_cast %115 : vector<1x256x64xf32> to vector<256x64xf32>
    %cst_83 = arith.constant dense<0.000000e+00> : vector<16x64xf32>
    %117 = tpu.matmul %58, %116, %cst_83 {dimension_numbers = #tpu.dot_dimension_numbers<[1], [0], [0], [1], [0, 0, 1, 1], [], []>} : vector<16x256xf32>, vector<256x64xf32>, vector<16x64xf32> -> vector<16x64xf32>
    %c224 = arith.constant 224 : index
    %c0_84 = arith.constant 0 : index
    %118 = vector.load %arg22[%c224, %c0_84] : memref<256x64xf32, #tpu.memory_space<vmem>>, vector<16x64xf32>
    tpu.vector_store %arg22[%c224, %c0_84], %117 {strides = array<i32>} : memref<256x64xf32, #tpu.memory_space<vmem>>, vector<16x64xf32>,
    %c15 = arith.constant 15 : index
    %c0_85 = arith.constant 0 : index
    %c0_86 = arith.constant 0 : index
    %119 = vector.load %arg10[%c15, %c0_85, %c0_86] : memref<16x256x64xf32, #tpu.memory_space<vmem>>, vector<1x256x64xf32>
    %120 = vector.shape_cast %119 : vector<1x256x64xf32> to vector<256x64xf32>
    %cst_87 = arith.constant dense<0.000000e+00> : vector<16x64xf32>
    %121 = tpu.matmul %58, %120, %cst_87 {dimension_numbers = #tpu.dot_dimension_numbers<[1], [0], [0], [1], [0, 0, 1, 1], [], []>} : vector<16x256xf32>, vector<256x64xf32>, vector<16x64xf32> -> vector<16x64xf32>
    %c240 = arith.constant 240 : index
    %c0_88 = arith.constant 0 : index
    %122 = vector.load %arg22[%c240, %c0_88] : memref<256x64xf32, #tpu.memory_space<vmem>>, vector<16x64xf32>
    tpu.vector_store %arg22[%c240, %c0_88], %121 {strides = array<i32>} : memref<256x64xf32, #tpu.memory_space<vmem>>, vector<16x64xf32>,
    %c0_89 = arith.constant 0 : index
    %c0_90 = arith.constant 0 : index
    %123 = vector.load %arg6[%c0_89, %c0_90] : memref<16x256xf32, #tpu.memory_space<vmem>>, vector<16x256xf32>
    %c0_91 = arith.constant 0 : index
    %c0_92 = arith.constant 0 : index
    %124 = vector.load %arg22[%c0_91, %c0_92] : memref<256x64xf32, #tpu.memory_space<vmem>>, vector<256x64xf32>
    %cst_93 = arith.constant dense<0.000000e+00> : vector<16x64xf32>
    %125 = tpu.matmul %123, %124, %cst_93 {dimension_numbers = #tpu.dot_dimension_numbers<[1], [0], [0], [1], [0, 0, 1, 1], [], []>} : vector<16x256xf32>, vector<256x64xf32>, vector<16x64xf32> -> vector<16x64xf32>
    %c0_94 = arith.constant 0 : index
    %c0_95 = arith.constant 0 : index
    %126 = vector.load %arg7[%c0_94, %c0_95] : memref<16x1xf32, #tpu.memory_space<vmem>>, vector<16x1xf32>
    %127 = vector.broadcast %126 : vector<16x1xf32> to vector<16x64xf32>
    %128 = arith.addf %125, %127 : vector<16x64xf32>
    %cst_96 = arith.constant 0.000000e+00 : f32
    %129 = vector.broadcast %cst_96 : f32 to vector<16x64xf32>
    %130 = arith.maximumf %128, %129 : vector<16x64xf32>
    %cst_97 = arith.constant dense<0.000000e+00> : vector<16xf32>
    %131 = vector.multi_reduction <add>, %130, %cst_97 [1] : vector<16x64xf32> to vector<16xf32>
    %132 = vector.shape_cast %131 : vector<16xf32> to vector<16x1xf32>
    %133 = arith.mulf %130, %130 : vector<16x64xf32>
    %cst_98 = arith.constant dense<0.000000e+00> : vector<16xf32>
    %134 = vector.multi_reduction <add>, %133, %cst_98 [1] : vector<16x64xf32> to vector<16xf32>
    %135 = vector.shape_cast %134 : vector<16xf32> to vector<16x1xf32>
    %136 = tpu.iota {dimensions = array<i32: 0>} : vector<16x1xi32>
    %c2_i32_99 = arith.constant 2 : i32
    %c0_i32_100 = arith.constant 0 : i32
    %137 = arith.cmpi eq, %c2_i32_99, %c0_i32_100 : i32
    %c1_i32_101 = arith.constant 1 : i32
    %138 = arith.select %137, %c1_i32_101, %c2_i32_99 : i32
    %139 = vector.broadcast %138 : i32 to vector<16x1xi32>
    %140 = arith.remsi %136, %139 : vector<16x1xi32>
    %c0_i32_102 = arith.constant 0 : i32
    %141 = vector.broadcast %c0_i32_102 : i32 to vector<16x1xi32>
    %142 = arith.cmpi ne, %140, %141 : vector<16x1xi32>
    %c0_i32_103 = arith.constant 0 : i32
    %143 = vector.broadcast %c0_i32_103 : i32 to vector<16x1xi32>
    %144 = arith.cmpi slt, %140, %143 : vector<16x1xi32>
    %c0_i32_104 = arith.constant 0 : i32
    %145 = arith.cmpi slt, %138, %c0_i32_104 : i32
    %146 = vector.broadcast %145 : i1 to vector<16x1xi1>
    %147 = vector.broadcast %146 : vector<16x1xi1> to vector<16x1xi1>
    %148 = arith.xori %144, %147 : vector<16x1xi1>
    %149 = arith.andi %148, %142 : vector<16x1xi1>
    %150 = vector.broadcast %138 : i32 to vector<16x1xi32>
    %151 = arith.addi %140, %150 : vector<16x1xi32>
    %152 = arith.select %149, %151, %140 : vector<16x1xi1>, vector<16x1xi32>
    %c0_i32_105 = arith.constant 0 : i32
    %153 = vector.broadcast %c0_i32_105 : i32 to vector<16x1xi32>
    %154 = arith.cmpi eq, %152, %153 : vector<16x1xi32>
    %c15_i32_106 = arith.constant 15 : i32
    %155 = tpu.dynamic_rotate %132 by %c15_i32_106 dim 0 : vector<16x1xf32>, i32 -> vector<16x1xf32>
    %c1_i32_107 = arith.constant 1 : i32
    %156 = tpu.dynamic_rotate %132 by %c1_i32_107 dim 0 : vector<16x1xf32>, i32 -> vector<16x1xf32>
    %157 = arith.select %154, %155, %156 : vector<16x1xi1>, vector<16x1xf32>
    %158 = arith.addf %132, %157 : vector<16x1xf32>
    %c15_i32_108 = arith.constant 15 : i32
    %159 = tpu.dynamic_rotate %135 by %c15_i32_108 dim 0 : vector<16x1xf32>, i32 -> vector<16x1xf32>
    %c1_i32_109 = arith.constant 1 : i32
    %160 = tpu.dynamic_rotate %135 by %c1_i32_109 dim 0 : vector<16x1xf32>, i32 -> vector<16x1xf32>
    %161 = arith.select %154, %159, %160 : vector<16x1xi1>, vector<16x1xf32>
    %162 = arith.addf %135, %161 : vector<16x1xf32>
    %cst_110 = arith.constant 1.280000e+02 : f32
    %163 = vector.broadcast %cst_110 : f32 to vector<16x1xf32>
    %164 = arith.divf %158, %163 : vector<16x1xf32>
    %cst_111 = arith.constant 1.280000e+02 : f32
    %165 = vector.broadcast %cst_111 : f32 to vector<16x1xf32>
    %166 = arith.divf %162, %165 : vector<16x1xf32>
    %167 = arith.mulf %164, %164 : vector<16x1xf32>
    %168 = arith.subf %166, %167 : vector<16x1xf32>
    %cst_112 = arith.constant 9.99999974E-6 : f32
    %169 = vector.broadcast %cst_112 : f32 to vector<16x1xf32>
    %170 = arith.addf %168, %169 : vector<16x1xf32>
    %171 = math.rsqrt %170 : vector<16x1xf32>
    %c0_113 = arith.constant 0 : index
    %c0_114 = arith.constant 0 : index
    %172 = vector.load %arg8[%c0_113, %c0_114] : memref<16x1xf32, #tpu.memory_space<vmem>>, vector<16x1xf32>
    %173 = arith.mulf %171, %172 : vector<16x1xf32>
    %c0_115 = arith.constant 0 : index
    %c0_116 = arith.constant 0 : index
    %174 = vector.load %arg9[%c0_115, %c0_116] : memref<16x1xf32, #tpu.memory_space<vmem>>, vector<16x1xf32>
    %175 = arith.mulf %164, %173 : vector<16x1xf32>
    %176 = arith.subf %174, %175 : vector<16x1xf32>
    %177 = vector.broadcast %173 : vector<16x1xf32> to vector<16x64xf32>
    %178 = arith.mulf %130, %177 : vector<16x64xf32>
    %179 = vector.broadcast %176 : vector<16x1xf32> to vector<16x64xf32>
    %180 = arith.addf %178, %179 : vector<16x64xf32>
    %c0_117 = arith.constant 0 : index
    %c0_118 = arith.constant 0 : index
    %c0_119 = arith.constant 0 : index
    %181 = vector.load %arg15[%c0_117, %c0_118, %c0_119] : memref<9x64x64xf32, #tpu.memory_space<vmem>>, vector<1x64x64xf32>
    %182 = vector.shape_cast %181 : vector<1x64x64xf32> to vector<64x64xf32>
    %cst_120 = arith.constant dense<0.000000e+00> : vector<16x64xf32>
    %183 = tpu.matmul %180, %182, %cst_120 {dimension_numbers = #tpu.dot_dimension_numbers<[1], [0], [0], [1], [0, 0, 1, 1], [], []>} : vector<16x64xf32>, vector<64x64xf32>, vector<16x64xf32> -> vector<16x64xf32>
    %c0_121 = arith.constant 0 : index
    %c0_122 = arith.constant 0 : index
    %184 = vector.load %arg23[%c0_121, %c0_122] : memref<144x64xf32, #tpu.memory_space<vmem>>, vector<16x64xf32>
    tpu.vector_store %arg23[%c0_121, %c0_122], %183 {strides = array<i32>} : memref<144x64xf32, #tpu.memory_space<vmem>>, vector<16x64xf32>,
    %c1_123 = arith.constant 1 : index
    %c0_124 = arith.constant 0 : index
    %c0_125 = arith.constant 0 : index
    %185 = vector.load %arg15[%c1_123, %c0_124, %c0_125] : memref<9x64x64xf32, #tpu.memory_space<vmem>>, vector<1x64x64xf32>
    %186 = vector.shape_cast %185 : vector<1x64x64xf32> to vector<64x64xf32>
    %cst_126 = arith.constant dense<0.000000e+00> : vector<16x64xf32>
    %187 = tpu.matmul %180, %186, %cst_126 {dimension_numbers = #tpu.dot_dimension_numbers<[1], [0], [0], [1], [0, 0, 1, 1], [], []>} : vector<16x64xf32>, vector<64x64xf32>, vector<16x64xf32> -> vector<16x64xf32>
    %c16_127 = arith.constant 16 : index
    %c0_128 = arith.constant 0 : index
    %188 = vector.load %arg23[%c16_127, %c0_128] : memref<144x64xf32, #tpu.memory_space<vmem>>, vector<16x64xf32>
    tpu.vector_store %arg23[%c16_127, %c0_128], %187 {strides = array<i32>} : memref<144x64xf32, #tpu.memory_space<vmem>>, vector<16x64xf32>,
    %c2_129 = arith.constant 2 : index
    %c0_130 = arith.constant 0 : index
    %c0_131 = arith.constant 0 : index
    %189 = vector.load %arg15[%c2_129, %c0_130, %c0_131] : memref<9x64x64xf32, #tpu.memory_space<vmem>>, vector<1x64x64xf32>
    %190 = vector.shape_cast %189 : vector<1x64x64xf32> to vector<64x64xf32>
    %cst_132 = arith.constant dense<0.000000e+00> : vector<16x64xf32>
    %191 = tpu.matmul %180, %190, %cst_132 {dimension_numbers = #tpu.dot_dimension_numbers<[1], [0], [0], [1], [0, 0, 1, 1], [], []>} : vector<16x64xf32>, vector<64x64xf32>, vector<16x64xf32> -> vector<16x64xf32>
    %c32_133 = arith.constant 32 : index
    %c0_134 = arith.constant 0 : index
    %192 = vector.load %arg23[%c32_133, %c0_134] : memref<144x64xf32, #tpu.memory_space<vmem>>, vector<16x64xf32>
    tpu.vector_store %arg23[%c32_133, %c0_134], %191 {strides = array<i32>} : memref<144x64xf32, #tpu.memory_space<vmem>>, vector<16x64xf32>,
    %c3_135 = arith.constant 3 : index
    %c0_136 = arith.constant 0 : index
    %c0_137 = arith.constant 0 : index
    %193 = vector.load %arg15[%c3_135, %c0_136, %c0_137] : memref<9x64x64xf32, #tpu.memory_space<vmem>>, vector<1x64x64xf32>
    %194 = vector.shape_cast %193 : vector<1x64x64xf32> to vector<64x64xf32>
    %cst_138 = arith.constant dense<0.000000e+00> : vector<16x64xf32>
    %195 = tpu.matmul %180, %194, %cst_138 {dimension_numbers = #tpu.dot_dimension_numbers<[1], [0], [0], [1], [0, 0, 1, 1], [], []>} : vector<16x64xf32>, vector<64x64xf32>, vector<16x64xf32> -> vector<16x64xf32>
    %c48_139 = arith.constant 48 : index
    %c0_140 = arith.constant 0 : index
    %196 = vector.load %arg23[%c48_139, %c0_140] : memref<144x64xf32, #tpu.memory_space<vmem>>, vector<16x64xf32>
    tpu.vector_store %arg23[%c48_139, %c0_140], %195 {strides = array<i32>} : memref<144x64xf32, #tpu.memory_space<vmem>>, vector<16x64xf32>,
    %c4_141 = arith.constant 4 : index
    %c0_142 = arith.constant 0 : index
    %c0_143 = arith.constant 0 : index
    %197 = vector.load %arg15[%c4_141, %c0_142, %c0_143] : memref<9x64x64xf32, #tpu.memory_space<vmem>>, vector<1x64x64xf32>
    %198 = vector.shape_cast %197 : vector<1x64x64xf32> to vector<64x64xf32>
    %cst_144 = arith.constant dense<0.000000e+00> : vector<16x64xf32>
    %199 = tpu.matmul %180, %198, %cst_144 {dimension_numbers = #tpu.dot_dimension_numbers<[1], [0], [0], [1], [0, 0, 1, 1], [], []>} : vector<16x64xf32>, vector<64x64xf32>, vector<16x64xf32> -> vector<16x64xf32>
    %c64_145 = arith.constant 64 : index
    %c0_146 = arith.constant 0 : index
    %200 = vector.load %arg23[%c64_145, %c0_146] : memref<144x64xf32, #tpu.memory_space<vmem>>, vector<16x64xf32>
    tpu.vector_store %arg23[%c64_145, %c0_146], %199 {strides = array<i32>} : memref<144x64xf32, #tpu.memory_space<vmem>>, vector<16x64xf32>,
    %c5_147 = arith.constant 5 : index
    %c0_148 = arith.constant 0 : index
    %c0_149 = arith.constant 0 : index
    %201 = vector.load %arg15[%c5_147, %c0_148, %c0_149] : memref<9x64x64xf32, #tpu.memory_space<vmem>>, vector<1x64x64xf32>
    %202 = vector.shape_cast %201 : vector<1x64x64xf32> to vector<64x64xf32>
    %cst_150 = arith.constant dense<0.000000e+00> : vector<16x64xf32>
    %203 = tpu.matmul %180, %202, %cst_150 {dimension_numbers = #tpu.dot_dimension_numbers<[1], [0], [0], [1], [0, 0, 1, 1], [], []>} : vector<16x64xf32>, vector<64x64xf32>, vector<16x64xf32> -> vector<16x64xf32>
    %c80_151 = arith.constant 80 : index
    %c0_152 = arith.constant 0 : index
    %204 = vector.load %arg23[%c80_151, %c0_152] : memref<144x64xf32, #tpu.memory_space<vmem>>, vector<16x64xf32>
    tpu.vector_store %arg23[%c80_151, %c0_152], %203 {strides = array<i32>} : memref<144x64xf32, #tpu.memory_space<vmem>>, vector<16x64xf32>,
    %c6_153 = arith.constant 6 : index
    %c0_154 = arith.constant 0 : index
    %c0_155 = arith.constant 0 : index
    %205 = vector.load %arg15[%c6_153, %c0_154, %c0_155] : memref<9x64x64xf32, #tpu.memory_space<vmem>>, vector<1x64x64xf32>
    %206 = vector.shape_cast %205 : vector<1x64x64xf32> to vector<64x64xf32>
    %cst_156 = arith.constant dense<0.000000e+00> : vector<16x64xf32>
    %207 = tpu.matmul %180, %206, %cst_156 {dimension_numbers = #tpu.dot_dimension_numbers<[1], [0], [0], [1], [0, 0, 1, 1], [], []>} : vector<16x64xf32>, vector<64x64xf32>, vector<16x64xf32> -> vector<16x64xf32>
    %c96_157 = arith.constant 96 : index
    %c0_158 = arith.constant 0 : index
    %208 = vector.load %arg23[%c96_157, %c0_158] : memref<144x64xf32, #tpu.memory_space<vmem>>, vector<16x64xf32>
    tpu.vector_store %arg23[%c96_157, %c0_158], %207 {strides = array<i32>} : memref<144x64xf32, #tpu.memory_space<vmem>>, vector<16x64xf32>,
    %c7_159 = arith.constant 7 : index
    %c0_160 = arith.constant 0 : index
    %c0_161 = arith.constant 0 : index
    %209 = vector.load %arg15[%c7_159, %c0_160, %c0_161] : memref<9x64x64xf32, #tpu.memory_space<vmem>>, vector<1x64x64xf32>
    %210 = vector.shape_cast %209 : vector<1x64x64xf32> to vector<64x64xf32>
    %cst_162 = arith.constant dense<0.000000e+00> : vector<16x64xf32>
    %211 = tpu.matmul %180, %210, %cst_162 {dimension_numbers = #tpu.dot_dimension_numbers<[1], [0], [0], [1], [0, 0, 1, 1], [], []>} : vector<16x64xf32>, vector<64x64xf32>, vector<16x64xf32> -> vector<16x64xf32>
    %c112_163 = arith.constant 112 : index
    %c0_164 = arith.constant 0 : index
    %212 = vector.load %arg23[%c112_163, %c0_164] : memref<144x64xf32, #tpu.memory_space<vmem>>, vector<16x64xf32>
    tpu.vector_store %arg23[%c112_163, %c0_164], %211 {strides = array<i32>} : memref<144x64xf32, #tpu.memory_space<vmem>>, vector<16x64xf32>,
    %c8_165 = arith.constant 8 : index
    %c0_166 = arith.constant 0 : index
    %c0_167 = arith.constant 0 : index
    %213 = vector.load %arg15[%c8_165, %c0_166, %c0_167] : memref<9x64x64xf32, #tpu.memory_space<vmem>>, vector<1x64x64xf32>
    %214 = vector.shape_cast %213 : vector<1x64x64xf32> to vector<64x64xf32>
    %cst_168 = arith.constant dense<0.000000e+00> : vector<16x64xf32>
    %215 = tpu.matmul %180, %214, %cst_168 {dimension_numbers = #tpu.dot_dimension_numbers<[1], [0], [0], [1], [0, 0, 1, 1], [], []>} : vector<16x64xf32>, vector<64x64xf32>, vector<16x64xf32> -> vector<16x64xf32>
    %c128_169 = arith.constant 128 : index
    %c0_170 = arith.constant 0 : index
    %216 = vector.load %arg23[%c128_169, %c0_170] : memref<144x64xf32, #tpu.memory_space<vmem>>, vector<16x64xf32>
    tpu.vector_store %arg23[%c128_169, %c0_170], %215 {strides = array<i32>} : memref<144x64xf32, #tpu.memory_space<vmem>>, vector<16x64xf32>,
    %c0_171 = arith.constant 0 : index
    %c0_172 = arith.constant 0 : index
    %217 = vector.load %arg11[%c0_171, %c0_172] : memref<32x144xf32, #tpu.memory_space<vmem>>, vector<32x144xf32>
    %c0_173 = arith.constant 0 : index
    %c0_174 = arith.constant 0 : index
    %218 = vector.load %arg23[%c0_173, %c0_174] : memref<144x64xf32, #tpu.memory_space<vmem>>, vector<144x64xf32>
    %cst_175 = arith.constant dense<0.000000e+00> : vector<32x64xf32>
    %219 = tpu.matmul %217, %218, %cst_175 {dimension_numbers = #tpu.dot_dimension_numbers<[1], [0], [0], [1], [0, 0, 1, 1], [], []>} : vector<32x144xf32>, vector<144x64xf32>, vector<32x64xf32> -> vector<32x64xf32>
    %c0_176 = arith.constant 0 : index
    %c0_177 = arith.constant 0 : index
    %220 = vector.load %arg12[%c0_176, %c0_177] : memref<32x1xf32, #tpu.memory_space<vmem>>, vector<32x1xf32>
    %221 = vector.broadcast %220 : vector<32x1xf32> to vector<32x64xf32>
    %222 = arith.addf %219, %221 : vector<32x64xf32>
    %cst_178 = arith.constant 0.000000e+00 : f32
    %223 = vector.broadcast %cst_178 : f32 to vector<32x64xf32>
    %224 = arith.maximumf %222, %223 : vector<32x64xf32>
    %cst_179 = arith.constant dense<0.000000e+00> : vector<32xf32>
    %225 = vector.multi_reduction <add>, %224, %cst_179 [1] : vector<32x64xf32> to vector<32xf32>
    %226 = vector.shape_cast %225 : vector<32xf32> to vector<32x1xf32>
    %227 = arith.mulf %224, %224 : vector<32x64xf32>
    %cst_180 = arith.constant dense<0.000000e+00> : vector<32xf32>
    %228 = vector.multi_reduction <add>, %227, %cst_180 [1] : vector<32x64xf32> to vector<32xf32>
    %229 = vector.shape_cast %228 : vector<32xf32> to vector<32x1xf32>
    %230 = tpu.iota {dimensions = array<i32: 0>} : vector<32x1xi32>
    %c2_i32_181 = arith.constant 2 : i32
    %c0_i32_182 = arith.constant 0 : i32
    %231 = arith.cmpi eq, %c2_i32_181, %c0_i32_182 : i32
    %c1_i32_183 = arith.constant 1 : i32
    %232 = arith.select %231, %c1_i32_183, %c2_i32_181 : i32
    %233 = vector.broadcast %232 : i32 to vector<32x1xi32>
    %234 = arith.remsi %230, %233 : vector<32x1xi32>
    %c0_i32_184 = arith.constant 0 : i32
    %235 = vector.broadcast %c0_i32_184 : i32 to vector<32x1xi32>
    %236 = arith.cmpi ne, %234, %235 : vector<32x1xi32>
    %c0_i32_185 = arith.constant 0 : i32
    %237 = vector.broadcast %c0_i32_185 : i32 to vector<32x1xi32>
    %238 = arith.cmpi slt, %234, %237 : vector<32x1xi32>
    %c0_i32_186 = arith.constant 0 : i32
    %239 = arith.cmpi slt, %232, %c0_i32_186 : i32
    %240 = vector.broadcast %239 : i1 to vector<32x1xi1>
    %241 = vector.broadcast %240 : vector<32x1xi1> to vector<32x1xi1>
    %242 = arith.xori %238, %241 : vector<32x1xi1>
    %243 = arith.andi %242, %236 : vector<32x1xi1>
    %244 = vector.broadcast %232 : i32 to vector<32x1xi32>
    %245 = arith.addi %234, %244 : vector<32x1xi32>
    %246 = arith.select %243, %245, %234 : vector<32x1xi1>, vector<32x1xi32>
    %c0_i32_187 = arith.constant 0 : i32
    %247 = vector.broadcast %c0_i32_187 : i32 to vector<32x1xi32>
    %248 = arith.cmpi eq, %246, %247 : vector<32x1xi32>
    %c31_i32 = arith.constant 31 : i32
    %249 = tpu.dynamic_rotate %226 by %c31_i32 dim 0 : vector<32x1xf32>, i32 -> vector<32x1xf32>
    %c1_i32_188 = arith.constant 1 : i32
    %250 = tpu.dynamic_rotate %226 by %c1_i32_188 dim 0 : vector<32x1xf32>, i32 -> vector<32x1xf32>
    %251 = arith.select %248, %249, %250 : vector<32x1xi1>, vector<32x1xf32>
    %252 = arith.addf %226, %251 : vector<32x1xf32>
    %c31_i32_189 = arith.constant 31 : i32
    %253 = tpu.dynamic_rotate %229 by %c31_i32_189 dim 0 : vector<32x1xf32>, i32 -> vector<32x1xf32>
    %c1_i32_190 = arith.constant 1 : i32
    %254 = tpu.dynamic_rotate %229 by %c1_i32_190 dim 0 : vector<32x1xf32>, i32 -> vector<32x1xf32>
    %255 = arith.select %248, %253, %254 : vector<32x1xi1>, vector<32x1xf32>
    %256 = arith.addf %229, %255 : vector<32x1xf32>
    %cst_191 = arith.constant 1.280000e+02 : f32
    %257 = vector.broadcast %cst_191 : f32 to vector<32x1xf32>
    %258 = arith.divf %252, %257 : vector<32x1xf32>
    %cst_192 = arith.constant 1.280000e+02 : f32
    %259 = vector.broadcast %cst_192 : f32 to vector<32x1xf32>
    %260 = arith.divf %256, %259 : vector<32x1xf32>
    %261 = arith.mulf %258, %258 : vector<32x1xf32>
    %262 = arith.subf %260, %261 : vector<32x1xf32>
    %cst_193 = arith.constant 9.99999974E-6 : f32
    %263 = vector.broadcast %cst_193 : f32 to vector<32x1xf32>
    %264 = arith.addf %262, %263 : vector<32x1xf32>
    %265 = math.rsqrt %264 : vector<32x1xf32>
    %c0_194 = arith.constant 0 : index
    %c0_195 = arith.constant 0 : index
    %266 = vector.load %arg13[%c0_194, %c0_195] : memref<32x1xf32, #tpu.memory_space<vmem>>, vector<32x1xf32>
    %267 = arith.mulf %265, %266 : vector<32x1xf32>
    %c0_196 = arith.constant 0 : index
    %c0_197 = arith.constant 0 : index
    %268 = vector.load %arg14[%c0_196, %c0_197] : memref<32x1xf32, #tpu.memory_space<vmem>>, vector<32x1xf32>
    %269 = arith.mulf %258, %267 : vector<32x1xf32>
    %270 = arith.subf %268, %269 : vector<32x1xf32>
    %271 = vector.broadcast %267 : vector<32x1xf32> to vector<32x64xf32>
    %272 = arith.mulf %224, %271 : vector<32x64xf32>
    %273 = vector.broadcast %270 : vector<32x1xf32> to vector<32x64xf32>
    %274 = arith.addf %272, %273 : vector<32x64xf32>
    %c0_198 = arith.constant 0 : index
    %c0_199 = arith.constant 0 : index
    %c0_200 = arith.constant 0 : index
    %275 = vector.load %arg20[%c0_198, %c0_199, %c0_200] : memref<9x64x36xf32, #tpu.memory_space<vmem>>, vector<1x64x36xf32>
    %276 = vector.shape_cast %275 : vector<1x64x36xf32> to vector<64x36xf32>
    %cst_201 = arith.constant dense<0.000000e+00> : vector<32x36xf32>
    %277 = tpu.matmul %274, %276, %cst_201 {dimension_numbers = #tpu.dot_dimension_numbers<[1], [0], [0], [1], [0, 0, 1, 1], [], []>} : vector<32x64xf32>, vector<64x36xf32>, vector<32x36xf32> -> vector<32x36xf32>
    %c0_202 = arith.constant 0 : index
    %c0_203 = arith.constant 0 : index
    %278 = vector.load %arg24[%c0_202, %c0_203] : memref<288x36xf32, #tpu.memory_space<vmem>>, vector<32x36xf32>
    tpu.vector_store %arg24[%c0_202, %c0_203], %277 {strides = array<i32>} : memref<288x36xf32, #tpu.memory_space<vmem>>, vector<32x36xf32>,
    %c1_204 = arith.constant 1 : index
    %c0_205 = arith.constant 0 : index
    %c0_206 = arith.constant 0 : index
    %279 = vector.load %arg20[%c1_204, %c0_205, %c0_206] : memref<9x64x36xf32, #tpu.memory_space<vmem>>, vector<1x64x36xf32>
    %280 = vector.shape_cast %279 : vector<1x64x36xf32> to vector<64x36xf32>
    %cst_207 = arith.constant dense<0.000000e+00> : vector<32x36xf32>
    %281 = tpu.matmul %274, %280, %cst_207 {dimension_numbers = #tpu.dot_dimension_numbers<[1], [0], [0], [1], [0, 0, 1, 1], [], []>} : vector<32x64xf32>, vector<64x36xf32>, vector<32x36xf32> -> vector<32x36xf32>
    %c32_208 = arith.constant 32 : index
    %c0_209 = arith.constant 0 : index
    %282 = vector.load %arg24[%c32_208, %c0_209] : memref<288x36xf32, #tpu.memory_space<vmem>>, vector<32x36xf32>
    tpu.vector_store %arg24[%c32_208, %c0_209], %281 {strides = array<i32>} : memref<288x36xf32, #tpu.memory_space<vmem>>, vector<32x36xf32>,
    %c2_210 = arith.constant 2 : index
    %c0_211 = arith.constant 0 : index
    %c0_212 = arith.constant 0 : index
    %283 = vector.load %arg20[%c2_210, %c0_211, %c0_212] : memref<9x64x36xf32, #tpu.memory_space<vmem>>, vector<1x64x36xf32>
    %284 = vector.shape_cast %283 : vector<1x64x36xf32> to vector<64x36xf32>
    %cst_213 = arith.constant dense<0.000000e+00> : vector<32x36xf32>
    %285 = tpu.matmul %274, %284, %cst_213 {dimension_numbers = #tpu.dot_dimension_numbers<[1], [0], [0], [1], [0, 0, 1, 1], [], []>} : vector<32x64xf32>, vector<64x36xf32>, vector<32x36xf32> -> vector<32x36xf32>
    %c64_214 = arith.constant 64 : index
    %c0_215 = arith.constant 0 : index
    %286 = vector.load %arg24[%c64_214, %c0_215] : memref<288x36xf32, #tpu.memory_space<vmem>>, vector<32x36xf32>
    tpu.vector_store %arg24[%c64_214, %c0_215], %285 {strides = array<i32>} : memref<288x36xf32, #tpu.memory_space<vmem>>, vector<32x36xf32>,
    %c3_216 = arith.constant 3 : index
    %c0_217 = arith.constant 0 : index
    %c0_218 = arith.constant 0 : index
    %287 = vector.load %arg20[%c3_216, %c0_217, %c0_218] : memref<9x64x36xf32, #tpu.memory_space<vmem>>, vector<1x64x36xf32>
    %288 = vector.shape_cast %287 : vector<1x64x36xf32> to vector<64x36xf32>
    %cst_219 = arith.constant dense<0.000000e+00> : vector<32x36xf32>
    %289 = tpu.matmul %274, %288, %cst_219 {dimension_numbers = #tpu.dot_dimension_numbers<[1], [0], [0], [1], [0, 0, 1, 1], [], []>} : vector<32x64xf32>, vector<64x36xf32>, vector<32x36xf32> -> vector<32x36xf32>
    %c96_220 = arith.constant 96 : index
    %c0_221 = arith.constant 0 : index
    %290 = vector.load %arg24[%c96_220, %c0_221] : memref<288x36xf32, #tpu.memory_space<vmem>>, vector<32x36xf32>
    tpu.vector_store %arg24[%c96_220, %c0_221], %289 {strides = array<i32>} : memref<288x36xf32, #tpu.memory_space<vmem>>, vector<32x36xf32>,
    %c4_222 = arith.constant 4 : index
    %c0_223 = arith.constant 0 : index
    %c0_224 = arith.constant 0 : index
    %291 = vector.load %arg20[%c4_222, %c0_223, %c0_224] : memref<9x64x36xf32, #tpu.memory_space<vmem>>, vector<1x64x36xf32>
    %292 = vector.shape_cast %291 : vector<1x64x36xf32> to vector<64x36xf32>
    %cst_225 = arith.constant dense<0.000000e+00> : vector<32x36xf32>
    %293 = tpu.matmul %274, %292, %cst_225 {dimension_numbers = #tpu.dot_dimension_numbers<[1], [0], [0], [1], [0, 0, 1, 1], [], []>} : vector<32x64xf32>, vector<64x36xf32>, vector<32x36xf32> -> vector<32x36xf32>
    %c128_226 = arith.constant 128 : index
    %c0_227 = arith.constant 0 : index
    %294 = vector.load %arg24[%c128_226, %c0_227] : memref<288x36xf32, #tpu.memory_space<vmem>>, vector<32x36xf32>
    tpu.vector_store %arg24[%c128_226, %c0_227], %293 {strides = array<i32>} : memref<288x36xf32, #tpu.memory_space<vmem>>, vector<32x36xf32>,
    %c5_228 = arith.constant 5 : index
    %c0_229 = arith.constant 0 : index
    %c0_230 = arith.constant 0 : index
    %295 = vector.load %arg20[%c5_228, %c0_229, %c0_230] : memref<9x64x36xf32, #tpu.memory_space<vmem>>, vector<1x64x36xf32>
    %296 = vector.shape_cast %295 : vector<1x64x36xf32> to vector<64x36xf32>
    %cst_231 = arith.constant dense<0.000000e+00> : vector<32x36xf32>
    %297 = tpu.matmul %274, %296, %cst_231 {dimension_numbers = #tpu.dot_dimension_numbers<[1], [0], [0], [1], [0, 0, 1, 1], [], []>} : vector<32x64xf32>, vector<64x36xf32>, vector<32x36xf32> -> vector<32x36xf32>
    %c160_232 = arith.constant 160 : index
    %c0_233 = arith.constant 0 : index
    %298 = vector.load %arg24[%c160_232, %c0_233] : memref<288x36xf32, #tpu.memory_space<vmem>>, vector<32x36xf32>
    tpu.vector_store %arg24[%c160_232, %c0_233], %297 {strides = array<i32>} : memref<288x36xf32, #tpu.memory_space<vmem>>, vector<32x36xf32>,
    %c6_234 = arith.constant 6 : index
    %c0_235 = arith.constant 0 : index
    %c0_236 = arith.constant 0 : index
    %299 = vector.load %arg20[%c6_234, %c0_235, %c0_236] : memref<9x64x36xf32, #tpu.memory_space<vmem>>, vector<1x64x36xf32>
    %300 = vector.shape_cast %299 : vector<1x64x36xf32> to vector<64x36xf32>
    %cst_237 = arith.constant dense<0.000000e+00> : vector<32x36xf32>
    %301 = tpu.matmul %274, %300, %cst_237 {dimension_numbers = #tpu.dot_dimension_numbers<[1], [0], [0], [1], [0, 0, 1, 1], [], []>} : vector<32x64xf32>, vector<64x36xf32>, vector<32x36xf32> -> vector<32x36xf32>
    %c192_238 = arith.constant 192 : index
    %c0_239 = arith.constant 0 : index
    %302 = vector.load %arg24[%c192_238, %c0_239] : memref<288x36xf32, #tpu.memory_space<vmem>>, vector<32x36xf32>
    tpu.vector_store %arg24[%c192_238, %c0_239], %301 {strides = array<i32>} : memref<288x36xf32, #tpu.memory_space<vmem>>, vector<32x36xf32>,
    %c7_240 = arith.constant 7 : index
    %c0_241 = arith.constant 0 : index
    %c0_242 = arith.constant 0 : index
    %303 = vector.load %arg20[%c7_240, %c0_241, %c0_242] : memref<9x64x36xf32, #tpu.memory_space<vmem>>, vector<1x64x36xf32>
    %304 = vector.shape_cast %303 : vector<1x64x36xf32> to vector<64x36xf32>
    %cst_243 = arith.constant dense<0.000000e+00> : vector<32x36xf32>
    %305 = tpu.matmul %274, %304, %cst_243 {dimension_numbers = #tpu.dot_dimension_numbers<[1], [0], [0], [1], [0, 0, 1, 1], [], []>} : vector<32x64xf32>, vector<64x36xf32>, vector<32x36xf32> -> vector<32x36xf32>
    %c224_244 = arith.constant 224 : index
    %c0_245 = arith.constant 0 : index
    %306 = vector.load %arg24[%c224_244, %c0_245] : memref<288x36xf32, #tpu.memory_space<vmem>>, vector<32x36xf32>
    tpu.vector_store %arg24[%c224_244, %c0_245], %305 {strides = array<i32>} : memref<288x36xf32, #tpu.memory_space<vmem>>, vector<32x36xf32>,
    %c8_246 = arith.constant 8 : index
    %c0_247 = arith.constant 0 : index
    %c0_248 = arith.constant 0 : index
    %307 = vector.load %arg20[%c8_246, %c0_247, %c0_248] : memref<9x64x36xf32, #tpu.memory_space<vmem>>, vector<1x64x36xf32>
    %308 = vector.shape_cast %307 : vector<1x64x36xf32> to vector<64x36xf32>
    %cst_249 = arith.constant dense<0.000000e+00> : vector<32x36xf32>
    %309 = tpu.matmul %274, %308, %cst_249 {dimension_numbers = #tpu.dot_dimension_numbers<[1], [0], [0], [1], [0, 0, 1, 1], [], []>} : vector<32x64xf32>, vector<64x36xf32>, vector<32x36xf32> -> vector<32x36xf32>
    %c256 = arith.constant 256 : index
    %c0_250 = arith.constant 0 : index
    %310 = vector.load %arg24[%c256, %c0_250] : memref<288x36xf32, #tpu.memory_space<vmem>>, vector<32x36xf32>
    tpu.vector_store %arg24[%c256, %c0_250], %309 {strides = array<i32>} : memref<288x36xf32, #tpu.memory_space<vmem>>, vector<32x36xf32>,
    %c0_251 = arith.constant 0 : index
    %c0_252 = arith.constant 0 : index
    %311 = vector.load %arg16[%c0_251, %c0_252] : memref<32x288xf32, #tpu.memory_space<vmem>>, vector<32x288xf32>
    %c0_253 = arith.constant 0 : index
    %c0_254 = arith.constant 0 : index
    %312 = vector.load %arg24[%c0_253, %c0_254] : memref<288x36xf32, #tpu.memory_space<vmem>>, vector<288x36xf32>
    %cst_255 = arith.constant dense<0.000000e+00> : vector<32x36xf32>
    %313 = tpu.matmul %311, %312, %cst_255 {dimension_numbers = #tpu.dot_dimension_numbers<[1], [0], [0], [1], [0, 0, 1, 1], [], []>} : vector<32x288xf32>, vector<288x36xf32>, vector<32x36xf32> -> vector<32x36xf32>
    %c0_256 = arith.constant 0 : index
    %c0_257 = arith.constant 0 : index
    %314 = vector.load %arg17[%c0_256, %c0_257] : memref<32x1xf32, #tpu.memory_space<vmem>>, vector<32x1xf32>
    %315 = vector.broadcast %314 : vector<32x1xf32> to vector<32x36xf32>
    %316 = arith.addf %313, %315 : vector<32x36xf32>
    %cst_258 = arith.constant 0.000000e+00 : f32
    %317 = vector.broadcast %cst_258 : f32 to vector<32x36xf32>
    %318 = arith.maximumf %316, %317 : vector<32x36xf32>
    %cst_259 = arith.constant dense<0.000000e+00> : vector<32xf32>
    %319 = vector.multi_reduction <add>, %318, %cst_259 [1] : vector<32x36xf32> to vector<32xf32>
    %320 = vector.shape_cast %319 : vector<32xf32> to vector<32x1xf32>
    %321 = arith.mulf %318, %318 : vector<32x36xf32>
    %cst_260 = arith.constant dense<0.000000e+00> : vector<32xf32>
    %322 = vector.multi_reduction <add>, %321, %cst_260 [1] : vector<32x36xf32> to vector<32xf32>
    %323 = vector.shape_cast %322 : vector<32xf32> to vector<32x1xf32>
    %324 = tpu.iota {dimensions = array<i32: 0>} : vector<32x1xi32>
    %c2_i32_261 = arith.constant 2 : i32
    %c0_i32_262 = arith.constant 0 : i32
    %325 = arith.cmpi eq, %c2_i32_261, %c0_i32_262 : i32
    %c1_i32_263 = arith.constant 1 : i32
    %326 = arith.select %325, %c1_i32_263, %c2_i32_261 : i32
    %327 = vector.broadcast %326 : i32 to vector<32x1xi32>
    %328 = arith.remsi %324, %327 : vector<32x1xi32>
    %c0_i32_264 = arith.constant 0 : i32
    %329 = vector.broadcast %c0_i32_264 : i32 to vector<32x1xi32>
    %330 = arith.cmpi ne, %328, %329 : vector<32x1xi32>
    %c0_i32_265 = arith.constant 0 : i32
    %331 = vector.broadcast %c0_i32_265 : i32 to vector<32x1xi32>
    %332 = arith.cmpi slt, %328, %331 : vector<32x1xi32>
    %c0_i32_266 = arith.constant 0 : i32
    %333 = arith.cmpi slt, %326, %c0_i32_266 : i32
    %334 = vector.broadcast %333 : i1 to vector<32x1xi1>
    %335 = vector.broadcast %334 : vector<32x1xi1> to vector<32x1xi1>
    %336 = arith.xori %332, %335 : vector<32x1xi1>
    %337 = arith.andi %336, %330 : vector<32x1xi1>
    %338 = vector.broadcast %326 : i32 to vector<32x1xi32>
    %339 = arith.addi %328, %338 : vector<32x1xi32>
    %340 = arith.select %337, %339, %328 : vector<32x1xi1>, vector<32x1xi32>
    %c0_i32_267 = arith.constant 0 : i32
    %341 = vector.broadcast %c0_i32_267 : i32 to vector<32x1xi32>
    %342 = arith.cmpi eq, %340, %341 : vector<32x1xi32>
    %c31_i32_268 = arith.constant 31 : i32
    %343 = tpu.dynamic_rotate %320 by %c31_i32_268 dim 0 : vector<32x1xf32>, i32 -> vector<32x1xf32>
    %c1_i32_269 = arith.constant 1 : i32
    %344 = tpu.dynamic_rotate %320 by %c1_i32_269 dim 0 : vector<32x1xf32>, i32 -> vector<32x1xf32>
    %345 = arith.select %342, %343, %344 : vector<32x1xi1>, vector<32x1xf32>
    %346 = arith.addf %320, %345 : vector<32x1xf32>
    %c31_i32_270 = arith.constant 31 : i32
    %347 = tpu.dynamic_rotate %323 by %c31_i32_270 dim 0 : vector<32x1xf32>, i32 -> vector<32x1xf32>
    %c1_i32_271 = arith.constant 1 : i32
    %348 = tpu.dynamic_rotate %323 by %c1_i32_271 dim 0 : vector<32x1xf32>, i32 -> vector<32x1xf32>
    %349 = arith.select %342, %347, %348 : vector<32x1xi1>, vector<32x1xf32>
    %350 = arith.addf %323, %349 : vector<32x1xf32>
    %cst_272 = arith.constant 7.200000e+01 : f32
    %351 = vector.broadcast %cst_272 : f32 to vector<32x1xf32>
    %352 = arith.divf %346, %351 : vector<32x1xf32>
    %cst_273 = arith.constant 7.200000e+01 : f32
    %353 = vector.broadcast %cst_273 : f32 to vector<32x1xf32>
    %354 = arith.divf %350, %353 : vector<32x1xf32>
    %355 = arith.mulf %352, %352 : vector<32x1xf32>
    %356 = arith.subf %354, %355 : vector<32x1xf32>
    %cst_274 = arith.constant 9.99999974E-6 : f32
    %357 = vector.broadcast %cst_274 : f32 to vector<32x1xf32>
    %358 = arith.addf %356, %357 : vector<32x1xf32>
    %359 = math.rsqrt %358 : vector<32x1xf32>
    %c0_275 = arith.constant 0 : index
    %c0_276 = arith.constant 0 : index
    %360 = vector.load %arg18[%c0_275, %c0_276] : memref<32x1xf32, #tpu.memory_space<vmem>>, vector<32x1xf32>
    %361 = arith.mulf %359, %360 : vector<32x1xf32>
    %c0_277 = arith.constant 0 : index
    %c0_278 = arith.constant 0 : index
    %362 = vector.load %arg19[%c0_277, %c0_278] : memref<32x1xf32, #tpu.memory_space<vmem>>, vector<32x1xf32>
    %363 = arith.mulf %352, %361 : vector<32x1xf32>
    %364 = arith.subf %362, %363 : vector<32x1xf32>
    %365 = vector.broadcast %361 : vector<32x1xf32> to vector<32x36xf32>
    %366 = arith.mulf %318, %365 : vector<32x36xf32>
    %367 = vector.broadcast %364 : vector<32x1xf32> to vector<32x36xf32>
    %368 = arith.addf %366, %367 : vector<32x36xf32>
    %c0_279 = arith.constant 0 : index
    %c0_280 = arith.constant 0 : index
    %c0_281 = arith.constant 0 : index
    %369 = vector.load %arg21[%c0_279, %c0_280, %c0_281] : memref<1x32x36xf32, #tpu.memory_space<vmem>>, vector<1x32x36xf32>
    %370 = vector.shape_cast %369 : vector<1x32x36xf32> to vector<32x36xf32>
    %371 = vector.shape_cast %368 : vector<32x36xf32> to vector<1x32x36xf32>
    tpu.vector_store %arg21[%c0_279, %c0_280, %c0_281], %371 {strides = array<i32>} : memref<1x32x36xf32, #tpu.memory_space<vmem>>, vector<1x32x36xf32>,
    return
  }
  func.func @transform_0(%arg0: i32) -> (i32, i32, i32) {
    %c0_i32 = arith.constant 0 : i32
    %c0_i32_0 = arith.constant 0 : i32
    %c0_i32_1 = arith.constant 0 : i32
    return %arg0, %c0_i32, %c0_i32_0 : i32, i32, i32
  }
  func.func @transform_1(%arg0: i32) -> (i32, i32) {
    %c0_i32 = arith.constant 0 : i32
    %c0_i32_0 = arith.constant 0 : i32
    %c0_i32_1 = arith.constant 0 : i32
    return %c0_i32, %c0_i32_0 : i32, i32
  }
  func.func @transform_2(%arg0: i32) -> (i32, i32) {
    %c0_i32 = arith.constant 0 : i32
    %c0_i32_0 = arith.constant 0 : i32
    %c0_i32_1 = arith.constant 0 : i32
    return %c0_i32, %c0_i32_0 : i32, i32
  }
  func.func @transform_3(%arg0: i32) -> (i32, i32) {
    %c0_i32 = arith.constant 0 : i32
    %c0_i32_0 = arith.constant 0 : i32
    %c0_i32_1 = arith.constant 0 : i32
    return %c0_i32, %c0_i32_0 : i32, i32
  }
  func.func @transform_4(%arg0: i32) -> (i32, i32) {
    %c0_i32 = arith.constant 0 : i32
    %c0_i32_0 = arith.constant 0 : i32
    %c0_i32_1 = arith.constant 0 : i32
    return %c0_i32, %c0_i32_0 : i32, i32
  }
  func.func @transform_5(%arg0: i32) -> (i32, i32) {
    %c0_i32 = arith.constant 0 : i32
    %c0_i32_0 = arith.constant 0 : i32
    %c0_i32_1 = arith.constant 0 : i32
    return %c0_i32, %c0_i32_0 : i32, i32
  }
  func.func @transform_6(%arg0: i32) -> (i32, i32) {
    %c0_i32 = arith.constant 0 : i32
    %c0_i32_0 = arith.constant 0 : i32
    %c0_i32_1 = arith.constant 0 : i32
    return %c0_i32, %c0_i32_0 : i32, i32
  }
  func.func @transform_7(%arg0: i32) -> (i32, i32) {
    %c0_i32 = arith.constant 0 : i32
    %c0_i32_0 = arith.constant 0 : i32
    %c0_i32_1 = arith.constant 0 : i32
    return %c0_i32, %c0_i32_0 : i32, i32
  }
  func.func @transform_8(%arg0: i32) -> (i32, i32) {
    %c0_i32 = arith.constant 0 : i32
    %c0_i32_0 = arith.constant 0 : i32
    %c0_i32_1 = arith.constant 0 : i32
    return %c0_i32, %c0_i32_0 : i32, i32
  }
  func.func @transform_9(%arg0: i32) -> (i32, i32, i32) {
    %c0_i32 = arith.constant 0 : i32
    %c0_i32_0 = arith.constant 0 : i32
    %c0_i32_1 = arith.constant 0 : i32
    %c0_i32_2 = arith.constant 0 : i32
    return %c0_i32, %c0_i32_0, %c0_i32_1 : i32, i32, i32
  }
  func.func @transform_10(%arg0: i32) -> (i32, i32) {
    %c0_i32 = arith.constant 0 : i32
    %c0_i32_0 = arith.constant 0 : i32
    %c0_i32_1 = arith.constant 0 : i32
    return %c0_i32, %c0_i32_0 : i32, i32
  }
  func.func @transform_11(%arg0: i32) -> (i32, i32) {
    %c0_i32 = arith.constant 0 : i32
    %c0_i32_0 = arith.constant 0 : i32
    %c0_i32_1 = arith.constant 0 : i32
    return %c0_i32, %c0_i32_0 : i32, i32
  }
  func.func @transform_12(%arg0: i32) -> (i32, i32) {
    %c0_i32 = arith.constant 0 : i32
    %c0_i32_0 = arith.constant 0 : i32
    %c0_i32_1 = arith.constant 0 : i32
    return %c0_i32, %c0_i32_0 : i32, i32
  }
  func.func @transform_13(%arg0: i32) -> (i32, i32) {
    %c0_i32 = arith.constant 0 : i32
    %c0_i32_0 = arith.constant 0 : i32
    %c0_i32_1 = arith.constant 0 : i32
    return %c0_i32, %c0_i32_0 : i32, i32
  }
  func.func @transform_14(%arg0: i32) -> (i32, i32, i32) {
    %c0_i32 = arith.constant 0 : i32
    %c0_i32_0 = arith.constant 0 : i32
    %c0_i32_1 = arith.constant 0 : i32
    %c0_i32_2 = arith.constant 0 : i32
    return %c0_i32, %c0_i32_0, %c0_i32_1 : i32, i32, i32
  }
  func.func @transform_15(%arg0: i32) -> (i32, i32) {
    %c0_i32 = arith.constant 0 : i32
    %c0_i32_0 = arith.constant 0 : i32
    %c0_i32_1 = arith.constant 0 : i32
    return %c0_i32, %c0_i32_0 : i32, i32
  }
  func.func @transform_16(%arg0: i32) -> (i32, i32) {
    %c0_i32 = arith.constant 0 : i32
    %c0_i32_0 = arith.constant 0 : i32
    %c0_i32_1 = arith.constant 0 : i32
    return %c0_i32, %c0_i32_0 : i32, i32
  }
  func.func @transform_17(%arg0: i32) -> (i32, i32) {
    %c0_i32 = arith.constant 0 : i32
    %c0_i32_0 = arith.constant 0 : i32
    %c0_i32_1 = arith.constant 0 : i32
    return %c0_i32, %c0_i32_0 : i32, i32
  }
  func.func @transform_18(%arg0: i32) -> (i32, i32) {
    %c0_i32 = arith.constant 0 : i32
    %c0_i32_0 = arith.constant 0 : i32
    %c0_i32_1 = arith.constant 0 : i32
    return %c0_i32, %c0_i32_0 : i32, i32
  }
  func.func @transform_19(%arg0: i32) -> (i32, i32, i32) {
    %c0_i32 = arith.constant 0 : i32
    %c0_i32_0 = arith.constant 0 : i32
    %c0_i32_1 = arith.constant 0 : i32
    %c0_i32_2 = arith.constant 0 : i32
    return %c0_i32, %c0_i32_0, %c0_i32_1 : i32, i32, i32
  }
  func.func @transform_20(%arg0: i32) -> (i32, i32, i32) {
    %c0_i32 = arith.constant 0 : i32
    %c0_i32_0 = arith.constant 0 : i32
    %c0_i32_1 = arith.constant 0 : i32
    return %arg0, %c0_i32, %c0_i32_0 : i32, i32, i32
  }
}

</mosaic_0001>

<llo_original>
// kernel: _lambda_.1
$region0: #{_lambda_.1}
  #allocation0 [shape = 'u32[]', space=smem, size = 0x4, offset = 0x4, fixed_abs, tag = 'smem constant byte address 0x4 - core index']
  #allocation1 [shape = 'u32[144,128]{1,0:T(1,128)}', space=vmem, size = 0x12000, scoped, tag = 'internal scratch']
  #allocation2 [shape = 'f32[256,64]{1,0:T(8,128)}', space=vmem, size = 0x20000, scoped, tag = 'scratch operand']
  #allocation3 [shape = 'f32[144,64]{1,0:T(8,128)}', space=vmem, size = 0x12000, scoped, tag = 'scratch operand']
  #allocation4 [shape = 'f32[288,36]{1,0:T(8,128)}', space=vmem, size = 0x24000, scoped, tag = 'scratch operand']
  %s0 = inlined_call_operand.vmem [shape: f32[2,192,256], index: 0, kind: input, shape index: {}]
  %s1 = inlined_call_operand.vmem [shape: f32[16,192], index: 1, kind: input, shape index: {}]
  %s2 = inlined_call_operand.vmem [shape: f32[16,1], index: 2, kind: input, shape index: {}]
  %s3 = inlined_call_operand.vmem [shape: f32[16,1], index: 3, kind: input, shape index: {}, may-alias: {3,7}]
  %s4 = inlined_call_operand.vmem [shape: f32[16,1], index: 4, kind: input, shape index: {}, may-alias: {4,8}]
  %s5 = inlined_call_operand.vmem [shape: f32[16,256], index: 5, kind: input, shape index: {}]
  %s6 = inlined_call_operand.vmem [shape: f32[16,1], index: 6, kind: input, shape index: {}]
  %s7 = inlined_call_operand.vmem [shape: f32[16,1], index: 7, kind: input, shape index: {}, may-alias: {3,7}]
  %s8 = inlined_call_operand.vmem [shape: f32[16,1], index: 8, kind: input, shape index: {}, may-alias: {4,8}]
  %s9 = inlined_call_operand.vmem [shape: f32[16,256,64], index: 9, kind: input, shape index: {}]
  %s10 = inlined_call_operand.vmem [shape: f32[32,144], index: 10, kind: input, shape index: {}]
  %s11 = inlined_call_operand.vmem [shape: f32[32,1], index: 11, kind: input, shape index: {}]
  %s12 = inlined_call_operand.vmem [shape: f32[32,1], index: 12, kind: input, shape index: {}, may-alias: {12,17}]
  %s13 = inlined_call_operand.vmem [shape: f32[32,1], index: 13, kind: input, shape index: {}, may-alias: {13,18}]
  %s14 = inlined_call_operand.vmem [shape: f32[9,64,64], index: 14, kind: input, shape index: {}]
  %s15 = inlined_call_operand.vmem [shape: f32[32,288], index: 15, kind: input, shape index: {}]
  %s16 = inlined_call_operand.vmem [shape: f32[32,1], index: 16, kind: input, shape index: {}]
  %s17 = inlined_call_operand.vmem [shape: f32[32,1], index: 17, kind: input, shape index: {}, may-alias: {12,17}]
  %s18 = inlined_call_operand.vmem [shape: f32[32,1], index: 18, kind: input, shape index: {}, may-alias: {13,18}]
  %s19 = inlined_call_operand.vmem [shape: f32[9,64,36], index: 19, kind: input, shape index: {}]
  %s20 = inlined_call_operand.vmem [shape: f32[2,32,36], index: 20, kind: output, shape index: {}]
  %s21 = sld [smem:[#allocation0]]
  $region113: #{_lambda_.1} parent=0
    _
  %s23 = ssub.s32 1, %s21
  %s24 = scalar_select 0, %s23, %s21
  loop: start=0, step=1, limit=4
  $region2: #{_lambda_.1} parent=0 // loop_pre_header
    _
  $region3: #{_lambda_.1} parent=0 // loop_header
    %s26 = sphi 0, %s30
    %p27 = scmp.ge.s32.totalorder %s26, 4
    %s36 = sphi 0, %s38
    %s39 = sphi 0, %s36
    %s40 = sphi 0, %s39
    %s56 = sphi 0, %s40
    %s60 = sphi 0, %s60
    %s62 = sphi 0, %s60
    %s63 = sphi 0, %s62
    %s77 = sphi 0, %s63
    %s81 = sphi 0, %s81
    %s83 = sphi 0, %s81
    %s84 = sphi 0, %s83
    %s98 = sphi 0, %s84
    %s102 = sphi 0, %s102
    %s104 = sphi 0, %s102
    %s105 = sphi 0, %s104
    %s119 = sphi 0, %s105
    %s123 = sphi 0, %s123
    %s125 = sphi 0, %s123
    %s126 = sphi 0, %s125
    %s140 = sphi 0, %s126
    %s144 = sphi 0, %s144
    %s146 = sphi 0, %s144
    %s147 = sphi 0, %s146
    %s161 = sphi 0, %s147
    %s165 = sphi 0, %s165
    %s167 = sphi 0, %s165
    %s168 = sphi 0, %s167
    %s182 = sphi 0, %s168
    %s186 = sphi 0, %s186
    %s188 = sphi 0, %s186
    %s189 = sphi 0, %s188
    %s203 = sphi 0, %s189
    %s207 = sphi 0, %s207
    %s209 = sphi 0, %s207
    %s210 = sphi 0, %s209
    %s224 = sphi 0, %s210
    %s228 = sphi 0, %s228
    %s230 = sphi 0, %s228
    %s231 = sphi 0, %s230
    %s245 = sphi 0, %s231
    %s249 = sphi 0, %s249
    %s251 = sphi 0, %s249
    %s252 = sphi 0, %s251
    %s266 = sphi 0, %s252
    %s270 = sphi 0, %s270
    %s272 = sphi 0, %s270
    %s273 = sphi 0, %s272
    %s287 = sphi 0, %s273
    %s291 = sphi 0, %s291
    %s293 = sphi 0, %s291
    %s294 = sphi 0, %s293
    %s308 = sphi 0, %s294
    %s312 = sphi 0, %s312
    %s314 = sphi 0, %s312
    %s315 = sphi 0, %s314
    %s329 = sphi 0, %s315
    %s333 = sphi 0, %s333
    %s335 = sphi 0, %s333
    %s336 = sphi 0, %s335
    %s350 = sphi 0, %s336
    %s354 = sphi 0, %s354
    %s356 = sphi 0, %s354
    %s357 = sphi 0, %s356
    %s371 = sphi 0, %s357
    %s375 = sphi 0, %s375
    %s377 = sphi 0, %s375
    %s378 = sphi 0, %s377
    %s392 = sphi 0, %s378
    %s396 = sphi 0, %s396
    %s398 = sphi 0, %s396
    %s399 = sphi 0, %s398
    %s413 = sphi 0, %s399
    %s417 = sphi 0, %s417
    %s419 = sphi 0, %s417
    %s420 = sphi 0, %s419
    %s434 = sphi 0, %s420
    %s438 = sphi 0, %s438
    %s440 = sphi 0, %s438
    %s441 = sphi 0, %s440
    %s455 = sphi 0, %s441
    %s461 = sphi 0, %s463
    %s464 = sphi 0, %s461
    %s465 = sphi 0, %s464
    %s481 = sphi 0, %s465
  $region4: #{_lambda_.1} parent=0 // loop_header_branch
    %29 = sbr.rel (%p27) target = $region8
  $region5: #{_lambda_.1} parent=0 // loop_body
    %s31 = ssub.s32 %s26, 1
    %s32 = ssub.s32 %s26, 2
    %s33 = sadd.s32 %s26, 1
    %s34 = ssub.s32 %s26, %s33
    %p35 = scmp.eq.s32.totalorder %s34, 0
    %s37 = sadd.s32 %s36, 1
    %s38 = scalar_select %p35, %s36, %s37
    %p41 = pneg %p35
    %p42 = scmp.eq.s32.totalorder %s26, 1
    %p43 = por %p41, %p42
    %p44 = scmp.ne.s32.totalorder %s36, %s39
    %p45 = scmp.eq.s32.totalorder %s26, 0
    %p46 = por %p44, %p45
    %p47 = scmp.ne.s32.totalorder %s36, %s39
    %p48 = scmp.eq.s32.totalorder %s31, 1
    %p49 = por %p47, %p48
    %p50 = scmp.ne.s32.totalorder %s39, %s40
    %p51 = scmp.eq.s32.totalorder %s31, 0
    %p52 = por %p50, %p51
    %p53 = scmp.ne.s32.totalorder %s39, %s40
    %p54 = scmp.eq.s32.totalorder %s32, 1
    %p55 = por %p53, %p54
    %p57 = scmp.ne.s32.totalorder %s40, %s56
    %p58 = scmp.eq.s32.totalorder %s32, 0
    %p59 = por %p57, %p58
    %s61 = sadd.s32 %s60, 1
    %p64 = scmp.eq.s32.totalorder %s26, 1
    %p65 = scmp.ne.s32.totalorder %s60, %s62
    %p66 = scmp.eq.s32.totalorder %s26, 0
    %p67 = por %p65, %p66
    %p68 = scmp.ne.s32.totalorder %s60, %s62
    %p69 = scmp.eq.s32.totalorder %s31, 1
    %p70 = por %p68, %p69
    %p71 = scmp.ne.s32.totalorder %s62, %s63
    %p72 = scmp.eq.s32.totalorder %s31, 0
    %p73 = por %p71, %p72
    %p74 = scmp.ne.s32.totalorder %s62, %s63
    %p75 = scmp.eq.s32.totalorder %s32, 1
    %p76 = por %p74, %p75
    %p78 = scmp.ne.s32.totalorder %s63, %s77
    %p79 = scmp.eq.s32.totalorder %s32, 0
    %p80 = por %p78, %p79
    %s82 = sadd.s32 %s81, 1
    %p85 = scmp.eq.s32.totalorder %s26, 1
    %p86 = scmp.ne.s32.totalorder %s81, %s83
    %p87 = scmp.eq.s32.totalorder %s26, 0
    %p88 = por %p86, %p87
    %p89 = scmp.ne.s32.totalorder %s81, %s83
    %p90 = scmp.eq.s32.totalorder %s31, 1
    %p91 = por %p89, %p90
    %p92 = scmp.ne.s32.totalorder %s83, %s84
    %p93 = scmp.eq.s32.totalorder %s31, 0
    %p94 = por %p92, %p93
    %p95 = scmp.ne.s32.totalorder %s83, %s84
    %p96 = scmp.eq.s32.totalorder %s32, 1
    %p97 = por %p95, %p96
    %p99 = scmp.ne.s32.totalorder %s84, %s98
    %p100 = scmp.eq.s32.totalorder %s32, 0
    %p101 = por %p99, %p100
    %s103 = sadd.s32 %s102, 1
    %p106 = scmp.eq.s32.totalorder %s26, 1
    %p107 = scmp.ne.s32.totalorder %s102, %s104
    %p108 = scmp.eq.s32.totalorder %s26, 0
    %p109 = por %p107, %p108
    %p110 = scmp.ne.s32.totalorder %s102, %s104
    %p111 = scmp.eq.s32.totalorder %s31, 1
    %p112 = por %p110, %p111
    %p113 = scmp.ne.s32.totalorder %s104, %s105
    %p114 = scmp.eq.s32.totalorder %s31, 0
    %p115 = por %p113, %p114
    %p116 = scmp.ne.s32.totalorder %s104, %s105
    %p117 = scmp.eq.s32.totalorder %s32, 1
    %p118 = por %p116, %p117
    %p120 = scmp.ne.s32.totalorder %s105, %s119
    %p121 = scmp.eq.s32.totalorder %s32, 0
    %p122 = por %p120, %p121
    %s124 = sadd.s32 %s123, 1
    %p127 = scmp.eq.s32.totalorder %s26, 1
    %p128 = scmp.ne.s32.totalorder %s123, %s125
    %p129 = scmp.eq.s32.totalorder %s26, 0
    %p130 = por %p128, %p129
    %p131 = scmp.ne.s32.totalorder %s123, %s125
    %p132 = scmp.eq.s32.totalorder %s31, 1
    %p133 = por %p131, %p132
    %p134 = scmp.ne.s32.totalorder %s125, %s126
    %p135 = scmp.eq.s32.totalorder %s31, 0
    %p136 = por %p134, %p135
    %p137 = scmp.ne.s32.totalorder %s125, %s126
    %p138 = scmp.eq.s32.totalorder %s32, 1
    %p139 = por %p137, %p138
    %p141 = scmp.ne.s32.totalorder %s126, %s140
    %p142 = scmp.eq.s32.totalorder %s32, 0
    %p143 = por %p141, %p142
    %s145 = sadd.s32 %s144, 1
    %p148 = scmp.eq.s32.totalorder %s26, 1
    %p149 = scmp.ne.s32.totalorder %s144, %s146
    %p150 = scmp.eq.s32.totalorder %s26, 0
    %p151 = por %p149, %p150
    %p152 = scmp.ne.s32.totalorder %s144, %s146
    %p153 = scmp.eq.s32.totalorder %s31, 1
    %p154 = por %p152, %p153
    %p155 = scmp.ne.s32.totalorder %s146, %s147
    %p156 = scmp.eq.s32.totalorder %s31, 0
    %p157 = por %p155, %p156
    %p158 = scmp.ne.s32.totalorder %s146, %s147
    %p159 = scmp.eq.s32.totalorder %s32, 1
    %p160 = por %p158, %p159
    %p162 = scmp.ne.s32.totalorder %s147, %s161
    %p163 = scmp.eq.s32.totalorder %s32, 0
    %p164 = por %p162, %p163
    %s166 = sadd.s32 %s165, 1
    %p169 = scmp.eq.s32.totalorder %s26, 1
    %p170 = scmp.ne.s32.totalorder %s165, %s167
    %p171 = scmp.eq.s32.totalorder %s26, 0
    %p172 = por %p170, %p171
    %p173 = scmp.ne.s32.totalorder %s165, %s167
    %p174 = scmp.eq.s32.totalorder %s31, 1
    %p175 = por %p173, %p174
    %p176 = scmp.ne.s32.totalorder %s167, %s168
    %p177 = scmp.eq.s32.totalorder %s31, 0
    %p178 = por %p176, %p177
    %p179 = scmp.ne.s32.totalorder %s167, %s168
    %p180 = scmp.eq.s32.totalorder %s32, 1
    %p181 = por %p179, %p180
    %p183 = scmp.ne.s32.totalorder %s168, %s182
    %p184 = scmp.eq.s32.totalorder %s32, 0
    %p185 = por %p183, %p184
    %s187 = sadd.s32 %s186, 1
    %p190 = scmp.eq.s32.totalorder %s26, 1
    %p191 = scmp.ne.s32.totalorder %s186, %s188
    %p192 = scmp.eq.s32.totalorder %s26, 0
    %p193 = por %p191, %p192
    %p194 = scmp.ne.s32.totalorder %s186, %s188
    %p195 = scmp.eq.s32.totalorder %s31, 1
    %p196 = por %p194, %p195
    %p197 = scmp.ne.s32.totalorder %s188, %s189
    %p198 = scmp.eq.s32.totalorder %s31, 0
    %p199 = por %p197, %p198
    %p200 = scmp.ne.s32.totalorder %s188, %s189
    %p201 = scmp.eq.s32.totalorder %s32, 1
    %p202 = por %p200, %p201
    %p204 = scmp.ne.s32.totalorder %s189, %s203
    %p205 = scmp.eq.s32.totalorder %s32, 0
    %p206 = por %p204, %p205
    %s208 = sadd.s32 %s207, 1
    %p211 = scmp.eq.s32.totalorder %s26, 1
    %p212 = scmp.ne.s32.totalorder %s207, %s209
    %p213 = scmp.eq.s32.totalorder %s26, 0
    %p214 = por %p212, %p213
    %p215 = scmp.ne.s32.totalorder %s207, %s209
    %p216 = scmp.eq.s32.totalorder %s31, 1
    %p217 = por %p215, %p216
    %p218 = scmp.ne.s32.totalorder %s209, %s210
    %p219 = scmp.eq.s32.totalorder %s31, 0
    %p220 = por %p218, %p219
    %p221 = scmp.ne.s32.totalorder %s209, %s210
    %p222 = scmp.eq.s32.totalorder %s32, 1
    %p223 = por %p221, %p222
    %p225 = scmp.ne.s32.totalorder %s210, %s224
    %p226 = scmp.eq.s32.totalorder %s32, 0
    %p227 = por %p225, %p226
    %s229 = sadd.s32 %s228, 1
    %p232 = scmp.eq.s32.totalorder %s26, 1
    %p233 = scmp.ne.s32.totalorder %s228, %s230
    %p234 = scmp.eq.s32.totalorder %s26, 0
    %p235 = por %p233, %p234
    %p236 = scmp.ne.s32.totalorder %s228, %s230
    %p237 = scmp.eq.s32.totalorder %s31, 1
    %p238 = por %p236, %p237
    %p239 = scmp.ne.s32.totalorder %s230, %s231
    %p240 = scmp.eq.s32.totalorder %s31, 0
    %p241 = por %p239, %p240
    %p242 = scmp.ne.s32.totalorder %s230, %s231
    %p243 = scmp.eq.s32.totalorder %s32, 1
    %p244 = por %p242, %p243
    %p246 = scmp.ne.s32.totalorder %s231, %s245
    %p247 = scmp.eq.s32.totalorder %s32, 0
    %p248 = por %p246, %p247
    %s250 = sadd.s32 %s249, 1
    %p253 = scmp.eq.s32.totalorder %s26, 1
    %p254 = scmp.ne.s32.totalorder %s249, %s251
    %p255 = scmp.eq.s32.totalorder %s26, 0
    %p256 = por %p254, %p255
    %p257 = scmp.ne.s32.totalorder %s249, %s251
    %p258 = scmp.eq.s32.totalorder %s31, 1
    %p259 = por %p257, %p258
    %p260 = scmp.ne.s32.totalorder %s251, %s252
    %p261 = scmp.eq.s32.totalorder %s31, 0
    %p262 = por %p260, %p261
    %p263 = scmp.ne.s32.totalorder %s251, %s252
    %p264 = scmp.eq.s32.totalorder %s32, 1
    %p265 = por %p263, %p264
    %p267 = scmp.ne.s32.totalorder %s252, %s266
    %p268 = scmp.eq.s32.totalorder %s32, 0
    %p269 = por %p267, %p268
    %s271 = sadd.s32 %s270, 1
    %p274 = scmp.eq.s32.totalorder %s26, 1
    %p275 = scmp.ne.s32.totalorder %s270, %s272
    %p276 = scmp.eq.s32.totalorder %s26, 0
    %p277 = por %p275, %p276
    %p278 = scmp.ne.s32.totalorder %s270, %s272
    %p279 = scmp.eq.s32.totalorder %s31, 1
    %p280 = por %p278, %p279
    %p281 = scmp.ne.s32.totalorder %s272, %s273
    %p282 = scmp.eq.s32.totalorder %s31, 0
    %p283 = por %p281, %p282
    %p284 = scmp.ne.s32.totalorder %s272, %s273
    %p285 = scmp.eq.s32.totalorder %s32, 1
    %p286 = por %p284, %p285
    %p288 = scmp.ne.s32.totalorder %s273, %s287
    %p289 = scmp.eq.s32.totalorder %s32, 0
    %p290 = por %p288, %p289
    %s292 = sadd.s32 %s291, 1
    %p295 = scmp.eq.s32.totalorder %s26, 1
    %p296 = scmp.ne.s32.totalorder %s291, %s293
    %p297 = scmp.eq.s32.totalorder %s26, 0
    %p298 = por %p296, %p297
    %p299 = scmp.ne.s32.totalorder %s291, %s293
    %p300 = scmp.eq.s32.totalorder %s31, 1
    %p301 = por %p299, %p300
    %p302 = scmp.ne.s32.totalorder %s293, %s294
    %p303 = scmp.eq.s32.totalorder %s31, 0
    %p304 = por %p302, %p303
    %p305 = scmp.ne.s32.totalorder %s293, %s294
    %p306 = scmp.eq.s32.totalorder %s32, 1
    %p307 = por %p305, %p306
    %p309 = scmp.ne.s32.totalorder %s294, %s308
    %p310 = scmp.eq.s32.totalorder %s32, 0
    %p311 = por %p309, %p310
    %s313 = sadd.s32 %s312, 1
    %p316 = scmp.eq.s32.totalorder %s26, 1
    %p317 = scmp.ne.s32.totalorder %s312, %s314
    %p318 = scmp.eq.s32.totalorder %s26, 0
    %p319 = por %p317, %p318
    %p320 = scmp.ne.s32.totalorder %s312, %s314
    %p321 = scmp.eq.s32.totalorder %s31, 1
    %p322 = por %p320, %p321
    %p323 = scmp.ne.s32.totalorder %s314, %s315
    %p324 = scmp.eq.s32.totalorder %s31, 0
    %p325 = por %p323, %p324
    %p326 = scmp.ne.s32.totalorder %s314, %s315
    %p327 = scmp.eq.s32.totalorder %s32, 1
    %p328 = por %p326, %p327
    %p330 = scmp.ne.s32.totalorder %s315, %s329
    %p331 = scmp.eq.s32.totalorder %s32, 0
    %p332 = por %p330, %p331
    %s334 = sadd.s32 %s333, 1
    %p337 = scmp.eq.s32.totalorder %s26, 1
    %p338 = scmp.ne.s32.totalorder %s333, %s335
    %p339 = scmp.eq.s32.totalorder %s26, 0
    %p340 = por %p338, %p339
    %p341 = scmp.ne.s32.totalorder %s333, %s335
    %p342 = scmp.eq.s32.totalorder %s31, 1
    %p343 = por %p341, %p342
    %p344 = scmp.ne.s32.totalorder %s335, %s336
    %p345 = scmp.eq.s32.totalorder %s31, 0
    %p346 = por %p344, %p345
    %p347 = scmp.ne.s32.totalorder %s335, %s336
    %p348 = scmp.eq.s32.totalorder %s32, 1
    %p349 = por %p347, %p348
    %p351 = scmp.ne.s32.totalorder %s336, %s350
    %p352 = scmp.eq.s32.totalorder %s32, 0
    %p353 = por %p351, %p352
    %s355 = sadd.s32 %s354, 1
    %p358 = scmp.eq.s32.totalorder %s26, 1
    %p359 = scmp.ne.s32.totalorder %s354, %s356
    %p360 = scmp.eq.s32.totalorder %s26, 0
    %p361 = por %p359, %p360
    %p362 = scmp.ne.s32.totalorder %s354, %s356
    %p363 = scmp.eq.s32.totalorder %s31, 1
    %p364 = por %p362, %p363
    %p365 = scmp.ne.s32.totalorder %s356, %s357
    %p366 = scmp.eq.s32.totalorder %s31, 0
    %p367 = por %p365, %p366
    %p368 = scmp.ne.s32.totalorder %s356, %s357
    %p369 = scmp.eq.s32.totalorder %s32, 1
    %p370 = por %p368, %p369
    %p372 = scmp.ne.s32.totalorder %s357, %s371
    %p373 = scmp.eq.s32.totalorder %s32, 0
    %p374 = por %p372, %p373
    %s376 = sadd.s32 %s375, 1
    %p379 = scmp.eq.s32.totalorder %s26, 1
    %p380 = scmp.ne.s32.totalorder %s375, %s377
    %p381 = scmp.eq.s32.totalorder %s26, 0
    %p382 = por %p380, %p381
    %p383 = scmp.ne.s32.totalorder %s375, %s377
    %p384 = scmp.eq.s32.totalorder %s31, 1
    %p385 = por %p383, %p384
    %p386 = scmp.ne.s32.totalorder %s377, %s378
    %p387 = scmp.eq.s32.totalorder %s31, 0
    %p388 = por %p386, %p387
    %p389 = scmp.ne.s32.totalorder %s377, %s378
    %p390 = scmp.eq.s32.totalorder %s32, 1
    %p391 = por %p389, %p390
    %p393 = scmp.ne.s32.totalorder %s378, %s392
    %p394 = scmp.eq.s32.totalorder %s32, 0
    %p395 = por %p393, %p394
    %s397 = sadd.s32 %s396, 1
    %p400 = scmp.eq.s32.totalorder %s26, 1
    %p401 = scmp.ne.s32.totalorder %s396, %s398
    %p402 = scmp.eq.s32.totalorder %s26, 0
    %p403 = por %p401, %p402
    %p404 = scmp.ne.s32.totalorder %s396, %s398
    %p405 = scmp.eq.s32.totalorder %s31, 1
    %p406 = por %p404, %p405
    %p407 = scmp.ne.s32.totalorder %s398, %s399
    %p408 = scmp.eq.s32.totalorder %s31, 0
    %p409 = por %p407, %p408
    %p410 = scmp.ne.s32.totalorder %s398, %s399
    %p411 = scmp.eq.s32.totalorder %s32, 1
    %p412 = por %p410, %p411
    %p414 = scmp.ne.s32.totalorder %s399, %s413
    %p415 = scmp.eq.s32.totalorder %s32, 0
    %p416 = por %p414, %p415
    %s418 = sadd.s32 %s417, 1
    %p421 = scmp.eq.s32.totalorder %s26, 1
    %p422 = scmp.ne.s32.totalorder %s417, %s419
    %p423 = scmp.eq.s32.totalorder %s26, 0
    %p424 = por %p422, %p423
    %p425 = scmp.ne.s32.totalorder %s417, %s419
    %p426 = scmp.eq.s32.totalorder %s31, 1
    %p427 = por %p425, %p426
    %p428 = scmp.ne.s32.totalorder %s419, %s420
    %p429 = scmp.eq.s32.totalorder %s31, 0
    %p430 = por %p428, %p429
    %p431 = scmp.ne.s32.totalorder %s419, %s420
    %p432 = scmp.eq.s32.totalorder %s32, 1
    %p433 = por %p431, %p432
    %p435 = scmp.ne.s32.totalorder %s420, %s434
    %p436 = scmp.eq.s32.totalorder %s32, 0
    %p437 = por %p435, %p436
    %s439 = sadd.s32 %s438, 1
    %p442 = scmp.eq.s32.totalorder %s26, 1
    %p443 = scmp.ne.s32.totalorder %s438, %s440
    %p444 = scmp.eq.s32.totalorder %s26, 0
    %p445 = por %p443, %p444
    %p446 = scmp.ne.s32.totalorder %s438, %s440
    %p447 = scmp.eq.s32.totalorder %s31, 1
    %p448 = por %p446, %p447
    %p449 = scmp.ne.s32.totalorder %s440, %s441
    %p450 = scmp.eq.s32.totalorder %s31, 0
    %p451 = por %p449, %p450
    %p452 = scmp.ne.s32.totalorder %s440, %s441
    %p453 = scmp.eq.s32.totalorder %s32, 1
    %p454 = por %p452, %p453
    %p456 = scmp.ne.s32.totalorder %s441, %s455
    %p457 = scmp.eq.s32.totalorder %s32, 0
    %p458 = por %p456, %p457
    %s459 = ssub.s32 %s26, %s33
    %p460 = scmp.eq.s32.totalorder %s459, 0
    %s462 = sadd.s32 %s461, 1
    %s463 = scalar_select %p460, %s461, %s462
    %p466 = pneg %p460
    %p467 = scmp.eq.s32.totalorder %s26, 1
    %p468 = por %p466, %p467
    %p469 = scmp.ne.s32.totalorder %s461, %s464
    %p470 = scmp.eq.s32.totalorder %s26, 0
    %p471 = por %p469, %p470
    %p472 = scmp.ne.s32.totalorder %s461, %s464
    %p473 = scmp.eq.s32.totalorder %s31, 1
    %p474 = por %p472, %p473
    %p475 = scmp.ne.s32.totalorder %s464, %s465
    %p476 = scmp.eq.s32.totalorder %s31, 0
    %p477 = por %p475, %p476
    %p478 = scmp.ne.s32.totalorder %s464, %s465
    %p479 = scmp.eq.s32.totalorder %s32, 1
    %p480 = por %p478, %p479
    %p482 = scmp.ne.s32.totalorder %s465, %s481
    %p483 = scmp.eq.s32.totalorder %s32, 0
    %p484 = por %p482, %p483
    %p485 = scmp.le.s32.totalorder 1, %s26
    %p486 = scmp.lt.s32.totalorder %s26, 3
    %p487 = pnand %p485, %p486
    %p488 = pneg %p487
    // Predicated region
    $region9: #{_lambda_.1} parent=5 // pred_check
      _
    $region10: #{_lambda_.1} parent=5 // pred_check_branch
      %490 = sbr.rel (%p487) target = $region12
    $region11: #{_lambda_.1} parent=5 // pred_region
      %s491 = ssub.s32 %s26, 1
      // Predicated region
      $region13: #{_lambda_.1} parent=11 // pred_check
        %p492 = pneg %p73
      $region14: #{_lambda_.1} parent=11 // pred_check_branch
        %494 = sbr.rel (%p492) target = $region16
      $region15: #{_lambda_.1} parent=11 // pred_region
        _
      $region16: #{_lambda_.1} parent=11 // pred_fallthru
        _
      // Predicated region
      $region17: #{_lambda_.1} parent=11 // pred_check
        %p495 = pneg %p94
      $region18: #{_lambda_.1} parent=11 // pred_check_branch
        %497 = sbr.rel (%p495) target = $region20
      $region19: #{_lambda_.1} parent=11 // pred_region
        _
      $region20: #{_lambda_.1} parent=11 // pred_fallthru
        _
      // Predicated region
      $region21: #{_lambda_.1} parent=11 // pred_check
        %p498 = pneg %p115
      $region22: #{_lambda_.1} parent=11 // pred_check_branch
        %500 = sbr.rel (%p498) target = $region24
      $region23: #{_lambda_.1} parent=11 // pred_region
        _
      $region24: #{_lambda_.1} parent=11 // pred_fallthru
        _
      // Predicated region
      $region25: #{_lambda_.1} parent=11 // pred_check
        %p501 = pneg %p136
      $region26: #{_lambda_.1} parent=11 // pred_check_branch
        %503 = sbr.rel (%p501) target = $region28
      $region27: #{_lambda_.1} parent=11 // pred_region
        _
      $region28: #{_lambda_.1} parent=11 // pred_fallthru
        _
      // Predicated region
      $region29: #{_lambda_.1} parent=11 // pred_check
        %p504 = pneg %p157
      $region30: #{_lambda_.1} parent=11 // pred_check_branch
        %506 = sbr.rel (%p504) target = $region32
      $region31: #{_lambda_.1} parent=11 // pred_region
        _
      $region32: #{_lambda_.1} parent=11 // pred_fallthru
        _
      // Predicated region
      $region33: #{_lambda_.1} parent=11 // pred_check
        %p507 = pneg %p178
      $region34: #{_lambda_.1} parent=11 // pred_check_branch
        %509 = sbr.rel (%p507) target = $region36
      $region35: #{_lambda_.1} parent=11 // pred_region
        _
      $region36: #{_lambda_.1} parent=11 // pred_fallthru
        _
      // Predicated region
      $region37: #{_lambda_.1} parent=11 // pred_check
        %p510 = pneg %p199
      $region38: #{_lambda_.1} parent=11 // pred_check_branch
        %512 = sbr.rel (%p510) target = $region40
      $region39: #{_lambda_.1} parent=11 // pred_region
        _
      $region40: #{_lambda_.1} parent=11 // pred_fallthru
        _
      // Predicated region
      $region41: #{_lambda_.1} parent=11 // pred_check
        %p513 = pneg %p220
      $region42: #{_lambda_.1} parent=11 // pred_check_branch
        %515 = sbr.rel (%p513) target = $region44
      $region43: #{_lambda_.1} parent=11 // pred_region
        _
      $region44: #{_lambda_.1} parent=11 // pred_fallthru
        _
      // Predicated region
      $region45: #{_lambda_.1} parent=11 // pred_check
        %p516 = pneg %p241
      $region46: #{_lambda_.1} parent=11 // pred_check_branch
        %518 = sbr.rel (%p516) target = $region48
      $region47: #{_lambda_.1} parent=11 // pred_region
        _
      $region48: #{_lambda_.1} parent=11 // pred_fallthru
        _
      // Predicated region
      $region49: #{_lambda_.1} parent=11 // pred_check
        %p519 = pneg %p262
      $region50: #{_lambda_.1} parent=11 // pred_check_branch
        %521 = sbr.rel (%p519) target = $region52
      $region51: #{_lambda_.1} parent=11 // pred_region
        _
      $region52: #{_lambda_.1} parent=11 // pred_fallthru
        _
      // Predicated region
      $region53: #{_lambda_.1} parent=11 // pred_check
        %p522 = pneg %p283
      $region54: #{_lambda_.1} parent=11 // pred_check_branch
        %524 = sbr.rel (%p522) target = $region56
      $region55: #{_lambda_.1} parent=11 // pred_region
        _
      $region56: #{_lambda_.1} parent=11 // pred_fallthru
        _
      // Predicated region
      $region57: #{_lambda_.1} parent=11 // pred_check
        %p525 = pneg %p304
      $region58: #{_lambda_.1} parent=11 // pred_check_branch
        %527 = sbr.rel (%p525) target = $region60
      $region59: #{_lambda_.1} parent=11 // pred_region
        _
      $region60: #{_lambda_.1} parent=11 // pred_fallthru
        _
      // Predicated region
      $region61: #{_lambda_.1} parent=11 // pred_check
        %p528 = pneg %p325
      $region62: #{_lambda_.1} parent=11 // pred_check_branch
        %530 = sbr.rel (%p528) target = $region64
      $region63: #{_lambda_.1} parent=11 // pred_region
        _
      $region64: #{_lambda_.1} parent=11 // pred_fallthru
        _
      // Predicated region
      $region65: #{_lambda_.1} parent=11 // pred_check
        %p531 = pneg %p346
      $region66: #{_lambda_.1} parent=11 // pred_check_branch
        %533 = sbr.rel (%p531) target = $region68
      $region67: #{_lambda_.1} parent=11 // pred_region
        _
      $region68: #{_lambda_.1} parent=11 // pred_fallthru
        _
      // Predicated region
      $region69: #{_lambda_.1} parent=11 // pred_check
        %p534 = pneg %p367
      $region70: #{_lambda_.1} parent=11 // pred_check_branch
        %536 = sbr.rel (%p534) target = $region72
      $region71: #{_lambda_.1} parent=11 // pred_region
        _
      $region72: #{_lambda_.1} parent=11 // pred_fallthru
        _
      // Predicated region
      $region73: #{_lambda_.1} parent=11 // pred_check
        %p537 = pneg %p388
      $region74: #{_lambda_.1} parent=11 // pred_check_branch
        %539 = sbr.rel (%p537) target = $region76
      $region75: #{_lambda_.1} parent=11 // pred_region
        _
      $region76: #{_lambda_.1} parent=11 // pred_fallthru
        _
      // Predicated region
      $region77: #{_lambda_.1} parent=11 // pred_check
        %p540 = pneg %p409
      $region78: #{_lambda_.1} parent=11 // pred_check_branch
        %542 = sbr.rel (%p540) target = $region80
      $region79: #{_lambda_.1} parent=11 // pred_region
        _
      $region80: #{_lambda_.1} parent=11 // pred_fallthru
        _
      // Predicated region
      $region81: #{_lambda_.1} parent=11 // pred_check
        %p543 = pneg %p430
      $region82: #{_lambda_.1} parent=11 // pred_check_branch
        %545 = sbr.rel (%p543) target = $region84
      $region83: #{_lambda_.1} parent=11 // pred_region
        _
      $region84: #{_lambda_.1} parent=11 // pred_fallthru
        _
      // Predicated region
      $region85: #{_lambda_.1} parent=11 // pred_check
        %p546 = pneg %p451
      $region86: #{_lambda_.1} parent=11 // pred_check_branch
        %548 = sbr.rel (%p546) target = $region88
      $region87: #{_lambda_.1} parent=11 // pred_region
        _
      $region88: #{_lambda_.1} parent=11 // pred_fallthru
        _
    $region12: #{_lambda_.1} parent=5 // pred_fallthru
      _
    %p549 = scmp.lt.s32.totalorder %s26, 2
    // Predicated region
    $region89: #{_lambda_.1} parent=5 // pred_check
      %p550 = pneg %p549
    $region90: #{_lambda_.1} parent=5 // pred_check_branch
      %552 = sbr.rel (%p550) target = $region92
    $region91: #{_lambda_.1} parent=5 // pred_region
      // Predicated region
      $region93: #{_lambda_.1} parent=91 // pred_check
        %p553 = pneg %p46
      $region94: #{_lambda_.1} parent=91 // pred_check_branch
        %555 = sbr.rel (%p553) target = $region96
      $region95: #{_lambda_.1} parent=91 // pred_region
        %p556 = scmp.lt.s32.totalorder %s26, 1
        %s557 = scalar_select %p556, %s26, 1
        %s558 = smul.addr %s557, 48
        %s559 = smul.addr %s558, 8
        %s560 = scalar_lea.vmem %s0, %s559
      $region96: #{_lambda_.1} parent=91 // pred_fallthru
        _
    $region92: #{_lambda_.1} parent=5 // pred_fallthru
      _
    %p561 = scmp.le.s32.totalorder 1, %s26
    %p562 = scmp.lt.s32.totalorder %s26, 3
    %p563 = pnand %p561, %p562
    %p564 = pneg %p563
    // Predicated region
    $region97: #{_lambda_.1} parent=5 // pred_check
      _
    $region98: #{_lambda_.1} parent=5 // pred_check_branch
      %566 = sbr.rel (%p563) target = $region100
    $region99: #{_lambda_.1} parent=5 // pred_region
      %s567 = ssub.s32 %s26, 1
      %p568 = scmp.lt.s32.totalorder %s31, 1
      %s569 = scalar_select %p568, %s31, 1
      %s570 = smul.addr %s569, 48
      %s571 = smul.addr %s570, 8
      %s572 = scalar_lea.vmem %s0, %s571
      %p573 = pneg %p52
      %p574 = pneg %p49
      %p575 = pneg %p73
      %p576 = pneg %p70
      %p577 = pneg %p94
      %p578 = pneg %p91
      %p579 = pneg %p115
      %p580 = pneg %p112
      %p581 = pneg %p136
      %p582 = pneg %p133
      %p583 = pneg %p157
      %p584 = pneg %p154
      %p585 = pneg %p178
      %p586 = pneg %p175
      %p587 = pneg %p199
      %p588 = pneg %p196
      %p589 = pneg %p220
      %p590 = pneg %p217
      %p591 = pneg %p241
      %p592 = pneg %p238
      %p593 = pneg %p262
      %p594 = pneg %p259
      %p595 = pneg %p283
      %p596 = pneg %p280
      %p597 = pneg %p304
      %p598 = pneg %p301
      %p599 = pneg %p325
      %p600 = pneg %p322
      %p601 = pneg %p346
      %p602 = pneg %p343
      %p603 = pneg %p367
      %p604 = pneg %p364
      %p605 = pneg %p388
      %p606 = pneg %p385
      %p607 = pneg %p409
      %p608 = pneg %p406
      %p609 = pneg %p430
      %p610 = pneg %p427
      %p611 = pneg %p451
      %p612 = pneg %p448
      %p613 = pneg %p477
      %p614 = pneg %p474
      %p615 = scmp.lt.s32.totalorder %s31, 1
      %s616 = scalar_select %p615, %s31, 1
      %s617 = smul.addr %s616, 4
      %s618 = smul.addr %s617, 8
      %s619 = scalar_lea.vmem %s20, %s618
      %p620 = scmp.lt.s32.totalorder %s31, 1
      %s621 = scalar_select %p620, %s31, 1
      %s622 = smul.addr %s621, 48
      %s623 = smul.addr %s622, 8
      %s624 = scalar_lea.vmem %s0, %s623
      %p625 = scmp.lt.s32.totalorder %s31, 1
      %s626 = scalar_select %p625, %s31, 1
      %s627 = smul.addr %s626, 4
      %s628 = smul.addr %s627, 8
      %s629 = scalar_lea.vmem %s20, %s628
      %v630 = vld [vmem:[%s1] sm:$0xff]
      %v631 = vld [vmem:[%s1 + $0x8] sm:$0xff]
      %v632 = vld [vmem:[%s1 + $0x10] sm:$0xff]
      %v633 = vld [vmem:[%s1 + $0x18] sm:$0xff]
      %v634 = vld [vmem:[%s624] sm:$0xff]
      %v635 = vld [vmem:[%s624 + $0x8] sm:$0xff]
      %v636 = vld [vmem:[%s624 + $0x10] sm:$0xff]
      %v637 = vld [vmem:[%s624 + $0x18] sm:$0xff]
      %v638 = vld [vmem:[%s624 + $0x20] sm:$0xff]
      %v639 = vld [vmem:[%s624 + $0x28] sm:$0xff]
      %v640 = vld [vmem:[%s624 + $0x30] sm:$0xff]
      %v641 = vld [vmem:[%s624 + $0x38] sm:$0xff]
      %v642 = vld [vmem:[%s624 + $0x40] sm:$0xff]
      %v643 = vld [vmem:[%s624 + $0x48] sm:$0xff]
      %v644 = vld [vmem:[%s624 + $0x50] sm:$0xff]
      %v645 = vld [vmem:[%s624 + $0x58] sm:$0xff]
      %v646 = vld [vmem:[%s624 + $0x60] sm:$0xff]
      %v647 = vld [vmem:[%s624 + $0x68] sm:$0xff]
      %v648 = vld [vmem:[%s624 + $0x70] sm:$0xff]
      %v649 = vld [vmem:[%s624 + $0x78] sm:$0xff]
      %v650 = vld [vmem:[%s624 + $0x80] sm:$0xff]
      %v651 = vld [vmem:[%s624 + $0x88] sm:$0xff]
      %v652 = vld [vmem:[%s624 + $0x90] sm:$0xff]
      %v653 = vld [vmem:[%s624 + $0x98] sm:$0xff]
      %v654 = vld [vmem:[%s624 + $0xa0] sm:$0xff]
      %v655 = vld [vmem:[%s624 + $0xa8] sm:$0xff]
      %v656 = vld [vmem:[%s624 + $0xb0] sm:$0xff]
      %v657 = vld [vmem:[%s624 + $0xb8] sm:$0xff]
      %v658 = vld [vmem:[%s624 + $0xc0] sm:$0xff]
      %v659 = vld [vmem:[%s624 + $0xc8] sm:$0xff]
      %v660 = vld [vmem:[%s624 + $0xd0] sm:$0xff]
      %v661 = vld [vmem:[%s624 + $0xd8] sm:$0xff]
      %v662 = vld [vmem:[%s624 + $0xe0] sm:$0xff]
      %v663 = vld [vmem:[%s624 + $0xe8] sm:$0xff]
      %v664 = vld [vmem:[%s624 + $0xf0] sm:$0xff]
      %v665 = vld [vmem:[%s624 + $0xf8] sm:$0xff]
      %v666 = vld [vmem:[%s624 + $0x100] sm:$0xff]
      %v667 = vld [vmem:[%s624 + $0x108] sm:$0xff]
      %v668 = vld [vmem:[%s624 + $0x110] sm:$0xff]
      %v669 = vld [vmem:[%s624 + $0x118] sm:$0xff]
      %v670 = vld [vmem:[%s624 + $0x120] sm:$0xff]
      %v671 = vld [vmem:[%s624 + $0x128] sm:$0xff]
      %v672 = vld [vmem:[%s624 + $0x130] sm:$0xff]
      %v673 = vld [vmem:[%s624 + $0x138] sm:$0xff]
      %v674 = vld [vmem:[%s624 + $0x140] sm:$0xff]
      %v675 = vld [vmem:[%s624 + $0x148] sm:$0xff]
      %v676 = vld [vmem:[%s624 + $0x150] sm:$0xff]
      %v677 = vld [vmem:[%s624 + $0x158] sm:$0xff]
      %v678 = vld [vmem:[%s624 + $0x160] sm:$0xff]
      %v679 = vld [vmem:[%s624 + $0x168] sm:$0xff]
      %v680 = vld [vmem:[%s624 + $0x170] sm:$0xff]
      %v681 = vld [vmem:[%s624 + $0x178] sm:$0xff]
      %v682 = vld [vmem:[%s2] sm:$0xff]
      %v683 = vld [vmem:[%s2 + $0x8] sm:$0xff]
      %685 = vset.pattern.permute.xlu0 0
      %686 = vperm.xlu0 %685, %v682
      %v687 = vpop.permute.xlu0 %686
      %690 = vset.pattern.permute.xlu0 0
      %691 = vperm.xlu0 %690, %v683
      %v692 = vpop.permute.xlu0 %691
      %vm694 = vcmask 523264
      %v696 = vsel %vm694, %v631, 0
      %v699 = vsel %vm694, %v633, 0
      %701 = vmatprep.subr.mxu0 %v665
      %702 = vmatpush1.msra.mxu0 %v664
      %703 = vmatprep.subr.mxu0 %v663
      %704 = vmatpush1.msra.mxu0 %v662
      %705 = vmatprep.subr.mxu0 %v661
      %706 = vmatpush1.msra.mxu0 %v660
      %707 = vmatprep.subr.mxu0 %v659
      %708 = vmatpush1.msra.mxu0 %v658
      %709 = vmatprep.subr.mxu0 %v657
      %710 = vmatpush1.msra.mxu0 %v656
      %711 = vmatprep.subr.mxu0 %v655
      %712 = vmatpush1.msra.mxu0 %v654
      %713 = vmatprep.subr.mxu0 %v653
      %714 = vmatpush1.msra.mxu0 %v652
      %715 = vmatprep.subr.mxu0 %v651
      %716 = vmatpush1.msra.mxu0 %v650
      %717 = vmatprep.subr.mxu0 %v649
      %718 = vmatpush1.msra.mxu0 %v648
      %719 = vmatprep.subr.mxu0 %v647
      %720 = vmatpush1.msra.mxu0 %v646
      %721 = vmatprep.subr.mxu0 %v645
      %722 = vmatpush1.msra.mxu0 %v644
      %723 = vmatprep.subr.mxu0 %v643
      %724 = vmatpush1.msra.mxu0 %v642
      %725 = vmatprep.subr.mxu0 %v641
      %726 = vmatpush1.msra.mxu0 %v640
      %727 = vmatprep.subr.mxu0 %v639
      %728 = vmatpush1.msra.mxu0 %v638
      %729 = vmatprep.subr.mxu0 %v637
      %730 = vmatpush1.msra.mxu0 %v636
      %731 = vmatprep.subr.mxu0 %v635
      %732 = vmatpush1.msra.mxu0 %v634
      %733 = vmatprep.subr.mxu0 0.0
      %734 = vmatpush2.msra.mxu0 0.0
      %735 = vmatprep.subr.mxu0 0.0
      %736 = vmatpush2.msra.mxu0 0.0
      %737 = vmatprep.subr.mxu0 0.0
      %738 = vmatpush2.msra.mxu0 0.0
      %739 = vmatprep.subr.mxu0 0.0
      %740 = vmatpush2.msra.mxu0 0.0
      %741 = vmatprep.subr.mxu0 0.0
      %742 = vmatpush2.msra.mxu0 0.0
      %743 = vmatprep.subr.mxu0 0.0
      %744 = vmatpush2.msra.mxu0 0.0
      %745 = vmatprep.subr.mxu0 0.0
      %746 = vmatpush2.msra.mxu0 0.0
      %747 = vmatprep.subr.mxu0 0.0
      %748 = vmatpush2.msra.mxu0 0.0
      %749 = vmatprep.subr.mxu0 %v681
      %750 = vmatpush2.msra.mxu0 %v680
      %751 = vmatprep.subr.mxu0 %v679
      %752 = vmatpush2.msra.mxu0 %v678
      %753 = vmatprep.subr.mxu0 %v677
      %754 = vmatpush2.msra.mxu0 %v676
      %755 = vmatprep.subr.mxu0 %v675
      %756 = vmatpush2.msra.mxu0 %v674
      %757 = vmatprep.subr.mxu0 %v673
      %758 = vmatpush2.msra.mxu0 %v672
      %759 = vmatprep.subr.mxu0 %v671
      %760 = vmatpush2.msra.mxu0 %v670
      %761 = vmatprep.subr.mxu0 %v669
      %762 = vmatpush2.msra.mxu0 %v668
      %763 = vmatprep.subr.mxu0 %v667
      %764 = vmatpush2.msra.mxu0 %v666
      %765 = vmatprep.mubr.f32.mxu0 %v696
      %766 = vmatmul.mubr.f32.gmra.mxu0 %v630
      %v767 = vpop.f32.mrf.mxu0
      %v768 = vadd.f32 %v687, %v767
      %v769 = vpop.f32.mrf.mxu0
      %v770 = vadd.f32 %v687, %v769
      %771 = vmatprep.mubr.f32.mxu0 %v699
      %772 = vmatmul.mubr.f32.gmra.mxu0 %v632
      %v773 = vpop.f32.mrf.mxu0
      %v774 = vadd.f32 %v692, %v773
      %v775 = vpop.f32.mrf.mxu0
      %v776 = vadd.f32 %v692, %v775
      %777 = vdwg.mxu0
      %v778 = vmax.f32 %v768, 0.0
      %v779 = vmax.f32 %v770, 0.0
      %v780 = vmax.f32 %v774, 0.0
      %v781 = vmax.f32 %v776, 0.0
      %v782 = vadd.f32 %v778, %v779
      %783 = vadd.xlane.f32.xlu0 %v782
      %v784 = vpop.xlane.xlu0 %783
      %v785 = vadd.f32 %v780, %v781
      %786 = vadd.xlane.f32.xlu0 %v785
      %v787 = vpop.xlane.xlu0 %786
      %v788 = vmul.f32 %v778, %v778
      %v789 = vmul.f32 %v779, %v779
      %v790 = vmul.f32 %v780, %v780
      %v791 = vmul.f32 %v781, %v781
      %v792 = vadd.f32 %v788, %v789
      %793 = vadd.xlane.f32.xlu0 %v792
      %v794 = vpop.xlane.xlu0 %793
      %v795 = vadd.f32 %v790, %v791
      %796 = vadd.xlane.f32.xlu0 %v795
      %v797 = vpop.xlane.xlu0 %796
      %v798 = vlaneseq
      %v799 = vshrl.u32 %v798, 7
      %v800 = vadd.s32 %v799, 8
      %vm801 = vcmp.lt.s32.totalorder %v799, 0
      %v802 = vsub.s32 0, %v799
      %v803 = vsel %vm801, %v802, %v799
      %v804 = vshrl.u32 %v803, 1
      %v805 = vand.u32 %v803, 1
      %v806 = vsub.s32 0, %v805
      %v807 = vsel %vm801, %v806, %v805
      %vm808 = vcmp.lt.s32.totalorder %v800, 0
      %v809 = vsub.s32 0, %v800
      %v810 = vsel %vm808, %v809, %v800
      %v811 = vshrl.u32 %v810, 1
      %v812 = vand.u32 %v810, 1
      %v813 = vsub.s32 0, %v812
      %v814 = vsel %vm808, %v813, %v812
      %vm815 = vcmp.ne.s32.totalorder %v807, 0
      %vm816 = vcmp.ne.s32.totalorder %v814, 0
      %vm817 = vcmp.lt.s32.totalorder %v807, 0
      %vm818 = vcmp.lt.s32.totalorder %v814, 0
      %vm819 = vmand %vm817, %vm815
      %vm820 = vmand %vm818, %vm816
      %v821 = vadd.s32 %v807, 2
      %v822 = vadd.s32 %v814, 2
      %v823 = vsel %vm819, %v821, %v807
      %v824 = vsel %vm820, %v822, %v814
      %vm825 = vcmp.eq.s32.totalorder %v823, 0
      %vm826 = vcmp.eq.s32.totalorder %v824, 0
      %v827 = vrot.slane %v784, 1
      %v828 = vrot.slane %v787, 1
      %vm829 = vcmp.lt.s32.totalorder %v799, 7
      %v830 = vsel %vm829, %v827, %v828
      %v831 = vsel %vm829, %v828, %v827
      %v832 = vrot.slane %v784, 7
      %v833 = vrot.slane %v787, 7
      %vm834 = vcmp.lt.s32.totalorder %v799, 1
      %v835 = vsel %vm834, %v832, %v833
      %v836 = vsel %vm834, %v833, %v832
      %v837 = vsel %vm825, %v830, %v836
      %v838 = vsel %vm826, %v831, %v835
      %v839 = vadd.f32 %v784, %v837
      %v840 = vadd.f32 %v787, %v838
      %v841 = vrot.slane %v794, 1
      %v842 = vrot.slane %v797, 1
      %v843 = vsel %vm829, %v841, %v842
      %v844 = vsel %vm829, %v842, %v841
      %v845 = vrot.slane %v794, 7
      %v846 = vrot.slane %v797, 7
      %v847 = vsel %vm834, %v845, %v846
      %v848 = vsel %vm834, %v846, %v845
      %v849 = vsel %vm825, %v843, %v848
      %v850 = vsel %vm826, %v844, %v847
      %v851 = vadd.f32 %v794, %v849
      %v852 = vadd.f32 %v797, %v850
      %v853 = vrcp.pop 512.0
      %v854 = vmul.f32 %v839, %v853
      %v855 = vmul.f32 %v840, %v853
      %v856 = vmul.f32 %v851, %v853
      %v857 = vmul.f32 %v852, %v853
      %v858 = vmul.f32 %v854, %v854
      %v859 = vmul.f32 %v855, %v855
      %v860 = vsub.f32 %v856, %v858
      %v861 = vsub.f32 %v857, %v859
      %v862 = vadd.f32 %v860, 1e-05
      %v863 = vadd.f32 %v861, 1e-05
      %v864 = vrsqrt.pop %v862
      %v865 = vrsqrt.pop %v863
      %v866 = vld [vmem:[%s3] sm:$0xff]
      %v867 = vld [vmem:[%s3 + $0x8] sm:$0xff]
      %v868 = vmul.f32 %v864, %v866
      %v869 = vmul.f32 %v865, %v867
      %v870 = vld [vmem:[%s4] sm:$0xff]
      %v871 = vld [vmem:[%s4 + $0x8] sm:$0xff]
      %v872 = vmul.f32 %v854, %v868
      %v873 = vmul.f32 %v855, %v869
      %v874 = vsub.f32 %v870, %v872
      %v875 = vsub.f32 %v871, %v873
      %877 = vset.pattern.permute.xlu0 0
      %878 = vperm.xlu0 %877, %v868
      %v879 = vpop.permute.xlu0 %878
      %882 = vset.pattern.permute.xlu0 0
      %883 = vperm.xlu0 %882, %v869
      %v884 = vpop.permute.xlu0 %883
      %v886 = vmul.f32 %v778, %v879
      %v887 = vmul.f32 %v779, %v879
      %v888 = vmul.f32 %v780, %v884
      %v889 = vmul.f32 %v781, %v884
      %891 = vset.pattern.permute.xlu0 0
      %892 = vperm.xlu0 %891, %v874
      %v893 = vpop.permute.xlu0 %892
      %896 = vset.pattern.permute.xlu0 0
      %897 = vperm.xlu0 %896, %v875
      %v898 = vpop.permute.xlu0 %897
      %v900 = vadd.f32 %v886, %v893
      %v901 = vadd.f32 %v887, %v893
      %v902 = vadd.f32 %v888, %v898
      %v903 = vadd.f32 %v889, %v898
      %v904 = vld [vmem:[%s9] sm:$0xff]
      %v905 = vld [vmem:[%s9 + $0x8] sm:$0xff]
      %v906 = vld [vmem:[%s9 + $0x10] sm:$0xff]
      %v907 = vld [vmem:[%s9 + $0x18] sm:$0xff]
      %v908 = vld [vmem:[%s9 + $0x20] sm:$0xff]
      %v909 = vld [vmem:[%s9 + $0x28] sm:$0xff]
      %v910 = vld [vmem:[%s9 + $0x30] sm:$0xff]
      %v911 = vld [vmem:[%s9 + $0x38] sm:$0xff]
      %v912 = vld [vmem:[%s9 + $0x40] sm:$0xff]
      %v913 = vld [vmem:[%s9 + $0x48] sm:$0xff]
      %v914 = vld [vmem:[%s9 + $0x50] sm:$0xff]
      %v915 = vld [vmem:[%s9 + $0x58] sm:$0xff]
      %v916 = vld [vmem:[%s9 + $0x60] sm:$0xff]
      %v917 = vld [vmem:[%s9 + $0x68] sm:$0xff]
      %v918 = vld [vmem:[%s9 + $0x70] sm:$0xff]
      %v919 = vld [vmem:[%s9 + $0x78] sm:$0xff]
      %v920 = vld [vmem:[%s9 + $0x80] sm:$0xff]
      %v921 = vld [vmem:[%s9 + $0x88] sm:$0xff]
      %v922 = vld [vmem:[%s9 + $0x90] sm:$0xff]
      %v923 = vld [vmem:[%s9 + $0x98] sm:$0xff]
      %v924 = vld [vmem:[%s9 + $0xa0] sm:$0xff]
      %v925 = vld [vmem:[%s9 + $0xa8] sm:$0xff]
      %v926 = vld [vmem:[%s9 + $0xb0] sm:$0xff]
      %v927 = vld [vmem:[%s9 + $0xb8] sm:$0xff]
      %v928 = vld [vmem:[%s9 + $0xc0] sm:$0xff]
      %v929 = vld [vmem:[%s9 + $0xc8] sm:$0xff]
      %v930 = vld [vmem:[%s9 + $0xd0] sm:$0xff]
      %v931 = vld [vmem:[%s9 + $0xd8] sm:$0xff]
      %v932 = vld [vmem:[%s9 + $0xe0] sm:$0xff]
      %v933 = vld [vmem:[%s9 + $0xe8] sm:$0xff]
      %v934 = vld [vmem:[%s9 + $0xf0] sm:$0xff]
      %v935 = vld [vmem:[%s9 + $0xf8] sm:$0xff]
      %936 = vmatprep.subr.mxu0 0.0
      %937 = vmatpush1.msra.mxu0 %v919
      %938 = vmatprep.subr.mxu0 0.0
      %939 = vmatpush1.msra.mxu0 %v918
      %940 = vmatprep.subr.mxu0 0.0
      %941 = vmatpush1.msra.mxu0 %v917
      %942 = vmatprep.subr.mxu0 0.0
      %943 = vmatpush1.msra.mxu0 %v916
      %944 = vmatprep.subr.mxu0 0.0
      %945 = vmatpush1.msra.mxu0 %v915
      %946 = vmatprep.subr.mxu0 0.0
      %947 = vmatpush1.msra.mxu0 %v914
      %948 = vmatprep.subr.mxu0 0.0
      %949 = vmatpush1.msra.mxu0 %v913
      %950 = vmatprep.subr.mxu0 0.0
      %951 = vmatpush1.msra.mxu0 %v912
      %952 = vmatprep.subr.mxu0 0.0
      %953 = vmatpush1.msra.mxu0 %v911
      %954 = vmatprep.subr.mxu0 0.0
      %955 = vmatpush1.msra.mxu0 %v910
      %956 = vmatprep.subr.mxu0 0.0
      %957 = vmatpush1.msra.mxu0 %v909
      %958 = vmatprep.subr.mxu0 0.0
      %959 = vmatpush1.msra.mxu0 %v908
      %960 = vmatprep.subr.mxu0 0.0
      %961 = vmatpush1.msra.mxu0 %v907
      %962 = vmatprep.subr.mxu0 0.0
      %963 = vmatpush1.msra.mxu0 %v906
      %964 = vmatprep.subr.mxu0 0.0
      %965 = vmatpush1.msra.mxu0 %v905
      %966 = vmatprep.subr.mxu0 0.0
      %967 = vmatpush1.msra.mxu0 %v904
      %968 = vmatprep.subr.mxu0 0.0
      %969 = vmatpush2.msra.mxu0 %v935
      %970 = vmatprep.subr.mxu0 0.0
      %971 = vmatpush2.msra.mxu0 %v934
      %972 = vmatprep.subr.mxu0 0.0
      %973 = vmatpush2.msra.mxu0 %v933
      %974 = vmatprep.subr.mxu0 0.0
      %975 = vmatpush2.msra.mxu0 %v932
      %976 = vmatprep.subr.mxu0 0.0
      %977 = vmatpush2.msra.mxu0 %v931
      %978 = vmatprep.subr.mxu0 0.0
      %979 = vmatpush2.msra.mxu0 %v930
      %980 = vmatprep.subr.mxu0 0.0
      %981 = vmatpush2.msra.mxu0 %v929
      %982 = vmatprep.subr.mxu0 0.0
      %983 = vmatpush2.msra.mxu0 %v928
      %984 = vmatprep.subr.mxu0 0.0
      %985 = vmatpush2.msra.mxu0 %v927
      %986 = vmatprep.subr.mxu0 0.0
      %987 = vmatpush2.msra.mxu0 %v926
      %988 = vmatprep.subr.mxu0 0.0
      %989 = vmatpush2.msra.mxu0 %v925
      %990 = vmatprep.subr.mxu0 0.0
      %991 = vmatpush2.msra.mxu0 %v924
      %992 = vmatprep.subr.mxu0 0.0
      %993 = vmatpush2.msra.mxu0 %v923
      %994 = vmatprep.subr.mxu0 0.0
      %995 = vmatpush2.msra.mxu0 %v922
      %996 = vmatprep.subr.mxu0 0.0
      %997 = vmatpush2.msra.mxu0 %v921
      %998 = vmatprep.subr.mxu0 0.0
      %999 = vmatpush2.msra.mxu0 %v920
      %1000 = vmatprep.mubr.f32.mxu0 %v901
      %1001 = vmatmul.mubr.f32.gmra.mxu0 %v900
      %v1002 = vpop.f32.mrf.mxu0
      %v1003 = vadd.f32 0.0, %v1002
      %v1004 = vpop.f32.mrf.mxu0
      %1005 = vmatprep.mubr.f32.mxu0 %v903
      %1006 = vmatmul.mubr.f32.gmra.mxu0 %v902
      %v1007 = vpop.f32.mrf.mxu0
      %v1008 = vadd.f32 0.0, %v1007
      %v1009 = vpop.f32.mrf.mxu0
      %1010 = vdwg.mxu0
      %1011 = vst.msk [vmem:[#allocation2] sm:$0xff] %vm694, %v1003
      %1012 = vst.msk [vmem:[#allocation2 + $0x8] sm:$0xff] %vm694, %v1008
      %s1013 = scalar_lea.vmem %s9, 256
      %v1014 = vld [vmem:[%s1013] sm:$0xff]
      %v1015 = vld [vmem:[%s1013 + $0x8] sm:$0xff]
      %v1016 = vld [vmem:[%s1013 + $0x10] sm:$0xff]
      %v1017 = vld [vmem:[%s1013 + $0x18] sm:$0xff]
      %v1018 = vld [vmem:[%s1013 + $0x20] sm:$0xff]
      %v1019 = vld [vmem:[%s1013 + $0x28] sm:$0xff]
      %v1020 = vld [vmem:[%s1013 + $0x30] sm:$0xff]
      %v1021 = vld [vmem:[%s1013 + $0x38] sm:$0xff]
      %v1022 = vld [vmem:[%s1013 + $0x40] sm:$0xff]
      %v1023 = vld [vmem:[%s1013 + $0x48] sm:$0xff]
      %v1024 = vld [vmem:[%s1013 + $0x50] sm:$0xff]
      %v1025 = vld [vmem:[%s1013 + $0x58] sm:$0xff]
      %v1026 = vld [vmem:[%s1013 + $0x60] sm:$0xff]
      %v1027 = vld [vmem:[%s1013 + $0x68] sm:$0xff]
      %v1028 = vld [vmem:[%s1013 + $0x70] sm:$0xff]
      %v1029 = vld [vmem:[%s1013 + $0x78] sm:$0xff]
      %v1030 = vld [vmem:[%s1013 + $0x80] sm:$0xff]
      %v1031 = vld [vmem:[%s1013 + $0x88] sm:$0xff]
      %v1032 = vld [vmem:[%s1013 + $0x90] sm:$0xff]
      %v1033 = vld [vmem:[%s1013 + $0x98] sm:$0xff]
      %v1034 = vld [vmem:[%s1013 + $0xa0] sm:$0xff]
      %v1035 = vld [vmem:[%s1013 + $0xa8] sm:$0xff]
      %v1036 = vld [vmem:[%s1013 + $0xb0] sm:$0xff]
      %v1037 = vld [vmem:[%s1013 + $0xb8] sm:$0xff]
      %v1038 = vld [vmem:[%s1013 + $0xc0] sm:$0xff]
      %v1039 = vld [vmem:[%s1013 + $0xc8] sm:$0xff]
      %v1040 = vld [vmem:[%s1013 + $0xd0] sm:$0xff]
      %v1041 = vld [vmem:[%s1013 + $0xd8] sm:$0xff]
      %v1042 = vld [vmem:[%s1013 + $0xe0] sm:$0xff]
      %v1043 = vld [vmem:[%s1013 + $0xe8] sm:$0xff]
      %v1044 = vld [vmem:[%s1013 + $0xf0] sm:$0xff]
      %v1045 = vld [vmem:[%s1013 + $0xf8] sm:$0xff]
      %1046 = vmatprep.subr.mxu0 0.0
      %1047 = vmatpush1.msra.mxu0 %v1029
      %1048 = vmatprep.subr.mxu0 0.0
      %1049 = vmatpush1.msra.mxu0 %v1028
      %1050 = vmatprep.subr.mxu0 0.0
      %1051 = vmatpush1.msra.mxu0 %v1027
      %1052 = vmatprep.subr.mxu0 0.0
      %1053 = vmatpush1.msra.mxu0 %v1026
      %1054 = vmatprep.subr.mxu0 0.0
      %1055 = vmatpush1.msra.mxu0 %v1025
      %1056 = vmatprep.subr.mxu0 0.0
      %1057 = vmatpush1.msra.mxu0 %v1024
      %1058 = vmatprep.subr.mxu0 0.0
      %1059 = vmatpush1.msra.mxu0 %v1023
      %1060 = vmatprep.subr.mxu0 0.0
      %1061 = vmatpush1.msra.mxu0 %v1022
      %1062 = vmatprep.subr.mxu0 0.0
      %1063 = vmatpush1.msra.mxu0 %v1021
      %1064 = vmatprep.subr.mxu0 0.0
      %1065 = vmatpush1.msra.mxu0 %v1020
      %1066 = vmatprep.subr.mxu0 0.0
      %1067 = vmatpush1.msra.mxu0 %v1019
      %1068 = vmatprep.subr.mxu0 0.0
      %1069 = vmatpush1.msra.mxu0 %v1018
      %1070 = vmatprep.subr.mxu0 0.0
      %1071 = vmatpush1.msra.mxu0 %v1017
      %1072 = vmatprep.subr.mxu0 0.0
      %1073 = vmatpush1.msra.mxu0 %v1016
      %1074 = vmatprep.subr.mxu0 0.0
      %1075 = vmatpush1.msra.mxu0 %v1015
      %1076 = vmatprep.subr.mxu0 0.0
      %1077 = vmatpush1.msra.mxu0 %v1014
      %1078 = vmatprep.subr.mxu0 0.0
      %1079 = vmatpush2.msra.mxu0 %v1045
      %1080 = vmatprep.subr.mxu0 0.0
      %1081 = vmatpush2.msra.mxu0 %v1044
      %1082 = vmatprep.subr.mxu0 0.0
      %1083 = vmatpush2.msra.mxu0 %v1043
      %1084 = vmatprep.subr.mxu0 0.0
      %1085 = vmatpush2.msra.mxu0 %v1042
      %1086 = vmatprep.subr.mxu0 0.0
      %1087 = vmatpush2.msra.mxu0 %v1041
      %1088 = vmatprep.subr.mxu0 0.0
      %1089 = vmatpush2.msra.mxu0 %v1040
      %1090 = vmatprep.subr.mxu0 0.0
      %1091 = vmatpush2.msra.mxu0 %v1039
      %1092 = vmatprep.subr.mxu0 0.0
      %1093 = vmatpush2.msra.mxu0 %v1038
      %1094 = vmatprep.subr.mxu0 0.0
      %1095 = vmatpush2.msra.mxu0 %v1037
      %1096 = vmatprep.subr.mxu0 0.0
      %1097 = vmatpush2.msra.mxu0 %v1036
      %1098 = vmatprep.subr.mxu0 0.0
      %1099 = vmatpush2.msra.mxu0 %v1035
      %1100 = vmatprep.subr.mxu0 0.0
      %1101 = vmatpush2.msra.mxu0 %v1034
      %1102 = vmatprep.subr.mxu0 0.0
      %1103 = vmatpush2.msra.mxu0 %v1033
      %1104 = vmatprep.subr.mxu0 0.0
      %1105 = vmatpush2.msra.mxu0 %v1032
      %1106 = vmatprep.subr.mxu0 0.0
      %1107 = vmatpush2.msra.mxu0 %v1031
      %1108 = vmatprep.subr.mxu0 0.0
      %1109 = vmatpush2.msra.mxu0 %v1030
      %1110 = vmatprep.mubr.f32.mxu0 %v901
      %1111 = vmatmul.mubr.f32.gmra.mxu0 %v900
      %v1112 = vpop.f32.mrf.mxu0
      %v1113 = vadd.f32 0.0, %v1112
      %v1114 = vpop.f32.mrf.mxu0
      %1115 = vmatprep.mubr.f32.mxu0 %v903
      %1116 = vmatmul.mubr.f32.gmra.mxu0 %v902
      %v1117 = vpop.f32.mrf.mxu0
      %v1118 = vadd.f32 0.0, %v1117
      %v1119 = vpop.f32.mrf.mxu0
      %1120 = vdwg.mxu0
      %1121 = vst.msk [vmem:[#allocation2 + $0x10] sm:$0xff] %vm694, %v1113
      %1122 = vst.msk [vmem:[#allocation2 + $0x18] sm:$0xff] %vm694, %v1118
      %s1123 = scalar_lea.vmem %s9, 512
      %v1124 = vld [vmem:[%s1123] sm:$0xff]
      %v1125 = vld [vmem:[%s1123 + $0x8] sm:$0xff]
      %v1126 = vld [vmem:[%s1123 + $0x10] sm:$0xff]
      %v1127 = vld [vmem:[%s1123 + $0x18] sm:$0xff]
      %v1128 = vld [vmem:[%s1123 + $0x20] sm:$0xff]
      %v1129 = vld [vmem:[%s1123 + $0x28] sm:$0xff]
      %v1130 = vld [vmem:[%s1123 + $0x30] sm:$0xff]
      %v1131 = vld [vmem:[%s1123 + $0x38] sm:$0xff]
      %v1132 = vld [vmem:[%s1123 + $0x40] sm:$0xff]
      %v1133 = vld [vmem:[%s1123 + $0x48] sm:$0xff]
      %v1134 = vld [vmem:[%s1123 + $0x50] sm:$0xff]
      %v1135 = vld [vmem:[%s1123 + $0x58] sm:$0xff]
      %v1136 = vld [vmem:[%s1123 + $0x60] sm:$0xff]
      %v1137 = vld [vmem:[%s1123 + $0x68] sm:$0xff]
      %v1138 = vld [vmem:[%s1123 + $0x70] sm:$0xff]
      %v1139 = vld [vmem:[%s1123 + $0x78] sm:$0xff]
      %v1140 = vld [vmem:[%s1123 + $0x80] sm:$0xff]
      %v1141 = vld [vmem:[%s1123 + $0x88] sm:$0xff]
      %v1142 = vld [vmem:[%s1123 + $0x90] sm:$0xff]
      %v1143 = vld [vmem:[%s1123 + $0x98] sm:$0xff]
      %v1144 = vld [vmem:[%s1123 + $0xa0] sm:$0xff]
      %v1145 = vld [vmem:[%s1123 + $0xa8] sm:$0xff]
      %v1146 = vld [vmem:[%s1123 + $0xb0] sm:$0xff]
      %v1147 = vld [vmem:[%s1123 + $0xb8] sm:$0xff]
      %v1148 = vld [vmem:[%s1123 + $0xc0] sm:$0xff]
      %v1149 = vld [vmem:[%s1123 + $0xc8] sm:$0xff]
      %v1150 = vld [vmem:[%s1123 + $0xd0] sm:$0xff]
      %v1151 = vld [vmem:[%s1123 + $0xd8] sm:$0xff]
      %v1152 = vld [vmem:[%s1123 + $0xe0] sm:$0xff]
      %v1153 = vld [vmem:[%s1123 + $0xe8] sm:$0xff]
      %v1154 = vld [vmem:[%s1123 + $0xf0] sm:$0xff]
      %v1155 = vld [vmem:[%s1123 + $0xf8] sm:$0xff]
      %1156 = vmatprep.subr.mxu0 0.0
      %1157 = vmatpush1.msra.mxu0 %v1139
      %1158 = vmatprep.subr.mxu0 0.0
      %1159 = vmatpush1.msra.mxu0 %v1138
      %1160 = vmatprep.subr.mxu0 0.0
      %1161 = vmatpush1.msra.mxu0 %v1137
      %1162 = vmatprep.subr.mxu0 0.0
      %1163 = vmatpush1.msra.mxu0 %v1136
      %1164 = vmatprep.subr.mxu0 0.0
      %1165 = vmatpush1.msra.mxu0 %v1135
      %1166 = vmatprep.subr.mxu0 0.0
      %1167 = vmatpush1.msra.mxu0 %v1134
      %1168 = vmatprep.subr.mxu0 0.0
      %1169 = vmatpush1.msra.mxu0 %v1133
      %1170 = vmatprep.subr.mxu0 0.0
      %1171 = vmatpush1.msra.mxu0 %v1132
      %1172 = vmatprep.subr.mxu0 0.0
      %1173 = vmatpush1.msra.mxu0 %v1131
      %1174 = vmatprep.subr.mxu0 0.0
      %1175 = vmatpush1.msra.mxu0 %v1130
      %1176 = vmatprep.subr.mxu0 0.0
      %1177 = vmatpush1.msra.mxu0 %v1129
      %1178 = vmatprep.subr.mxu0 0.0
      %1179 = vmatpush1.msra.mxu0 %v1128
      %1180 = vmatprep.subr.mxu0 0.0
      %1181 = vmatpush1.msra.mxu0 %v1127
      %1182 = vmatprep.subr.mxu0 0.0
      %1183 = vmatpush1.msra.mxu0 %v1126
      %1184 = vmatprep.subr.mxu0 0.0
      %1185 = vmatpush1.msra.mxu0 %v1125
      %1186 = vmatprep.subr.mxu0 0.0
      %1187 = vmatpush1.msra.mxu0 %v1124
      %1188 = vmatprep.subr.mxu0 0.0
      %1189 = vmatpush2.msra.mxu0 %v1155
      %1190 = vmatprep.subr.mxu0 0.0
      %1191 = vmatpush2.msra.mxu0 %v1154
      %1192 = vmatprep.subr.mxu0 0.0
      %1193 = vmatpush2.msra.mxu0 %v1153
      %1194 = vmatprep.subr.mxu0 0.0
      %1195 = vmatpush2.msra.mxu0 %v1152
      %1196 = vmatprep.subr.mxu0 0.0
      %1197 = vmatpush2.msra.mxu0 %v1151
      %1198 = vmatprep.subr.mxu0 0.0
      %1199 = vmatpush2.msra.mxu0 %v1150
      %1200 = vmatprep.subr.mxu0 0.0
      %1201 = vmatpush2.msra.mxu0 %v1149
      %1202 = vmatprep.subr.mxu0 0.0
      %1203 = vmatpush2.msra.mxu0 %v1148
      %1204 = vmatprep.subr.mxu0 0.0
      %1205 = vmatpush2.msra.mxu0 %v1147
      %1206 = vmatprep.subr.mxu0 0.0
      %1207 = vmatpush2.msra.mxu0 %v1146
      %1208 = vmatprep.subr.mxu0 0.0
      %1209 = vmatpush2.msra.mxu0 %v1145
      %1210 = vmatprep.subr.mxu0 0.0
      %1211 = vmatpush2.msra.mxu0 %v1144
      %1212 = vmatprep.subr.mxu0 0.0
      %1213 = vmatpush2.msra.mxu0 %v1143
      %1214 = vmatprep.subr.mxu0 0.0
      %1215 = vmatpush2.msra.mxu0 %v1142
      %1216 = vmatprep.subr.mxu0 0.0
      %1217 = vmatpush2.msra.mxu0 %v1141
      %1218 = vmatprep.subr.mxu0 0.0
      %1219 = vmatpush2.msra.mxu0 %v1140
      %1220 = vmatprep.mubr.f32.mxu0 %v901
      %1221 = vmatmul.mubr.f32.gmra.mxu0 %v900
      %v1222 = vpop.f32.mrf.mxu0
      %v1223 = vadd.f32 0.0, %v1222
      %v1224 = vpop.f32.mrf.mxu0
      %1225 = vmatprep.mubr.f32.mxu0 %v903
      %1226 = vmatmul.mubr.f32.gmra.mxu0 %v902
      %v1227 = vpop.f32.mrf.mxu0
      %v1228 = vadd.f32 0.0, %v1227
      %v1229 = vpop.f32.mrf.mxu0
      %1230 = vdwg.mxu0
      %1231 = vst.msk [vmem:[#allocation2 + $0x20] sm:$0xff] %vm694, %v1223
      %1232 = vst.msk [vmem:[#allocation2 + $0x28] sm:$0xff] %vm694, %v1228
      %s1233 = scalar_lea.vmem %s9, 768
      %v1234 = vld [vmem:[%s1233] sm:$0xff]
      %v1235 = vld [vmem:[%s1233 + $0x8] sm:$0xff]
      %v1236 = vld [vmem:[%s1233 + $0x10] sm:$0xff]
      %v1237 = vld [vmem:[%s1233 + $0x18] sm:$0xff]
      %v1238 = vld [vmem:[%s1233 + $0x20] sm:$0xff]
      %v1239 = vld [vmem:[%s1233 + $0x28] sm:$0xff]
      %v1240 = vld [vmem:[%s1233 + $0x30] sm:$0xff]
      %v1241 = vld [vmem:[%s1233 + $0x38] sm:$0xff]
      %v1242 = vld [vmem:[%s1233 + $0x40] sm:$0xff]
      %v1243 = vld [vmem:[%s1233 + $0x48] sm:$0xff]
      %v1244 = vld [vmem:[%s1233 + $0x50] sm:$0xff]
      %v1245 = vld [vmem:[%s1233 + $0x58] sm:$0xff]
      %v1246 = vld [vmem:[%s1233 + $0x60] sm:$0xff]
      %v1247 = vld [vmem:[%s1233 + $0x68] sm:$0xff]
      %v1248 = vld [vmem:[%s1233 + $0x70] sm:$0xff]
      %v1249 = vld [vmem:[%s1233 + $0x78] sm:$0xff]
      %v1250 = vld [vmem:[%s1233 + $0x80] sm:$0xff]
      %v1251 = vld [vmem:[%s1233 + $0x88] sm:$0xff]
      %v1252 = vld [vmem:[%s1233 + $0x90] sm:$0xff]
      %v1253 = vld [vmem:[%s1233 + $0x98] sm:$0xff]
      %v1254 = vld [vmem:[%s1233 + $0xa0] sm:$0xff]
      %v1255 = vld [vmem:[%s1233 + $0xa8] sm:$0xff]
      %v1256 = vld [vmem:[%s1233 + $0xb0] sm:$0xff]
      %v1257 = vld [vmem:[%s1233 + $0xb8] sm:$0xff]
      %v1258 = vld [vmem:[%s1233 + $0xc0] sm:$0xff]
      %v1259 = vld [vmem:[%s1233 + $0xc8] sm:$0xff]
      %v1260 = vld [vmem:[%s1233 + $0xd0] sm:$0xff]
      %v1261 = vld [vmem:[%s1233 + $0xd8] sm:$0xff]
      %v1262 = vld [vmem:[%s1233 + $0xe0] sm:$0xff]
      %v1263 = vld [vmem:[%s1233 + $0xe8] sm:$0xff]
      %v1264 = vld [vmem:[%s1233 + $0xf0] sm:$0xff]
      %v1265 = vld [vmem:[%s1233 + $0xf8] sm:$0xff]
      %1266 = vmatprep.subr.mxu0 0.0
      %1267 = vmatpush1.msra.mxu0 %v1249
      %1268 = vmatprep.subr.mxu0 0.0
      %1269 = vmatpush1.msra.mxu0 %v1248
      %1270 = vmatprep.subr.mxu0 0.0
      %1271 = vmatpush1.msra.mxu0 %v1247
      %1272 = vmatprep.subr.mxu0 0.0
      %1273 = vmatpush1.msra.mxu0 %v1246
      %1274 = vmatprep.subr.mxu0 0.0
      %1275 = vmatpush1.msra.mxu0 %v1245
      %1276 = vmatprep.subr.mxu0 0.0
      %1277 = vmatpush1.msra.mxu0 %v1244
      %1278 = vmatprep.subr.mxu0 0.0
      %1279 = vmatpush1.msra.mxu0 %v1243
      %1280 = vmatprep.subr.mxu0 0.0
      %1281 = vmatpush1.msra.mxu0 %v1242
      %1282 = vmatprep.subr.mxu0 0.0
      %1283 = vmatpush1.msra.mxu0 %v1241
      %1284 = vmatprep.subr.mxu0 0.0
      %1285 = vmatpush1.msra.mxu0 %v1240
      %1286 = vmatprep.subr.mxu0 0.0
      %1287 = vmatpush1.msra.mxu0 %v1239
      %1288 = vmatprep.subr.mxu0 0.0
      %1289 = vmatpush1.msra.mxu0 %v1238
      %1290 = vmatprep.subr.mxu0 0.0
      %1291 = vmatpush1.msra.mxu0 %v1237
      %1292 = vmatprep.subr.mxu0 0.0
      %1293 = vmatpush1.msra.mxu0 %v1236
      %1294 = vmatprep.subr.mxu0 0.0
      %1295 = vmatpush1.msra.mxu0 %v1235
      %1296 = vmatprep.subr.mxu0 0.0
      %1297 = vmatpush1.msra.mxu0 %v1234
      %1298 = vmatprep.subr.mxu0 0.0
      %1299 = vmatpush2.msra.mxu0 %v1265
      %1300 = vmatprep.subr.mxu0 0.0
      %1301 = vmatpush2.msra.mxu0 %v1264
      %1302 = vmatprep.subr.mxu0 0.0
      %1303 = vmatpush2.msra.mxu0 %v1263
      %1304 = vmatprep.subr.mxu0 0.0
      %1305 = vmatpush2.msra.mxu0 %v1262
      %1306 = vmatprep.subr.mxu0 0.0
      %1307 = vmatpush2.msra.mxu0 %v1261
      %1308 = vmatprep.subr.mxu0 0.0
      %1309 = vmatpush2.msra.mxu0 %v1260
      %1310 = vmatprep.subr.mxu0 0.0
      %1311 = vmatpush2.msra.mxu0 %v1259
      %1312 = vmatprep.subr.mxu0 0.0
      %1313 = vmatpush2.msra.mxu0 %v1258
      %1314 = vmatprep.subr.mxu0 0.0
      %1315 = vmatpush2.msra.mxu0 %v1257
      %1316 = vmatprep.subr.mxu0 0.0
      %1317 = vmatpush2.msra.mxu0 %v1256
      %1318 = vmatprep.subr.mxu0 0.0
      %1319 = vmatpush2.msra.mxu0 %v1255
      %1320 = vmatprep.subr.mxu0 0.0
      %1321 = vmatpush2.msra.mxu0 %v1254
      %1322 = vmatprep.subr.mxu0 0.0
      %1323 = vmatpush2.msra.mxu0 %v1253
      %1324 = vmatprep.subr.mxu0 0.0
      %1325 = vmatpush2.msra.mxu0 %v1252
      %1326 = vmatprep.subr.mxu0 0.0
      %1327 = vmatpush2.msra.mxu0 %v1251
      %1328 = vmatprep.subr.mxu0 0.0
      %1329 = vmatpush2.msra.mxu0 %v1250
      %1330 = vmatprep.mubr.f32.mxu0 %v901
      %1331 = vmatmul.mubr.f32.gmra.mxu0 %v900
      %v1332 = vpop.f32.mrf.mxu0
      %v1333 = vadd.f32 0.0, %v1332
      %v1334 = vpop.f32.mrf.mxu0
      %1335 = vmatprep.mubr.f32.mxu0 %v903
      %1336 = vmatmul.mubr.f32.gmra.mxu0 %v902
      %v1337 = vpop.f32.mrf.mxu0
      %v1338 = vadd.f32 0.0, %v1337
      %v1339 = vpop.f32.mrf.mxu0
      %1340 = vdwg.mxu0
      %1341 = vst.msk [vmem:[#allocation2 + $0x30] sm:$0xff] %vm694, %v1333
      %1342 = vst.msk [vmem:[#allocation2 + $0x38] sm:$0xff] %vm694, %v1338
      %s1343 = scalar_lea.vmem %s9, 1024
      %v1344 = vld [vmem:[%s1343] sm:$0xff]
      %v1345 = vld [vmem:[%s1343 + $0x8] sm:$0xff]
      %v1346 = vld [vmem:[%s1343 + $0x10] sm:$0xff]
      %v1347 = vld [vmem:[%s1343 + $0x18] sm:$0xff]
      %v1348 = vld [vmem:[%s1343 + $0x20] sm:$0xff]
      %v1349 = vld [vmem:[%s1343 + $0x28] sm:$0xff]
      %v1350 = vld [vmem:[%s1343 + $0x30] sm:$0xff]
      %v1351 = vld [vmem:[%s1343 + $0x38] sm:$0xff]
      %v1352 = vld [vmem:[%s1343 + $0x40] sm:$0xff]
      %v1353 = vld [vmem:[%s1343 + $0x48] sm:$0xff]
      %v1354 = vld [vmem:[%s1343 + $0x50] sm:$0xff]
      %v1355 = vld [vmem:[%s1343 + $0x58] sm:$0xff]
      %v1356 = vld [vmem:[%s1343 + $0x60] sm:$0xff]
      %v1357 = vld [vmem:[%s1343 + $0x68] sm:$0xff]
      %v1358 = vld [vmem:[%s1343 + $0x70] sm:$0xff]
      %v1359 = vld [vmem:[%s1343 + $0x78] sm:$0xff]
      %v1360 = vld [vmem:[%s1343 + $0x80] sm:$0xff]
      %v1361 = vld [vmem:[%s1343 + $0x88] sm:$0xff]
      %v1362 = vld [vmem:[%s1343 + $0x90] sm:$0xff]
      %v1363 = vld [vmem:[%s1343 + $0x98] sm:$0xff]
      %v1364 = vld [vmem:[%s1343 + $0xa0] sm:$0xff]
      %v1365 = vld [vmem:[%s1343 + $0xa8] sm:$0xff]
      %v1366 = vld [vmem:[%s1343 + $0xb0] sm:$0xff]
      %v1367 = vld [vmem:[%s1343 + $0xb8] sm:$0xff]
      %v1368 = vld [vmem:[%s1343 + $0xc0] sm:$0xff]
      %v1369 = vld [vmem:[%s1343 + $0xc8] sm:$0xff]
      %v1370 = vld [vmem:[%s1343 + $0xd0] sm:$0xff]
      %v1371 = vld [vmem:[%s1343 + $0xd8] sm:$0xff]
      %v1372 = vld [vmem:[%s1343 + $0xe0] sm:$0xff]
      %v1373 = vld [vmem:[%s1343 + $0xe8] sm:$0xff]
      %v1374 = vld [vmem:[%s1343 + $0xf0] sm:$0xff]
      %v1375 = vld [vmem:[%s1343 + $0xf8] sm:$0xff]
      %1376 = vmatprep.subr.mxu0 0.0
      %1377 = vmatpush1.msra.mxu0 %v1359
      %1378 = vmatprep.subr.mxu0 0.0
      %1379 = vmatpush1.msra.mxu0 %v1358
      %1380 = vmatprep.subr.mxu0 0.0
      %1381 = vmatpush1.msra.mxu0 %v1357
      %1382 = vmatprep.subr.mxu0 0.0
      %1383 = vmatpush1.msra.mxu0 %v1356
      %1384 = vmatprep.subr.mxu0 0.0
      %1385 = vmatpush1.msra.mxu0 %v1355
      %1386 = vmatprep.subr.mxu0 0.0
      %1387 = vmatpush1.msra.mxu0 %v1354
      %1388 = vmatprep.subr.mxu0 0.0
      %1389 = vmatpush1.msra.mxu0 %v1353
      %1390 = vmatprep.subr.mxu0 0.0
      %1391 = vmatpush1.msra.mxu0 %v1352
      %1392 = vmatprep.subr.mxu0 0.0
      %1393 = vmatpush1.msra.mxu0 %v1351
      %1394 = vmatprep.subr.mxu0 0.0
      %1395 = vmatpush1.msra.mxu0 %v1350
      %1396 = vmatprep.subr.mxu0 0.0
      %1397 = vmatpush1.msra.mxu0 %v1349
      %1398 = vmatprep.subr.mxu0 0.0
      %1399 = vmatpush1.msra.mxu0 %v1348
      %1400 = vmatprep.subr.mxu0 0.0
      %1401 = vmatpush1.msra.mxu0 %v1347
      %1402 = vmatprep.subr.mxu0 0.0
      %1403 = vmatpush1.msra.mxu0 %v1346
      %1404 = vmatprep.subr.mxu0 0.0
      %1405 = vmatpush1.msra.mxu0 %v1345
      %1406 = vmatprep.subr.mxu0 0.0
      %1407 = vmatpush1.msra.mxu0 %v1344
      %1408 = vmatprep.subr.mxu0 0.0
      %1409 = vmatpush2.msra.mxu0 %v1375
      %1410 = vmatprep.subr.mxu0 0.0
      %1411 = vmatpush2.msra.mxu0 %v1374
      %1412 = vmatprep.subr.mxu0 0.0
      %1413 = vmatpush2.msra.mxu0 %v1373
      %1414 = vmatprep.subr.mxu0 0.0
      %1415 = vmatpush2.msra.mxu0 %v1372
      %1416 = vmatprep.subr.mxu0 0.0
      %1417 = vmatpush2.msra.mxu0 %v1371
      %1418 = vmatprep.subr.mxu0 0.0
      %1419 = vmatpush2.msra.mxu0 %v1370
      %1420 = vmatprep.subr.mxu0 0.0
      %1421 = vmatpush2.msra.mxu0 %v1369
      %1422 = vmatprep.subr.mxu0 0.0
      %1423 = vmatpush2.msra.mxu0 %v1368
      %1424 = vmatprep.subr.mxu0 0.0
      %1425 = vmatpush2.msra.mxu0 %v1367
      %1426 = vmatprep.subr.mxu0 0.0
      %1427 = vmatpush2.msra.mxu0 %v1366
      %1428 = vmatprep.subr.mxu0 0.0
      %1429 = vmatpush2.msra.mxu0 %v1365
      %1430 = vmatprep.subr.mxu0 0.0
      %1431 = vmatpush2.msra.mxu0 %v1364
      %1432 = vmatprep.subr.mxu0 0.0
      %1433 = vmatpush2.msra.mxu0 %v1363
      %1434 = vmatprep.subr.mxu0 0.0
      %1435 = vmatpush2.msra.mxu0 %v1362
      %1436 = vmatprep.subr.mxu0 0.0
      %1437 = vmatpush2.msra.mxu0 %v1361
      %1438 = vmatprep.subr.mxu0 0.0
      %1439 = vmatpush2.msra.mxu0 %v1360
      %1440 = vmatprep.mubr.f32.mxu0 %v901
      %1441 = vmatmul.mubr.f32.gmra.mxu0 %v900
      %v1442 = vpop.f32.mrf.mxu0
      %v1443 = vadd.f32 0.0, %v1442
      %v1444 = vpop.f32.mrf.mxu0
      %1445 = vmatprep.mubr.f32.mxu0 %v903
      %1446 = vmatmul.mubr.f32.gmra.mxu0 %v902
      %v1447 = vpop.f32.mrf.mxu0
      %v1448 = vadd.f32 0.0, %v1447
      %v1449 = vpop.f32.mrf.mxu0
      %1450 = vdwg.mxu0
      %1451 = vst.msk [vmem:[#allocation2 + $0x40] sm:$0xff] %vm694, %v1443
      %1452 = vst.msk [vmem:[#allocation2 + $0x48] sm:$0xff] %vm694, %v1448
      %s1453 = scalar_lea.vmem %s9, 1280
      %v1454 = vld [vmem:[%s1453] sm:$0xff]
      %v1455 = vld [vmem:[%s1453 + $0x8] sm:$0xff]
      %v1456 = vld [vmem:[%s1453 + $0x10] sm:$0xff]
      %v1457 = vld [vmem:[%s1453 + $0x18] sm:$0xff]
      %v1458 = vld [vmem:[%s1453 + $0x20] sm:$0xff]
      %v1459 = vld [vmem:[%s1453 + $0x28] sm:$0xff]
      %v1460 = vld [vmem:[%s1453 + $0x30] sm:$0xff]
      %v1461 = vld [vmem:[%s1453 + $0x38] sm:$0xff]
      %v1462 = vld [vmem:[%s1453 + $0x40] sm:$0xff]
      %v1463 = vld [vmem:[%s1453 + $0x48] sm:$0xff]
      %v1464 = vld [vmem:[%s1453 + $0x50] sm:$0xff]
      %v1465 = vld [vmem:[%s1453 + $0x58] sm:$0xff]
      %v1466 = vld [vmem:[%s1453 + $0x60] sm:$0xff]
      %v1467 = vld [vmem:[%s1453 + $0x68] sm:$0xff]
      %v1468 = vld [vmem:[%s1453 + $0x70] sm:$0xff]
      %v1469 = vld [vmem:[%s1453 + $0x78] sm:$0xff]
      %v1470 = vld [vmem:[%s1453 + $0x80] sm:$0xff]
      %v1471 = vld [vmem:[%s1453 + $0x88] sm:$0xff]
      %v1472 = vld [vmem:[%s1453 + $0x90] sm:$0xff]
      %v1473 = vld [vmem:[%s1453 + $0x98] sm:$0xff]
      %v1474 = vld [vmem:[%s1453 + $0xa0] sm:$0xff]
      %v1475 = vld [vmem:[%s1453 + $0xa8] sm:$0xff]
      %v1476 = vld [vmem:[%s1453 + $0xb0] sm:$0xff]
      %v1477 = vld [vmem:[%s1453 + $0xb8] sm:$0xff]
      %v1478 = vld [vmem:[%s1453 + $0xc0] sm:$0xff]
      %v1479 = vld [vmem:[%s1453 + $0xc8] sm:$0xff]
      %v1480 = vld [vmem:[%s1453 + $0xd0] sm:$0xff]
      %v1481 = vld [vmem:[%s1453 + $0xd8] sm:$0xff]
      %v1482 = vld [vmem:[%s1453 + $0xe0] sm:$0xff]
      %v1483 = vld [vmem:[%s1453 + $0xe8] sm:$0xff]
      %v1484 = vld [vmem:[%s1453 + $0xf0] sm:$0xff]
      %v1485 = vld [vmem:[%s1453 + $0xf8] sm:$0xff]
      %1486 = vmatprep.subr.mxu0 0.0
      %1487 = vmatpush1.msra.mxu0 %v1469
      %1488 = vmatprep.subr.mxu0 0.0
      %1489 = vmatpush1.msra.mxu0 %v1468
      %1490 = vmatprep.subr.mxu0 0.0
      %1491 = vmatpush1.msra.mxu0 %v1467
      %1492 = vmatprep.subr.mxu0 0.0
      %1493 = vmatpush1.msra.mxu0 %v1466
      %1494 = vmatprep.subr.mxu0 0.0
      %1495 = vmatpush1.msra.mxu0 %v1465
      %1496 = vmatprep.subr.mxu0 0.0
      %1497 = vmatpush1.msra.mxu0 %v1464
      %1498 = vmatprep.subr.mxu0 0.0
      %1499 = vmatpush1.msra.mxu0 %v1463
      %1500 = vmatprep.subr.mxu0 0.0
      %1501 = vmatpush1.msra.mxu0 %v1462
      %1502 = vmatprep.subr.mxu0 0.0
      %1503 = vmatpush1.msra.mxu0 %v1461
      %1504 = vmatprep.subr.mxu0 0.0
      %1505 = vmatpush1.msra.mxu0 %v1460
      %1506 = vmatprep.subr.mxu0 0.0
      %1507 = vmatpush1.msra.mxu0 %v1459
      %1508 = vmatprep.subr.mxu0 0.0
      %1509 = vmatpush1.msra.mxu0 %v1458
      %1510 = vmatprep.subr.mxu0 0.0
      %1511 = vmatpush1.msra.mxu0 %v1457
      %1512 = vmatprep.subr.mxu0 0.0
      %1513 = vmatpush1.msra.mxu0 %v1456
      %1514 = vmatprep.subr.mxu0 0.0
      %1515 = vmatpush1.msra.mxu0 %v1455
      %1516 = vmatprep.subr.mxu0 0.0
      %1517 = vmatpush1.msra.mxu0 %v1454
      %1518 = vmatprep.subr.mxu0 0.0
      %1519 = vmatpush2.msra.mxu0 %v1485
      %1520 = vmatprep.subr.mxu0 0.0
      %1521 = vmatpush2.msra.mxu0 %v1484
      %1522 = vmatprep.subr.mxu0 0.0
      %1523 = vmatpush2.msra.mxu0 %v1483
      %1524 = vmatprep.subr.mxu0 0.0
      %1525 = vmatpush2.msra.mxu0 %v1482
      %1526 = vmatprep.subr.mxu0 0.0
      %1527 = vmatpush2.msra.mxu0 %v1481
      %1528 = vmatprep.subr.mxu0 0.0
      %1529 = vmatpush2.msra.mxu0 %v1480
      %1530 = vmatprep.subr.mxu0 0.0
      %1531 = vmatpush2.msra.mxu0 %v1479
      %1532 = vmatprep.subr.mxu0 0.0
      %1533 = vmatpush2.msra.mxu0 %v1478
      %1534 = vmatprep.subr.mxu0 0.0
      %1535 = vmatpush2.msra.mxu0 %v1477
      %1536 = vmatprep.subr.mxu0 0.0
      %1537 = vmatpush2.msra.mxu0 %v1476
      %1538 = vmatprep.subr.mxu0 0.0
      %1539 = vmatpush2.msra.mxu0 %v1475
      %1540 = vmatprep.subr.mxu0 0.0
      %1541 = vmatpush2.msra.mxu0 %v1474
      %1542 = vmatprep.subr.mxu0 0.0
      %1543 = vmatpush2.msra.mxu0 %v1473
      %1544 = vmatprep.subr.mxu0 0.0
      %1545 = vmatpush2.msra.mxu0 %v1472
      %1546 = vmatprep.subr.mxu0 0.0
      %1547 = vmatpush2.msra.mxu0 %v1471
      %1548 = vmatprep.subr.mxu0 0.0
      %1549 = vmatpush2.msra.mxu0 %v1470
      %1550 = vmatprep.mubr.f32.mxu0 %v901
      %1551 = vmatmul.mubr.f32.gmra.mxu0 %v900
      %v1552 = vpop.f32.mrf.mxu0
      %v1553 = vadd.f32 0.0, %v1552
      %v1554 = vpop.f32.mrf.mxu0
      %1555 = vmatprep.mubr.f32.mxu0 %v903
      %1556 = vmatmul.mubr.f32.gmra.mxu0 %v902
      %v1557 = vpop.f32.mrf.mxu0
      %v1558 = vadd.f32 0.0, %v1557
      %v1559 = vpop.f32.mrf.mxu0
      %1560 = vdwg.mxu0
      %1561 = vst.msk [vmem:[#allocation2 + $0x50] sm:$0xff] %vm694, %v1553
      %1562 = vst.msk [vmem:[#allocation2 + $0x58] sm:$0xff] %vm694, %v1558
      %s1563 = scalar_lea.vmem %s9, 1536
      %v1564 = vld [vmem:[%s1563] sm:$0xff]
      %v1565 = vld [vmem:[%s1563 + $0x8] sm:$0xff]
      %v1566 = vld [vmem:[%s1563 + $0x10] sm:$0xff]
      %v1567 = vld [vmem:[%s1563 + $0x18] sm:$0xff]
      %v1568 = vld [vmem:[%s1563 + $0x20] sm:$0xff]
      %v1569 = vld [vmem:[%s1563 + $0x28] sm:$0xff]
      %v1570 = vld [vmem:[%s1563 + $0x30] sm:$0xff]
      %v1571 = vld [vmem:[%s1563 + $0x38] sm:$0xff]
      %v1572 = vld [vmem:[%s1563 + $0x40] sm:$0xff]
      %v1573 = vld [vmem:[%s1563 + $0x48] sm:$0xff]
      %v1574 = vld [vmem:[%s1563 + $0x50] sm:$0xff]
      %v1575 = vld [vmem:[%s1563 + $0x58] sm:$0xff]
      %v1576 = vld [vmem:[%s1563 + $0x60] sm:$0xff]
      %v1577 = vld [vmem:[%s1563 + $0x68] sm:$0xff]
      %v1578 = vld [vmem:[%s1563 + $0x70] sm:$0xff]
      %v1579 = vld [vmem:[%s1563 + $0x78] sm:$0xff]
      %v1580 = vld [vmem:[%s1563 + $0x80] sm:$0xff]
      %v1581 = vld [vmem:[%s1563 + $0x88] sm:$0xff]
      %v1582 = vld [vmem:[%s1563 + $0x90] sm:$0xff]
      %v1583 = vld [vmem:[%s1563 + $0x98] sm:$0xff]
      %v1584 = vld [vmem:[%s1563 + $0xa0] sm:$0xff]
      %v1585 = vld [vmem:[%s1563 + $0xa8] sm:$0xff]
      %v1586 = vld [vmem:[%s1563 + $0xb0] sm:$0xff]
      %v1587 = vld [vmem:[%s1563 + $0xb8] sm:$0xff]
      %v1588 = vld [vmem:[%s1563 + $0xc0] sm:$0xff]
      %v1589 = vld [vmem:[%s1563 + $0xc8] sm:$0xff]
      %v1590 = vld [vmem:[%s1563 + $0xd0] sm:$0xff]
      %v1591 = vld [vmem:[%s1563 + $0xd8] sm:$0xff]
      %v1592 = vld [vmem:[%s1563 + $0xe0] sm:$0xff]
      %v1593 = vld [vmem:[%s1563 + $0xe8] sm:$0xff]
      %v1594 = vld [vmem:[%s1563 + $0xf0] sm:$0xff]
      %v1595 = vld [vmem:[%s1563 + $0xf8] sm:$0xff]
      %1596 = vmatprep.subr.mxu0 0.0
      %1597 = vmatpush1.msra.mxu0 %v1579
      %1598 = vmatprep.subr.mxu0 0.0
      %1599 = vmatpush1.msra.mxu0 %v1578
      %1600 = vmatprep.subr.mxu0 0.0
      %1601 = vmatpush1.msra.mxu0 %v1577
      %1602 = vmatprep.subr.mxu0 0.0
      %1603 = vmatpush1.msra.mxu0 %v1576
      %1604 = vmatprep.subr.mxu0 0.0
      %1605 = vmatpush1.msra.mxu0 %v1575
      %1606 = vmatprep.subr.mxu0 0.0
      %1607 = vmatpush1.msra.mxu0 %v1574
      %1608 = vmatprep.subr.mxu0 0.0
      %1609 = vmatpush1.msra.mxu0 %v1573
      %1610 = vmatprep.subr.mxu0 0.0
      %1611 = vmatpush1.msra.mxu0 %v1572
      %1612 = vmatprep.subr.mxu0 0.0
      %1613 = vmatpush1.msra.mxu0 %v1571
      %1614 = vmatprep.subr.mxu0 0.0
      %1615 = vmatpush1.msra.mxu0 %v1570
      %1616 = vmatprep.subr.mxu0 0.0
      %1617 = vmatpush1.msra.mxu0 %v1569
      %1618 = vmatprep.subr.mxu0 0.0
      %1619 = vmatpush1.msra.mxu0 %v1568
      %1620 = vmatprep.subr.mxu0 0.0
      %1621 = vmatpush1.msra.mxu0 %v1567
      %1622 = vmatprep.subr.mxu0 0.0
      %1623 = vmatpush1.msra.mxu0 %v1566
      %1624 = vmatprep.subr.mxu0 0.0
      %1625 = vmatpush1.msra.mxu0 %v1565
      %1626 = vmatprep.subr.mxu0 0.0
      %1627 = vmatpush1.msra.mxu0 %v1564
      %1628 = vmatprep.subr.mxu0 0.0
      %1629 = vmatpush2.msra.mxu0 %v1595
      %1630 = vmatprep.subr.mxu0 0.0
      %1631 = vmatpush2.msra.mxu0 %v1594
      %1632 = vmatprep.subr.mxu0 0.0
      %1633 = vmatpush2.msra.mxu0 %v1593
      %1634 = vmatprep.subr.mxu0 0.0
      %1635 = vmatpush2.msra.mxu0 %v1592
      %1636 = vmatprep.subr.mxu0 0.0
      %1637 = vmatpush2.msra.mxu0 %v1591
      %1638 = vmatprep.subr.mxu0 0.0
      %1639 = vmatpush2.msra.mxu0 %v1590
      %1640 = vmatprep.subr.mxu0 0.0
      %1641 = vmatpush2.msra.mxu0 %v1589
      %1642 = vmatprep.subr.mxu0 0.0
      %1643 = vmatpush2.msra.mxu0 %v1588
      %1644 = vmatprep.subr.mxu0 0.0
      %1645 = vmatpush2.msra.mxu0 %v1587
      %1646 = vmatprep.subr.mxu0 0.0
      %1647 = vmatpush2.msra.mxu0 %v1586
      %1648 = vmatprep.subr.mxu0 0.0
      %1649 = vmatpush2.msra.mxu0 %v1585
      %1650 = vmatprep.subr.mxu0 0.0
      %1651 = vmatpush2.msra.mxu0 %v1584
      %1652 = vmatprep.subr.mxu0 0.0
      %1653 = vmatpush2.msra.mxu0 %v1583
      %1654 = vmatprep.subr.mxu0 0.0
      %1655 = vmatpush2.msra.mxu0 %v1582
      %1656 = vmatprep.subr.mxu0 0.0
      %1657 = vmatpush2.msra.mxu0 %v1581
      %1658 = vmatprep.subr.mxu0 0.0
      %1659 = vmatpush2.msra.mxu0 %v1580
      %1660 = vmatprep.mubr.f32.mxu0 %v901
      %1661 = vmatmul.mubr.f32.gmra.mxu0 %v900
      %v1662 = vpop.f32.mrf.mxu0
      %v1663 = vadd.f32 0.0, %v1662
      %v1664 = vpop.f32.mrf.mxu0
      %1665 = vmatprep.mubr.f32.mxu0 %v903
      %1666 = vmatmul.mubr.f32.gmra.mxu0 %v902
      %v1667 = vpop.f32.mrf.mxu0
      %v1668 = vadd.f32 0.0, %v1667
      %v1669 = vpop.f32.mrf.mxu0
      %1670 = vdwg.mxu0
      %1671 = vst.msk [vmem:[#allocation2 + $0x60] sm:$0xff] %vm694, %v1663
      %1672 = vst.msk [vmem:[#allocation2 + $0x68] sm:$0xff] %vm694, %v1668
      %s1673 = scalar_lea.vmem %s9, 1792
      %v1674 = vld [vmem:[%s1673] sm:$0xff]
      %v1675 = vld [vmem:[%s1673 + $0x8] sm:$0xff]
      %v1676 = vld [vmem:[%s1673 + $0x10] sm:$0xff]
      %v1677 = vld [vmem:[%s1673 + $0x18] sm:$0xff]
      %v1678 = vld [vmem:[%s1673 + $0x20] sm:$0xff]
      %v1679 = vld [vmem:[%s1673 + $0x28] sm:$0xff]
      %v1680 = vld [vmem:[%s1673 + $0x30] sm:$0xff]
      %v1681 = vld [vmem:[%s1673 + $0x38] sm:$0xff]
      %v1682 = vld [vmem:[%s1673 + $0x40] sm:$0xff]
      %v1683 = vld [vmem:[%s1673 + $0x48] sm:$0xff]
      %v1684 = vld [vmem:[%s1673 + $0x50] sm:$0xff]
      %v1685 = vld [vmem:[%s1673 + $0x58] sm:$0xff]
      %v1686 = vld [vmem:[%s1673 + $0x60] sm:$0xff]
      %v1687 = vld [vmem:[%s1673 + $0x68] sm:$0xff]
      %v1688 = vld [vmem:[%s1673 + $0x70] sm:$0xff]
      %v1689 = vld [vmem:[%s1673 + $0x78] sm:$0xff]
      %v1690 = vld [vmem:[%s1673 + $0x80] sm:$0xff]
      %v1691 = vld [vmem:[%s1673 + $0x88] sm:$0xff]
      %v1692 = vld [vmem:[%s1673 + $0x90] sm:$0xff]
      %v1693 = vld [vmem:[%s1673 + $0x98] sm:$0xff]
      %v1694 = vld [vmem:[%s1673 + $0xa0] sm:$0xff]
      %v1695 = vld [vmem:[%s1673 + $0xa8] sm:$0xff]
      %v1696 = vld [vmem:[%s1673 + $0xb0] sm:$0xff]
      %v1697 = vld [vmem:[%s1673 + $0xb8] sm:$0xff]
      %v1698 = vld [vmem:[%s1673 + $0xc0] sm:$0xff]
      %v1699 = vld [vmem:[%s1673 + $0xc8] sm:$0xff]
      %v1700 = vld [vmem:[%s1673 + $0xd0] sm:$0xff]
      %v1701 = vld [vmem:[%s1673 + $0xd8] sm:$0xff]
      %v1702 = vld [vmem:[%s1673 + $0xe0] sm:$0xff]
      %v1703 = vld [vmem:[%s1673 + $0xe8] sm:$0xff]
      %v1704 = vld [vmem:[%s1673 + $0xf0] sm:$0xff]
      %v1705 = vld [vmem:[%s1673 + $0xf8] sm:$0xff]
      %1706 = vmatprep.subr.mxu0 0.0
      %1707 = vmatpush1.msra.mxu0 %v1689
      %1708 = vmatprep.subr.mxu0 0.0
      %1709 = vmatpush1.msra.mxu0 %v1688
      %1710 = vmatprep.subr.mxu0 0.0
      %1711 = vmatpush1.msra.mxu0 %v1687
      %1712 = vmatprep.subr.mxu0 0.0
      %1713 = vmatpush1.msra.mxu0 %v1686
      %1714 = vmatprep.subr.mxu0 0.0
      %1715 = vmatpush1.msra.mxu0 %v1685
      %1716 = vmatprep.subr.mxu0 0.0
      %1717 = vmatpush1.msra.mxu0 %v1684
      %1718 = vmatprep.subr.mxu0 0.0
      %1719 = vmatpush1.msra.mxu0 %v1683
      %1720 = vmatprep.subr.mxu0 0.0
      %1721 = vmatpush1.msra.mxu0 %v1682
      %1722 = vmatprep.subr.mxu0 0.0
      %1723 = vmatpush1.msra.mxu0 %v1681
      %1724 = vmatprep.subr.mxu0 0.0
      %1725 = vmatpush1.msra.mxu0 %v1680
      %1726 = vmatprep.subr.mxu0 0.0
      %1727 = vmatpush1.msra.mxu0 %v1679
      %1728 = vmatprep.subr.mxu0 0.0
      %1729 = vmatpush1.msra.mxu0 %v1678
      %1730 = vmatprep.subr.mxu0 0.0
      %1731 = vmatpush1.msra.mxu0 %v1677
      %1732 = vmatprep.subr.mxu0 0.0
      %1733 = vmatpush1.msra.mxu0 %v1676
      %1734 = vmatprep.subr.mxu0 0.0
      %1735 = vmatpush1.msra.mxu0 %v1675
      %1736 = vmatprep.subr.mxu0 0.0
      %1737 = vmatpush1.msra.mxu0 %v1674
      %1738 = vmatprep.subr.mxu0 0.0
      %1739 = vmatpush2.msra.mxu0 %v1705
      %1740 = vmatprep.subr.mxu0 0.0
      %1741 = vmatpush2.msra.mxu0 %v1704
      %1742 = vmatprep.subr.mxu0 0.0
      %1743 = vmatpush2.msra.mxu0 %v1703
      %1744 = vmatprep.subr.mxu0 0.0
      %1745 = vmatpush2.msra.mxu0 %v1702
      %1746 = vmatprep.subr.mxu0 0.0
      %1747 = vmatpush2.msra.mxu0 %v1701
      %1748 = vmatprep.subr.mxu0 0.0
      %1749 = vmatpush2.msra.mxu0 %v1700
      %1750 = vmatprep.subr.mxu0 0.0
      %1751 = vmatpush2.msra.mxu0 %v1699
      %1752 = vmatprep.subr.mxu0 0.0
      %1753 = vmatpush2.msra.mxu0 %v1698
      %1754 = vmatprep.subr.mxu0 0.0
      %1755 = vmatpush2.msra.mxu0 %v1697
      %1756 = vmatprep.subr.mxu0 0.0
      %1757 = vmatpush2.msra.mxu0 %v1696
      %1758 = vmatprep.subr.mxu0 0.0
      %1759 = vmatpush2.msra.mxu0 %v1695
      %1760 = vmatprep.subr.mxu0 0.0
      %1761 = vmatpush2.msra.mxu0 %v1694
      %1762 = vmatprep.subr.mxu0 0.0
      %1763 = vmatpush2.msra.mxu0 %v1693
      %1764 = vmatprep.subr.mxu0 0.0
      %1765 = vmatpush2.msra.mxu0 %v1692
      %1766 = vmatprep.subr.mxu0 0.0
      %1767 = vmatpush2.msra.mxu0 %v1691
      %1768 = vmatprep.subr.mxu0 0.0
      %1769 = vmatpush2.msra.mxu0 %v1690
      %1770 = vmatprep.mubr.f32.mxu0 %v901
      %1771 = vmatmul.mubr.f32.gmra.mxu0 %v900
      %v1772 = vpop.f32.mrf.mxu0
      %v1773 = vadd.f32 0.0, %v1772
      %v1774 = vpop.f32.mrf.mxu0
      %1775 = vmatprep.mubr.f32.mxu0 %v903
      %1776 = vmatmul.mubr.f32.gmra.mxu0 %v902
      %v1777 = vpop.f32.mrf.mxu0
      %v1778 = vadd.f32 0.0, %v1777
      %v1779 = vpop.f32.mrf.mxu0
      %1780 = vdwg.mxu0
      %1781 = vst.msk [vmem:[#allocation2 + $0x70] sm:$0xff] %vm694, %v1773
      %1782 = vst.msk [vmem:[#allocation2 + $0x78] sm:$0xff] %vm694, %v1778
      %s1783 = scalar_lea.vmem %s9, 2048
      %v1784 = vld [vmem:[%s1783] sm:$0xff]
      %v1785 = vld [vmem:[%s1783 + $0x8] sm:$0xff]
      %v1786 = vld [vmem:[%s1783 + $0x10] sm:$0xff]
      %v1787 = vld [vmem:[%s1783 + $0x18] sm:$0xff]
      %v1788 = vld [vmem:[%s1783 + $0x20] sm:$0xff]
      %v1789 = vld [vmem:[%s1783 + $0x28] sm:$0xff]
      %v1790 = vld [vmem:[%s1783 + $0x30] sm:$0xff]
      %v1791 = vld [vmem:[%s1783 + $0x38] sm:$0xff]
      %v1792 = vld [vmem:[%s1783 + $0x40] sm:$0xff]
      %v1793 = vld [vmem:[%s1783 + $0x48] sm:$0xff]
      %v1794 = vld [vmem:[%s1783 + $0x50] sm:$0xff]
      %v1795 = vld [vmem:[%s1783 + $0x58] sm:$0xff]
      %v1796 = vld [vmem:[%s1783 + $0x60] sm:$0xff]
      %v1797 = vld [vmem:[%s1783 + $0x68] sm:$0xff]
      %v1798 = vld [vmem:[%s1783 + $0x70] sm:$0xff]
      %v1799 = vld [vmem:[%s1783 + $0x78] sm:$0xff]
      %v1800 = vld [vmem:[%s1783 + $0x80] sm:$0xff]
      %v1801 = vld [vmem:[%s1783 + $0x88] sm:$0xff]
      %v1802 = vld [vmem:[%s1783 + $0x90] sm:$0xff]
      %v1803 = vld [vmem:[%s1783 + $0x98] sm:$0xff]
      %v1804 = vld [vmem:[%s1783 + $0xa0] sm:$0xff]
      %v1805 = vld [vmem:[%s1783 + $0xa8] sm:$0xff]
      %v1806 = vld [vmem:[%s1783 + $0xb0] sm:$0xff]
      %v1807 = vld [vmem:[%s1783 + $0xb8] sm:$0xff]
      %v1808 = vld [vmem:[%s1783 + $0xc0] sm:$0xff]
      %v1809 = vld [vmem:[%s1783 + $0xc8] sm:$0xff]
      %v1810 = vld [vmem:[%s1783 + $0xd0] sm:$0xff]
      %v1811 = vld [vmem:[%s1783 + $0xd8] sm:$0xff]
      %v1812 = vld [vmem:[%s1783 + $0xe0] sm:$0xff]
      %v1813 = vld [vmem:[%s1783 + $0xe8] sm:$0xff]
      %v1814 = vld [vmem:[%s1783 + $0xf0] sm:$0xff]
      %v1815 = vld [vmem:[%s1783 + $0xf8] sm:$0xff]
      %1816 = vmatprep.subr.mxu0 0.0
      %1817 = vmatpush1.msra.mxu0 %v1799
      %1818 = vmatprep.subr.mxu0 0.0
      %1819 = vmatpush1.msra.mxu0 %v1798
      %1820 = vmatprep.subr.mxu0 0.0
      %1821 = vmatpush1.msra.mxu0 %v1797
      %1822 = vmatprep.subr.mxu0 0.0
      %1823 = vmatpush1.msra.mxu0 %v1796
      %1824 = vmatprep.subr.mxu0 0.0
      %1825 = vmatpush1.msra.mxu0 %v1795
      %1826 = vmatprep.subr.mxu0 0.0
      %1827 = vmatpush1.msra.mxu0 %v1794
      %1828 = vmatprep.subr.mxu0 0.0
      %1829 = vmatpush1.msra.mxu0 %v1793
      %1830 = vmatprep.subr.mxu0 0.0
      %1831 = vmatpush1.msra.mxu0 %v1792
      %1832 = vmatprep.subr.mxu0 0.0
      %1833 = vmatpush1.msra.mxu0 %v1791
      %1834 = vmatprep.subr.mxu0 0.0
      %1835 = vmatpush1.msra.mxu0 %v1790
      %1836 = vmatprep.subr.mxu0 0.0
      %1837 = vmatpush1.msra.mxu0 %v1789
      %1838 = vmatprep.subr.mxu0 0.0
      %1839 = vmatpush1.msra.mxu0 %v1788
      %1840 = vmatprep.subr.mxu0 0.0
      %1841 = vmatpush1.msra.mxu0 %v1787
      %1842 = vmatprep.subr.mxu0 0.0
      %1843 = vmatpush1.msra.mxu0 %v1786
      %1844 = vmatprep.subr.mxu0 0.0
      %1845 = vmatpush1.msra.mxu0 %v1785
      %1846 = vmatprep.subr.mxu0 0.0
      %1847 = vmatpush1.msra.mxu0 %v1784
      %1848 = vmatprep.subr.mxu0 0.0
      %1849 = vmatpush2.msra.mxu0 %v1815
      %1850 = vmatprep.subr.mxu0 0.0
      %1851 = vmatpush2.msra.mxu0 %v1814
      %1852 = vmatprep.subr.mxu0 0.0
      %1853 = vmatpush2.msra.mxu0 %v1813
      %1854 = vmatprep.subr.mxu0 0.0
      %1855 = vmatpush2.msra.mxu0 %v1812
      %1856 = vmatprep.subr.mxu0 0.0
      %1857 = vmatpush2.msra.mxu0 %v1811
      %1858 = vmatprep.subr.mxu0 0.0
      %1859 = vmatpush2.msra.mxu0 %v1810
      %1860 = vmatprep.subr.mxu0 0.0
      %1861 = vmatpush2.msra.mxu0 %v1809
      %1862 = vmatprep.subr.mxu0 0.0
      %1863 = vmatpush2.msra.mxu0 %v1808
      %1864 = vmatprep.subr.mxu0 0.0
      %1865 = vmatpush2.msra.mxu0 %v1807
      %1866 = vmatprep.subr.mxu0 0.0
      %1867 = vmatpush2.msra.mxu0 %v1806
      %1868 = vmatprep.subr.mxu0 0.0
      %1869 = vmatpush2.msra.mxu0 %v1805
      %1870 = vmatprep.subr.mxu0 0.0
      %1871 = vmatpush2.msra.mxu0 %v1804
      %1872 = vmatprep.subr.mxu0 0.0
      %1873 = vmatpush2.msra.mxu0 %v1803
      %1874 = vmatprep.subr.mxu0 0.0
      %1875 = vmatpush2.msra.mxu0 %v1802
      %1876 = vmatprep.subr.mxu0 0.0
      %1877 = vmatpush2.msra.mxu0 %v1801
      %1878 = vmatprep.subr.mxu0 0.0
      %1879 = vmatpush2.msra.mxu0 %v1800
      %1880 = vmatprep.mubr.f32.mxu0 %v901
      %1881 = vmatmul.mubr.f32.gmra.mxu0 %v900
      %v1882 = vpop.f32.mrf.mxu0
      %v1883 = vadd.f32 0.0, %v1882
      %v1884 = vpop.f32.mrf.mxu0
      %1885 = vmatprep.mubr.f32.mxu0 %v903
      %1886 = vmatmul.mubr.f32.gmra.mxu0 %v902
      %v1887 = vpop.f32.mrf.mxu0
      %v1888 = vadd.f32 0.0, %v1887
      %v1889 = vpop.f32.mrf.mxu0
      %1890 = vdwg.mxu0
      %1891 = vst.msk [vmem:[#allocation2 + $0x80] sm:$0xff] %vm694, %v1883
      %1892 = vst.msk [vmem:[#allocation2 + $0x88] sm:$0xff] %vm694, %v1888
      %s1893 = scalar_lea.vmem %s9, 2304
      %v1894 = vld [vmem:[%s1893] sm:$0xff]
      %v1895 = vld [vmem:[%s1893 + $0x8] sm:$0xff]
      %v1896 = vld [vmem:[%s1893 + $0x10] sm:$0xff]
      %v1897 = vld [vmem:[%s1893 + $0x18] sm:$0xff]
      %v1898 = vld [vmem:[%s1893 + $0x20] sm:$0xff]
      %v1899 = vld [vmem:[%s1893 + $0x28] sm:$0xff]
      %v1900 = vld [vmem:[%s1893 + $0x30] sm:$0xff]
      %v1901 = vld [vmem:[%s1893 + $0x38] sm:$0xff]
      %v1902 = vld [vmem:[%s1893 + $0x40] sm:$0xff]
      %v1903 = vld [vmem:[%s1893 + $0x48] sm:$0xff]
      %v1904 = vld [vmem:[%s1893 + $0x50] sm:$0xff]
      %v1905 = vld [vmem:[%s1893 + $0x58] sm:$0xff]
      %v1906 = vld [vmem:[%s1893 + $0x60] sm:$0xff]
      %v1907 = vld [vmem:[%s1893 + $0x68] sm:$0xff]
      %v1908 = vld [vmem:[%s1893 + $0x70] sm:$0xff]
      %v1909 = vld [vmem:[%s1893 + $0x78] sm:$0xff]
      %v1910 = vld [vmem:[%s1893 + $0x80] sm:$0xff]
      %v1911 = vld [vmem:[%s1893 + $0x88] sm:$0xff]
      %v1912 = vld [vmem:[%s1893 + $0x90] sm:$0xff]
      %v1913 = vld [vmem:[%s1893 + $0x98] sm:$0xff]
      %v1914 = vld [vmem:[%s1893 + $0xa0] sm:$0xff]
      %v1915 = vld [vmem:[%s1893 + $0xa8] sm:$0xff]
      %v1916 = vld [vmem:[%s1893 + $0xb0] sm:$0xff]
      %v1917 = vld [vmem:[%s1893 + $0xb8] sm:$0xff]
      %v1918 = vld [vmem:[%s1893 + $0xc0] sm:$0xff]
      %v1919 = vld [vmem:[%s1893 + $0xc8] sm:$0xff]
      %v1920 = vld [vmem:[%s1893 + $0xd0] sm:$0xff]
      %v1921 = vld [vmem:[%s1893 + $0xd8] sm:$0xff]
      %v1922 = vld [vmem:[%s1893 + $0xe0] sm:$0xff]
      %v1923 = vld [vmem:[%s1893 + $0xe8] sm:$0xff]
      %v1924 = vld [vmem:[%s1893 + $0xf0] sm:$0xff]
      %v1925 = vld [vmem:[%s1893 + $0xf8] sm:$0xff]
      %1926 = vmatprep.subr.mxu0 0.0
      %1927 = vmatpush1.msra.mxu0 %v1909
      %1928 = vmatprep.subr.mxu0 0.0
      %1929 = vmatpush1.msra.mxu0 %v1908
      %1930 = vmatprep.subr.mxu0 0.0
      %1931 = vmatpush1.msra.mxu0 %v1907
      %1932 = vmatprep.subr.mxu0 0.0
      %1933 = vmatpush1.msra.mxu0 %v1906
      %1934 = vmatprep.subr.mxu0 0.0
      %1935 = vmatpush1.msra.mxu0 %v1905
      %1936 = vmatprep.subr.mxu0 0.0
      %1937 = vmatpush1.msra.mxu0 %v1904
      %1938 = vmatprep.subr.mxu0 0.0
      %1939 = vmatpush1.msra.mxu0 %v1903
      %1940 = vmatprep.subr.mxu0 0.0
      %1941 = vmatpush1.msra.mxu0 %v1902
      %1942 = vmatprep.subr.mxu0 0.0
      %1943 = vmatpush1.msra.mxu0 %v1901
      %1944 = vmatprep.subr.mxu0 0.0
      %1945 = vmatpush1.msra.mxu0 %v1900
      %1946 = vmatprep.subr.mxu0 0.0
      %1947 = vmatpush1.msra.mxu0 %v1899
      %1948 = vmatprep.subr.mxu0 0.0
      %1949 = vmatpush1.msra.mxu0 %v1898
      %1950 = vmatprep.subr.mxu0 0.0
      %1951 = vmatpush1.msra.mxu0 %v1897
      %1952 = vmatprep.subr.mxu0 0.0
      %1953 = vmatpush1.msra.mxu0 %v1896
      %1954 = vmatprep.subr.mxu0 0.0
      %1955 = vmatpush1.msra.mxu0 %v1895
      %1956 = vmatprep.subr.mxu0 0.0
      %1957 = vmatpush1.msra.mxu0 %v1894
      %1958 = vmatprep.subr.mxu0 0.0
      %1959 = vmatpush2.msra.mxu0 %v1925
      %1960 = vmatprep.subr.mxu0 0.0
      %1961 = vmatpush2.msra.mxu0 %v1924
      %1962 = vmatprep.subr.mxu0 0.0
      %1963 = vmatpush2.msra.mxu0 %v1923
      %1964 = vmatprep.subr.mxu0 0.0
      %1965 = vmatpush2.msra.mxu0 %v1922
      %1966 = vmatprep.subr.mxu0 0.0
      %1967 = vmatpush2.msra.mxu0 %v1921
      %1968 = vmatprep.subr.mxu0 0.0
      %1969 = vmatpush2.msra.mxu0 %v1920
      %1970 = vmatprep.subr.mxu0 0.0
      %1971 = vmatpush2.msra.mxu0 %v1919
      %1972 = vmatprep.subr.mxu0 0.0
      %1973 = vmatpush2.msra.mxu0 %v1918
      %1974 = vmatprep.subr.mxu0 0.0
      %1975 = vmatpush2.msra.mxu0 %v1917
      %1976 = vmatprep.subr.mxu0 0.0
      %1977 = vmatpush2.msra.mxu0 %v1916
      %1978 = vmatprep.subr.mxu0 0.0
      %1979 = vmatpush2.msra.mxu0 %v1915
      %1980 = vmatprep.subr.mxu0 0.0
      %1981 = vmatpush2.msra.mxu0 %v1914
      %1982 = vmatprep.subr.mxu0 0.0
      %1983 = vmatpush2.msra.mxu0 %v1913
      %1984 = vmatprep.subr.mxu0 0.0
      %1985 = vmatpush2.msra.mxu0 %v1912
      %1986 = vmatprep.subr.mxu0 0.0
      %1987 = vmatpush2.msra.mxu0 %v1911
      %1988 = vmatprep.subr.mxu0 0.0
      %1989 = vmatpush2.msra.mxu0 %v1910
      %1990 = vmatprep.mubr.f32.mxu0 %v901
      %1991 = vmatmul.mubr.f32.gmra.mxu0 %v900
      %v1992 = vpop.f32.mrf.mxu0
      %v1993 = vadd.f32 0.0, %v1992
      %v1994 = vpop.f32.mrf.mxu0
      %1995 = vmatprep.mubr.f32.mxu0 %v903
      %1996 = vmatmul.mubr.f32.gmra.mxu0 %v902
      %v1997 = vpop.f32.mrf.mxu0
      %v1998 = vadd.f32 0.0, %v1997
      %v1999 = vpop.f32.mrf.mxu0
      %2000 = vdwg.mxu0
      %2001 = vst.msk [vmem:[#allocation2 + $0x90] sm:$0xff] %vm694, %v1993
      %2002 = vst.msk [vmem:[#allocation2 + $0x98] sm:$0xff] %vm694, %v1998
      %s2003 = scalar_lea.vmem %s9, 2560
      %v2004 = vld [vmem:[%s2003] sm:$0xff]
      %v2005 = vld [vmem:[%s2003 + $0x8] sm:$0xff]
      %v2006 = vld [vmem:[%s2003 + $0x10] sm:$0xff]
      %v2007 = vld [vmem:[%s2003 + $0x18] sm:$0xff]
      %v2008 = vld [vmem:[%s2003 + $0x20] sm:$0xff]
      %v2009 = vld [vmem:[%s2003 + $0x28] sm:$0xff]
      %v2010 = vld [vmem:[%s2003 + $0x30] sm:$0xff]
      %v2011 = vld [vmem:[%s2003 + $0x38] sm:$0xff]
      %v2012 = vld [vmem:[%s2003 + $0x40] sm:$0xff]
      %v2013 = vld [vmem:[%s2003 + $0x48] sm:$0xff]
      %v2014 = vld [vmem:[%s2003 + $0x50] sm:$0xff]
      %v2015 = vld [vmem:[%s2003 + $0x58] sm:$0xff]
      %v2016 = vld [vmem:[%s2003 + $0x60] sm:$0xff]
      %v2017 = vld [vmem:[%s2003 + $0x68] sm:$0xff]
      %v2018 = vld [vmem:[%s2003 + $0x70] sm:$0xff]
      %v2019 = vld [vmem:[%s2003 + $0x78] sm:$0xff]
      %v2020 = vld [vmem:[%s2003 + $0x80] sm:$0xff]
      %v2021 = vld [vmem:[%s2003 + $0x88] sm:$0xff]
      %v2022 = vld [vmem:[%s2003 + $0x90] sm:$0xff]
      %v2023 = vld [vmem:[%s2003 + $0x98] sm:$0xff]
      %v2024 = vld [vmem:[%s2003 + $0xa0] sm:$0xff]
      %v2025 = vld [vmem:[%s2003 + $0xa8] sm:$0xff]
      %v2026 = vld [vmem:[%s2003 + $0xb0] sm:$0xff]
      %v2027 = vld [vmem:[%s2003 + $0xb8] sm:$0xff]
      %v2028 = vld [vmem:[%s2003 + $0xc0] sm:$0xff]
      %v2029 = vld [vmem:[%s2003 + $0xc8] sm:$0xff]
      %v2030 = vld [vmem:[%s2003 + $0xd0] sm:$0xff]
      %v2031 = vld [vmem:[%s2003 + $0xd8] sm:$0xff]
      %v2032 = vld [vmem:[%s2003 + $0xe0] sm:$0xff]
      %v2033 = vld [vmem:[%s2003 + $0xe8] sm:$0xff]
      %v2034 = vld [vmem:[%s2003 + $0xf0] sm:$0xff]
      %v2035 = vld [vmem:[%s2003 + $0xf8] sm:$0xff]
      %2036 = vmatprep.subr.mxu0 0.0
      %2037 = vmatpush1.msra.mxu0 %v2019
      %2038 = vmatprep.subr.mxu0 0.0
      %2039 = vmatpush1.msra.mxu0 %v2018
      %2040 = vmatprep.subr.mxu0 0.0
      %2041 = vmatpush1.msra.mxu0 %v2017
      %2042 = vmatprep.subr.mxu0 0.0
      %2043 = vmatpush1.msra.mxu0 %v2016
      %2044 = vmatprep.subr.mxu0 0.0
      %2045 = vmatpush1.msra.mxu0 %v2015
      %2046 = vmatprep.subr.mxu0 0.0
      %2047 = vmatpush1.msra.mxu0 %v2014
      %2048 = vmatprep.subr.mxu0 0.0
      %2049 = vmatpush1.msra.mxu0 %v2013
      %2050 = vmatprep.subr.mxu0 0.0
      %2051 = vmatpush1.msra.mxu0 %v2012
      %2052 = vmatprep.subr.mxu0 0.0
      %2053 = vmatpush1.msra.mxu0 %v2011
      %2054 = vmatprep.subr.mxu0 0.0
      %2055 = vmatpush1.msra.mxu0 %v2010
      %2056 = vmatprep.subr.mxu0 0.0
      %2057 = vmatpush1.msra.mxu0 %v2009
      %2058 = vmatprep.subr.mxu0 0.0
      %2059 = vmatpush1.msra.mxu0 %v2008
      %2060 = vmatprep.subr.mxu0 0.0
      %2061 = vmatpush1.msra.mxu0 %v2007
      %2062 = vmatprep.subr.mxu0 0.0
      %2063 = vmatpush1.msra.mxu0 %v2006
      %2064 = vmatprep.subr.mxu0 0.0
      %2065 = vmatpush1.msra.mxu0 %v2005
      %2066 = vmatprep.subr.mxu0 0.0
      %2067 = vmatpush1.msra.mxu0 %v2004
      %2068 = vmatprep.subr.mxu0 0.0
      %2069 = vmatpush2.msra.mxu0 %v2035
      %2070 = vmatprep.subr.mxu0 0.0
      %2071 = vmatpush2.msra.mxu0 %v2034
      %2072 = vmatprep.subr.mxu0 0.0
      %2073 = vmatpush2.msra.mxu0 %v2033
      %2074 = vmatprep.subr.mxu0 0.0
      %2075 = vmatpush2.msra.mxu0 %v2032
      %2076 = vmatprep.subr.mxu0 0.0
      %2077 = vmatpush2.msra.mxu0 %v2031
      %2078 = vmatprep.subr.mxu0 0.0
      %2079 = vmatpush2.msra.mxu0 %v2030
      %2080 = vmatprep.subr.mxu0 0.0
      %2081 = vmatpush2.msra.mxu0 %v2029
      %2082 = vmatprep.subr.mxu0 0.0
      %2083 = vmatpush2.msra.mxu0 %v2028
      %2084 = vmatprep.subr.mxu0 0.0
      %2085 = vmatpush2.msra.mxu0 %v2027
      %2086 = vmatprep.subr.mxu0 0.0
      %2087 = vmatpush2.msra.mxu0 %v2026
      %2088 = vmatprep.subr.mxu0 0.0
      %2089 = vmatpush2.msra.mxu0 %v2025
      %2090 = vmatprep.subr.mxu0 0.0
      %2091 = vmatpush2.msra.mxu0 %v2024
      %2092 = vmatprep.subr.mxu0 0.0
      %2093 = vmatpush2.msra.mxu0 %v2023
      %2094 = vmatprep.subr.mxu0 0.0
      %2095 = vmatpush2.msra.mxu0 %v2022
      %2096 = vmatprep.subr.mxu0 0.0
      %2097 = vmatpush2.msra.mxu0 %v2021
      %2098 = vmatprep.subr.mxu0 0.0
      %2099 = vmatpush2.msra.mxu0 %v2020
      %2100 = vmatprep.mubr.f32.mxu0 %v901
      %2101 = vmatmul.mubr.f32.gmra.mxu0 %v900
      %v2102 = vpop.f32.mrf.mxu0
      %v2103 = vadd.f32 0.0, %v2102
      %v2104 = vpop.f32.mrf.mxu0
      %2105 = vmatprep.mubr.f32.mxu0 %v903
      %2106 = vmatmul.mubr.f32.gmra.mxu0 %v902
      %v2107 = vpop.f32.mrf.mxu0
      %v2108 = vadd.f32 0.0, %v2107
      %v2109 = vpop.f32.mrf.mxu0
      %2110 = vdwg.mxu0
      %2111 = vst.msk [vmem:[#allocation2 + $0xa0] sm:$0xff] %vm694, %v2103
      %2112 = vst.msk [vmem:[#allocation2 + $0xa8] sm:$0xff] %vm694, %v2108
      %s2113 = scalar_lea.vmem %s9, 2816
      %v2114 = vld [vmem:[%s2113] sm:$0xff]
      %v2115 = vld [vmem:[%s2113 + $0x8] sm:$0xff]
      %v2116 = vld [vmem:[%s2113 + $0x10] sm:$0xff]
      %v2117 = vld [vmem:[%s2113 + $0x18] sm:$0xff]
      %v2118 = vld [vmem:[%s2113 + $0x20] sm:$0xff]
      %v2119 = vld [vmem:[%s2113 + $0x28] sm:$0xff]
      %v2120 = vld [vmem:[%s2113 + $0x30] sm:$0xff]
      %v2121 = vld [vmem:[%s2113 + $0x38] sm:$0xff]
      %v2122 = vld [vmem:[%s2113 + $0x40] sm:$0xff]
      %v2123 = vld [vmem:[%s2113 + $0x48] sm:$0xff]
      %v2124 = vld [vmem:[%s2113 + $0x50] sm:$0xff]
      %v2125 = vld [vmem:[%s2113 + $0x58] sm:$0xff]
      %v2126 = vld [vmem:[%s2113 + $0x60] sm:$0xff]
      %v2127 = vld [vmem:[%s2113 + $0x68] sm:$0xff]
      %v2128 = vld [vmem:[%s2113 + $0x70] sm:$0xff]
      %v2129 = vld [vmem:[%s2113 + $0x78] sm:$0xff]
      %v2130 = vld [vmem:[%s2113 + $0x80] sm:$0xff]
      %v2131 = vld [vmem:[%s2113 + $0x88] sm:$0xff]
      %v2132 = vld [vmem:[%s2113 + $0x90] sm:$0xff]
      %v2133 = vld [vmem:[%s2113 + $0x98] sm:$0xff]
      %v2134 = vld [vmem:[%s2113 + $0xa0] sm:$0xff]
      %v2135 = vld [vmem:[%s2113 + $0xa8] sm:$0xff]
      %v2136 = vld [vmem:[%s2113 + $0xb0] sm:$0xff]
      %v2137 = vld [vmem:[%s2113 + $0xb8] sm:$0xff]
      %v2138 = vld [vmem:[%s2113 + $0xc0] sm:$0xff]
      %v2139 = vld [vmem:[%s2113 + $0xc8] sm:$0xff]
      %v2140 = vld [vmem:[%s2113 + $0xd0] sm:$0xff]
      %v2141 = vld [vmem:[%s2113 + $0xd8] sm:$0xff]
      %v2142 = vld [vmem:[%s2113 + $0xe0] sm:$0xff]
      %v2143 = vld [vmem:[%s2113 + $0xe8] sm:$0xff]
      %v2144 = vld [vmem:[%s2113 + $0xf0] sm:$0xff]
      %v2145 = vld [vmem:[%s2113 + $0xf8] sm:$0xff]
      %2146 = vmatprep.subr.mxu0 0.0
      %2147 = vmatpush1.msra.mxu0 %v2129
      %2148 = vmatprep.subr.mxu0 0.0
      %2149 = vmatpush1.msra.mxu0 %v2128
      %2150 = vmatprep.subr.mxu0 0.0
      %2151 = vmatpush1.msra.mxu0 %v2127
      %2152 = vmatprep.subr.mxu0 0.0
      %2153 = vmatpush1.msra.mxu0 %v2126
      %2154 = vmatprep.subr.mxu0 0.0
      %2155 = vmatpush1.msra.mxu0 %v2125
      %2156 = vmatprep.subr.mxu0 0.0
      %2157 = vmatpush1.msra.mxu0 %v2124
      %2158 = vmatprep.subr.mxu0 0.0
      %2159 = vmatpush1.msra.mxu0 %v2123
      %2160 = vmatprep.subr.mxu0 0.0
      %2161 = vmatpush1.msra.mxu0 %v2122
      %2162 = vmatprep.subr.mxu0 0.0
      %2163 = vmatpush1.msra.mxu0 %v2121
      %2164 = vmatprep.subr.mxu0 0.0
      %2165 = vmatpush1.msra.mxu0 %v2120
      %2166 = vmatprep.subr.mxu0 0.0
      %2167 = vmatpush1.msra.mxu0 %v2119
      %2168 = vmatprep.subr.mxu0 0.0
      %2169 = vmatpush1.msra.mxu0 %v2118
      %2170 = vmatprep.subr.mxu0 0.0
      %2171 = vmatpush1.msra.mxu0 %v2117
      %2172 = vmatprep.subr.mxu0 0.0
      %2173 = vmatpush1.msra.mxu0 %v2116
      %2174 = vmatprep.subr.mxu0 0.0
      %2175 = vmatpush1.msra.mxu0 %v2115
      %2176 = vmatprep.subr.mxu0 0.0
      %2177 = vmatpush1.msra.mxu0 %v2114
      %2178 = vmatprep.subr.mxu0 0.0
      %2179 = vmatpush2.msra.mxu0 %v2145
      %2180 = vmatprep.subr.mxu0 0.0
      %2181 = vmatpush2.msra.mxu0 %v2144
      %2182 = vmatprep.subr.mxu0 0.0
      %2183 = vmatpush2.msra.mxu0 %v2143
      %2184 = vmatprep.subr.mxu0 0.0
      %2185 = vmatpush2.msra.mxu0 %v2142
      %2186 = vmatprep.subr.mxu0 0.0
      %2187 = vmatpush2.msra.mxu0 %v2141
      %2188 = vmatprep.subr.mxu0 0.0
      %2189 = vmatpush2.msra.mxu0 %v2140
      %2190 = vmatprep.subr.mxu0 0.0
      %2191 = vmatpush2.msra.mxu0 %v2139
      %2192 = vmatprep.subr.mxu0 0.0
      %2193 = vmatpush2.msra.mxu0 %v2138
      %2194 = vmatprep.subr.mxu0 0.0
      %2195 = vmatpush2.msra.mxu0 %v2137
      %2196 = vmatprep.subr.mxu0 0.0
      %2197 = vmatpush2.msra.mxu0 %v2136
      %2198 = vmatprep.subr.mxu0 0.0
      %2199 = vmatpush2.msra.mxu0 %v2135
      %2200 = vmatprep.subr.mxu0 0.0
      %2201 = vmatpush2.msra.mxu0 %v2134
      %2202 = vmatprep.subr.mxu0 0.0
      %2203 = vmatpush2.msra.mxu0 %v2133
      %2204 = vmatprep.subr.mxu0 0.0
      %2205 = vmatpush2.msra.mxu0 %v2132
      %2206 = vmatprep.subr.mxu0 0.0
      %2207 = vmatpush2.msra.mxu0 %v2131
      %2208 = vmatprep.subr.mxu0 0.0
      %2209 = vmatpush2.msra.mxu0 %v2130
      %2210 = vmatprep.mubr.f32.mxu0 %v901
      %2211 = vmatmul.mubr.f32.gmra.mxu0 %v900
      %v2212 = vpop.f32.mrf.mxu0
      %v2213 = vadd.f32 0.0, %v2212
      %v2214 = vpop.f32.mrf.mxu0
      %2215 = vmatprep.mubr.f32.mxu0 %v903
      %2216 = vmatmul.mubr.f32.gmra.mxu0 %v902
      %v2217 = vpop.f32.mrf.mxu0
      %v2218 = vadd.f32 0.0, %v2217
      %v2219 = vpop.f32.mrf.mxu0
      %2220 = vdwg.mxu0
      %2221 = vst.msk [vmem:[#allocation2 + $0xb0] sm:$0xff] %vm694, %v2213
      %2222 = vst.msk [vmem:[#allocation2 + $0xb8] sm:$0xff] %vm694, %v2218
      %s2223 = scalar_lea.vmem %s9, 3072
      %v2224 = vld [vmem:[%s2223] sm:$0xff]
      %v2225 = vld [vmem:[%s2223 + $0x8] sm:$0xff]
      %v2226 = vld [vmem:[%s2223 + $0x10] sm:$0xff]
      %v2227 = vld [vmem:[%s2223 + $0x18] sm:$0xff]
      %v2228 = vld [vmem:[%s2223 + $0x20] sm:$0xff]
      %v2229 = vld [vmem:[%s2223 + $0x28] sm:$0xff]
      %v2230 = vld [vmem:[%s2223 + $0x30] sm:$0xff]
      %v2231 = vld [vmem:[%s2223 + $0x38] sm:$0xff]
      %v2232 = vld [vmem:[%s2223 + $0x40] sm:$0xff]
      %v2233 = vld [vmem:[%s2223 + $0x48] sm:$0xff]
      %v2234 = vld [vmem:[%s2223 + $0x50] sm:$0xff]
      %v2235 = vld [vmem:[%s2223 + $0x58] sm:$0xff]
      %v2236 = vld [vmem:[%s2223 + $0x60] sm:$0xff]
      %v2237 = vld [vmem:[%s2223 + $0x68] sm:$0xff]
      %v2238 = vld [vmem:[%s2223 + $0x70] sm:$0xff]
      %v2239 = vld [vmem:[%s2223 + $0x78] sm:$0xff]
      %v2240 = vld [vmem:[%s2223 + $0x80] sm:$0xff]
      %v2241 = vld [vmem:[%s2223 + $0x88] sm:$0xff]
      %v2242 = vld [vmem:[%s2223 + $0x90] sm:$0xff]
      %v2243 = vld [vmem:[%s2223 + $0x98] sm:$0xff]
      %v2244 = vld [vmem:[%s2223 + $0xa0] sm:$0xff]
      %v2245 = vld [vmem:[%s2223 + $0xa8] sm:$0xff]
      %v2246 = vld [vmem:[%s2223 + $0xb0] sm:$0xff]
      %v2247 = vld [vmem:[%s2223 + $0xb8] sm:$0xff]
      %v2248 = vld [vmem:[%s2223 + $0xc0] sm:$0xff]
      %v2249 = vld [vmem:[%s2223 + $0xc8] sm:$0xff]
      %v2250 = vld [vmem:[%s2223 + $0xd0] sm:$0xff]
      %v2251 = vld [vmem:[%s2223 + $0xd8] sm:$0xff]
      %v2252 = vld [vmem:[%s2223 + $0xe0] sm:$0xff]
      %v2253 = vld [vmem:[%s2223 + $0xe8] sm:$0xff]
      %v2254 = vld [vmem:[%s2223 + $0xf0] sm:$0xff]
      %v2255 = vld [vmem:[%s2223 + $0xf8] sm:$0xff]
      %2256 = vmatprep.subr.mxu0 0.0
      %2257 = vmatpush1.msra.mxu0 %v2239
      %2258 = vmatprep.subr.mxu0 0.0
      %2259 = vmatpush1.msra.mxu0 %v2238
      %2260 = vmatprep.subr.mxu0 0.0
      %2261 = vmatpush1.msra.mxu0 %v2237
      %2262 = vmatprep.subr.mxu0 0.0
      %2263 = vmatpush1.msra.mxu0 %v2236
      %2264 = vmatprep.subr.mxu0 0.0
      %2265 = vmatpush1.msra.mxu0 %v2235
      %2266 = vmatprep.subr.mxu0 0.0
      %2267 = vmatpush1.msra.mxu0 %v2234
      %2268 = vmatprep.subr.mxu0 0.0
      %2269 = vmatpush1.msra.mxu0 %v2233
      %2270 = vmatprep.subr.mxu0 0.0
      %2271 = vmatpush1.msra.mxu0 %v2232
      %2272 = vmatprep.subr.mxu0 0.0
      %2273 = vmatpush1.msra.mxu0 %v2231
      %2274 = vmatprep.subr.mxu0 0.0
      %2275 = vmatpush1.msra.mxu0 %v2230
      %2276 = vmatprep.subr.mxu0 0.0
      %2277 = vmatpush1.msra.mxu0 %v2229
      %2278 = vmatprep.subr.mxu0 0.0
      %2279 = vmatpush1.msra.mxu0 %v2228
      %2280 = vmatprep.subr.mxu0 0.0
      %2281 = vmatpush1.msra.mxu0 %v2227
      %2282 = vmatprep.subr.mxu0 0.0
      %2283 = vmatpush1.msra.mxu0 %v2226
      %2284 = vmatprep.subr.mxu0 0.0
      %2285 = vmatpush1.msra.mxu0 %v2225
      %2286 = vmatprep.subr.mxu0 0.0
      %2287 = vmatpush1.msra.mxu0 %v2224
      %2288 = vmatprep.subr.mxu0 0.0
      %2289 = vmatpush2.msra.mxu0 %v2255
      %2290 = vmatprep.subr.mxu0 0.0
      %2291 = vmatpush2.msra.mxu0 %v2254
      %2292 = vmatprep.subr.mxu0 0.0
      %2293 = vmatpush2.msra.mxu0 %v2253
      %2294 = vmatprep.subr.mxu0 0.0
      %2295 = vmatpush2.msra.mxu0 %v2252
      %2296 = vmatprep.subr.mxu0 0.0
      %2297 = vmatpush2.msra.mxu0 %v2251
      %2298 = vmatprep.subr.mxu0 0.0
      %2299 = vmatpush2.msra.mxu0 %v2250
      %2300 = vmatprep.subr.mxu0 0.0
      %2301 = vmatpush2.msra.mxu0 %v2249
      %2302 = vmatprep.subr.mxu0 0.0
      %2303 = vmatpush2.msra.mxu0 %v2248
      %2304 = vmatprep.subr.mxu0 0.0
      %2305 = vmatpush2.msra.mxu0 %v2247
      %2306 = vmatprep.subr.mxu0 0.0
      %2307 = vmatpush2.msra.mxu0 %v2246
      %2308 = vmatprep.subr.mxu0 0.0
      %2309 = vmatpush2.msra.mxu0 %v2245
      %2310 = vmatprep.subr.mxu0 0.0
      %2311 = vmatpush2.msra.mxu0 %v2244
      %2312 = vmatprep.subr.mxu0 0.0
      %2313 = vmatpush2.msra.mxu0 %v2243
      %2314 = vmatprep.subr.mxu0 0.0
      %2315 = vmatpush2.msra.mxu0 %v2242
      %2316 = vmatprep.subr.mxu0 0.0
      %2317 = vmatpush2.msra.mxu0 %v2241
      %2318 = vmatprep.subr.mxu0 0.0
      %2319 = vmatpush2.msra.mxu0 %v2240
      %2320 = vmatprep.mubr.f32.mxu0 %v901
      %2321 = vmatmul.mubr.f32.gmra.mxu0 %v900
      %v2322 = vpop.f32.mrf.mxu0
      %v2323 = vadd.f32 0.0, %v2322
      %v2324 = vpop.f32.mrf.mxu0
      %2325 = vmatprep.mubr.f32.mxu0 %v903
      %2326 = vmatmul.mubr.f32.gmra.mxu0 %v902
      %v2327 = vpop.f32.mrf.mxu0
      %v2328 = vadd.f32 0.0, %v2327
      %v2329 = vpop.f32.mrf.mxu0
      %2330 = vdwg.mxu0
      %2331 = vst.msk [vmem:[#allocation2 + $0xc0] sm:$0xff] %vm694, %v2323
      %2332 = vst.msk [vmem:[#allocation2 + $0xc8] sm:$0xff] %vm694, %v2328
      %s2333 = scalar_lea.vmem %s9, 3328
      %v2334 = vld [vmem:[%s2333] sm:$0xff]
      %v2335 = vld [vmem:[%s2333 + $0x8] sm:$0xff]
      %v2336 = vld [vmem:[%s2333 + $0x10] sm:$0xff]
      %v2337 = vld [vmem:[%s2333 + $0x18] sm:$0xff]
      %v2338 = vld [vmem:[%s2333 + $0x20] sm:$0xff]
      %v2339 = vld [vmem:[%s2333 + $0x28] sm:$0xff]
      %v2340 = vld [vmem:[%s2333 + $0x30] sm:$0xff]
      %v2341 = vld [vmem:[%s2333 + $0x38] sm:$0xff]
      %v2342 = vld [vmem:[%s2333 + $0x40] sm:$0xff]
      %v2343 = vld [vmem:[%s2333 + $0x48] sm:$0xff]
      %v2344 = vld [vmem:[%s2333 + $0x50] sm:$0xff]
      %v2345 = vld [vmem:[%s2333 + $0x58] sm:$0xff]
      %v2346 = vld [vmem:[%s2333 + $0x60] sm:$0xff]
      %v2347 = vld [vmem:[%s2333 + $0x68] sm:$0xff]
      %v2348 = vld [vmem:[%s2333 + $0x70] sm:$0xff]
      %v2349 = vld [vmem:[%s2333 + $0x78] sm:$0xff]
      %v2350 = vld [vmem:[%s2333 + $0x80] sm:$0xff]
      %v2351 = vld [vmem:[%s2333 + $0x88] sm:$0xff]
      %v2352 = vld [vmem:[%s2333 + $0x90] sm:$0xff]
      %v2353 = vld [vmem:[%s2333 + $0x98] sm:$0xff]
      %v2354 = vld [vmem:[%s2333 + $0xa0] sm:$0xff]
      %v2355 = vld [vmem:[%s2333 + $0xa8] sm:$0xff]
      %v2356 = vld [vmem:[%s2333 + $0xb0] sm:$0xff]
      %v2357 = vld [vmem:[%s2333 + $0xb8] sm:$0xff]
      %v2358 = vld [vmem:[%s2333 + $0xc0] sm:$0xff]
      %v2359 = vld [vmem:[%s2333 + $0xc8] sm:$0xff]
      %v2360 = vld [vmem:[%s2333 + $0xd0] sm:$0xff]
      %v2361 = vld [vmem:[%s2333 + $0xd8] sm:$0xff]
      %v2362 = vld [vmem:[%s2333 + $0xe0] sm:$0xff]
      %v2363 = vld [vmem:[%s2333 + $0xe8] sm:$0xff]
      %v2364 = vld [vmem:[%s2333 + $0xf0] sm:$0xff]
      %v2365 = vld [vmem:[%s2333 + $0xf8] sm:$0xff]
      %2366 = vmatprep.subr.mxu0 0.0
      %2367 = vmatpush1.msra.mxu0 %v2349
      %2368 = vmatprep.subr.mxu0 0.0
      %2369 = vmatpush1.msra.mxu0 %v2348
      %2370 = vmatprep.subr.mxu0 0.0
      %2371 = vmatpush1.msra.mxu0 %v2347
      %2372 = vmatprep.subr.mxu0 0.0
      %2373 = vmatpush1.msra.mxu0 %v2346
      %2374 = vmatprep.subr.mxu0 0.0
      %2375 = vmatpush1.msra.mxu0 %v2345
      %2376 = vmatprep.subr.mxu0 0.0
      %2377 = vmatpush1.msra.mxu0 %v2344
      %2378 = vmatprep.subr.mxu0 0.0
      %2379 = vmatpush1.msra.mxu0 %v2343
      %2380 = vmatprep.subr.mxu0 0.0
      %2381 = vmatpush1.msra.mxu0 %v2342
      %2382 = vmatprep.subr.mxu0 0.0
      %2383 = vmatpush1.msra.mxu0 %v2341
      %2384 = vmatprep.subr.mxu0 0.0
      %2385 = vmatpush1.msra.mxu0 %v2340
      %2386 = vmatprep.subr.mxu0 0.0
      %2387 = vmatpush1.msra.mxu0 %v2339
      %2388 = vmatprep.subr.mxu0 0.0
      %2389 = vmatpush1.msra.mxu0 %v2338
      %2390 = vmatprep.subr.mxu0 0.0
      %2391 = vmatpush1.msra.mxu0 %v2337
      %2392 = vmatprep.subr.mxu0 0.0
      %2393 = vmatpush1.msra.mxu0 %v2336
      %2394 = vmatprep.subr.mxu0 0.0
      %2395 = vmatpush1.msra.mxu0 %v2335
      %2396 = vmatprep.subr.mxu0 0.0
      %2397 = vmatpush1.msra.mxu0 %v2334
      %2398 = vmatprep.subr.mxu0 0.0
      %2399 = vmatpush2.msra.mxu0 %v2365
      %2400 = vmatprep.subr.mxu0 0.0
      %2401 = vmatpush2.msra.mxu0 %v2364
      %2402 = vmatprep.subr.mxu0 0.0
      %2403 = vmatpush2.msra.mxu0 %v2363
      %2404 = vmatprep.subr.mxu0 0.0
      %2405 = vmatpush2.msra.mxu0 %v2362
      %2406 = vmatprep.subr.mxu0 0.0
      %2407 = vmatpush2.msra.mxu0 %v2361
      %2408 = vmatprep.subr.mxu0 0.0
      %2409 = vmatpush2.msra.mxu0 %v2360
      %2410 = vmatprep.subr.mxu0 0.0
      %2411 = vmatpush2.msra.mxu0 %v2359
      %2412 = vmatprep.subr.mxu0 0.0
      %2413 = vmatpush2.msra.mxu0 %v2358
      %2414 = vmatprep.subr.mxu0 0.0
      %2415 = vmatpush2.msra.mxu0 %v2357
      %2416 = vmatprep.subr.mxu0 0.0
      %2417 = vmatpush2.msra.mxu0 %v2356
      %2418 = vmatprep.subr.mxu0 0.0
      %2419 = vmatpush2.msra.mxu0 %v2355
      %2420 = vmatprep.subr.mxu0 0.0
      %2421 = vmatpush2.msra.mxu0 %v2354
      %2422 = vmatprep.subr.mxu0 0.0
      %2423 = vmatpush2.msra.mxu0 %v2353
      %2424 = vmatprep.subr.mxu0 0.0
      %2425 = vmatpush2.msra.mxu0 %v2352
      %2426 = vmatprep.subr.mxu0 0.0
      %2427 = vmatpush2.msra.mxu0 %v2351
      %2428 = vmatprep.subr.mxu0 0.0
      %2429 = vmatpush2.msra.mxu0 %v2350
      %2430 = vmatprep.mubr.f32.mxu0 %v901
      %2431 = vmatmul.mubr.f32.gmra.mxu0 %v900
      %v2432 = vpop.f32.mrf.mxu0
      %v2433 = vadd.f32 0.0, %v2432
      %v2434 = vpop.f32.mrf.mxu0
      %2435 = vmatprep.mubr.f32.mxu0 %v903
      %2436 = vmatmul.mubr.f32.gmra.mxu0 %v902
      %v2437 = vpop.f32.mrf.mxu0
      %v2438 = vadd.f32 0.0, %v2437
      %v2439 = vpop.f32.mrf.mxu0
      %2440 = vdwg.mxu0
      %2441 = vst.msk [vmem:[#allocation2 + $0xd0] sm:$0xff] %vm694, %v2433
      %2442 = vst.msk [vmem:[#allocation2 + $0xd8] sm:$0xff] %vm694, %v2438
      %s2443 = scalar_lea.vmem %s9, 3584
      %v2444 = vld [vmem:[%s2443] sm:$0xff]
      %v2445 = vld [vmem:[%s2443 + $0x8] sm:$0xff]
      %v2446 = vld [vmem:[%s2443 + $0x10] sm:$0xff]
      %v2447 = vld [vmem:[%s2443 + $0x18] sm:$0xff]
      %v2448 = vld [vmem:[%s2443 + $0x20] sm:$0xff]
      %v2449 = vld [vmem:[%s2443 + $0x28] sm:$0xff]
      %v2450 = vld [vmem:[%s2443 + $0x30] sm:$0xff]
      %v2451 = vld [vmem:[%s2443 + $0x38] sm:$0xff]
      %v2452 = vld [vmem:[%s2443 + $0x40] sm:$0xff]
      %v2453 = vld [vmem:[%s2443 + $0x48] sm:$0xff]
      %v2454 = vld [vmem:[%s2443 + $0x50] sm:$0xff]
      %v2455 = vld [vmem:[%s2443 + $0x58] sm:$0xff]
      %v2456 = vld [vmem:[%s2443 + $0x60] sm:$0xff]
      %v2457 = vld [vmem:[%s2443 + $0x68] sm:$0xff]
      %v2458 = vld [vmem:[%s2443 + $0x70] sm:$0xff]
      %v2459 = vld [vmem:[%s2443 + $0x78] sm:$0xff]
      %v2460 = vld [vmem:[%s2443 + $0x80] sm:$0xff]
      %v2461 = vld [vmem:[%s2443 + $0x88] sm:$0xff]
      %v2462 = vld [vmem:[%s2443 + $0x90] sm:$0xff]
      %v2463 = vld [vmem:[%s2443 + $0x98] sm:$0xff]
      %v2464 = vld [vmem:[%s2443 + $0xa0] sm:$0xff]
      %v2465 = vld [vmem:[%s2443 + $0xa8] sm:$0xff]
      %v2466 = vld [vmem:[%s2443 + $0xb0] sm:$0xff]
      %v2467 = vld [vmem:[%s2443 + $0xb8] sm:$0xff]
      %v2468 = vld [vmem:[%s2443 + $0xc0] sm:$0xff]
      %v2469 = vld [vmem:[%s2443 + $0xc8] sm:$0xff]
      %v2470 = vld [vmem:[%s2443 + $0xd0] sm:$0xff]
      %v2471 = vld [vmem:[%s2443 + $0xd8] sm:$0xff]
      %v2472 = vld [vmem:[%s2443 + $0xe0] sm:$0xff]
      %v2473 = vld [vmem:[%s2443 + $0xe8] sm:$0xff]
      %v2474 = vld [vmem:[%s2443 + $0xf0] sm:$0xff]
      %v2475 = vld [vmem:[%s2443 + $0xf8] sm:$0xff]
      %2476 = vmatprep.subr.mxu0 0.0
      %2477 = vmatpush1.msra.mxu0 %v2459
      %2478 = vmatprep.subr.mxu0 0.0
      %2479 = vmatpush1.msra.mxu0 %v2458
      %2480 = vmatprep.subr.mxu0 0.0
      %2481 = vmatpush1.msra.mxu0 %v2457
      %2482 = vmatprep.subr.mxu0 0.0
      %2483 = vmatpush1.msra.mxu0 %v2456
      %2484 = vmatprep.subr.mxu0 0.0
      %2485 = vmatpush1.msra.mxu0 %v2455
      %2486 = vmatprep.subr.mxu0 0.0
      %2487 = vmatpush1.msra.mxu0 %v2454
      %2488 = vmatprep.subr.mxu0 0.0
      %2489 = vmatpush1.msra.mxu0 %v2453
      %2490 = vmatprep.subr.mxu0 0.0
      %2491 = vmatpush1.msra.mxu0 %v2452
      %2492 = vmatprep.subr.mxu0 0.0
      %2493 = vmatpush1.msra.mxu0 %v2451
      %2494 = vmatprep.subr.mxu0 0.0
      %2495 = vmatpush1.msra.mxu0 %v2450
      %2496 = vmatprep.subr.mxu0 0.0
      %2497 = vmatpush1.msra.mxu0 %v2449
      %2498 = vmatprep.subr.mxu0 0.0
      %2499 = vmatpush1.msra.mxu0 %v2448
      %2500 = vmatprep.subr.mxu0 0.0
      %2501 = vmatpush1.msra.mxu0 %v2447
      %2502 = vmatprep.subr.mxu0 0.0
      %2503 = vmatpush1.msra.mxu0 %v2446
      %2504 = vmatprep.subr.mxu0 0.0
      %2505 = vmatpush1.msra.mxu0 %v2445
      %2506 = vmatprep.subr.mxu0 0.0
      %2507 = vmatpush1.msra.mxu0 %v2444
      %2508 = vmatprep.subr.mxu0 0.0
      %2509 = vmatpush2.msra.mxu0 %v2475
      %2510 = vmatprep.subr.mxu0 0.0
      %2511 = vmatpush2.msra.mxu0 %v2474
      %2512 = vmatprep.subr.mxu0 0.0
      %2513 = vmatpush2.msra.mxu0 %v2473
      %2514 = vmatprep.subr.mxu0 0.0
      %2515 = vmatpush2.msra.mxu0 %v2472
      %2516 = vmatprep.subr.mxu0 0.0
      %2517 = vmatpush2.msra.mxu0 %v2471
      %2518 = vmatprep.subr.mxu0 0.0
      %2519 = vmatpush2.msra.mxu0 %v2470
      %2520 = vmatprep.subr.mxu0 0.0
      %2521 = vmatpush2.msra.mxu0 %v2469
      %2522 = vmatprep.subr.mxu0 0.0
      %2523 = vmatpush2.msra.mxu0 %v2468
      %2524 = vmatprep.subr.mxu0 0.0
      %2525 = vmatpush2.msra.mxu0 %v2467
      %2526 = vmatprep.subr.mxu0 0.0
      %2527 = vmatpush2.msra.mxu0 %v2466
      %2528 = vmatprep.subr.mxu0 0.0
      %2529 = vmatpush2.msra.mxu0 %v2465
      %2530 = vmatprep.subr.mxu0 0.0
      %2531 = vmatpush2.msra.mxu0 %v2464
      %2532 = vmatprep.subr.mxu0 0.0
      %2533 = vmatpush2.msra.mxu0 %v2463
      %2534 = vmatprep.subr.mxu0 0.0
      %2535 = vmatpush2.msra.mxu0 %v2462
      %2536 = vmatprep.subr.mxu0 0.0
      %2537 = vmatpush2.msra.mxu0 %v2461
      %2538 = vmatprep.subr.mxu0 0.0
      %2539 = vmatpush2.msra.mxu0 %v2460
      %2540 = vmatprep.mubr.f32.mxu0 %v901
      %2541 = vmatmul.mubr.f32.gmra.mxu0 %v900
      %v2542 = vpop.f32.mrf.mxu0
      %v2543 = vadd.f32 0.0, %v2542
      %v2544 = vpop.f32.mrf.mxu0
      %2545 = vmatprep.mubr.f32.mxu0 %v903
      %2546 = vmatmul.mubr.f32.gmra.mxu0 %v902
      %v2547 = vpop.f32.mrf.mxu0
      %v2548 = vadd.f32 0.0, %v2547
      %v2549 = vpop.f32.mrf.mxu0
      %2550 = vdwg.mxu0
      %2551 = vst.msk [vmem:[#allocation2 + $0xe0] sm:$0xff] %vm694, %v2543
      %2552 = vst.msk [vmem:[#allocation2 + $0xe8] sm:$0xff] %vm694, %v2548
      %s2553 = scalar_lea.vmem %s9, 3840
      %v2554 = vld [vmem:[%s2553] sm:$0xff]
      %v2555 = vld [vmem:[%s2553 + $0x8] sm:$0xff]
      %v2556 = vld [vmem:[%s2553 + $0x10] sm:$0xff]
      %v2557 = vld [vmem:[%s2553 + $0x18] sm:$0xff]
      %v2558 = vld [vmem:[%s2553 + $0x20] sm:$0xff]
      %v2559 = vld [vmem:[%s2553 + $0x28] sm:$0xff]
      %v2560 = vld [vmem:[%s2553 + $0x30] sm:$0xff]
      %v2561 = vld [vmem:[%s2553 + $0x38] sm:$0xff]
      %v2562 = vld [vmem:[%s2553 + $0x40] sm:$0xff]
      %v2563 = vld [vmem:[%s2553 + $0x48] sm:$0xff]
      %v2564 = vld [vmem:[%s2553 + $0x50] sm:$0xff]
      %v2565 = vld [vmem:[%s2553 + $0x58] sm:$0xff]
      %v2566 = vld [vmem:[%s2553 + $0x60] sm:$0xff]
      %v2567 = vld [vmem:[%s2553 + $0x68] sm:$0xff]
      %v2568 = vld [vmem:[%s2553 + $0x70] sm:$0xff]
      %v2569 = vld [vmem:[%s2553 + $0x78] sm:$0xff]
      %v2570 = vld [vmem:[%s2553 + $0x80] sm:$0xff]
      %v2571 = vld [vmem:[%s2553 + $0x88] sm:$0xff]
      %v2572 = vld [vmem:[%s2553 + $0x90] sm:$0xff]
      %v2573 = vld [vmem:[%s2553 + $0x98] sm:$0xff]
      %v2574 = vld [vmem:[%s2553 + $0xa0] sm:$0xff]
      %v2575 = vld [vmem:[%s2553 + $0xa8] sm:$0xff]
      %v2576 = vld [vmem:[%s2553 + $0xb0] sm:$0xff]
      %v2577 = vld [vmem:[%s2553 + $0xb8] sm:$0xff]
      %v2578 = vld [vmem:[%s2553 + $0xc0] sm:$0xff]
      %v2579 = vld [vmem:[%s2553 + $0xc8] sm:$0xff]
      %v2580 = vld [vmem:[%s2553 + $0xd0] sm:$0xff]
      %v2581 = vld [vmem:[%s2553 + $0xd8] sm:$0xff]
      %v2582 = vld [vmem:[%s2553 + $0xe0] sm:$0xff]
      %v2583 = vld [vmem:[%s2553 + $0xe8] sm:$0xff]
      %v2584 = vld [vmem:[%s2553 + $0xf0] sm:$0xff]
      %v2585 = vld [vmem:[%s2553 + $0xf8] sm:$0xff]
      %2586 = vmatprep.subr.mxu0 0.0
      %2587 = vmatpush1.msra.mxu0 %v2569
      %2588 = vmatprep.subr.mxu0 0.0
      %2589 = vmatpush1.msra.mxu0 %v2568
      %2590 = vmatprep.subr.mxu0 0.0
      %2591 = vmatpush1.msra.mxu0 %v2567
      %2592 = vmatprep.subr.mxu0 0.0
      %2593 = vmatpush1.msra.mxu0 %v2566
      %2594 = vmatprep.subr.mxu0 0.0
      %2595 = vmatpush1.msra.mxu0 %v2565
      %2596 = vmatprep.subr.mxu0 0.0
      %2597 = vmatpush1.msra.mxu0 %v2564
      %2598 = vmatprep.subr.mxu0 0.0
      %2599 = vmatpush1.msra.mxu0 %v2563
      %2600 = vmatprep.subr.mxu0 0.0
      %2601 = vmatpush1.msra.mxu0 %v2562
      %2602 = vmatprep.subr.mxu0 0.0
      %2603 = vmatpush1.msra.mxu0 %v2561
      %2604 = vmatprep.subr.mxu0 0.0
      %2605 = vmatpush1.msra.mxu0 %v2560
      %2606 = vmatprep.subr.mxu0 0.0
      %2607 = vmatpush1.msra.mxu0 %v2559
      %2608 = vmatprep.subr.mxu0 0.0
      %2609 = vmatpush1.msra.mxu0 %v2558
      %2610 = vmatprep.subr.mxu0 0.0
      %2611 = vmatpush1.msra.mxu0 %v2557
      %2612 = vmatprep.subr.mxu0 0.0
      %2613 = vmatpush1.msra.mxu0 %v2556
      %2614 = vmatprep.subr.mxu0 0.0
      %2615 = vmatpush1.msra.mxu0 %v2555
      %2616 = vmatprep.subr.mxu0 0.0
      %2617 = vmatpush1.msra.mxu0 %v2554
      %2618 = vmatprep.subr.mxu0 0.0
      %2619 = vmatpush2.msra.mxu0 %v2585
      %2620 = vmatprep.subr.mxu0 0.0
      %2621 = vmatpush2.msra.mxu0 %v2584
      %2622 = vmatprep.subr.mxu0 0.0
      %2623 = vmatpush2.msra.mxu0 %v2583
      %2624 = vmatprep.subr.mxu0 0.0
      %2625 = vmatpush2.msra.mxu0 %v2582
      %2626 = vmatprep.subr.mxu0 0.0
      %2627 = vmatpush2.msra.mxu0 %v2581
      %2628 = vmatprep.subr.mxu0 0.0
      %2629 = vmatpush2.msra.mxu0 %v2580
      %2630 = vmatprep.subr.mxu0 0.0
      %2631 = vmatpush2.msra.mxu0 %v2579
      %2632 = vmatprep.subr.mxu0 0.0
      %2633 = vmatpush2.msra.mxu0 %v2578
      %2634 = vmatprep.subr.mxu0 0.0
      %2635 = vmatpush2.msra.mxu0 %v2577
      %2636 = vmatprep.subr.mxu0 0.0
      %2637 = vmatpush2.msra.mxu0 %v2576
      %2638 = vmatprep.subr.mxu0 0.0
      %2639 = vmatpush2.msra.mxu0 %v2575
      %2640 = vmatprep.subr.mxu0 0.0
      %2641 = vmatpush2.msra.mxu0 %v2574
      %2642 = vmatprep.subr.mxu0 0.0
      %2643 = vmatpush2.msra.mxu0 %v2573
      %2644 = vmatprep.subr.mxu0 0.0
      %2645 = vmatpush2.msra.mxu0 %v2572
      %2646 = vmatprep.subr.mxu0 0.0
      %2647 = vmatpush2.msra.mxu0 %v2571
      %2648 = vmatprep.subr.mxu0 0.0
      %2649 = vmatpush2.msra.mxu0 %v2570
      %2650 = vmatprep.mubr.f32.mxu0 %v901
      %2651 = vmatmul.mubr.f32.gmra.mxu0 %v900
      %v2652 = vpop.f32.mrf.mxu0
      %v2653 = vadd.f32 0.0, %v2652
      %v2654 = vpop.f32.mrf.mxu0
      %2655 = vmatprep.mubr.f32.mxu0 %v903
      %2656 = vmatmul.mubr.f32.gmra.mxu0 %v902
      %v2657 = vpop.f32.mrf.mxu0
      %v2658 = vadd.f32 0.0, %v2657
      %v2659 = vpop.f32.mrf.mxu0
      %2660 = vdwg.mxu0
      %2661 = vst.msk [vmem:[#allocation2 + $0xf0] sm:$0xff] %vm694, %v2653
      %2662 = vst.msk [vmem:[#allocation2 + $0xf8] sm:$0xff] %vm694, %v2658
      %v2663 = vld [vmem:[%s5] sm:$0xff]
      %v2664 = vld [vmem:[%s5 + $0x8] sm:$0xff]
      %v2665 = vld [vmem:[%s5 + $0x10] sm:$0xff]
      %v2666 = vld [vmem:[%s5 + $0x18] sm:$0xff]
      %v2667 = vld [vmem:[#allocation2] sm:$0xff]
      %v2668 = vld [vmem:[#allocation2 + $0x8] sm:$0xff]
      %v2669 = vld [vmem:[#allocation2 + $0x10] sm:$0xff]
      %v2670 = vld [vmem:[#allocation2 + $0x18] sm:$0xff]
      %v2671 = vld [vmem:[#allocation2 + $0x20] sm:$0xff]
      %v2672 = vld [vmem:[#allocation2 + $0x28] sm:$0xff]
      %v2673 = vld [vmem:[#allocation2 + $0x30] sm:$0xff]
      %v2674 = vld [vmem:[#allocation2 + $0x38] sm:$0xff]
      %v2675 = vld [vmem:[#allocation2 + $0x40] sm:$0xff]
      %v2676 = vld [vmem:[#allocation2 + $0x48] sm:$0xff]
      %v2677 = vld [vmem:[#allocation2 + $0x50] sm:$0xff]
      %v2678 = vld [vmem:[#allocation2 + $0x58] sm:$0xff]
      %v2679 = vld [vmem:[#allocation2 + $0x60] sm:$0xff]
      %v2680 = vld [vmem:[#allocation2 + $0x68] sm:$0xff]
      %v2681 = vld [vmem:[#allocation2 + $0x70] sm:$0xff]
      %v2682 = vld [vmem:[#allocation2 + $0x78] sm:$0xff]
      %v2683 = vld [vmem:[#allocation2 + $0x80] sm:$0xff]
      %v2684 = vld [vmem:[#allocation2 + $0x88] sm:$0xff]
      %v2685 = vld [vmem:[#allocation2 + $0x90] sm:$0xff]
      %v2686 = vld [vmem:[#allocation2 + $0x98] sm:$0xff]
      %v2687 = vld [vmem:[#allocation2 + $0xa0] sm:$0xff]
      %v2688 = vld [vmem:[#allocation2 + $0xa8] sm:$0xff]
      %v2689 = vld [vmem:[#allocation2 + $0xb0] sm:$0xff]
      %v2690 = vld [vmem:[#allocation2 + $0xb8] sm:$0xff]
      %v2691 = vld [vmem:[#allocation2 + $0xc0] sm:$0xff]
      %v2692 = vld [vmem:[#allocation2 + $0xc8] sm:$0xff]
      %v2693 = vld [vmem:[#allocation2 + $0xd0] sm:$0xff]
      %v2694 = vld [vmem:[#allocation2 + $0xd8] sm:$0xff]
      %v2695 = vld [vmem:[#allocation2 + $0xe0] sm:$0xff]
      %v2696 = vld [vmem:[#allocation2 + $0xe8] sm:$0xff]
      %v2697 = vld [vmem:[#allocation2 + $0xf0] sm:$0xff]
      %v2698 = vld [vmem:[#allocation2 + $0xf8] sm:$0xff]
      %v2699 = vld [vmem:[%s6] sm:$0xff]
      %v2700 = vld [vmem:[%s6 + $0x8] sm:$0xff]
      %2702 = vset.pattern.permute.xlu0 0
      %2703 = vperm.xlu0 %2702, %v2699
      %v2704 = vpop.permute.xlu0 %2703
      %2707 = vset.pattern.permute.xlu0 0
      %2708 = vperm.xlu0 %2707, %v2700
      %v2709 = vpop.permute.xlu0 %2708
      %2711 = vmatprep.subr.mxu0 0.0
      %2712 = vmatpush1.msra.mxu0 %v2682
      %2713 = vmatprep.subr.mxu0 0.0
      %2714 = vmatpush1.msra.mxu0 %v2681
      %2715 = vmatprep.subr.mxu0 0.0
      %2716 = vmatpush1.msra.mxu0 %v2680
      %2717 = vmatprep.subr.mxu0 0.0
      %2718 = vmatpush1.msra.mxu0 %v2679
      %2719 = vmatprep.subr.mxu0 0.0
      %2720 = vmatpush1.msra.mxu0 %v2678
      %2721 = vmatprep.subr.mxu0 0.0
      %2722 = vmatpush1.msra.mxu0 %v2677
      %2723 = vmatprep.subr.mxu0 0.0
      %2724 = vmatpush1.msra.mxu0 %v2676
      %2725 = vmatprep.subr.mxu0 0.0
      %2726 = vmatpush1.msra.mxu0 %v2675
      %2727 = vmatprep.subr.mxu0 0.0
      %2728 = vmatpush1.msra.mxu0 %v2674
      %2729 = vmatprep.subr.mxu0 0.0
      %2730 = vmatpush1.msra.mxu0 %v2673
      %2731 = vmatprep.subr.mxu0 0.0
      %2732 = vmatpush1.msra.mxu0 %v2672
      %2733 = vmatprep.subr.mxu0 0.0
      %2734 = vmatpush1.msra.mxu0 %v2671
      %2735 = vmatprep.subr.mxu0 0.0
      %2736 = vmatpush1.msra.mxu0 %v2670
      %2737 = vmatprep.subr.mxu0 0.0
      %2738 = vmatpush1.msra.mxu0 %v2669
      %2739 = vmatprep.subr.mxu0 0.0
      %2740 = vmatpush1.msra.mxu0 %v2668
      %2741 = vmatprep.subr.mxu0 0.0
      %2742 = vmatpush1.msra.mxu0 %v2667
      %2743 = vmatprep.subr.mxu0 0.0
      %2744 = vmatpush2.msra.mxu0 %v2698
      %2745 = vmatprep.subr.mxu0 0.0
      %2746 = vmatpush2.msra.mxu0 %v2697
      %2747 = vmatprep.subr.mxu0 0.0
      %2748 = vmatpush2.msra.mxu0 %v2696
      %2749 = vmatprep.subr.mxu0 0.0
      %2750 = vmatpush2.msra.mxu0 %v2695
      %2751 = vmatprep.subr.mxu0 0.0
      %2752 = vmatpush2.msra.mxu0 %v2694
      %2753 = vmatprep.subr.mxu0 0.0
      %2754 = vmatpush2.msra.mxu0 %v2693
      %2755 = vmatprep.subr.mxu0 0.0
      %2756 = vmatpush2.msra.mxu0 %v2692
      %2757 = vmatprep.subr.mxu0 0.0
      %2758 = vmatpush2.msra.mxu0 %v2691
      %2759 = vmatprep.subr.mxu0 0.0
      %2760 = vmatpush2.msra.mxu0 %v2690
      %2761 = vmatprep.subr.mxu0 0.0
      %2762 = vmatpush2.msra.mxu0 %v2689
      %2763 = vmatprep.subr.mxu0 0.0
      %2764 = vmatpush2.msra.mxu0 %v2688
      %2765 = vmatprep.subr.mxu0 0.0
      %2766 = vmatpush2.msra.mxu0 %v2687
      %2767 = vmatprep.subr.mxu0 0.0
      %2768 = vmatpush2.msra.mxu0 %v2686
      %2769 = vmatprep.subr.mxu0 0.0
      %2770 = vmatpush2.msra.mxu0 %v2685
      %2771 = vmatprep.subr.mxu0 0.0
      %2772 = vmatpush2.msra.mxu0 %v2684
      %2773 = vmatprep.subr.mxu0 0.0
      %2774 = vmatpush2.msra.mxu0 %v2683
      %2775 = vmatprep.mubr.f32.mxu0 %v2664
      %2776 = vmatmul.mubr.f32.gmra.mxu0 %v2663
      %v2777 = vpop.f32.mrf.mxu0
      %v2778 = vadd.f32 %v2704, %v2777
      %v2779 = vpop.f32.mrf.mxu0
      %2780 = vmatprep.mubr.f32.mxu0 %v2666
      %2781 = vmatmul.mubr.f32.gmra.mxu0 %v2665
      %v2782 = vpop.f32.mrf.mxu0
      %v2783 = vadd.f32 %v2709, %v2782
      %v2784 = vpop.f32.mrf.mxu0
      %2785 = vdwg.mxu0
      %v2786 = vmax.f32 %v2778, 0.0
      %v2787 = vmax.f32 %v2783, 0.0
      %v2788 = vsel %vm694, %v2786, 0.0
      %2789 = vadd.xlane.f32.xlu0 %v2788
      %v2790 = vpop.xlane.xlu0 %2789
      %v2791 = vsel %vm694, %v2787, 0.0
      %2792 = vadd.xlane.f32.xlu0 %v2791
      %v2793 = vpop.xlane.xlu0 %2792
      %v2794 = vmul.f32 %v2786, %v2786
      %v2795 = vmul.f32 %v2787, %v2787
      %v2796 = vsel %vm694, %v2794, 0.0
      %2797 = vadd.xlane.f32.xlu0 %v2796
      %v2798 = vpop.xlane.xlu0 %2797
      %v2799 = vsel %vm694, %v2795, 0.0
      %2800 = vadd.xlane.f32.xlu0 %v2799
      %v2801 = vpop.xlane.xlu0 %2800
      %v2802 = vrot.slane %v2790, 1
      %v2803 = vrot.slane %v2793, 1
      %v2804 = vsel %vm829, %v2802, %v2803
      %v2805 = vsel %vm829, %v2803, %v2802
      %v2806 = vrot.slane %v2790, 7
      %v2807 = vrot.slane %v2793, 7
      %v2808 = vsel %vm834, %v2806, %v2807
      %v2809 = vsel %vm834, %v2807, %v2806
      %v2810 = vsel %vm825, %v2804, %v2809
      %v2811 = vsel %vm826, %v2805, %v2808
      %v2812 = vadd.f32 %v2790, %v2810
      %v2813 = vadd.f32 %v2793, %v2811
      %v2814 = vrot.slane %v2798, 1
      %v2815 = vrot.slane %v2801, 1
      %v2816 = vsel %vm829, %v2814, %v2815
      %v2817 = vsel %vm829, %v2815, %v2814
      %v2818 = vrot.slane %v2798, 7
      %v2819 = vrot.slane %v2801, 7
      %v2820 = vsel %vm834, %v2818, %v2819
      %v2821 = vsel %vm834, %v2819, %v2818
      %v2822 = vsel %vm825, %v2816, %v2821
      %v2823 = vsel %vm826, %v2817, %v2820
      %v2824 = vadd.f32 %v2798, %v2822
      %v2825 = vadd.f32 %v2801, %v2823
      %v2826 = vrcp.pop 128.0
      %v2827 = vmul.f32 %v2812, %v2826
      %v2828 = vmul.f32 %v2813, %v2826
      %v2829 = vmul.f32 %v2824, %v2826
      %v2830 = vmul.f32 %v2825, %v2826
      %v2831 = vmul.f32 %v2827, %v2827
      %v2832 = vmul.f32 %v2828, %v2828
      %v2833 = vsub.f32 %v2829, %v2831
      %v2834 = vsub.f32 %v2830, %v2832
      %v2835 = vadd.f32 %v2833, 1e-05
      %v2836 = vadd.f32 %v2834, 1e-05
      %v2837 = vrsqrt.pop %v2835
      %v2838 = vrsqrt.pop %v2836
      %v2839 = vld [vmem:[%s7] sm:$0xff]
      %v2840 = vld [vmem:[%s7 + $0x8] sm:$0xff]
      %v2841 = vmul.f32 %v2837, %v2839
      %v2842 = vmul.f32 %v2838, %v2840
      %v2843 = vld [vmem:[%s8] sm:$0xff]
      %v2844 = vld [vmem:[%s8 + $0x8] sm:$0xff]
      %v2845 = vmul.f32 %v2827, %v2841
      %v2846 = vmul.f32 %v2828, %v2842
      %v2847 = vsub.f32 %v2843, %v2845
      %v2848 = vsub.f32 %v2844, %v2846
      %2850 = vset.pattern.permute.xlu0 0
      %2851 = vperm.xlu0 %2850, %v2841
      %v2852 = vpop.permute.xlu0 %2851
      %2855 = vset.pattern.permute.xlu0 0
      %2856 = vperm.xlu0 %2855, %v2842
      %v2857 = vpop.permute.xlu0 %2856
      %v2859 = vmul.f32 %v2786, %v2852
      %v2860 = vmul.f32 %v2787, %v2857
      %2862 = vset.pattern.permute.xlu0 0
      %2863 = vperm.xlu0 %2862, %v2847
      %v2864 = vpop.permute.xlu0 %2863
      %2867 = vset.pattern.permute.xlu0 0
      %2868 = vperm.xlu0 %2867, %v2848
      %v2869 = vpop.permute.xlu0 %2868
      %v2871 = vadd.f32 %v2859, %v2864
      %v2872 = vadd.f32 %v2860, %v2869
      %v2873 = vld [vmem:[%s14] sm:$0xff]
      %v2874 = vld [vmem:[%s14 + $0x8] sm:$0xff]
      %v2875 = vld [vmem:[%s14 + $0x10] sm:$0xff]
      %v2876 = vld [vmem:[%s14 + $0x18] sm:$0xff]
      %v2877 = vld [vmem:[%s14 + $0x20] sm:$0xff]
      %v2878 = vld [vmem:[%s14 + $0x28] sm:$0xff]
      %v2879 = vld [vmem:[%s14 + $0x30] sm:$0xff]
      %v2880 = vld [vmem:[%s14 + $0x38] sm:$0xff]
      %v2882 = vsel %vm694, %v2871, 0
      %v2885 = vsel %vm694, %v2872, 0
      %2887 = vmatprep.subr.mxu0 0.0
      %2888 = vmatpush1.msra.mxu0 0.0
      %2889 = vmatprep.subr.mxu0 0.0
      %2890 = vmatpush1.msra.mxu0 0.0
      %2891 = vmatprep.subr.mxu0 0.0
      %2892 = vmatpush1.msra.mxu0 0.0
      %2893 = vmatprep.subr.mxu0 0.0
      %2894 = vmatpush1.msra.mxu0 0.0
      %2895 = vmatprep.subr.mxu0 0.0
      %2896 = vmatpush1.msra.mxu0 0.0
      %2897 = vmatprep.subr.mxu0 0.0
      %2898 = vmatpush1.msra.mxu0 0.0
      %2899 = vmatprep.subr.mxu0 0.0
      %2900 = vmatpush1.msra.mxu0 0.0
      %2901 = vmatprep.subr.mxu0 0.0
      %2902 = vmatpush1.msra.mxu0 0.0
      %2903 = vmatprep.subr.mxu0 0.0
      %2904 = vmatpush1.msra.mxu0 %v2880
      %2905 = vmatprep.subr.mxu0 0.0
      %2906 = vmatpush1.msra.mxu0 %v2879
      %2907 = vmatprep.subr.mxu0 0.0
      %2908 = vmatpush1.msra.mxu0 %v2878
      %2909 = vmatprep.subr.mxu0 0.0
      %2910 = vmatpush1.msra.mxu0 %v2877
      %2911 = vmatprep.subr.mxu0 0.0
      %2912 = vmatpush1.msra.mxu0 %v2876
      %2913 = vmatprep.subr.mxu0 0.0
      %2914 = vmatpush1.msra.mxu0 %v2875
      %2915 = vmatprep.subr.mxu0 0.0
      %2916 = vmatpush1.msra.mxu0 %v2874
      %2917 = vmatprep.subr.mxu0 0.0
      %2918 = vmatpush1.msra.mxu0 %v2873
      %2919 = vmatprep.subr.mxu0 0.0
      %2920 = vmatpush2.msra.mxu0 0.0
      %2921 = vmatprep.subr.mxu0 0.0
      %2922 = vmatpush2.msra.mxu0 0.0
      %2923 = vmatprep.subr.mxu0 0.0
      %2924 = vmatpush2.msra.mxu0 0.0
      %2925 = vmatprep.subr.mxu0 0.0
      %2926 = vmatpush2.msra.mxu0 0.0
      %2927 = vmatprep.subr.mxu0 0.0
      %2928 = vmatpush2.msra.mxu0 0.0
      %2929 = vmatprep.subr.mxu0 0.0
      %2930 = vmatpush2.msra.mxu0 0.0
      %2931 = vmatprep.subr.mxu0 0.0
      %2932 = vmatpush2.msra.mxu0 0.0
      %2933 = vmatprep.subr.mxu0 0.0
      %2934 = vmatpush2.msra.mxu0 0.0
      %2935 = vmatprep.subr.mxu0 0.0
      %2936 = vmatpush2.msra.mxu0 0.0
      %2937 = vmatprep.subr.mxu0 0.0
      %2938 = vmatpush2.msra.mxu0 0.0
      %2939 = vmatprep.subr.mxu0 0.0
      %2940 = vmatpush2.msra.mxu0 0.0
      %2941 = vmatprep.subr.mxu0 0.0
      %2942 = vmatpush2.msra.mxu0 0.0
      %2943 = vmatprep.subr.mxu0 0.0
      %2944 = vmatpush2.msra.mxu0 0.0
      %2945 = vmatprep.subr.mxu0 0.0
      %2946 = vmatpush2.msra.mxu0 0.0
      %2947 = vmatprep.subr.mxu0 0.0
      %2948 = vmatpush2.msra.mxu0 0.0
      %2949 = vmatprep.subr.mxu0 0.0
      %2950 = vmatpush2.msra.mxu0 0.0
      %2951 = vmatprep.mubr.f32.mxu0 0.0
      %2952 = vmatmul.mubr.f32.gmra.mxu0 %v2882
      %v2953 = vpop.f32.mrf.mxu0
      %v2954 = vadd.f32 0.0, %v2953
      %v2955 = vpop.f32.mrf.mxu0
      %2956 = vmatprep.mubr.f32.mxu0 0.0
      %2957 = vmatmul.mubr.f32.gmra.mxu0 %v2885
      %v2958 = vpop.f32.mrf.mxu0
      %v2959 = vadd.f32 0.0, %v2958
      %v2960 = vpop.f32.mrf.mxu0
      %2961 = vdwg.mxu0
      %2962 = vst.msk [vmem:[#allocation3] sm:$0xff] %vm694, %v2954
      %2963 = vst.msk [vmem:[#allocation3 + $0x8] sm:$0xff] %vm694, %v2959
      %s2964 = scalar_lea.vmem %s14, 64
      %v2965 = vld [vmem:[%s2964] sm:$0xff]
      %v2966 = vld [vmem:[%s2964 + $0x8] sm:$0xff]
      %v2967 = vld [vmem:[%s2964 + $0x10] sm:$0xff]
      %v2968 = vld [vmem:[%s2964 + $0x18] sm:$0xff]
      %v2969 = vld [vmem:[%s2964 + $0x20] sm:$0xff]
      %v2970 = vld [vmem:[%s2964 + $0x28] sm:$0xff]
      %v2971 = vld [vmem:[%s2964 + $0x30] sm:$0xff]
      %v2972 = vld [vmem:[%s2964 + $0x38] sm:$0xff]
      %2973 = vmatprep.subr.mxu0 0.0
      %2974 = vmatpush1.msra.mxu0 0.0
      %2975 = vmatprep.subr.mxu0 0.0
      %2976 = vmatpush1.msra.mxu0 0.0
      %2977 = vmatprep.subr.mxu0 0.0
      %2978 = vmatpush1.msra.mxu0 0.0
      %2979 = vmatprep.subr.mxu0 0.0
      %2980 = vmatpush1.msra.mxu0 0.0
      %2981 = vmatprep.subr.mxu0 0.0
      %2982 = vmatpush1.msra.mxu0 0.0
      %2983 = vmatprep.subr.mxu0 0.0
      %2984 = vmatpush1.msra.mxu0 0.0
      %2985 = vmatprep.subr.mxu0 0.0
      %2986 = vmatpush1.msra.mxu0 0.0
      %2987 = vmatprep.subr.mxu0 0.0
      %2988 = vmatpush1.msra.mxu0 0.0
      %2989 = vmatprep.subr.mxu0 0.0
      %2990 = vmatpush1.msra.mxu0 %v2972
      %2991 = vmatprep.subr.mxu0 0.0
      %2992 = vmatpush1.msra.mxu0 %v2971
      %2993 = vmatprep.subr.mxu0 0.0
      %2994 = vmatpush1.msra.mxu0 %v2970
      %2995 = vmatprep.subr.mxu0 0.0
      %2996 = vmatpush1.msra.mxu0 %v2969
      %2997 = vmatprep.subr.mxu0 0.0
      %2998 = vmatpush1.msra.mxu0 %v2968
      %2999 = vmatprep.subr.mxu0 0.0
      %3000 = vmatpush1.msra.mxu0 %v2967
      %3001 = vmatprep.subr.mxu0 0.0
      %3002 = vmatpush1.msra.mxu0 %v2966
      %3003 = vmatprep.subr.mxu0 0.0
      %3004 = vmatpush1.msra.mxu0 %v2965
      %3005 = vmatprep.subr.mxu0 0.0
      %3006 = vmatpush2.msra.mxu0 0.0
      %3007 = vmatprep.subr.mxu0 0.0
      %3008 = vmatpush2.msra.mxu0 0.0
      %3009 = vmatprep.subr.mxu0 0.0
      %3010 = vmatpush2.msra.mxu0 0.0
      %3011 = vmatprep.subr.mxu0 0.0
      %3012 = vmatpush2.msra.mxu0 0.0
      %3013 = vmatprep.subr.mxu0 0.0
      %3014 = vmatpush2.msra.mxu0 0.0
      %3015 = vmatprep.subr.mxu0 0.0
      %3016 = vmatpush2.msra.mxu0 0.0
      %3017 = vmatprep.subr.mxu0 0.0
      %3018 = vmatpush2.msra.mxu0 0.0
      %3019 = vmatprep.subr.mxu0 0.0
      %3020 = vmatpush2.msra.mxu0 0.0
      %3021 = vmatprep.subr.mxu0 0.0
      %3022 = vmatpush2.msra.mxu0 0.0
      %3023 = vmatprep.subr.mxu0 0.0
      %3024 = vmatpush2.msra.mxu0 0.0
      %3025 = vmatprep.subr.mxu0 0.0
      %3026 = vmatpush2.msra.mxu0 0.0
      %3027 = vmatprep.subr.mxu0 0.0
      %3028 = vmatpush2.msra.mxu0 0.0
      %3029 = vmatprep.subr.mxu0 0.0
      %3030 = vmatpush2.msra.mxu0 0.0
      %3031 = vmatprep.subr.mxu0 0.0
      %3032 = vmatpush2.msra.mxu0 0.0
      %3033 = vmatprep.subr.mxu0 0.0
      %3034 = vmatpush2.msra.mxu0 0.0
      %3035 = vmatprep.subr.mxu0 0.0
      %3036 = vmatpush2.msra.mxu0 0.0
      %3037 = vmatprep.mubr.f32.mxu0 0.0
      %3038 = vmatmul.mubr.f32.gmra.mxu0 %v2882
      %v3039 = vpop.f32.mrf.mxu0
      %v3040 = vadd.f32 0.0, %v3039
      %v3041 = vpop.f32.mrf.mxu0
      %3042 = vmatprep.mubr.f32.mxu0 0.0
      %3043 = vmatmul.mubr.f32.gmra.mxu0 %v2885
      %v3044 = vpop.f32.mrf.mxu0
      %v3045 = vadd.f32 0.0, %v3044
      %v3046 = vpop.f32.mrf.mxu0
      %3047 = vdwg.mxu0
      %3048 = vst.msk [vmem:[#allocation3 + $0x10] sm:$0xff] %vm694, %v3040
      %3049 = vst.msk [vmem:[#allocation3 + $0x18] sm:$0xff] %vm694, %v3045
      %s3050 = scalar_lea.vmem %s14, 128
      %v3051 = vld [vmem:[%s3050] sm:$0xff]
      %v3052 = vld [vmem:[%s3050 + $0x8] sm:$0xff]
      %v3053 = vld [vmem:[%s3050 + $0x10] sm:$0xff]
      %v3054 = vld [vmem:[%s3050 + $0x18] sm:$0xff]
      %v3055 = vld [vmem:[%s3050 + $0x20] sm:$0xff]
      %v3056 = vld [vmem:[%s3050 + $0x28] sm:$0xff]
      %v3057 = vld [vmem:[%s3050 + $0x30] sm:$0xff]
      %v3058 = vld [vmem:[%s3050 + $0x38] sm:$0xff]
      %3059 = vmatprep.subr.mxu0 0.0
      %3060 = vmatpush1.msra.mxu0 0.0
      %3061 = vmatprep.subr.mxu0 0.0
      %3062 = vmatpush1.msra.mxu0 0.0
      %3063 = vmatprep.subr.mxu0 0.0
      %3064 = vmatpush1.msra.mxu0 0.0
      %3065 = vmatprep.subr.mxu0 0.0
      %3066 = vmatpush1.msra.mxu0 0.0
      %3067 = vmatprep.subr.mxu0 0.0
      %3068 = vmatpush1.msra.mxu0 0.0
      %3069 = vmatprep.subr.mxu0 0.0
      %3070 = vmatpush1.msra.mxu0 0.0
      %3071 = vmatprep.subr.mxu0 0.0
      %3072 = vmatpush1.msra.mxu0 0.0
      %3073 = vmatprep.subr.mxu0 0.0
      %3074 = vmatpush1.msra.mxu0 0.0
      %3075 = vmatprep.subr.mxu0 0.0
      %3076 = vmatpush1.msra.mxu0 %v3058
      %3077 = vmatprep.subr.mxu0 0.0
      %3078 = vmatpush1.msra.mxu0 %v3057
      %3079 = vmatprep.subr.mxu0 0.0
      %3080 = vmatpush1.msra.mxu0 %v3056
      %3081 = vmatprep.subr.mxu0 0.0
      %3082 = vmatpush1.msra.mxu0 %v3055
      %3083 = vmatprep.subr.mxu0 0.0
      %3084 = vmatpush1.msra.mxu0 %v3054
      %3085 = vmatprep.subr.mxu0 0.0
      %3086 = vmatpush1.msra.mxu0 %v3053
      %3087 = vmatprep.subr.mxu0 0.0
      %3088 = vmatpush1.msra.mxu0 %v3052
      %3089 = vmatprep.subr.mxu0 0.0
      %3090 = vmatpush1.msra.mxu0 %v3051
      %3091 = vmatprep.subr.mxu0 0.0
      %3092 = vmatpush2.msra.mxu0 0.0
      %3093 = vmatprep.subr.mxu0 0.0
      %3094 = vmatpush2.msra.mxu0 0.0
      %3095 = vmatprep.subr.mxu0 0.0
      %3096 = vmatpush2.msra.mxu0 0.0
      %3097 = vmatprep.subr.mxu0 0.0
      %3098 = vmatpush2.msra.mxu0 0.0
      %3099 = vmatprep.subr.mxu0 0.0
      %3100 = vmatpush2.msra.mxu0 0.0
      %3101 = vmatprep.subr.mxu0 0.0
      %3102 = vmatpush2.msra.mxu0 0.0
      %3103 = vmatprep.subr.mxu0 0.0
      %3104 = vmatpush2.msra.mxu0 0.0
      %3105 = vmatprep.subr.mxu0 0.0
      %3106 = vmatpush2.msra.mxu0 0.0
      %3107 = vmatprep.subr.mxu0 0.0
      %3108 = vmatpush2.msra.mxu0 0.0
      %3109 = vmatprep.subr.mxu0 0.0
      %3110 = vmatpush2.msra.mxu0 0.0
      %3111 = vmatprep.subr.mxu0 0.0
      %3112 = vmatpush2.msra.mxu0 0.0
      %3113 = vmatprep.subr.mxu0 0.0
      %3114 = vmatpush2.msra.mxu0 0.0
      %3115 = vmatprep.subr.mxu0 0.0
      %3116 = vmatpush2.msra.mxu0 0.0
      %3117 = vmatprep.subr.mxu0 0.0
      %3118 = vmatpush2.msra.mxu0 0.0
      %3119 = vmatprep.subr.mxu0 0.0
      %3120 = vmatpush2.msra.mxu0 0.0
      %3121 = vmatprep.subr.mxu0 0.0
      %3122 = vmatpush2.msra.mxu0 0.0
      %3123 = vmatprep.mubr.f32.mxu0 0.0
      %3124 = vmatmul.mubr.f32.gmra.mxu0 %v2882
      %v3125 = vpop.f32.mrf.mxu0
      %v3126 = vadd.f32 0.0, %v3125
      %v3127 = vpop.f32.mrf.mxu0
      %3128 = vmatprep.mubr.f32.mxu0 0.0
      %3129 = vmatmul.mubr.f32.gmra.mxu0 %v2885
      %v3130 = vpop.f32.mrf.mxu0
      %v3131 = vadd.f32 0.0, %v3130
      %v3132 = vpop.f32.mrf.mxu0
      %3133 = vdwg.mxu0
      %3134 = vst.msk [vmem:[#allocation3 + $0x20] sm:$0xff] %vm694, %v3126
      %3135 = vst.msk [vmem:[#allocation3 + $0x28] sm:$0xff] %vm694, %v3131
      %s3136 = scalar_lea.vmem %s14, 192
      %v3137 = vld [vmem:[%s3136] sm:$0xff]
      %v3138 = vld [vmem:[%s3136 + $0x8] sm:$0xff]
      %v3139 = vld [vmem:[%s3136 + $0x10] sm:$0xff]
      %v3140 = vld [vmem:[%s3136 + $0x18] sm:$0xff]
      %v3141 = vld [vmem:[%s3136 + $0x20] sm:$0xff]
      %v3142 = vld [vmem:[%s3136 + $0x28] sm:$0xff]
      %v3143 = vld [vmem:[%s3136 + $0x30] sm:$0xff]
      %v3144 = vld [vmem:[%s3136 + $0x38] sm:$0xff]
      %3145 = vmatprep.subr.mxu0 0.0
      %3146 = vmatpush1.msra.mxu0 0.0
      %3147 = vmatprep.subr.mxu0 0.0
      %3148 = vmatpush1.msra.mxu0 0.0
      %3149 = vmatprep.subr.mxu0 0.0
      %3150 = vmatpush1.msra.mxu0 0.0
      %3151 = vmatprep.subr.mxu0 0.0
      %3152 = vmatpush1.msra.mxu0 0.0
      %3153 = vmatprep.subr.mxu0 0.0
      %3154 = vmatpush1.msra.mxu0 0.0
      %3155 = vmatprep.subr.mxu0 0.0
      %3156 = vmatpush1.msra.mxu0 0.0
      %3157 = vmatprep.subr.mxu0 0.0
      %3158 = vmatpush1.msra.mxu0 0.0
      %3159 = vmatprep.subr.mxu0 0.0
      %3160 = vmatpush1.msra.mxu0 0.0
      %3161 = vmatprep.subr.mxu0 0.0
      %3162 = vmatpush1.msra.mxu0 %v3144
      %3163 = vmatprep.subr.mxu0 0.0
      %3164 = vmatpush1.msra.mxu0 %v3143
      %3165 = vmatprep.subr.mxu0 0.0
      %3166 = vmatpush1.msra.mxu0 %v3142
      %3167 = vmatprep.subr.mxu0 0.0
      %3168 = vmatpush1.msra.mxu0 %v3141
      %3169 = vmatprep.subr.mxu0 0.0
      %3170 = vmatpush1.msra.mxu0 %v3140
      %3171 = vmatprep.subr.mxu0 0.0
      %3172 = vmatpush1.msra.mxu0 %v3139
      %3173 = vmatprep.subr.mxu0 0.0
      %3174 = vmatpush1.msra.mxu0 %v3138
      %3175 = vmatprep.subr.mxu0 0.0
      %3176 = vmatpush1.msra.mxu0 %v3137
      %3177 = vmatprep.subr.mxu0 0.0
      %3178 = vmatpush2.msra.mxu0 0.0
      %3179 = vmatprep.subr.mxu0 0.0
      %3180 = vmatpush2.msra.mxu0 0.0
      %3181 = vmatprep.subr.mxu0 0.0
      %3182 = vmatpush2.msra.mxu0 0.0
      %3183 = vmatprep.subr.mxu0 0.0
      %3184 = vmatpush2.msra.mxu0 0.0
      %3185 = vmatprep.subr.mxu0 0.0
      %3186 = vmatpush2.msra.mxu0 0.0
      %3187 = vmatprep.subr.mxu0 0.0
      %3188 = vmatpush2.msra.mxu0 0.0
      %3189 = vmatprep.subr.mxu0 0.0
      %3190 = vmatpush2.msra.mxu0 0.0
      %3191 = vmatprep.subr.mxu0 0.0
      %3192 = vmatpush2.msra.mxu0 0.0
      %3193 = vmatprep.subr.mxu0 0.0
      %3194 = vmatpush2.msra.mxu0 0.0
      %3195 = vmatprep.subr.mxu0 0.0
      %3196 = vmatpush2.msra.mxu0 0.0
      %3197 = vmatprep.subr.mxu0 0.0
      %3198 = vmatpush2.msra.mxu0 0.0
      %3199 = vmatprep.subr.mxu0 0.0
      %3200 = vmatpush2.msra.mxu0 0.0
      %3201 = vmatprep.subr.mxu0 0.0
      %3202 = vmatpush2.msra.mxu0 0.0
      %3203 = vmatprep.subr.mxu0 0.0
      %3204 = vmatpush2.msra.mxu0 0.0
      %3205 = vmatprep.subr.mxu0 0.0
      %3206 = vmatpush2.msra.mxu0 0.0
      %3207 = vmatprep.subr.mxu0 0.0
      %3208 = vmatpush2.msra.mxu0 0.0
      %3209 = vmatprep.mubr.f32.mxu0 0.0
      %3210 = vmatmul.mubr.f32.gmra.mxu0 %v2882
      %v3211 = vpop.f32.mrf.mxu0
      %v3212 = vadd.f32 0.0, %v3211
      %v3213 = vpop.f32.mrf.mxu0
      %3214 = vmatprep.mubr.f32.mxu0 0.0
      %3215 = vmatmul.mubr.f32.gmra.mxu0 %v2885
      %v3216 = vpop.f32.mrf.mxu0
      %v3217 = vadd.f32 0.0, %v3216
      %v3218 = vpop.f32.mrf.mxu0
      %3219 = vdwg.mxu0
      %3220 = vst.msk [vmem:[#allocation3 + $0x30] sm:$0xff] %vm694, %v3212
      %3221 = vst.msk [vmem:[#allocation3 + $0x38] sm:$0xff] %vm694, %v3217
      %s3222 = scalar_lea.vmem %s14, 256
      %v3223 = vld [vmem:[%s3222] sm:$0xff]
      %v3224 = vld [vmem:[%s3222 + $0x8] sm:$0xff]
      %v3225 = vld [vmem:[%s3222 + $0x10] sm:$0xff]
      %v3226 = vld [vmem:[%s3222 + $0x18] sm:$0xff]
      %v3227 = vld [vmem:[%s3222 + $0x20] sm:$0xff]
      %v3228 = vld [vmem:[%s3222 + $0x28] sm:$0xff]
      %v3229 = vld [vmem:[%s3222 + $0x30] sm:$0xff]
      %v3230 = vld [vmem:[%s3222 + $0x38] sm:$0xff]
      %3231 = vmatprep.subr.mxu0 0.0
      %3232 = vmatpush1.msra.mxu0 0.0
      %3233 = vmatprep.subr.mxu0 0.0
      %3234 = vmatpush1.msra.mxu0 0.0
      %3235 = vmatprep.subr.mxu0 0.0
      %3236 = vmatpush1.msra.mxu0 0.0
      %3237 = vmatprep.subr.mxu0 0.0
      %3238 = vmatpush1.msra.mxu0 0.0
      %3239 = vmatprep.subr.mxu0 0.0
      %3240 = vmatpush1.msra.mxu0 0.0
      %3241 = vmatprep.subr.mxu0 0.0
      %3242 = vmatpush1.msra.mxu0 0.0
      %3243 = vmatprep.subr.mxu0 0.0
      %3244 = vmatpush1.msra.mxu0 0.0
      %3245 = vmatprep.subr.mxu0 0.0
      %3246 = vmatpush1.msra.mxu0 0.0
      %3247 = vmatprep.subr.mxu0 0.0
      %3248 = vmatpush1.msra.mxu0 %v3230
      %3249 = vmatprep.subr.mxu0 0.0
      %3250 = vmatpush1.msra.mxu0 %v3229
      %3251 = vmatprep.subr.mxu0 0.0
      %3252 = vmatpush1.msra.mxu0 %v3228
      %3253 = vmatprep.subr.mxu0 0.0
      %3254 = vmatpush1.msra.mxu0 %v3227
      %3255 = vmatprep.subr.mxu0 0.0
      %3256 = vmatpush1.msra.mxu0 %v3226
      %3257 = vmatprep.subr.mxu0 0.0
      %3258 = vmatpush1.msra.mxu0 %v3225
      %3259 = vmatprep.subr.mxu0 0.0
      %3260 = vmatpush1.msra.mxu0 %v3224
      %3261 = vmatprep.subr.mxu0 0.0
      %3262 = vmatpush1.msra.mxu0 %v3223
      %3263 = vmatprep.subr.mxu0 0.0
      %3264 = vmatpush2.msra.mxu0 0.0
      %3265 = vmatprep.subr.mxu0 0.0
      %3266 = vmatpush2.msra.mxu0 0.0
      %3267 = vmatprep.subr.mxu0 0.0
      %3268 = vmatpush2.msra.mxu0 0.0
      %3269 = vmatprep.subr.mxu0 0.0
      %3270 = vmatpush2.msra.mxu0 0.0
      %3271 = vmatprep.subr.mxu0 0.0
      %3272 = vmatpush2.msra.mxu0 0.0
      %3273 = vmatprep.subr.mxu0 0.0
      %3274 = vmatpush2.msra.mxu0 0.0
      %3275 = vmatprep.subr.mxu0 0.0
      %3276 = vmatpush2.msra.mxu0 0.0
      %3277 = vmatprep.subr.mxu0 0.0
      %3278 = vmatpush2.msra.mxu0 0.0
      %3279 = vmatprep.subr.mxu0 0.0
      %3280 = vmatpush2.msra.mxu0 0.0
      %3281 = vmatprep.subr.mxu0 0.0
      %3282 = vmatpush2.msra.mxu0 0.0
      %3283 = vmatprep.subr.mxu0 0.0
      %3284 = vmatpush2.msra.mxu0 0.0
      %3285 = vmatprep.subr.mxu0 0.0
      %3286 = vmatpush2.msra.mxu0 0.0
      %3287 = vmatprep.subr.mxu0 0.0
      %3288 = vmatpush2.msra.mxu0 0.0
      %3289 = vmatprep.subr.mxu0 0.0
      %3290 = vmatpush2.msra.mxu0 0.0
      %3291 = vmatprep.subr.mxu0 0.0
      %3292 = vmatpush2.msra.mxu0 0.0
      %3293 = vmatprep.subr.mxu0 0.0
      %3294 = vmatpush2.msra.mxu0 0.0
      %3295 = vmatprep.mubr.f32.mxu0 0.0
      %3296 = vmatmul.mubr.f32.gmra.mxu0 %v2882
      %v3297 = vpop.f32.mrf.mxu0
      %v3298 = vadd.f32 0.0, %v3297
      %v3299 = vpop.f32.mrf.mxu0
      %3300 = vmatprep.mubr.f32.mxu0 0.0
      %3301 = vmatmul.mubr.f32.gmra.mxu0 %v2885
      %v3302 = vpop.f32.mrf.mxu0
      %v3303 = vadd.f32 0.0, %v3302
      %v3304 = vpop.f32.mrf.mxu0
      %3305 = vdwg.mxu0
      %3306 = vst.msk [vmem:[#allocation3 + $0x40] sm:$0xff] %vm694, %v3298
      %3307 = vst.msk [vmem:[#allocation3 + $0x48] sm:$0xff] %vm694, %v3303
      %s3308 = scalar_lea.vmem %s14, 320
      %v3309 = vld [vmem:[%s3308] sm:$0xff]
      %v3310 = vld [vmem:[%s3308 + $0x8] sm:$0xff]
      %v3311 = vld [vmem:[%s3308 + $0x10] sm:$0xff]
      %v3312 = vld [vmem:[%s3308 + $0x18] sm:$0xff]
      %v3313 = vld [vmem:[%s3308 + $0x20] sm:$0xff]
      %v3314 = vld [vmem:[%s3308 + $0x28] sm:$0xff]
      %v3315 = vld [vmem:[%s3308 + $0x30] sm:$0xff]
      %v3316 = vld [vmem:[%s3308 + $0x38] sm:$0xff]
      %3317 = vmatprep.subr.mxu0 0.0
      %3318 = vmatpush1.msra.mxu0 0.0
      %3319 = vmatprep.subr.mxu0 0.0
      %3320 = vmatpush1.msra.mxu0 0.0
      %3321 = vmatprep.subr.mxu0 0.0
      %3322 = vmatpush1.msra.mxu0 0.0
      %3323 = vmatprep.subr.mxu0 0.0
      %3324 = vmatpush1.msra.mxu0 0.0
      %3325 = vmatprep.subr.mxu0 0.0
      %3326 = vmatpush1.msra.mxu0 0.0
      %3327 = vmatprep.subr.mxu0 0.0
      %3328 = vmatpush1.msra.mxu0 0.0
      %3329 = vmatprep.subr.mxu0 0.0
      %3330 = vmatpush1.msra.mxu0 0.0
      %3331 = vmatprep.subr.mxu0 0.0
      %3332 = vmatpush1.msra.mxu0 0.0
      %3333 = vmatprep.subr.mxu0 0.0
      %3334 = vmatpush1.msra.mxu0 %v3316
      %3335 = vmatprep.subr.mxu0 0.0
      %3336 = vmatpush1.msra.mxu0 %v3315
      %3337 = vmatprep.subr.mxu0 0.0
      %3338 = vmatpush1.msra.mxu0 %v3314
      %3339 = vmatprep.subr.mxu0 0.0
      %3340 = vmatpush1.msra.mxu0 %v3313
      %3341 = vmatprep.subr.mxu0 0.0
      %3342 = vmatpush1.msra.mxu0 %v3312
      %3343 = vmatprep.subr.mxu0 0.0
      %3344 = vmatpush1.msra.mxu0 %v3311
      %3345 = vmatprep.subr.mxu0 0.0
      %3346 = vmatpush1.msra.mxu0 %v3310
      %3347 = vmatprep.subr.mxu0 0.0
      %3348 = vmatpush1.msra.mxu0 %v3309
      %3349 = vmatprep.subr.mxu0 0.0
      %3350 = vmatpush2.msra.mxu0 0.0
      %3351 = vmatprep.subr.mxu0 0.0
      %3352 = vmatpush2.msra.mxu0 0.0
      %3353 = vmatprep.subr.mxu0 0.0
      %3354 = vmatpush2.msra.mxu0 0.0
      %3355 = vmatprep.subr.mxu0 0.0
      %3356 = vmatpush2.msra.mxu0 0.0
      %3357 = vmatprep.subr.mxu0 0.0
      %3358 = vmatpush2.msra.mxu0 0.0
      %3359 = vmatprep.subr.mxu0 0.0
      %3360 = vmatpush2.msra.mxu0 0.0
      %3361 = vmatprep.subr.mxu0 0.0
      %3362 = vmatpush2.msra.mxu0 0.0
      %3363 = vmatprep.subr.mxu0 0.0
      %3364 = vmatpush2.msra.mxu0 0.0
      %3365 = vmatprep.subr.mxu0 0.0
      %3366 = vmatpush2.msra.mxu0 0.0
      %3367 = vmatprep.subr.mxu0 0.0
      %3368 = vmatpush2.msra.mxu0 0.0
      %3369 = vmatprep.subr.mxu0 0.0
      %3370 = vmatpush2.msra.mxu0 0.0
      %3371 = vmatprep.subr.mxu0 0.0
      %3372 = vmatpush2.msra.mxu0 0.0
      %3373 = vmatprep.subr.mxu0 0.0
      %3374 = vmatpush2.msra.mxu0 0.0
      %3375 = vmatprep.subr.mxu0 0.0
      %3376 = vmatpush2.msra.mxu0 0.0
      %3377 = vmatprep.subr.mxu0 0.0
      %3378 = vmatpush2.msra.mxu0 0.0
      %3379 = vmatprep.subr.mxu0 0.0
      %3380 = vmatpush2.msra.mxu0 0.0
      %3381 = vmatprep.mubr.f32.mxu0 0.0
      %3382 = vmatmul.mubr.f32.gmra.mxu0 %v2882
      %v3383 = vpop.f32.mrf.mxu0
      %v3384 = vadd.f32 0.0, %v3383
      %v3385 = vpop.f32.mrf.mxu0
      %3386 = vmatprep.mubr.f32.mxu0 0.0
      %3387 = vmatmul.mubr.f32.gmra.mxu0 %v2885
      %v3388 = vpop.f32.mrf.mxu0
      %v3389 = vadd.f32 0.0, %v3388
      %v3390 = vpop.f32.mrf.mxu0
      %3391 = vdwg.mxu0
      %3392 = vst.msk [vmem:[#allocation3 + $0x50] sm:$0xff] %vm694, %v3384
      %3393 = vst.msk [vmem:[#allocation3 + $0x58] sm:$0xff] %vm694, %v3389
      %s3394 = scalar_lea.vmem %s14, 384
      %v3395 = vld [vmem:[%s3394] sm:$0xff]
      %v3396 = vld [vmem:[%s3394 + $0x8] sm:$0xff]
      %v3397 = vld [vmem:[%s3394 + $0x10] sm:$0xff]
      %v3398 = vld [vmem:[%s3394 + $0x18] sm:$0xff]
      %v3399 = vld [vmem:[%s3394 + $0x20] sm:$0xff]
      %v3400 = vld [vmem:[%s3394 + $0x28] sm:$0xff]
      %v3401 = vld [vmem:[%s3394 + $0x30] sm:$0xff]
      %v3402 = vld [vmem:[%s3394 + $0x38] sm:$0xff]
      %3403 = vmatprep.subr.mxu0 0.0
      %3404 = vmatpush1.msra.mxu0 0.0
      %3405 = vmatprep.subr.mxu0 0.0
      %3406 = vmatpush1.msra.mxu0 0.0
      %3407 = vmatprep.subr.mxu0 0.0
      %3408 = vmatpush1.msra.mxu0 0.0
      %3409 = vmatprep.subr.mxu0 0.0
      %3410 = vmatpush1.msra.mxu0 0.0
      %3411 = vmatprep.subr.mxu0 0.0
      %3412 = vmatpush1.msra.mxu0 0.0
      %3413 = vmatprep.subr.mxu0 0.0
      %3414 = vmatpush1.msra.mxu0 0.0
      %3415 = vmatprep.subr.mxu0 0.0
      %3416 = vmatpush1.msra.mxu0 0.0
      %3417 = vmatprep.subr.mxu0 0.0
      %3418 = vmatpush1.msra.mxu0 0.0
      %3419 = vmatprep.subr.mxu0 0.0
      %3420 = vmatpush1.msra.mxu0 %v3402
      %3421 = vmatprep.subr.mxu0 0.0
      %3422 = vmatpush1.msra.mxu0 %v3401
      %3423 = vmatprep.subr.mxu0 0.0
      %3424 = vmatpush1.msra.mxu0 %v3400
      %3425 = vmatprep.subr.mxu0 0.0
      %3426 = vmatpush1.msra.mxu0 %v3399
      %3427 = vmatprep.subr.mxu0 0.0
      %3428 = vmatpush1.msra.mxu0 %v3398
      %3429 = vmatprep.subr.mxu0 0.0
      %3430 = vmatpush1.msra.mxu0 %v3397
      %3431 = vmatprep.subr.mxu0 0.0
      %3432 = vmatpush1.msra.mxu0 %v3396
      %3433 = vmatprep.subr.mxu0 0.0
      %3434 = vmatpush1.msra.mxu0 %v3395
      %3435 = vmatprep.subr.mxu0 0.0
      %3436 = vmatpush2.msra.mxu0 0.0
      %3437 = vmatprep.subr.mxu0 0.0
      %3438 = vmatpush2.msra.mxu0 0.0
      %3439 = vmatprep.subr.mxu0 0.0
      %3440 = vmatpush2.msra.mxu0 0.0
      %3441 = vmatprep.subr.mxu0 0.0
      %3442 = vmatpush2.msra.mxu0 0.0
      %3443 = vmatprep.subr.mxu0 0.0
      %3444 = vmatpush2.msra.mxu0 0.0
      %3445 = vmatprep.subr.mxu0 0.0
      %3446 = vmatpush2.msra.mxu0 0.0
      %3447 = vmatprep.subr.mxu0 0.0
      %3448 = vmatpush2.msra.mxu0 0.0
      %3449 = vmatprep.subr.mxu0 0.0
      %3450 = vmatpush2.msra.mxu0 0.0
      %3451 = vmatprep.subr.mxu0 0.0
      %3452 = vmatpush2.msra.mxu0 0.0
      %3453 = vmatprep.subr.mxu0 0.0
      %3454 = vmatpush2.msra.mxu0 0.0
      %3455 = vmatprep.subr.mxu0 0.0
      %3456 = vmatpush2.msra.mxu0 0.0
      %3457 = vmatprep.subr.mxu0 0.0
      %3458 = vmatpush2.msra.mxu0 0.0
      %3459 = vmatprep.subr.mxu0 0.0
      %3460 = vmatpush2.msra.mxu0 0.0
      %3461 = vmatprep.subr.mxu0 0.0
      %3462 = vmatpush2.msra.mxu0 0.0
      %3463 = vmatprep.subr.mxu0 0.0
      %3464 = vmatpush2.msra.mxu0 0.0
      %3465 = vmatprep.subr.mxu0 0.0
      %3466 = vmatpush2.msra.mxu0 0.0
      %3467 = vmatprep.mubr.f32.mxu0 0.0
      %3468 = vmatmul.mubr.f32.gmra.mxu0 %v2882
      %v3469 = vpop.f32.mrf.mxu0
      %v3470 = vadd.f32 0.0, %v3469
      %v3471 = vpop.f32.mrf.mxu0
      %3472 = vmatprep.mubr.f32.mxu0 0.0
      %3473 = vmatmul.mubr.f32.gmra.mxu0 %v2885
      %v3474 = vpop.f32.mrf.mxu0
      %v3475 = vadd.f32 0.0, %v3474
      %v3476 = vpop.f32.mrf.mxu0
      %3477 = vdwg.mxu0
      %3478 = vst.msk [vmem:[#allocation3 + $0x60] sm:$0xff] %vm694, %v3470
      %3479 = vst.msk [vmem:[#allocation3 + $0x68] sm:$0xff] %vm694, %v3475
      %s3480 = scalar_lea.vmem %s14, 448
      %v3481 = vld [vmem:[%s3480] sm:$0xff]
      %v3482 = vld [vmem:[%s3480 + $0x8] sm:$0xff]
      %v3483 = vld [vmem:[%s3480 + $0x10] sm:$0xff]
      %v3484 = vld [vmem:[%s3480 + $0x18] sm:$0xff]
      %v3485 = vld [vmem:[%s3480 + $0x20] sm:$0xff]
      %v3486 = vld [vmem:[%s3480 + $0x28] sm:$0xff]
      %v3487 = vld [vmem:[%s3480 + $0x30] sm:$0xff]
      %v3488 = vld [vmem:[%s3480 + $0x38] sm:$0xff]
      %3489 = vmatprep.subr.mxu0 0.0
      %3490 = vmatpush1.msra.mxu0 0.0
      %3491 = vmatprep.subr.mxu0 0.0
      %3492 = vmatpush1.msra.mxu0 0.0
      %3493 = vmatprep.subr.mxu0 0.0
      %3494 = vmatpush1.msra.mxu0 0.0
      %3495 = vmatprep.subr.mxu0 0.0
      %3496 = vmatpush1.msra.mxu0 0.0
      %3497 = vmatprep.subr.mxu0 0.0
      %3498 = vmatpush1.msra.mxu0 0.0
      %3499 = vmatprep.subr.mxu0 0.0
      %3500 = vmatpush1.msra.mxu0 0.0
      %3501 = vmatprep.subr.mxu0 0.0
      %3502 = vmatpush1.msra.mxu0 0.0
      %3503 = vmatprep.subr.mxu0 0.0
      %3504 = vmatpush1.msra.mxu0 0.0
      %3505 = vmatprep.subr.mxu0 0.0
      %3506 = vmatpush1.msra.mxu0 %v3488
      %3507 = vmatprep.subr.mxu0 0.0
      %3508 = vmatpush1.msra.mxu0 %v3487
      %3509 = vmatprep.subr.mxu0 0.0
      %3510 = vmatpush1.msra.mxu0 %v3486
      %3511 = vmatprep.subr.mxu0 0.0
      %3512 = vmatpush1.msra.mxu0 %v3485
      %3513 = vmatprep.subr.mxu0 0.0
      %3514 = vmatpush1.msra.mxu0 %v3484
      %3515 = vmatprep.subr.mxu0 0.0
      %3516 = vmatpush1.msra.mxu0 %v3483
      %3517 = vmatprep.subr.mxu0 0.0
      %3518 = vmatpush1.msra.mxu0 %v3482
      %3519 = vmatprep.subr.mxu0 0.0
      %3520 = vmatpush1.msra.mxu0 %v3481
      %3521 = vmatprep.subr.mxu0 0.0
      %3522 = vmatpush2.msra.mxu0 0.0
      %3523 = vmatprep.subr.mxu0 0.0
      %3524 = vmatpush2.msra.mxu0 0.0
      %3525 = vmatprep.subr.mxu0 0.0
      %3526 = vmatpush2.msra.mxu0 0.0
      %3527 = vmatprep.subr.mxu0 0.0
      %3528 = vmatpush2.msra.mxu0 0.0
      %3529 = vmatprep.subr.mxu0 0.0
      %3530 = vmatpush2.msra.mxu0 0.0
      %3531 = vmatprep.subr.mxu0 0.0
      %3532 = vmatpush2.msra.mxu0 0.0
      %3533 = vmatprep.subr.mxu0 0.0
      %3534 = vmatpush2.msra.mxu0 0.0
      %3535 = vmatprep.subr.mxu0 0.0
      %3536 = vmatpush2.msra.mxu0 0.0
      %3537 = vmatprep.subr.mxu0 0.0
      %3538 = vmatpush2.msra.mxu0 0.0
      %3539 = vmatprep.subr.mxu0 0.0
      %3540 = vmatpush2.msra.mxu0 0.0
      %3541 = vmatprep.subr.mxu0 0.0
      %3542 = vmatpush2.msra.mxu0 0.0
      %3543 = vmatprep.subr.mxu0 0.0
      %3544 = vmatpush2.msra.mxu0 0.0
      %3545 = vmatprep.subr.mxu0 0.0
      %3546 = vmatpush2.msra.mxu0 0.0
      %3547 = vmatprep.subr.mxu0 0.0
      %3548 = vmatpush2.msra.mxu0 0.0
      %3549 = vmatprep.subr.mxu0 0.0
      %3550 = vmatpush2.msra.mxu0 0.0
      %3551 = vmatprep.subr.mxu0 0.0
      %3552 = vmatpush2.msra.mxu0 0.0
      %3553 = vmatprep.mubr.f32.mxu0 0.0
      %3554 = vmatmul.mubr.f32.gmra.mxu0 %v2882
      %v3555 = vpop.f32.mrf.mxu0
      %v3556 = vadd.f32 0.0, %v3555
      %v3557 = vpop.f32.mrf.mxu0
      %3558 = vmatprep.mubr.f32.mxu0 0.0
      %3559 = vmatmul.mubr.f32.gmra.mxu0 %v2885
      %v3560 = vpop.f32.mrf.mxu0
      %v3561 = vadd.f32 0.0, %v3560
      %v3562 = vpop.f32.mrf.mxu0
      %3563 = vdwg.mxu0
      %3564 = vst.msk [vmem:[#allocation3 + $0x70] sm:$0xff] %vm694, %v3556
      %3565 = vst.msk [vmem:[#allocation3 + $0x78] sm:$0xff] %vm694, %v3561
      %s3566 = scalar_lea.vmem %s14, 512
      %v3567 = vld [vmem:[%s3566] sm:$0xff]
      %v3568 = vld [vmem:[%s3566 + $0x8] sm:$0xff]
      %v3569 = vld [vmem:[%s3566 + $0x10] sm:$0xff]
      %v3570 = vld [vmem:[%s3566 + $0x18] sm:$0xff]
      %v3571 = vld [vmem:[%s3566 + $0x20] sm:$0xff]
      %v3572 = vld [vmem:[%s3566 + $0x28] sm:$0xff]
      %v3573 = vld [vmem:[%s3566 + $0x30] sm:$0xff]
      %v3574 = vld [vmem:[%s3566 + $0x38] sm:$0xff]
      %3575 = vmatprep.subr.mxu0 0.0
      %3576 = vmatpush1.msra.mxu0 0.0
      %3577 = vmatprep.subr.mxu0 0.0
      %3578 = vmatpush1.msra.mxu0 0.0
      %3579 = vmatprep.subr.mxu0 0.0
      %3580 = vmatpush1.msra.mxu0 0.0
      %3581 = vmatprep.subr.mxu0 0.0
      %3582 = vmatpush1.msra.mxu0 0.0
      %3583 = vmatprep.subr.mxu0 0.0
      %3584 = vmatpush1.msra.mxu0 0.0
      %3585 = vmatprep.subr.mxu0 0.0
      %3586 = vmatpush1.msra.mxu0 0.0
      %3587 = vmatprep.subr.mxu0 0.0
      %3588 = vmatpush1.msra.mxu0 0.0
      %3589 = vmatprep.subr.mxu0 0.0
      %3590 = vmatpush1.msra.mxu0 0.0
      %3591 = vmatprep.subr.mxu0 0.0
      %3592 = vmatpush1.msra.mxu0 %v3574
      %3593 = vmatprep.subr.mxu0 0.0
      %3594 = vmatpush1.msra.mxu0 %v3573
      %3595 = vmatprep.subr.mxu0 0.0
      %3596 = vmatpush1.msra.mxu0 %v3572
      %3597 = vmatprep.subr.mxu0 0.0
      %3598 = vmatpush1.msra.mxu0 %v3571
      %3599 = vmatprep.subr.mxu0 0.0
      %3600 = vmatpush1.msra.mxu0 %v3570
      %3601 = vmatprep.subr.mxu0 0.0
      %3602 = vmatpush1.msra.mxu0 %v3569
      %3603 = vmatprep.subr.mxu0 0.0
      %3604 = vmatpush1.msra.mxu0 %v3568
      %3605 = vmatprep.subr.mxu0 0.0
      %3606 = vmatpush1.msra.mxu0 %v3567
      %3607 = vmatprep.subr.mxu0 0.0
      %3608 = vmatpush2.msra.mxu0 0.0
      %3609 = vmatprep.subr.mxu0 0.0
      %3610 = vmatpush2.msra.mxu0 0.0
      %3611 = vmatprep.subr.mxu0 0.0
      %3612 = vmatpush2.msra.mxu0 0.0
      %3613 = vmatprep.subr.mxu0 0.0
      %3614 = vmatpush2.msra.mxu0 0.0
      %3615 = vmatprep.subr.mxu0 0.0
      %3616 = vmatpush2.msra.mxu0 0.0
      %3617 = vmatprep.subr.mxu0 0.0
      %3618 = vmatpush2.msra.mxu0 0.0
      %3619 = vmatprep.subr.mxu0 0.0
      %3620 = vmatpush2.msra.mxu0 0.0
      %3621 = vmatprep.subr.mxu0 0.0
      %3622 = vmatpush2.msra.mxu0 0.0
      %3623 = vmatprep.subr.mxu0 0.0
      %3624 = vmatpush2.msra.mxu0 0.0
      %3625 = vmatprep.subr.mxu0 0.0
      %3626 = vmatpush2.msra.mxu0 0.0
      %3627 = vmatprep.subr.mxu0 0.0
      %3628 = vmatpush2.msra.mxu0 0.0
      %3629 = vmatprep.subr.mxu0 0.0
      %3630 = vmatpush2.msra.mxu0 0.0
      %3631 = vmatprep.subr.mxu0 0.0
      %3632 = vmatpush2.msra.mxu0 0.0
      %3633 = vmatprep.subr.mxu0 0.0
      %3634 = vmatpush2.msra.mxu0 0.0
      %3635 = vmatprep.subr.mxu0 0.0
      %3636 = vmatpush2.msra.mxu0 0.0
      %3637 = vmatprep.subr.mxu0 0.0
      %3638 = vmatpush2.msra.mxu0 0.0
      %3639 = vmatprep.mubr.f32.mxu0 0.0
      %3640 = vmatmul.mubr.f32.gmra.mxu0 %v2882
      %v3641 = vpop.f32.mrf.mxu0
      %v3642 = vadd.f32 0.0, %v3641
      %v3643 = vpop.f32.mrf.mxu0
      %3644 = vmatprep.mubr.f32.mxu0 0.0
      %3645 = vmatmul.mubr.f32.gmra.mxu0 %v2885
      %v3646 = vpop.f32.mrf.mxu0
      %v3647 = vadd.f32 0.0, %v3646
      %v3648 = vpop.f32.mrf.mxu0
      %3649 = vdwg.mxu0
      %3650 = vst.msk [vmem:[#allocation3 + $0x80] sm:$0xff] %vm694, %v3642
      %3651 = vst.msk [vmem:[#allocation3 + $0x88] sm:$0xff] %vm694, %v3647
      %v3652 = vld [vmem:[%s10] sm:$0xff]
      %v3653 = vld [vmem:[%s10 + $0x8] sm:$0xff]
      %v3654 = vld [vmem:[%s10 + $0x10] sm:$0xff]
      %v3655 = vld [vmem:[%s10 + $0x18] sm:$0xff]
      %v3656 = vld [vmem:[%s10 + $0x20] sm:$0xff]
      %v3657 = vld [vmem:[%s10 + $0x28] sm:$0xff]
      %v3658 = vld [vmem:[%s10 + $0x30] sm:$0xff]
      %v3659 = vld [vmem:[%s10 + $0x38] sm:$0xff]
      %v3660 = vld [vmem:[#allocation3] sm:$0xff]
      %v3661 = vld [vmem:[#allocation3 + $0x8] sm:$0xff]
      %v3662 = vld [vmem:[#allocation3 + $0x10] sm:$0xff]
      %v3663 = vld [vmem:[#allocation3 + $0x18] sm:$0xff]
      %v3664 = vld [vmem:[#allocation3 + $0x20] sm:$0xff]
      %v3665 = vld [vmem:[#allocation3 + $0x28] sm:$0xff]
      %v3666 = vld [vmem:[#allocation3 + $0x30] sm:$0xff]
      %v3667 = vld [vmem:[#allocation3 + $0x38] sm:$0xff]
      %v3668 = vld [vmem:[#allocation3 + $0x40] sm:$0xff]
      %v3669 = vld [vmem:[#allocation3 + $0x48] sm:$0xff]
      %v3670 = vld [vmem:[#allocation3 + $0x50] sm:$0xff]
      %v3671 = vld [vmem:[#allocation3 + $0x58] sm:$0xff]
      %v3672 = vld [vmem:[#allocation3 + $0x60] sm:$0xff]
      %v3673 = vld [vmem:[#allocation3 + $0x68] sm:$0xff]
      %v3674 = vld [vmem:[#allocation3 + $0x70] sm:$0xff]
      %v3675 = vld [vmem:[#allocation3 + $0x78] sm:$0xff]
      %v3676 = vld [vmem:[#allocation3 + $0x80] sm:$0xff]
      %v3677 = vld [vmem:[#allocation3 + $0x88] sm:$0xff]
      %v3678 = vld [vmem:[%s11] sm:$0xff]
      %v3679 = vld [vmem:[%s11 + $0x8] sm:$0xff]
      %v3680 = vld [vmem:[%s11 + $0x10] sm:$0xff]
      %v3681 = vld [vmem:[%s11 + $0x18] sm:$0xff]
      %3683 = vset.pattern.permute.xlu0 0
      %3684 = vperm.xlu0 %3683, %v3678
      %v3685 = vpop.permute.xlu0 %3684
      %3688 = vset.pattern.permute.xlu0 0
      %3689 = vperm.xlu0 %3688, %v3679
      %v3690 = vpop.permute.xlu0 %3689
      %3693 = vset.pattern.permute.xlu0 0
      %3694 = vperm.xlu0 %3693, %v3680
      %v3695 = vpop.permute.xlu0 %3694
      %3698 = vset.pattern.permute.xlu0 0
      %3699 = vperm.xlu0 %3698, %v3681
      %v3700 = vpop.permute.xlu0 %3699
      %vm3702 = vcmask 130048
      %v3704 = vsel %vm3702, %v3653, 0
      %v3707 = vsel %vm3702, %v3655, 0
      %v3710 = vsel %vm3702, %v3657, 0
      %v3713 = vsel %vm3702, %v3659, 0
      %3715 = vmatprep.subr.mxu0 0.0
      %3716 = vmatpush1.msra.mxu0 %v3675
      %3717 = vmatprep.subr.mxu0 0.0
      %3718 = vmatpush1.msra.mxu0 %v3674
      %3719 = vmatprep.subr.mxu0 0.0
      %3720 = vmatpush1.msra.mxu0 %v3673
      %3721 = vmatprep.subr.mxu0 0.0
      %3722 = vmatpush1.msra.mxu0 %v3672
      %3723 = vmatprep.subr.mxu0 0.0
      %3724 = vmatpush1.msra.mxu0 %v3671
      %3725 = vmatprep.subr.mxu0 0.0
      %3726 = vmatpush1.msra.mxu0 %v3670
      %3727 = vmatprep.subr.mxu0 0.0
      %3728 = vmatpush1.msra.mxu0 %v3669
      %3729 = vmatprep.subr.mxu0 0.0
      %3730 = vmatpush1.msra.mxu0 %v3668
      %3731 = vmatprep.subr.mxu0 0.0
      %3732 = vmatpush1.msra.mxu0 %v3667
      %3733 = vmatprep.subr.mxu0 0.0
      %3734 = vmatpush1.msra.mxu0 %v3666
      %3735 = vmatprep.subr.mxu0 0.0
      %3736 = vmatpush1.msra.mxu0 %v3665
      %3737 = vmatprep.subr.mxu0 0.0
      %3738 = vmatpush1.msra.mxu0 %v3664
      %3739 = vmatprep.subr.mxu0 0.0
      %3740 = vmatpush1.msra.mxu0 %v3663
      %3741 = vmatprep.subr.mxu0 0.0
      %3742 = vmatpush1.msra.mxu0 %v3662
      %3743 = vmatprep.subr.mxu0 0.0
      %3744 = vmatpush1.msra.mxu0 %v3661
      %3745 = vmatprep.subr.mxu0 0.0
      %3746 = vmatpush1.msra.mxu0 %v3660
      %3747 = vmatprep.subr.mxu0 0.0
      %3748 = vmatpush2.msra.mxu0 0.0
      %3749 = vmatprep.subr.mxu0 0.0
      %3750 = vmatpush2.msra.mxu0 0.0
      %3751 = vmatprep.subr.mxu0 0.0
      %3752 = vmatpush2.msra.mxu0 0.0
      %3753 = vmatprep.subr.mxu0 0.0
      %3754 = vmatpush2.msra.mxu0 0.0
      %3755 = vmatprep.subr.mxu0 0.0
      %3756 = vmatpush2.msra.mxu0 0.0
      %3757 = vmatprep.subr.mxu0 0.0
      %3758 = vmatpush2.msra.mxu0 0.0
      %3759 = vmatprep.subr.mxu0 0.0
      %3760 = vmatpush2.msra.mxu0 0.0
      %3761 = vmatprep.subr.mxu0 0.0
      %3762 = vmatpush2.msra.mxu0 0.0
      %3763 = vmatprep.subr.mxu0 0.0
      %3764 = vmatpush2.msra.mxu0 0.0
      %3765 = vmatprep.subr.mxu0 0.0
      %3766 = vmatpush2.msra.mxu0 0.0
      %3767 = vmatprep.subr.mxu0 0.0
      %3768 = vmatpush2.msra.mxu0 0.0
      %3769 = vmatprep.subr.mxu0 0.0
      %3770 = vmatpush2.msra.mxu0 0.0
      %3771 = vmatprep.subr.mxu0 0.0
      %3772 = vmatpush2.msra.mxu0 0.0
      %3773 = vmatprep.subr.mxu0 0.0
      %3774 = vmatpush2.msra.mxu0 0.0
      %3775 = vmatprep.subr.mxu0 0.0
      %3776 = vmatpush2.msra.mxu0 %v3677
      %3777 = vmatprep.subr.mxu0 0.0
      %3778 = vmatpush2.msra.mxu0 %v3676
      %3779 = vmatprep.mubr.f32.mxu0 %v3704
      %3780 = vmatmul.mubr.f32.gmra.mxu0 %v3652
      %v3781 = vpop.f32.mrf.mxu0
      %v3782 = vadd.f32 %v3685, %v3781
      %v3783 = vpop.f32.mrf.mxu0
      %3784 = vmatprep.mubr.f32.mxu0 %v3707
      %3785 = vmatmul.mubr.f32.gmra.mxu0 %v3654
      %v3786 = vpop.f32.mrf.mxu0
      %v3787 = vadd.f32 %v3690, %v3786
      %v3788 = vpop.f32.mrf.mxu0
      %3789 = vmatprep.mubr.f32.mxu0 %v3710
      %3790 = vmatmul.mubr.f32.gmra.mxu0 %v3656
      %v3791 = vpop.f32.mrf.mxu0
      %v3792 = vadd.f32 %v3695, %v3791
      %v3793 = vpop.f32.mrf.mxu0
      %3794 = vmatprep.mubr.f32.mxu0 %v3713
      %3795 = vmatmul.mubr.f32.gmra.mxu0 %v3658
      %v3796 = vpop.f32.mrf.mxu0
      %v3797 = vadd.f32 %v3700, %v3796
      %v3798 = vpop.f32.mrf.mxu0
      %3799 = vdwg.mxu0
      %v3800 = vmax.f32 %v3782, 0.0
      %v3801 = vmax.f32 %v3787, 0.0
      %v3802 = vmax.f32 %v3792, 0.0
      %v3803 = vmax.f32 %v3797, 0.0
      %v3804 = vsel %vm694, %v3800, 0.0
      %3805 = vadd.xlane.f32.xlu0 %v3804
      %v3806 = vpop.xlane.xlu0 %3805
      %v3807 = vsel %vm694, %v3801, 0.0
      %3808 = vadd.xlane.f32.xlu0 %v3807
      %v3809 = vpop.xlane.xlu0 %3808
      %v3810 = vsel %vm694, %v3802, 0.0
      %3811 = vadd.xlane.f32.xlu0 %v3810
      %v3812 = vpop.xlane.xlu0 %3811
      %v3813 = vsel %vm694, %v3803, 0.0
      %3814 = vadd.xlane.f32.xlu0 %v3813
      %v3815 = vpop.xlane.xlu0 %3814
      %v3816 = vmul.f32 %v3800, %v3800
      %v3817 = vmul.f32 %v3801, %v3801
      %v3818 = vmul.f32 %v3802, %v3802
      %v3819 = vmul.f32 %v3803, %v3803
      %v3820 = vsel %vm694, %v3816, 0.0
      %3821 = vadd.xlane.f32.xlu0 %v3820
      %v3822 = vpop.xlane.xlu0 %3821
      %v3823 = vsel %vm694, %v3817, 0.0
      %3824 = vadd.xlane.f32.xlu0 %v3823
      %v3825 = vpop.xlane.xlu0 %3824
      %v3826 = vsel %vm694, %v3818, 0.0
      %3827 = vadd.xlane.f32.xlu0 %v3826
      %v3828 = vpop.xlane.xlu0 %3827
      %v3829 = vsel %vm694, %v3819, 0.0
      %3830 = vadd.xlane.f32.xlu0 %v3829
      %v3831 = vpop.xlane.xlu0 %3830
      %v3832 = vadd.s32 %v799, 16
      %v3833 = vadd.s32 %v799, 24
      %vm3834 = vcmp.lt.s32.totalorder %v3832, 0
      %v3835 = vsub.s32 0, %v3832
      %v3836 = vsel %vm3834, %v3835, %v3832
      %v3837 = vshrl.u32 %v3836, 1
      %v3838 = vand.u32 %v3836, 1
      %v3839 = vsub.s32 0, %v3838
      %v3840 = vsel %vm3834, %v3839, %v3838
      %vm3841 = vcmp.lt.s32.totalorder %v3833, 0
      %v3842 = vsub.s32 0, %v3833
      %v3843 = vsel %vm3841, %v3842, %v3833
      %v3844 = vshrl.u32 %v3843, 1
      %v3845 = vand.u32 %v3843, 1
      %v3846 = vsub.s32 0, %v3845
      %v3847 = vsel %vm3841, %v3846, %v3845
      %vm3848 = vcmp.ne.s32.totalorder %v3840, 0
      %vm3849 = vcmp.ne.s32.totalorder %v3847, 0
      %vm3850 = vcmp.lt.s32.totalorder %v3840, 0
      %vm3851 = vcmp.lt.s32.totalorder %v3847, 0
      %vm3852 = vmand %vm3850, %vm3848
      %vm3853 = vmand %vm3851, %vm3849
      %v3854 = vadd.s32 %v3840, 2
      %v3855 = vadd.s32 %v3847, 2
      %v3856 = vsel %vm3852, %v3854, %v3840
      %v3857 = vsel %vm3853, %v3855, %v3847
      %vm3858 = vcmp.eq.s32.totalorder %v3856, 0
      %vm3859 = vcmp.eq.s32.totalorder %v3857, 0
      %v3860 = vrot.slane %v3806, 1
      %v3861 = vrot.slane %v3809, 1
      %v3862 = vrot.slane %v3812, 1
      %v3863 = vrot.slane %v3815, 1
      %v3864 = vsel %vm829, %v3862, %v3863
      %v3865 = vsel %vm829, %v3861, %v3862
      %v3866 = vsel %vm829, %v3860, %v3861
      %v3867 = vsel %vm829, %v3863, %v3860
      %v3868 = vrot.slane %v3806, 7
      %v3869 = vrot.slane %v3809, 7
      %v3870 = vrot.slane %v3812, 7
      %v3871 = vrot.slane %v3815, 7
      %v3872 = vsel %vm834, %v3870, %v3871
      %v3873 = vsel %vm834, %v3869, %v3870
      %v3874 = vsel %vm834, %v3868, %v3869
      %v3875 = vsel %vm834, %v3871, %v3868
      %v3876 = vsel %vm825, %v3866, %v3875
      %v3877 = vsel %vm826, %v3865, %v3874
      %v3878 = vsel %vm3858, %v3864, %v3873
      %v3879 = vsel %vm3859, %v3867, %v3872
      %v3880 = vadd.f32 %v3806, %v3876
      %v3881 = vadd.f32 %v3809, %v3877
      %v3882 = vadd.f32 %v3812, %v3878
      %v3883 = vadd.f32 %v3815, %v3879
      %v3884 = vrot.slane %v3822, 1
      %v3885 = vrot.slane %v3825, 1
      %v3886 = vrot.slane %v3828, 1
      %v3887 = vrot.slane %v3831, 1
      %v3888 = vsel %vm829, %v3886, %v3887
      %v3889 = vsel %vm829, %v3885, %v3886
      %v3890 = vsel %vm829, %v3884, %v3885
      %v3891 = vsel %vm829, %v3887, %v3884
      %v3892 = vrot.slane %v3822, 7
      %v3893 = vrot.slane %v3825, 7
      %v3894 = vrot.slane %v3828, 7
      %v3895 = vrot.slane %v3831, 7
      %v3896 = vsel %vm834, %v3894, %v3895
      %v3897 = vsel %vm834, %v3893, %v3894
      %v3898 = vsel %vm834, %v3892, %v3893
      %v3899 = vsel %vm834, %v3895, %v3892
      %v3900 = vsel %vm825, %v3890, %v3899
      %v3901 = vsel %vm826, %v3889, %v3898
      %v3902 = vsel %vm3858, %v3888, %v3897
      %v3903 = vsel %vm3859, %v3891, %v3896
      %v3904 = vadd.f32 %v3822, %v3900
      %v3905 = vadd.f32 %v3825, %v3901
      %v3906 = vadd.f32 %v3828, %v3902
      %v3907 = vadd.f32 %v3831, %v3903
      %v3908 = vmul.f32 %v3880, %v2826
      %v3909 = vmul.f32 %v3881, %v2826
      %v3910 = vmul.f32 %v3882, %v2826
      %v3911 = vmul.f32 %v3883, %v2826
      %v3912 = vmul.f32 %v3904, %v2826
      %v3913 = vmul.f32 %v3905, %v2826
      %v3914 = vmul.f32 %v3906, %v2826
      %v3915 = vmul.f32 %v3907, %v2826
      %v3916 = vmul.f32 %v3908, %v3908
      %v3917 = vmul.f32 %v3909, %v3909
      %v3918 = vmul.f32 %v3910, %v3910
      %v3919 = vmul.f32 %v3911, %v3911
      %v3920 = vsub.f32 %v3912, %v3916
      %v3921 = vsub.f32 %v3913, %v3917
      %v3922 = vsub.f32 %v3914, %v3918
      %v3923 = vsub.f32 %v3915, %v3919
      %v3924 = vadd.f32 %v3920, 1e-05
      %v3925 = vadd.f32 %v3921, 1e-05
      %v3926 = vadd.f32 %v3922, 1e-05
      %v3927 = vadd.f32 %v3923, 1e-05
      %v3928 = vrsqrt.pop %v3924
      %v3929 = vrsqrt.pop %v3925
      %v3930 = vrsqrt.pop %v3926
      %v3931 = vrsqrt.pop %v3927
      %v3932 = vld [vmem:[%s12] sm:$0xff]
      %v3933 = vld [vmem:[%s12 + $0x8] sm:$0xff]
      %v3934 = vld [vmem:[%s12 + $0x10] sm:$0xff]
      %v3935 = vld [vmem:[%s12 + $0x18] sm:$0xff]
      %v3936 = vmul.f32 %v3928, %v3932
      %v3937 = vmul.f32 %v3929, %v3933
      %v3938 = vmul.f32 %v3930, %v3934
      %v3939 = vmul.f32 %v3931, %v3935
      %v3940 = vld [vmem:[%s13] sm:$0xff]
      %v3941 = vld [vmem:[%s13 + $0x8] sm:$0xff]
      %v3942 = vld [vmem:[%s13 + $0x10] sm:$0xff]
      %v3943 = vld [vmem:[%s13 + $0x18] sm:$0xff]
      %v3944 = vmul.f32 %v3908, %v3936
      %v3945 = vmul.f32 %v3909, %v3937
      %v3946 = vmul.f32 %v3910, %v3938
      %v3947 = vmul.f32 %v3911, %v3939
      %v3948 = vsub.f32 %v3940, %v3944
      %v3949 = vsub.f32 %v3941, %v3945
      %v3950 = vsub.f32 %v3942, %v3946
      %v3951 = vsub.f32 %v3943, %v3947
      %3953 = vset.pattern.permute.xlu0 0
      %3954 = vperm.xlu0 %3953, %v3936
      %v3955 = vpop.permute.xlu0 %3954
      %3958 = vset.pattern.permute.xlu0 0
      %3959 = vperm.xlu0 %3958, %v3937
      %v3960 = vpop.permute.xlu0 %3959
      %3963 = vset.pattern.permute.xlu0 0
      %3964 = vperm.xlu0 %3963, %v3938
      %v3965 = vpop.permute.xlu0 %3964
      %3968 = vset.pattern.permute.xlu0 0
      %3969 = vperm.xlu0 %3968, %v3939
      %v3970 = vpop.permute.xlu0 %3969
      %v3972 = vmul.f32 %v3800, %v3955
      %v3973 = vmul.f32 %v3801, %v3960
      %v3974 = vmul.f32 %v3802, %v3965
      %v3975 = vmul.f32 %v3803, %v3970
      %3977 = vset.pattern.permute.xlu0 0
      %3978 = vperm.xlu0 %3977, %v3948
      %v3979 = vpop.permute.xlu0 %3978
      %3982 = vset.pattern.permute.xlu0 0
      %3983 = vperm.xlu0 %3982, %v3949
      %v3984 = vpop.permute.xlu0 %3983
      %3987 = vset.pattern.permute.xlu0 0
      %3988 = vperm.xlu0 %3987, %v3950
      %v3989 = vpop.permute.xlu0 %3988
      %3992 = vset.pattern.permute.xlu0 0
      %3993 = vperm.xlu0 %3992, %v3951
      %v3994 = vpop.permute.xlu0 %3993
      %v3996 = vadd.f32 %v3972, %v3979
      %v3997 = vadd.f32 %v3973, %v3984
      %v3998 = vadd.f32 %v3974, %v3989
      %v3999 = vadd.f32 %v3975, %v3994
      %v4000 = vld [vmem:[%s19] sm:$0xff]
      %v4001 = vld [vmem:[%s19 + $0x8] sm:$0xff]
      %v4002 = vld [vmem:[%s19 + $0x10] sm:$0xff]
      %v4003 = vld [vmem:[%s19 + $0x18] sm:$0xff]
      %v4004 = vld [vmem:[%s19 + $0x20] sm:$0xff]
      %v4005 = vld [vmem:[%s19 + $0x28] sm:$0xff]
      %v4006 = vld [vmem:[%s19 + $0x30] sm:$0xff]
      %v4007 = vld [vmem:[%s19 + $0x38] sm:$0xff]
      %v4009 = vsel %vm694, %v3996, 0
      %v4012 = vsel %vm694, %v3997, 0
      %v4015 = vsel %vm694, %v3998, 0
      %v4018 = vsel %vm694, %v3999, 0
      %4020 = vmatprep.subr.mxu0 0.0
      %4021 = vmatpush1.msra.mxu0 0.0
      %4022 = vmatprep.subr.mxu0 0.0
      %4023 = vmatpush1.msra.mxu0 0.0
      %4024 = vmatprep.subr.mxu0 0.0
      %4025 = vmatpush1.msra.mxu0 0.0
      %4026 = vmatprep.subr.mxu0 0.0
      %4027 = vmatpush1.msra.mxu0 0.0
      %4028 = vmatprep.subr.mxu0 0.0
      %4029 = vmatpush1.msra.mxu0 0.0
      %4030 = vmatprep.subr.mxu0 0.0
      %4031 = vmatpush1.msra.mxu0 0.0
      %4032 = vmatprep.subr.mxu0 0.0
      %4033 = vmatpush1.msra.mxu0 0.0
      %4034 = vmatprep.subr.mxu0 0.0
      %4035 = vmatpush1.msra.mxu0 0.0
      %4036 = vmatprep.subr.mxu0 0.0
      %4037 = vmatpush1.msra.mxu0 %v4007
      %4038 = vmatprep.subr.mxu0 0.0
      %4039 = vmatpush1.msra.mxu0 %v4006
      %4040 = vmatprep.subr.mxu0 0.0
      %4041 = vmatpush1.msra.mxu0 %v4005
      %4042 = vmatprep.subr.mxu0 0.0
      %4043 = vmatpush1.msra.mxu0 %v4004
      %4044 = vmatprep.subr.mxu0 0.0
      %4045 = vmatpush1.msra.mxu0 %v4003
      %4046 = vmatprep.subr.mxu0 0.0
      %4047 = vmatpush1.msra.mxu0 %v4002
      %4048 = vmatprep.subr.mxu0 0.0
      %4049 = vmatpush1.msra.mxu0 %v4001
      %4050 = vmatprep.subr.mxu0 0.0
      %4051 = vmatpush1.msra.mxu0 %v4000
      %4052 = vmatprep.subr.mxu0 0.0
      %4053 = vmatpush2.msra.mxu0 0.0
      %4054 = vmatprep.subr.mxu0 0.0
      %4055 = vmatpush2.msra.mxu0 0.0
      %4056 = vmatprep.subr.mxu0 0.0
      %4057 = vmatpush2.msra.mxu0 0.0
      %4058 = vmatprep.subr.mxu0 0.0
      %4059 = vmatpush2.msra.mxu0 0.0
      %4060 = vmatprep.subr.mxu0 0.0
      %4061 = vmatpush2.msra.mxu0 0.0
      %4062 = vmatprep.subr.mxu0 0.0
      %4063 = vmatpush2.msra.mxu0 0.0
      %4064 = vmatprep.subr.mxu0 0.0
      %4065 = vmatpush2.msra.mxu0 0.0
      %4066 = vmatprep.subr.mxu0 0.0
      %4067 = vmatpush2.msra.mxu0 0.0
      %4068 = vmatprep.subr.mxu0 0.0
      %4069 = vmatpush2.msra.mxu0 0.0
      %4070 = vmatprep.subr.mxu0 0.0
      %4071 = vmatpush2.msra.mxu0 0.0
      %4072 = vmatprep.subr.mxu0 0.0
      %4073 = vmatpush2.msra.mxu0 0.0
      %4074 = vmatprep.subr.mxu0 0.0
      %4075 = vmatpush2.msra.mxu0 0.0
      %4076 = vmatprep.subr.mxu0 0.0
      %4077 = vmatpush2.msra.mxu0 0.0
      %4078 = vmatprep.subr.mxu0 0.0
      %4079 = vmatpush2.msra.mxu0 0.0
      %4080 = vmatprep.subr.mxu0 0.0
      %4081 = vmatpush2.msra.mxu0 0.0
      %4082 = vmatprep.subr.mxu0 0.0
      %4083 = vmatpush2.msra.mxu0 0.0
      %4084 = vmatprep.mubr.f32.mxu0 0.0
      %4085 = vmatmul.mubr.f32.gmra.mxu0 %v4009
      %v4086 = vpop.f32.mrf.mxu0
      %v4087 = vadd.f32 0.0, %v4086
      %v4088 = vpop.f32.mrf.mxu0
      %4089 = vmatprep.mubr.f32.mxu0 0.0
      %4090 = vmatmul.mubr.f32.gmra.mxu0 %v4012
      %v4091 = vpop.f32.mrf.mxu0
      %v4092 = vadd.f32 0.0, %v4091
      %v4093 = vpop.f32.mrf.mxu0
      %4094 = vmatprep.mubr.f32.mxu0 0.0
      %4095 = vmatmul.mubr.f32.gmra.mxu0 %v4015
      %v4096 = vpop.f32.mrf.mxu0
      %v4097 = vadd.f32 0.0, %v4096
      %v4098 = vpop.f32.mrf.mxu0
      %4099 = vmatprep.mubr.f32.mxu0 0.0
      %4100 = vmatmul.mubr.f32.gmra.mxu0 %v4018
      %v4101 = vpop.f32.mrf.mxu0
      %v4102 = vadd.f32 0.0, %v4101
      %v4103 = vpop.f32.mrf.mxu0
      %4104 = vdwg.mxu0
      %vm4105 = vcmask 293888
      %4106 = vst.msk [vmem:[#allocation4] sm:$0xff] %vm4105, %v4087
      %4107 = vst.msk [vmem:[#allocation4 + $0x8] sm:$0xff] %vm4105, %v4092
      %4108 = vst.msk [vmem:[#allocation4 + $0x10] sm:$0xff] %vm4105, %v4097
      %4109 = vst.msk [vmem:[#allocation4 + $0x18] sm:$0xff] %vm4105, %v4102
      %s4110 = scalar_lea.vmem %s19, 64
      %v4111 = vld [vmem:[%s4110] sm:$0xff]
      %v4112 = vld [vmem:[%s4110 + $0x8] sm:$0xff]
      %v4113 = vld [vmem:[%s4110 + $0x10] sm:$0xff]
      %v4114 = vld [vmem:[%s4110 + $0x18] sm:$0xff]
      %v4115 = vld [vmem:[%s4110 + $0x20] sm:$0xff]
      %v4116 = vld [vmem:[%s4110 + $0x28] sm:$0xff]
      %v4117 = vld [vmem:[%s4110 + $0x30] sm:$0xff]
      %v4118 = vld [vmem:[%s4110 + $0x38] sm:$0xff]
      %4119 = vmatprep.subr.mxu0 0.0
      %4120 = vmatpush1.msra.mxu0 0.0
      %4121 = vmatprep.subr.mxu0 0.0
      %4122 = vmatpush1.msra.mxu0 0.0
      %4123 = vmatprep.subr.mxu0 0.0
      %4124 = vmatpush1.msra.mxu0 0.0
      %4125 = vmatprep.subr.mxu0 0.0
      %4126 = vmatpush1.msra.mxu0 0.0
      %4127 = vmatprep.subr.mxu0 0.0
      %4128 = vmatpush1.msra.mxu0 0.0
      %4129 = vmatprep.subr.mxu0 0.0
      %4130 = vmatpush1.msra.mxu0 0.0
      %4131 = vmatprep.subr.mxu0 0.0
      %4132 = vmatpush1.msra.mxu0 0.0
      %4133 = vmatprep.subr.mxu0 0.0
      %4134 = vmatpush1.msra.mxu0 0.0
      %4135 = vmatprep.subr.mxu0 0.0
      %4136 = vmatpush1.msra.mxu0 %v4118
      %4137 = vmatprep.subr.mxu0 0.0
      %4138 = vmatpush1.msra.mxu0 %v4117
      %4139 = vmatprep.subr.mxu0 0.0
      %4140 = vmatpush1.msra.mxu0 %v4116
      %4141 = vmatprep.subr.mxu0 0.0
      %4142 = vmatpush1.msra.mxu0 %v4115
      %4143 = vmatprep.subr.mxu0 0.0
      %4144 = vmatpush1.msra.mxu0 %v4114
      %4145 = vmatprep.subr.mxu0 0.0
      %4146 = vmatpush1.msra.mxu0 %v4113
      %4147 = vmatprep.subr.mxu0 0.0
      %4148 = vmatpush1.msra.mxu0 %v4112
      %4149 = vmatprep.subr.mxu0 0.0
      %4150 = vmatpush1.msra.mxu0 %v4111
      %4151 = vmatprep.subr.mxu0 0.0
      %4152 = vmatpush2.msra.mxu0 0.0
      %4153 = vmatprep.subr.mxu0 0.0
      %4154 = vmatpush2.msra.mxu0 0.0
      %4155 = vmatprep.subr.mxu0 0.0
      %4156 = vmatpush2.msra.mxu0 0.0
      %4157 = vmatprep.subr.mxu0 0.0
      %4158 = vmatpush2.msra.mxu0 0.0
      %4159 = vmatprep.subr.mxu0 0.0
      %4160 = vmatpush2.msra.mxu0 0.0
      %4161 = vmatprep.subr.mxu0 0.0
      %4162 = vmatpush2.msra.mxu0 0.0
      %4163 = vmatprep.subr.mxu0 0.0
      %4164 = vmatpush2.msra.mxu0 0.0
      %4165 = vmatprep.subr.mxu0 0.0
      %4166 = vmatpush2.msra.mxu0 0.0
      %4167 = vmatprep.subr.mxu0 0.0
      %4168 = vmatpush2.msra.mxu0 0.0
      %4169 = vmatprep.subr.mxu0 0.0
      %4170 = vmatpush2.msra.mxu0 0.0
      %4171 = vmatprep.subr.mxu0 0.0
      %4172 = vmatpush2.msra.mxu0 0.0
      %4173 = vmatprep.subr.mxu0 0.0
      %4174 = vmatpush2.msra.mxu0 0.0
      %4175 = vmatprep.subr.mxu0 0.0
      %4176 = vmatpush2.msra.mxu0 0.0
      %4177 = vmatprep.subr.mxu0 0.0
      %4178 = vmatpush2.msra.mxu0 0.0
      %4179 = vmatprep.subr.mxu0 0.0
      %4180 = vmatpush2.msra.mxu0 0.0
      %4181 = vmatprep.subr.mxu0 0.0
      %4182 = vmatpush2.msra.mxu0 0.0
      %4183 = vmatprep.mubr.f32.mxu0 0.0
      %4184 = vmatmul.mubr.f32.gmra.mxu0 %v4009
      %v4185 = vpop.f32.mrf.mxu0
      %v4186 = vadd.f32 0.0, %v4185
      %v4187 = vpop.f32.mrf.mxu0
      %4188 = vmatprep.mubr.f32.mxu0 0.0
      %4189 = vmatmul.mubr.f32.gmra.mxu0 %v4012
      %v4190 = vpop.f32.mrf.mxu0
      %v4191 = vadd.f32 0.0, %v4190
      %v4192 = vpop.f32.mrf.mxu0
      %4193 = vmatprep.mubr.f32.mxu0 0.0
      %4194 = vmatmul.mubr.f32.gmra.mxu0 %v4015
      %v4195 = vpop.f32.mrf.mxu0
      %v4196 = vadd.f32 0.0, %v4195
      %v4197 = vpop.f32.mrf.mxu0
      %4198 = vmatprep.mubr.f32.mxu0 0.0
      %4199 = vmatmul.mubr.f32.gmra.mxu0 %v4018
      %v4200 = vpop.f32.mrf.mxu0
      %v4201 = vadd.f32 0.0, %v4200
      %v4202 = vpop.f32.mrf.mxu0
      %4203 = vdwg.mxu0
      %4204 = vst.msk [vmem:[#allocation4 + $0x20] sm:$0xff] %vm4105, %v4186
      %4205 = vst.msk [vmem:[#allocation4 + $0x28] sm:$0xff] %vm4105, %v4191
      %4206 = vst.msk [vmem:[#allocation4 + $0x30] sm:$0xff] %vm4105, %v4196
      %4207 = vst.msk [vmem:[#allocation4 + $0x38] sm:$0xff] %vm4105, %v4201
      %s4208 = scalar_lea.vmem %s19, 128
      %v4209 = vld [vmem:[%s4208] sm:$0xff]
      %v4210 = vld [vmem:[%s4208 + $0x8] sm:$0xff]
      %v4211 = vld [vmem:[%s4208 + $0x10] sm:$0xff]
      %v4212 = vld [vmem:[%s4208 + $0x18] sm:$0xff]
      %v4213 = vld [vmem:[%s4208 + $0x20] sm:$0xff]
      %v4214 = vld [vmem:[%s4208 + $0x28] sm:$0xff]
      %v4215 = vld [vmem:[%s4208 + $0x30] sm:$0xff]
      %v4216 = vld [vmem:[%s4208 + $0x38] sm:$0xff]
      %4217 = vmatprep.subr.mxu0 0.0
      %4218 = vmatpush1.msra.mxu0 0.0
      %4219 = vmatprep.subr.mxu0 0.0
      %4220 = vmatpush1.msra.mxu0 0.0
      %4221 = vmatprep.subr.mxu0 0.0
      %4222 = vmatpush1.msra.mxu0 0.0
      %4223 = vmatprep.subr.mxu0 0.0
      %4224 = vmatpush1.msra.mxu0 0.0
      %4225 = vmatprep.subr.mxu0 0.0
      %4226 = vmatpush1.msra.mxu0 0.0
      %4227 = vmatprep.subr.mxu0 0.0
      %4228 = vmatpush1.msra.mxu0 0.0
      %4229 = vmatprep.subr.mxu0 0.0
      %4230 = vmatpush1.msra.mxu0 0.0
      %4231 = vmatprep.subr.mxu0 0.0
      %4232 = vmatpush1.msra.mxu0 0.0
      %4233 = vmatprep.subr.mxu0 0.0
      %4234 = vmatpush1.msra.mxu0 %v4216
      %4235 = vmatprep.subr.mxu0 0.0
      %4236 = vmatpush1.msra.mxu0 %v4215
      %4237 = vmatprep.subr.mxu0 0.0
      %4238 = vmatpush1.msra.mxu0 %v4214
      %4239 = vmatprep.subr.mxu0 0.0
      %4240 = vmatpush1.msra.mxu0 %v4213
      %4241 = vmatprep.subr.mxu0 0.0
      %4242 = vmatpush1.msra.mxu0 %v4212
      %4243 = vmatprep.subr.mxu0 0.0
      %4244 = vmatpush1.msra.mxu0 %v4211
      %4245 = vmatprep.subr.mxu0 0.0
      %4246 = vmatpush1.msra.mxu0 %v4210
      %4247 = vmatprep.subr.mxu0 0.0
      %4248 = vmatpush1.msra.mxu0 %v4209
      %4249 = vmatprep.subr.mxu0 0.0
      %4250 = vmatpush2.msra.mxu0 0.0
      %4251 = vmatprep.subr.mxu0 0.0
      %4252 = vmatpush2.msra.mxu0 0.0
      %4253 = vmatprep.subr.mxu0 0.0
      %4254 = vmatpush2.msra.mxu0 0.0
      %4255 = vmatprep.subr.mxu0 0.0
      %4256 = vmatpush2.msra.mxu0 0.0
      %4257 = vmatprep.subr.mxu0 0.0
      %4258 = vmatpush2.msra.mxu0 0.0
      %4259 = vmatprep.subr.mxu0 0.0
      %4260 = vmatpush2.msra.mxu0 0.0
      %4261 = vmatprep.subr.mxu0 0.0
      %4262 = vmatpush2.msra.mxu0 0.0
      %4263 = vmatprep.subr.mxu0 0.0
      %4264 = vmatpush2.msra.mxu0 0.0
      %4265 = vmatprep.subr.mxu0 0.0
      %4266 = vmatpush2.msra.mxu0 0.0
      %4267 = vmatprep.subr.mxu0 0.0
      %4268 = vmatpush2.msra.mxu0 0.0
      %4269 = vmatprep.subr.mxu0 0.0
      %4270 = vmatpush2.msra.mxu0 0.0
      %4271 = vmatprep.subr.mxu0 0.0
      %4272 = vmatpush2.msra.mxu0 0.0
      %4273 = vmatprep.subr.mxu0 0.0
      %4274 = vmatpush2.msra.mxu0 0.0
      %4275 = vmatprep.subr.mxu0 0.0
      %4276 = vmatpush2.msra.mxu0 0.0
      %4277 = vmatprep.subr.mxu0 0.0
      %4278 = vmatpush2.msra.mxu0 0.0
      %4279 = vmatprep.subr.mxu0 0.0
      %4280 = vmatpush2.msra.mxu0 0.0
      %4281 = vmatprep.mubr.f32.mxu0 0.0
      %4282 = vmatmul.mubr.f32.gmra.mxu0 %v4009
      %v4283 = vpop.f32.mrf.mxu0
      %v4284 = vadd.f32 0.0, %v4283
      %v4285 = vpop.f32.mrf.mxu0
      %4286 = vmatprep.mubr.f32.mxu0 0.0
      %4287 = vmatmul.mubr.f32.gmra.mxu0 %v4012
      %v4288 = vpop.f32.mrf.mxu0
      %v4289 = vadd.f32 0.0, %v4288
      %v4290 = vpop.f32.mrf.mxu0
      %4291 = vmatprep.mubr.f32.mxu0 0.0
      %4292 = vmatmul.mubr.f32.gmra.mxu0 %v4015
      %v4293 = vpop.f32.mrf.mxu0
      %v4294 = vadd.f32 0.0, %v4293
      %v4295 = vpop.f32.mrf.mxu0
      %4296 = vmatprep.mubr.f32.mxu0 0.0
      %4297 = vmatmul.mubr.f32.gmra.mxu0 %v4018
      %v4298 = vpop.f32.mrf.mxu0
      %v4299 = vadd.f32 0.0, %v4298
      %v4300 = vpop.f32.mrf.mxu0
      %4301 = vdwg.mxu0
      %4302 = vst.msk [vmem:[#allocation4 + $0x40] sm:$0xff] %vm4105, %v4284
      %4303 = vst.msk [vmem:[#allocation4 + $0x48] sm:$0xff] %vm4105, %v4289
      %4304 = vst.msk [vmem:[#allocation4 + $0x50] sm:$0xff] %vm4105, %v4294
      %4305 = vst.msk [vmem:[#allocation4 + $0x58] sm:$0xff] %vm4105, %v4299
      %s4306 = scalar_lea.vmem %s19, 192
      %v4307 = vld [vmem:[%s4306] sm:$0xff]
      %v4308 = vld [vmem:[%s4306 + $0x8] sm:$0xff]
      %v4309 = vld [vmem:[%s4306 + $0x10] sm:$0xff]
      %v4310 = vld [vmem:[%s4306 + $0x18] sm:$0xff]
      %v4311 = vld [vmem:[%s4306 + $0x20] sm:$0xff]
      %v4312 = vld [vmem:[%s4306 + $0x28] sm:$0xff]
      %v4313 = vld [vmem:[%s4306 + $0x30] sm:$0xff]
      %v4314 = vld [vmem:[%s4306 + $0x38] sm:$0xff]
      %4315 = vmatprep.subr.mxu0 0.0
      %4316 = vmatpush1.msra.mxu0 0.0
      %4317 = vmatprep.subr.mxu0 0.0
      %4318 = vmatpush1.msra.mxu0 0.0
      %4319 = vmatprep.subr.mxu0 0.0
      %4320 = vmatpush1.msra.mxu0 0.0
      %4321 = vmatprep.subr.mxu0 0.0
      %4322 = vmatpush1.msra.mxu0 0.0
      %4323 = vmatprep.subr.mxu0 0.0
      %4324 = vmatpush1.msra.mxu0 0.0
      %4325 = vmatprep.subr.mxu0 0.0
      %4326 = vmatpush1.msra.mxu0 0.0
      %4327 = vmatprep.subr.mxu0 0.0
      %4328 = vmatpush1.msra.mxu0 0.0
      %4329 = vmatprep.subr.mxu0 0.0
      %4330 = vmatpush1.msra.mxu0 0.0
      %4331 = vmatprep.subr.mxu0 0.0
      %4332 = vmatpush1.msra.mxu0 %v4314
      %4333 = vmatprep.subr.mxu0 0.0
      %4334 = vmatpush1.msra.mxu0 %v4313
      %4335 = vmatprep.subr.mxu0 0.0
      %4336 = vmatpush1.msra.mxu0 %v4312
      %4337 = vmatprep.subr.mxu0 0.0
      %4338 = vmatpush1.msra.mxu0 %v4311
      %4339 = vmatprep.subr.mxu0 0.0
      %4340 = vmatpush1.msra.mxu0 %v4310
      %4341 = vmatprep.subr.mxu0 0.0
      %4342 = vmatpush1.msra.mxu0 %v4309
      %4343 = vmatprep.subr.mxu0 0.0
      %4344 = vmatpush1.msra.mxu0 %v4308
      %4345 = vmatprep.subr.mxu0 0.0
      %4346 = vmatpush1.msra.mxu0 %v4307
      %4347 = vmatprep.subr.mxu0 0.0
      %4348 = vmatpush2.msra.mxu0 0.0
      %4349 = vmatprep.subr.mxu0 0.0
      %4350 = vmatpush2.msra.mxu0 0.0
      %4351 = vmatprep.subr.mxu0 0.0
      %4352 = vmatpush2.msra.mxu0 0.0
      %4353 = vmatprep.subr.mxu0 0.0
      %4354 = vmatpush2.msra.mxu0 0.0
      %4355 = vmatprep.subr.mxu0 0.0
      %4356 = vmatpush2.msra.mxu0 0.0
      %4357 = vmatprep.subr.mxu0 0.0
      %4358 = vmatpush2.msra.mxu0 0.0
      %4359 = vmatprep.subr.mxu0 0.0
      %4360 = vmatpush2.msra.mxu0 0.0
      %4361 = vmatprep.subr.mxu0 0.0
      %4362 = vmatpush2.msra.mxu0 0.0
      %4363 = vmatprep.subr.mxu0 0.0
      %4364 = vmatpush2.msra.mxu0 0.0
      %4365 = vmatprep.subr.mxu0 0.0
      %4366 = vmatpush2.msra.mxu0 0.0
      %4367 = vmatprep.subr.mxu0 0.0
      %4368 = vmatpush2.msra.mxu0 0.0
      %4369 = vmatprep.subr.mxu0 0.0
      %4370 = vmatpush2.msra.mxu0 0.0
      %4371 = vmatprep.subr.mxu0 0.0
      %4372 = vmatpush2.msra.mxu0 0.0
      %4373 = vmatprep.subr.mxu0 0.0
      %4374 = vmatpush2.msra.mxu0 0.0
      %4375 = vmatprep.subr.mxu0 0.0
      %4376 = vmatpush2.msra.mxu0 0.0
      %4377 = vmatprep.subr.mxu0 0.0
      %4378 = vmatpush2.msra.mxu0 0.0
      %4379 = vmatprep.mubr.f32.mxu0 0.0
      %4380 = vmatmul.mubr.f32.gmra.mxu0 %v4009
      %v4381 = vpop.f32.mrf.mxu0
      %v4382 = vadd.f32 0.0, %v4381
      %v4383 = vpop.f32.mrf.mxu0
      %4384 = vmatprep.mubr.f32.mxu0 0.0
      %4385 = vmatmul.mubr.f32.gmra.mxu0 %v4012
      %v4386 = vpop.f32.mrf.mxu0
      %v4387 = vadd.f32 0.0, %v4386
      %v4388 = vpop.f32.mrf.mxu0
      %4389 = vmatprep.mubr.f32.mxu0 0.0
      %4390 = vmatmul.mubr.f32.gmra.mxu0 %v4015
      %v4391 = vpop.f32.mrf.mxu0
      %v4392 = vadd.f32 0.0, %v4391
      %v4393 = vpop.f32.mrf.mxu0
      %4394 = vmatprep.mubr.f32.mxu0 0.0
      %4395 = vmatmul.mubr.f32.gmra.mxu0 %v4018
      %v4396 = vpop.f32.mrf.mxu0
      %v4397 = vadd.f32 0.0, %v4396
      %v4398 = vpop.f32.mrf.mxu0
      %4399 = vdwg.mxu0
      %4400 = vst.msk [vmem:[#allocation4 + $0x60] sm:$0xff] %vm4105, %v4382
      %4401 = vst.msk [vmem:[#allocation4 + $0x68] sm:$0xff] %vm4105, %v4387
      %4402 = vst.msk [vmem:[#allocation4 + $0x70] sm:$0xff] %vm4105, %v4392
      %4403 = vst.msk [vmem:[#allocation4 + $0x78] sm:$0xff] %vm4105, %v4397
      %s4404 = scalar_lea.vmem %s19, 256
      %v4405 = vld [vmem:[%s4404] sm:$0xff]
      %v4406 = vld [vmem:[%s4404 + $0x8] sm:$0xff]
      %v4407 = vld [vmem:[%s4404 + $0x10] sm:$0xff]
      %v4408 = vld [vmem:[%s4404 + $0x18] sm:$0xff]
      %v4409 = vld [vmem:[%s4404 + $0x20] sm:$0xff]
      %v4410 = vld [vmem:[%s4404 + $0x28] sm:$0xff]
      %v4411 = vld [vmem:[%s4404 + $0x30] sm:$0xff]
      %v4412 = vld [vmem:[%s4404 + $0x38] sm:$0xff]
      %4413 = vmatprep.subr.mxu0 0.0
      %4414 = vmatpush1.msra.mxu0 0.0
      %4415 = vmatprep.subr.mxu0 0.0
      %4416 = vmatpush1.msra.mxu0 0.0
      %4417 = vmatprep.subr.mxu0 0.0
      %4418 = vmatpush1.msra.mxu0 0.0
      %4419 = vmatprep.subr.mxu0 0.0
      %4420 = vmatpush1.msra.mxu0 0.0
      %4421 = vmatprep.subr.mxu0 0.0
      %4422 = vmatpush1.msra.mxu0 0.0
      %4423 = vmatprep.subr.mxu0 0.0
      %4424 = vmatpush1.msra.mxu0 0.0
      %4425 = vmatprep.subr.mxu0 0.0
      %4426 = vmatpush1.msra.mxu0 0.0
      %4427 = vmatprep.subr.mxu0 0.0
      %4428 = vmatpush1.msra.mxu0 0.0
      %4429 = vmatprep.subr.mxu0 0.0
      %4430 = vmatpush1.msra.mxu0 %v4412
      %4431 = vmatprep.subr.mxu0 0.0
      %4432 = vmatpush1.msra.mxu0 %v4411
      %4433 = vmatprep.subr.mxu0 0.0
      %4434 = vmatpush1.msra.mxu0 %v4410
      %4435 = vmatprep.subr.mxu0 0.0
      %4436 = vmatpush1.msra.mxu0 %v4409
      %4437 = vmatprep.subr.mxu0 0.0
      %4438 = vmatpush1.msra.mxu0 %v4408
      %4439 = vmatprep.subr.mxu0 0.0
      %4440 = vmatpush1.msra.mxu0 %v4407
      %4441 = vmatprep.subr.mxu0 0.0
      %4442 = vmatpush1.msra.mxu0 %v4406
      %4443 = vmatprep.subr.mxu0 0.0
      %4444 = vmatpush1.msra.mxu0 %v4405
      %4445 = vmatprep.subr.mxu0 0.0
      %4446 = vmatpush2.msra.mxu0 0.0
      %4447 = vmatprep.subr.mxu0 0.0
      %4448 = vmatpush2.msra.mxu0 0.0
      %4449 = vmatprep.subr.mxu0 0.0
      %4450 = vmatpush2.msra.mxu0 0.0
      %4451 = vmatprep.subr.mxu0 0.0
      %4452 = vmatpush2.msra.mxu0 0.0
      %4453 = vmatprep.subr.mxu0 0.0
      %4454 = vmatpush2.msra.mxu0 0.0
      %4455 = vmatprep.subr.mxu0 0.0
      %4456 = vmatpush2.msra.mxu0 0.0
      %4457 = vmatprep.subr.mxu0 0.0
      %4458 = vmatpush2.msra.mxu0 0.0
      %4459 = vmatprep.subr.mxu0 0.0
      %4460 = vmatpush2.msra.mxu0 0.0
      %4461 = vmatprep.subr.mxu0 0.0
      %4462 = vmatpush2.msra.mxu0 0.0
      %4463 = vmatprep.subr.mxu0 0.0
      %4464 = vmatpush2.msra.mxu0 0.0
      %4465 = vmatprep.subr.mxu0 0.0
      %4466 = vmatpush2.msra.mxu0 0.0
      %4467 = vmatprep.subr.mxu0 0.0
      %4468 = vmatpush2.msra.mxu0 0.0
      %4469 = vmatprep.subr.mxu0 0.0
      %4470 = vmatpush2.msra.mxu0 0.0
      %4471 = vmatprep.subr.mxu0 0.0
      %4472 = vmatpush2.msra.mxu0 0.0
      %4473 = vmatprep.subr.mxu0 0.0
      %4474 = vmatpush2.msra.mxu0 0.0
      %4475 = vmatprep.subr.mxu0 0.0
      %4476 = vmatpush2.msra.mxu0 0.0
      %4477 = vmatprep.mubr.f32.mxu0 0.0
      %4478 = vmatmul.mubr.f32.gmra.mxu0 %v4009
      %v4479 = vpop.f32.mrf.mxu0
      %v4480 = vadd.f32 0.0, %v4479
      %v4481 = vpop.f32.mrf.mxu0
      %4482 = vmatprep.mubr.f32.mxu0 0.0
      %4483 = vmatmul.mubr.f32.gmra.mxu0 %v4012
      %v4484 = vpop.f32.mrf.mxu0
      %v4485 = vadd.f32 0.0, %v4484
      %v4486 = vpop.f32.mrf.mxu0
      %4487 = vmatprep.mubr.f32.mxu0 0.0
      %4488 = vmatmul.mubr.f32.gmra.mxu0 %v4015
      %v4489 = vpop.f32.mrf.mxu0
      %v4490 = vadd.f32 0.0, %v4489
      %v4491 = vpop.f32.mrf.mxu0
      %4492 = vmatprep.mubr.f32.mxu0 0.0
      %4493 = vmatmul.mubr.f32.gmra.mxu0 %v4018
      %v4494 = vpop.f32.mrf.mxu0
      %v4495 = vadd.f32 0.0, %v4494
      %v4496 = vpop.f32.mrf.mxu0
      %4497 = vdwg.mxu0
      %4498 = vst.msk [vmem:[#allocation4 + $0x80] sm:$0xff] %vm4105, %v4480
      %4499 = vst.msk [vmem:[#allocation4 + $0x88] sm:$0xff] %vm4105, %v4485
      %4500 = vst.msk [vmem:[#allocation4 + $0x90] sm:$0xff] %vm4105, %v4490
      %4501 = vst.msk [vmem:[#allocation4 + $0x98] sm:$0xff] %vm4105, %v4495
      %s4502 = scalar_lea.vmem %s19, 320
      %v4503 = vld [vmem:[%s4502] sm:$0xff]
      %v4504 = vld [vmem:[%s4502 + $0x8] sm:$0xff]
      %v4505 = vld [vmem:[%s4502 + $0x10] sm:$0xff]
      %v4506 = vld [vmem:[%s4502 + $0x18] sm:$0xff]
      %v4507 = vld [vmem:[%s4502 + $0x20] sm:$0xff]
      %v4508 = vld [vmem:[%s4502 + $0x28] sm:$0xff]
      %v4509 = vld [vmem:[%s4502 + $0x30] sm:$0xff]
      %v4510 = vld [vmem:[%s4502 + $0x38] sm:$0xff]
      %4511 = vmatprep.subr.mxu0 0.0
      %4512 = vmatpush1.msra.mxu0 0.0
      %4513 = vmatprep.subr.mxu0 0.0
      %4514 = vmatpush1.msra.mxu0 0.0
      %4515 = vmatprep.subr.mxu0 0.0
      %4516 = vmatpush1.msra.mxu0 0.0
      %4517 = vmatprep.subr.mxu0 0.0
      %4518 = vmatpush1.msra.mxu0 0.0
      %4519 = vmatprep.subr.mxu0 0.0
      %4520 = vmatpush1.msra.mxu0 0.0
      %4521 = vmatprep.subr.mxu0 0.0
      %4522 = vmatpush1.msra.mxu0 0.0
      %4523 = vmatprep.subr.mxu0 0.0
      %4524 = vmatpush1.msra.mxu0 0.0
      %4525 = vmatprep.subr.mxu0 0.0
      %4526 = vmatpush1.msra.mxu0 0.0
      %4527 = vmatprep.subr.mxu0 0.0
      %4528 = vmatpush1.msra.mxu0 %v4510
      %4529 = vmatprep.subr.mxu0 0.0
      %4530 = vmatpush1.msra.mxu0 %v4509
      %4531 = vmatprep.subr.mxu0 0.0
      %4532 = vmatpush1.msra.mxu0 %v4508
      %4533 = vmatprep.subr.mxu0 0.0
      %4534 = vmatpush1.msra.mxu0 %v4507
      %4535 = vmatprep.subr.mxu0 0.0
      %4536 = vmatpush1.msra.mxu0 %v4506
      %4537 = vmatprep.subr.mxu0 0.0
      %4538 = vmatpush1.msra.mxu0 %v4505
      %4539 = vmatprep.subr.mxu0 0.0
      %4540 = vmatpush1.msra.mxu0 %v4504
      %4541 = vmatprep.subr.mxu0 0.0
      %4542 = vmatpush1.msra.mxu0 %v4503
      %4543 = vmatprep.subr.mxu0 0.0
      %4544 = vmatpush2.msra.mxu0 0.0
      %4545 = vmatprep.subr.mxu0 0.0
      %4546 = vmatpush2.msra.mxu0 0.0
      %4547 = vmatprep.subr.mxu0 0.0
      %4548 = vmatpush2.msra.mxu0 0.0
      %4549 = vmatprep.subr.mxu0 0.0
      %4550 = vmatpush2.msra.mxu0 0.0
      %4551 = vmatprep.subr.mxu0 0.0
      %4552 = vmatpush2.msra.mxu0 0.0
      %4553 = vmatprep.subr.mxu0 0.0
      %4554 = vmatpush2.msra.mxu0 0.0
      %4555 = vmatprep.subr.mxu0 0.0
      %4556 = vmatpush2.msra.mxu0 0.0
      %4557 = vmatprep.subr.mxu0 0.0
      %4558 = vmatpush2.msra.mxu0 0.0
      %4559 = vmatprep.subr.mxu0 0.0
      %4560 = vmatpush2.msra.mxu0 0.0
      %4561 = vmatprep.subr.mxu0 0.0
      %4562 = vmatpush2.msra.mxu0 0.0
      %4563 = vmatprep.subr.mxu0 0.0
      %4564 = vmatpush2.msra.mxu0 0.0
      %4565 = vmatprep.subr.mxu0 0.0
      %4566 = vmatpush2.msra.mxu0 0.0
      %4567 = vmatprep.subr.mxu0 0.0
      %4568 = vmatpush2.msra.mxu0 0.0
      %4569 = vmatprep.subr.mxu0 0.0
      %4570 = vmatpush2.msra.mxu0 0.0
      %4571 = vmatprep.subr.mxu0 0.0
      %4572 = vmatpush2.msra.mxu0 0.0
      %4573 = vmatprep.subr.mxu0 0.0
      %4574 = vmatpush2.msra.mxu0 0.0
      %4575 = vmatprep.mubr.f32.mxu0 0.0
      %4576 = vmatmul.mubr.f32.gmra.mxu0 %v4009
      %v4577 = vpop.f32.mrf.mxu0
      %v4578 = vadd.f32 0.0, %v4577
      %v4579 = vpop.f32.mrf.mxu0
      %4580 = vmatprep.mubr.f32.mxu0 0.0
      %4581 = vmatmul.mubr.f32.gmra.mxu0 %v4012
      %v4582 = vpop.f32.mrf.mxu0
      %v4583 = vadd.f32 0.0, %v4582
      %v4584 = vpop.f32.mrf.mxu0
      %4585 = vmatprep.mubr.f32.mxu0 0.0
      %4586 = vmatmul.mubr.f32.gmra.mxu0 %v4015
      %v4587 = vpop.f32.mrf.mxu0
      %v4588 = vadd.f32 0.0, %v4587
      %v4589 = vpop.f32.mrf.mxu0
      %4590 = vmatprep.mubr.f32.mxu0 0.0
      %4591 = vmatmul.mubr.f32.gmra.mxu0 %v4018
      %v4592 = vpop.f32.mrf.mxu0
      %v4593 = vadd.f32 0.0, %v4592
      %v4594 = vpop.f32.mrf.mxu0
      %4595 = vdwg.mxu0
      %4596 = vst.msk [vmem:[#allocation4 + $0xa0] sm:$0xff] %vm4105, %v4578
      %4597 = vst.msk [vmem:[#allocation4 + $0xa8] sm:$0xff] %vm4105, %v4583
      %4598 = vst.msk [vmem:[#allocation4 + $0xb0] sm:$0xff] %vm4105, %v4588
      %4599 = vst.msk [vmem:[#allocation4 + $0xb8] sm:$0xff] %vm4105, %v4593
      %s4600 = scalar_lea.vmem %s19, 384
      %v4601 = vld [vmem:[%s4600] sm:$0xff]
      %v4602 = vld [vmem:[%s4600 + $0x8] sm:$0xff]
      %v4603 = vld [vmem:[%s4600 + $0x10] sm:$0xff]
      %v4604 = vld [vmem:[%s4600 + $0x18] sm:$0xff]
      %v4605 = vld [vmem:[%s4600 + $0x20] sm:$0xff]
      %v4606 = vld [vmem:[%s4600 + $0x28] sm:$0xff]
      %v4607 = vld [vmem:[%s4600 + $0x30] sm:$0xff]
      %v4608 = vld [vmem:[%s4600 + $0x38] sm:$0xff]
      %4609 = vmatprep.subr.mxu0 0.0
      %4610 = vmatpush1.msra.mxu0 0.0
      %4611 = vmatprep.subr.mxu0 0.0
      %4612 = vmatpush1.msra.mxu0 0.0
      %4613 = vmatprep.subr.mxu0 0.0
      %4614 = vmatpush1.msra.mxu0 0.0
      %4615 = vmatprep.subr.mxu0 0.0
      %4616 = vmatpush1.msra.mxu0 0.0
      %4617 = vmatprep.subr.mxu0 0.0
      %4618 = vmatpush1.msra.mxu0 0.0
      %4619 = vmatprep.subr.mxu0 0.0
      %4620 = vmatpush1.msra.mxu0 0.0
      %4621 = vmatprep.subr.mxu0 0.0
      %4622 = vmatpush1.msra.mxu0 0.0
      %4623 = vmatprep.subr.mxu0 0.0
      %4624 = vmatpush1.msra.mxu0 0.0
      %4625 = vmatprep.subr.mxu0 0.0
      %4626 = vmatpush1.msra.mxu0 %v4608
      %4627 = vmatprep.subr.mxu0 0.0
      %4628 = vmatpush1.msra.mxu0 %v4607
      %4629 = vmatprep.subr.mxu0 0.0
      %4630 = vmatpush1.msra.mxu0 %v4606
      %4631 = vmatprep.subr.mxu0 0.0
      %4632 = vmatpush1.msra.mxu0 %v4605
      %4633 = vmatprep.subr.mxu0 0.0
      %4634 = vmatpush1.msra.mxu0 %v4604
      %4635 = vmatprep.subr.mxu0 0.0
      %4636 = vmatpush1.msra.mxu0 %v4603
      %4637 = vmatprep.subr.mxu0 0.0
      %4638 = vmatpush1.msra.mxu0 %v4602
      %4639 = vmatprep.subr.mxu0 0.0
      %4640 = vmatpush1.msra.mxu0 %v4601
      %4641 = vmatprep.subr.mxu0 0.0
      %4642 = vmatpush2.msra.mxu0 0.0
      %4643 = vmatprep.subr.mxu0 0.0
      %4644 = vmatpush2.msra.mxu0 0.0
      %4645 = vmatprep.subr.mxu0 0.0
      %4646 = vmatpush2.msra.mxu0 0.0
      %4647 = vmatprep.subr.mxu0 0.0
      %4648 = vmatpush2.msra.mxu0 0.0
      %4649 = vmatprep.subr.mxu0 0.0
      %4650 = vmatpush2.msra.mxu0 0.0
      %4651 = vmatprep.subr.mxu0 0.0
      %4652 = vmatpush2.msra.mxu0 0.0
      %4653 = vmatprep.subr.mxu0 0.0
      %4654 = vmatpush2.msra.mxu0 0.0
      %4655 = vmatprep.subr.mxu0 0.0
      %4656 = vmatpush2.msra.mxu0 0.0
      %4657 = vmatprep.subr.mxu0 0.0
      %4658 = vmatpush2.msra.mxu0 0.0
      %4659 = vmatprep.subr.mxu0 0.0
      %4660 = vmatpush2.msra.mxu0 0.0
      %4661 = vmatprep.subr.mxu0 0.0
      %4662 = vmatpush2.msra.mxu0 0.0
      %4663 = vmatprep.subr.mxu0 0.0
      %4664 = vmatpush2.msra.mxu0 0.0
      %4665 = vmatprep.subr.mxu0 0.0
      %4666 = vmatpush2.msra.mxu0 0.0
      %4667 = vmatprep.subr.mxu0 0.0
      %4668 = vmatpush2.msra.mxu0 0.0
      %4669 = vmatprep.subr.mxu0 0.0
      %4670 = vmatpush2.msra.mxu0 0.0
      %4671 = vmatprep.subr.mxu0 0.0
      %4672 = vmatpush2.msra.mxu0 0.0
      %4673 = vmatprep.mubr.f32.mxu0 0.0
      %4674 = vmatmul.mubr.f32.gmra.mxu0 %v4009
      %v4675 = vpop.f32.mrf.mxu0
      %v4676 = vadd.f32 0.0, %v4675
      %v4677 = vpop.f32.mrf.mxu0
      %4678 = vmatprep.mubr.f32.mxu0 0.0
      %4679 = vmatmul.mubr.f32.gmra.mxu0 %v4012
      %v4680 = vpop.f32.mrf.mxu0
      %v4681 = vadd.f32 0.0, %v4680
      %v4682 = vpop.f32.mrf.mxu0
      %4683 = vmatprep.mubr.f32.mxu0 0.0
      %4684 = vmatmul.mubr.f32.gmra.mxu0 %v4015
      %v4685 = vpop.f32.mrf.mxu0
      %v4686 = vadd.f32 0.0, %v4685
      %v4687 = vpop.f32.mrf.mxu0
      %4688 = vmatprep.mubr.f32.mxu0 0.0
      %4689 = vmatmul.mubr.f32.gmra.mxu0 %v4018
      %v4690 = vpop.f32.mrf.mxu0
      %v4691 = vadd.f32 0.0, %v4690
      %v4692 = vpop.f32.mrf.mxu0
      %4693 = vdwg.mxu0
      %4694 = vst.msk [vmem:[#allocation4 + $0xc0] sm:$0xff] %vm4105, %v4676
      %4695 = vst.msk [vmem:[#allocation4 + $0xc8] sm:$0xff] %vm4105, %v4681
      %4696 = vst.msk [vmem:[#allocation4 + $0xd0] sm:$0xff] %vm4105, %v4686
      %4697 = vst.msk [vmem:[#allocation4 + $0xd8] sm:$0xff] %vm4105, %v4691
      %s4698 = scalar_lea.vmem %s19, 448
      %v4699 = vld [vmem:[%s4698] sm:$0xff]
      %v4700 = vld [vmem:[%s4698 + $0x8] sm:$0xff]
      %v4701 = vld [vmem:[%s4698 + $0x10] sm:$0xff]
      %v4702 = vld [vmem:[%s4698 + $0x18] sm:$0xff]
      %v4703 = vld [vmem:[%s4698 + $0x20] sm:$0xff]
      %v4704 = vld [vmem:[%s4698 + $0x28] sm:$0xff]
      %v4705 = vld [vmem:[%s4698 + $0x30] sm:$0xff]
      %v4706 = vld [vmem:[%s4698 + $0x38] sm:$0xff]
      %4707 = vmatprep.subr.mxu0 0.0
      %4708 = vmatpush1.msra.mxu0 0.0
      %4709 = vmatprep.subr.mxu0 0.0
      %4710 = vmatpush1.msra.mxu0 0.0
      %4711 = vmatprep.subr.mxu0 0.0
      %4712 = vmatpush1.msra.mxu0 0.0
      %4713 = vmatprep.subr.mxu0 0.0
      %4714 = vmatpush1.msra.mxu0 0.0
      %4715 = vmatprep.subr.mxu0 0.0
      %4716 = vmatpush1.msra.mxu0 0.0
      %4717 = vmatprep.subr.mxu0 0.0
      %4718 = vmatpush1.msra.mxu0 0.0
      %4719 = vmatprep.subr.mxu0 0.0
      %4720 = vmatpush1.msra.mxu0 0.0
      %4721 = vmatprep.subr.mxu0 0.0
      %4722 = vmatpush1.msra.mxu0 0.0
      %4723 = vmatprep.subr.mxu0 0.0
      %4724 = vmatpush1.msra.mxu0 %v4706
      %4725 = vmatprep.subr.mxu0 0.0
      %4726 = vmatpush1.msra.mxu0 %v4705
      %4727 = vmatprep.subr.mxu0 0.0
      %4728 = vmatpush1.msra.mxu0 %v4704
      %4729 = vmatprep.subr.mxu0 0.0
      %4730 = vmatpush1.msra.mxu0 %v4703
      %4731 = vmatprep.subr.mxu0 0.0
      %4732 = vmatpush1.msra.mxu0 %v4702
      %4733 = vmatprep.subr.mxu0 0.0
      %4734 = vmatpush1.msra.mxu0 %v4701
      %4735 = vmatprep.subr.mxu0 0.0
      %4736 = vmatpush1.msra.mxu0 %v4700
      %4737 = vmatprep.subr.mxu0 0.0
      %4738 = vmatpush1.msra.mxu0 %v4699
      %4739 = vmatprep.subr.mxu0 0.0
      %4740 = vmatpush2.msra.mxu0 0.0
      %4741 = vmatprep.subr.mxu0 0.0
      %4742 = vmatpush2.msra.mxu0 0.0
      %4743 = vmatprep.subr.mxu0 0.0
      %4744 = vmatpush2.msra.mxu0 0.0
      %4745 = vmatprep.subr.mxu0 0.0
      %4746 = vmatpush2.msra.mxu0 0.0
      %4747 = vmatprep.subr.mxu0 0.0
      %4748 = vmatpush2.msra.mxu0 0.0
      %4749 = vmatprep.subr.mxu0 0.0
      %4750 = vmatpush2.msra.mxu0 0.0
      %4751 = vmatprep.subr.mxu0 0.0
      %4752 = vmatpush2.msra.mxu0 0.0
      %4753 = vmatprep.subr.mxu0 0.0
      %4754 = vmatpush2.msra.mxu0 0.0
      %4755 = vmatprep.subr.mxu0 0.0
      %4756 = vmatpush2.msra.mxu0 0.0
      %4757 = vmatprep.subr.mxu0 0.0
      %4758 = vmatpush2.msra.mxu0 0.0
      %4759 = vmatprep.subr.mxu0 0.0
      %4760 = vmatpush2.msra.mxu0 0.0
      %4761 = vmatprep.subr.mxu0 0.0
      %4762 = vmatpush2.msra.mxu0 0.0
      %4763 = vmatprep.subr.mxu0 0.0
      %4764 = vmatpush2.msra.mxu0 0.0
      %4765 = vmatprep.subr.mxu0 0.0
      %4766 = vmatpush2.msra.mxu0 0.0
      %4767 = vmatprep.subr.mxu0 0.0
      %4768 = vmatpush2.msra.mxu0 0.0
      %4769 = vmatprep.subr.mxu0 0.0
      %4770 = vmatpush2.msra.mxu0 0.0
      %4771 = vmatprep.mubr.f32.mxu0 0.0
      %4772 = vmatmul.mubr.f32.gmra.mxu0 %v4009
      %v4773 = vpop.f32.mrf.mxu0
      %v4774 = vadd.f32 0.0, %v4773
      %v4775 = vpop.f32.mrf.mxu0
      %4776 = vmatprep.mubr.f32.mxu0 0.0
      %4777 = vmatmul.mubr.f32.gmra.mxu0 %v4012
      %v4778 = vpop.f32.mrf.mxu0
      %v4779 = vadd.f32 0.0, %v4778
      %v4780 = vpop.f32.mrf.mxu0
      %4781 = vmatprep.mubr.f32.mxu0 0.0
      %4782 = vmatmul.mubr.f32.gmra.mxu0 %v4015
      %v4783 = vpop.f32.mrf.mxu0
      %v4784 = vadd.f32 0.0, %v4783
      %v4785 = vpop.f32.mrf.mxu0
      %4786 = vmatprep.mubr.f32.mxu0 0.0
      %4787 = vmatmul.mubr.f32.gmra.mxu0 %v4018
      %v4788 = vpop.f32.mrf.mxu0
      %v4789 = vadd.f32 0.0, %v4788
      %v4790 = vpop.f32.mrf.mxu0
      %4791 = vdwg.mxu0
      %4792 = vst.msk [vmem:[#allocation4 + $0xe0] sm:$0xff] %vm4105, %v4774
      %4793 = vst.msk [vmem:[#allocation4 + $0xe8] sm:$0xff] %vm4105, %v4779
      %4794 = vst.msk [vmem:[#allocation4 + $0xf0] sm:$0xff] %vm4105, %v4784
      %4795 = vst.msk [vmem:[#allocation4 + $0xf8] sm:$0xff] %vm4105, %v4789
      %s4796 = scalar_lea.vmem %s19, 512
      %v4797 = vld [vmem:[%s4796] sm:$0xff]
      %v4798 = vld [vmem:[%s4796 + $0x8] sm:$0xff]
      %v4799 = vld [vmem:[%s4796 + $0x10] sm:$0xff]
      %v4800 = vld [vmem:[%s4796 + $0x18] sm:$0xff]
      %v4801 = vld [vmem:[%s4796 + $0x20] sm:$0xff]
      %v4802 = vld [vmem:[%s4796 + $0x28] sm:$0xff]
      %v4803 = vld [vmem:[%s4796 + $0x30] sm:$0xff]
      %v4804 = vld [vmem:[%s4796 + $0x38] sm:$0xff]
      %4805 = vmatprep.subr.mxu0 0.0
      %4806 = vmatpush1.msra.mxu0 0.0
      %4807 = vmatprep.subr.mxu0 0.0
      %4808 = vmatpush1.msra.mxu0 0.0
      %4809 = vmatprep.subr.mxu0 0.0
      %4810 = vmatpush1.msra.mxu0 0.0
      %4811 = vmatprep.subr.mxu0 0.0
      %4812 = vmatpush1.msra.mxu0 0.0
      %4813 = vmatprep.subr.mxu0 0.0
      %4814 = vmatpush1.msra.mxu0 0.0
      %4815 = vmatprep.subr.mxu0 0.0
      %4816 = vmatpush1.msra.mxu0 0.0
      %4817 = vmatprep.subr.mxu0 0.0
      %4818 = vmatpush1.msra.mxu0 0.0
      %4819 = vmatprep.subr.mxu0 0.0
      %4820 = vmatpush1.msra.mxu0 0.0
      %4821 = vmatprep.subr.mxu0 0.0
      %4822 = vmatpush1.msra.mxu0 %v4804
      %4823 = vmatprep.subr.mxu0 0.0
      %4824 = vmatpush1.msra.mxu0 %v4803
      %4825 = vmatprep.subr.mxu0 0.0
      %4826 = vmatpush1.msra.mxu0 %v4802
      %4827 = vmatprep.subr.mxu0 0.0
      %4828 = vmatpush1.msra.mxu0 %v4801
      %4829 = vmatprep.subr.mxu0 0.0
      %4830 = vmatpush1.msra.mxu0 %v4800
      %4831 = vmatprep.subr.mxu0 0.0
      %4832 = vmatpush1.msra.mxu0 %v4799
      %4833 = vmatprep.subr.mxu0 0.0
      %4834 = vmatpush1.msra.mxu0 %v4798
      %4835 = vmatprep.subr.mxu0 0.0
      %4836 = vmatpush1.msra.mxu0 %v4797
      %4837 = vmatprep.subr.mxu0 0.0
      %4838 = vmatpush2.msra.mxu0 0.0
      %4839 = vmatprep.subr.mxu0 0.0
      %4840 = vmatpush2.msra.mxu0 0.0
      %4841 = vmatprep.subr.mxu0 0.0
      %4842 = vmatpush2.msra.mxu0 0.0
      %4843 = vmatprep.subr.mxu0 0.0
      %4844 = vmatpush2.msra.mxu0 0.0
      %4845 = vmatprep.subr.mxu0 0.0
      %4846 = vmatpush2.msra.mxu0 0.0
      %4847 = vmatprep.subr.mxu0 0.0
      %4848 = vmatpush2.msra.mxu0 0.0
      %4849 = vmatprep.subr.mxu0 0.0
      %4850 = vmatpush2.msra.mxu0 0.0
      %4851 = vmatprep.subr.mxu0 0.0
      %4852 = vmatpush2.msra.mxu0 0.0
      %4853 = vmatprep.subr.mxu0 0.0
      %4854 = vmatpush2.msra.mxu0 0.0
      %4855 = vmatprep.subr.mxu0 0.0
      %4856 = vmatpush2.msra.mxu0 0.0
      %4857 = vmatprep.subr.mxu0 0.0
      %4858 = vmatpush2.msra.mxu0 0.0
      %4859 = vmatprep.subr.mxu0 0.0
      %4860 = vmatpush2.msra.mxu0 0.0
      %4861 = vmatprep.subr.mxu0 0.0
      %4862 = vmatpush2.msra.mxu0 0.0
      %4863 = vmatprep.subr.mxu0 0.0
      %4864 = vmatpush2.msra.mxu0 0.0
      %4865 = vmatprep.subr.mxu0 0.0
      %4866 = vmatpush2.msra.mxu0 0.0
      %4867 = vmatprep.subr.mxu0 0.0
      %4868 = vmatpush2.msra.mxu0 0.0
      %4869 = vmatprep.mubr.f32.mxu0 0.0
      %4870 = vmatmul.mubr.f32.gmra.mxu0 %v4009
      %v4871 = vpop.f32.mrf.mxu0
      %v4872 = vadd.f32 0.0, %v4871
      %v4873 = vpop.f32.mrf.mxu0
      %4874 = vmatprep.mubr.f32.mxu0 0.0
      %4875 = vmatmul.mubr.f32.gmra.mxu0 %v4012
      %v4876 = vpop.f32.mrf.mxu0
      %v4877 = vadd.f32 0.0, %v4876
      %v4878 = vpop.f32.mrf.mxu0
      %4879 = vmatprep.mubr.f32.mxu0 0.0
      %4880 = vmatmul.mubr.f32.gmra.mxu0 %v4015
      %v4881 = vpop.f32.mrf.mxu0
      %v4882 = vadd.f32 0.0, %v4881
      %v4883 = vpop.f32.mrf.mxu0
      %4884 = vmatprep.mubr.f32.mxu0 0.0
      %4885 = vmatmul.mubr.f32.gmra.mxu0 %v4018
      %v4886 = vpop.f32.mrf.mxu0
      %v4887 = vadd.f32 0.0, %v4886
      %v4888 = vpop.f32.mrf.mxu0
      %4889 = vdwg.mxu0
      %4890 = vst.msk [vmem:[#allocation4 + $0x100] sm:$0xff] %vm4105, %v4872
      %4891 = vst.msk [vmem:[#allocation4 + $0x108] sm:$0xff] %vm4105, %v4877
      %4892 = vst.msk [vmem:[#allocation4 + $0x110] sm:$0xff] %vm4105, %v4882
      %4893 = vst.msk [vmem:[#allocation4 + $0x118] sm:$0xff] %vm4105, %v4887
      %v4894 = vld [vmem:[%s15] sm:$0xff]
      %v4895 = vld [vmem:[%s15 + $0x8] sm:$0xff]
      %v4896 = vld [vmem:[%s15 + $0x10] sm:$0xff]
      %v4897 = vld [vmem:[%s15 + $0x18] sm:$0xff]
      %v4898 = vld [vmem:[%s15 + $0x20] sm:$0xff]
      %v4899 = vld [vmem:[%s15 + $0x28] sm:$0xff]
      %v4900 = vld [vmem:[%s15 + $0x30] sm:$0xff]
      %v4901 = vld [vmem:[%s15 + $0x38] sm:$0xff]
      %v4902 = vld [vmem:[%s15 + $0x40] sm:$0xff]
      %v4903 = vld [vmem:[%s15 + $0x48] sm:$0xff]
      %v4904 = vld [vmem:[%s15 + $0x50] sm:$0xff]
      %v4905 = vld [vmem:[%s15 + $0x58] sm:$0xff]
      %v4906 = vld [vmem:[#allocation4] sm:$0xff]
      %v4907 = vld [vmem:[#allocation4 + $0x8] sm:$0xff]
      %v4908 = vld [vmem:[#allocation4 + $0x10] sm:$0xff]
      %v4909 = vld [vmem:[#allocation4 + $0x18] sm:$0xff]
      %v4910 = vld [vmem:[#allocation4 + $0x20] sm:$0xff]
      %v4911 = vld [vmem:[#allocation4 + $0x28] sm:$0xff]
      %v4912 = vld [vmem:[#allocation4 + $0x30] sm:$0xff]
      %v4913 = vld [vmem:[#allocation4 + $0x38] sm:$0xff]
      %v4914 = vld [vmem:[#allocation4 + $0x40] sm:$0xff]
      %v4915 = vld [vmem:[#allocation4 + $0x48] sm:$0xff]
      %v4916 = vld [vmem:[#allocation4 + $0x50] sm:$0xff]
      %v4917 = vld [vmem:[#allocation4 + $0x58] sm:$0xff]
      %v4918 = vld [vmem:[#allocation4 + $0x60] sm:$0xff]
      %v4919 = vld [vmem:[#allocation4 + $0x68] sm:$0xff]
      %v4920 = vld [vmem:[#allocation4 + $0x70] sm:$0xff]
      %v4921 = vld [vmem:[#allocation4 + $0x78] sm:$0xff]
      %v4922 = vld [vmem:[#allocation4 + $0x80] sm:$0xff]
      %v4923 = vld [vmem:[#allocation4 + $0x88] sm:$0xff]
      %v4924 = vld [vmem:[#allocation4 + $0x90] sm:$0xff]
      %v4925 = vld [vmem:[#allocation4 + $0x98] sm:$0xff]
      %v4926 = vld [vmem:[#allocation4 + $0xa0] sm:$0xff]
      %v4927 = vld [vmem:[#allocation4 + $0xa8] sm:$0xff]
      %v4928 = vld [vmem:[#allocation4 + $0xb0] sm:$0xff]
      %v4929 = vld [vmem:[#allocation4 + $0xb8] sm:$0xff]
      %v4930 = vld [vmem:[#allocation4 + $0xc0] sm:$0xff]
      %v4931 = vld [vmem:[#allocation4 + $0xc8] sm:$0xff]
      %v4932 = vld [vmem:[#allocation4 + $0xd0] sm:$0xff]
      %v4933 = vld [vmem:[#allocation4 + $0xd8] sm:$0xff]
      %v4934 = vld [vmem:[#allocation4 + $0xe0] sm:$0xff]
      %v4935 = vld [vmem:[#allocation4 + $0xe8] sm:$0xff]
      %v4936 = vld [vmem:[#allocation4 + $0xf0] sm:$0xff]
      %v4937 = vld [vmem:[#allocation4 + $0xf8] sm:$0xff]
      %v4938 = vld [vmem:[#allocation4 + $0x100] sm:$0xff]
      %v4939 = vld [vmem:[#allocation4 + $0x108] sm:$0xff]
      %v4940 = vld [vmem:[#allocation4 + $0x110] sm:$0xff]
      %v4941 = vld [vmem:[#allocation4 + $0x118] sm:$0xff]
      %v4942 = vld [vmem:[%s16] sm:$0xff]
      %v4943 = vld [vmem:[%s16 + $0x8] sm:$0xff]
      %v4944 = vld [vmem:[%s16 + $0x10] sm:$0xff]
      %v4945 = vld [vmem:[%s16 + $0x18] sm:$0xff]
      %4947 = vset.pattern.permute.xlu0 0
      %4948 = vperm.xlu0 %4947, %v4942
      %v4949 = vpop.permute.xlu0 %4948
      %4952 = vset.pattern.permute.xlu0 0
      %4953 = vperm.xlu0 %4952, %v4943
      %v4954 = vpop.permute.xlu0 %4953
      %4957 = vset.pattern.permute.xlu0 0
      %4958 = vperm.xlu0 %4957, %v4944
      %v4959 = vpop.permute.xlu0 %4958
      %4962 = vset.pattern.permute.xlu0 0
      %4963 = vperm.xlu0 %4962, %v4945
      %v4964 = vpop.permute.xlu0 %4963
      %vm4966 = vcmask 261120
      %v4968 = vsel %vm4966, %v4896, 0
      %v4971 = vsel %vm4966, %v4899, 0
      %v4974 = vsel %vm4966, %v4902, 0
      %v4977 = vsel %vm4966, %v4905, 0
      %4979 = vmatprep.subr.mxu0 0.0
      %4980 = vmatpush1.msra.mxu0 %v4921
      %4981 = vmatprep.subr.mxu0 0.0
      %4982 = vmatpush1.msra.mxu0 %v4920
      %4983 = vmatprep.subr.mxu0 0.0
      %4984 = vmatpush1.msra.mxu0 %v4919
      %4985 = vmatprep.subr.mxu0 0.0
      %4986 = vmatpush1.msra.mxu0 %v4918
      %4987 = vmatprep.subr.mxu0 0.0
      %4988 = vmatpush1.msra.mxu0 %v4917
      %4989 = vmatprep.subr.mxu0 0.0
      %4990 = vmatpush1.msra.mxu0 %v4916
      %4991 = vmatprep.subr.mxu0 0.0
      %4992 = vmatpush1.msra.mxu0 %v4915
      %4993 = vmatprep.subr.mxu0 0.0
      %4994 = vmatpush1.msra.mxu0 %v4914
      %4995 = vmatprep.subr.mxu0 0.0
      %4996 = vmatpush1.msra.mxu0 %v4913
      %4997 = vmatprep.subr.mxu0 0.0
      %4998 = vmatpush1.msra.mxu0 %v4912
      %4999 = vmatprep.subr.mxu0 0.0
      %5000 = vmatpush1.msra.mxu0 %v4911
      %5001 = vmatprep.subr.mxu0 0.0
      %5002 = vmatpush1.msra.mxu0 %v4910
      %5003 = vmatprep.subr.mxu0 0.0
      %5004 = vmatpush1.msra.mxu0 %v4909
      %5005 = vmatprep.subr.mxu0 0.0
      %5006 = vmatpush1.msra.mxu0 %v4908
      %5007 = vmatprep.subr.mxu0 0.0
      %5008 = vmatpush1.msra.mxu0 %v4907
      %5009 = vmatprep.subr.mxu0 0.0
      %5010 = vmatpush1.msra.mxu0 %v4906
      %5011 = vmatprep.subr.mxu0 0.0
      %5012 = vmatpush2.msra.mxu0 %v4937
      %5013 = vmatprep.subr.mxu0 0.0
      %5014 = vmatpush2.msra.mxu0 %v4936
      %5015 = vmatprep.subr.mxu0 0.0
      %5016 = vmatpush2.msra.mxu0 %v4935
      %5017 = vmatprep.subr.mxu0 0.0
      %5018 = vmatpush2.msra.mxu0 %v4934
      %5019 = vmatprep.subr.mxu0 0.0
      %5020 = vmatpush2.msra.mxu0 %v4933
      %5021 = vmatprep.subr.mxu0 0.0
      %5022 = vmatpush2.msra.mxu0 %v4932
      %5023 = vmatprep.subr.mxu0 0.0
      %5024 = vmatpush2.msra.mxu0 %v4931
      %5025 = vmatprep.subr.mxu0 0.0
      %5026 = vmatpush2.msra.mxu0 %v4930
      %5027 = vmatprep.subr.mxu0 0.0
      %5028 = vmatpush2.msra.mxu0 %v4929
      %5029 = vmatprep.subr.mxu0 0.0
      %5030 = vmatpush2.msra.mxu0 %v4928
      %5031 = vmatprep.subr.mxu0 0.0
      %5032 = vmatpush2.msra.mxu0 %v4927
      %5033 = vmatprep.subr.mxu0 0.0
      %5034 = vmatpush2.msra.mxu0 %v4926
      %5035 = vmatprep.subr.mxu0 0.0
      %5036 = vmatpush2.msra.mxu0 %v4925
      %5037 = vmatprep.subr.mxu0 0.0
      %5038 = vmatpush2.msra.mxu0 %v4924
      %5039 = vmatprep.subr.mxu0 0.0
      %5040 = vmatpush2.msra.mxu0 %v4923
      %5041 = vmatprep.subr.mxu0 0.0
      %5042 = vmatpush2.msra.mxu0 %v4922
      %5043 = vmatprep.mubr.f32.mxu0 %v4895
      %5044 = vmatmul.mubr.f32.gmra.mxu0 %v4894
      %v5045 = vpop.f32.mrf.mxu0
      %v5046 = vadd.f32 %v4949, %v5045
      %v5047 = vpop.f32.mrf.mxu0
      %5048 = vmatprep.mubr.f32.mxu0 %v4898
      %5049 = vmatmul.mubr.f32.gmra.mxu0 %v4897
      %v5050 = vpop.f32.mrf.mxu0
      %v5051 = vadd.f32 %v4954, %v5050
      %v5052 = vpop.f32.mrf.mxu0
      %5053 = vmatprep.mubr.f32.mxu0 %v4901
      %5054 = vmatmul.mubr.f32.gmra.mxu0 %v4900
      %v5055 = vpop.f32.mrf.mxu0
      %v5056 = vadd.f32 %v4959, %v5055
      %v5057 = vpop.f32.mrf.mxu0
      %5058 = vmatprep.mubr.f32.mxu0 %v4904
      %5059 = vmatmul.mubr.f32.gmra.mxu0 %v4903
      %v5060 = vpop.f32.mrf.mxu0
      %v5061 = vadd.f32 %v4964, %v5060
      %v5062 = vpop.f32.mrf.mxu0
      %5063 = vdwg.mxu0
      %5064 = vmatprep.subr.mxu0 0.0
      %5065 = vmatpush1.msra.mxu0 0.0
      %5066 = vmatprep.subr.mxu0 0.0
      %5067 = vmatpush1.msra.mxu0 0.0
      %5068 = vmatprep.subr.mxu0 0.0
      %5069 = vmatpush1.msra.mxu0 0.0
      %5070 = vmatprep.subr.mxu0 0.0
      %5071 = vmatpush1.msra.mxu0 0.0
      %5072 = vmatprep.subr.mxu0 0.0
      %5073 = vmatpush1.msra.mxu0 0.0
      %5074 = vmatprep.subr.mxu0 0.0
      %5075 = vmatpush1.msra.mxu0 0.0
      %5076 = vmatprep.subr.mxu0 0.0
      %5077 = vmatpush1.msra.mxu0 0.0
      %5078 = vmatprep.subr.mxu0 0.0
      %5079 = vmatpush1.msra.mxu0 0.0
      %5080 = vmatprep.subr.mxu0 0.0
      %5081 = vmatpush1.msra.mxu0 0.0
      %5082 = vmatprep.subr.mxu0 0.0
      %5083 = vmatpush1.msra.mxu0 0.0
      %5084 = vmatprep.subr.mxu0 0.0
      %5085 = vmatpush1.msra.mxu0 0.0
      %5086 = vmatprep.subr.mxu0 0.0
      %5087 = vmatpush1.msra.mxu0 0.0
      %5088 = vmatprep.subr.mxu0 0.0
      %5089 = vmatpush1.msra.mxu0 %v4941
      %5090 = vmatprep.subr.mxu0 0.0
      %5091 = vmatpush1.msra.mxu0 %v4940
      %5092 = vmatprep.subr.mxu0 0.0
      %5093 = vmatpush1.msra.mxu0 %v4939
      %5094 = vmatprep.subr.mxu0 0.0
      %5095 = vmatpush1.msra.mxu0 %v4938
      %5096 = vmatprep.subr.mxu0 0.0
      %5097 = vmatpush2.msra.mxu0 0.0
      %5098 = vmatprep.subr.mxu0 0.0
      %5099 = vmatpush2.msra.mxu0 0.0
      %5100 = vmatprep.subr.mxu0 0.0
      %5101 = vmatpush2.msra.mxu0 0.0
      %5102 = vmatprep.subr.mxu0 0.0
      %5103 = vmatpush2.msra.mxu0 0.0
      %5104 = vmatprep.subr.mxu0 0.0
      %5105 = vmatpush2.msra.mxu0 0.0
      %5106 = vmatprep.subr.mxu0 0.0
      %5107 = vmatpush2.msra.mxu0 0.0
      %5108 = vmatprep.subr.mxu0 0.0
      %5109 = vmatpush2.msra.mxu0 0.0
      %5110 = vmatprep.subr.mxu0 0.0
      %5111 = vmatpush2.msra.mxu0 0.0
      %5112 = vmatprep.subr.mxu0 0.0
      %5113 = vmatpush2.msra.mxu0 0.0
      %5114 = vmatprep.subr.mxu0 0.0
      %5115 = vmatpush2.msra.mxu0 0.0
      %5116 = vmatprep.subr.mxu0 0.0
      %5117 = vmatpush2.msra.mxu0 0.0
      %5118 = vmatprep.subr.mxu0 0.0
      %5119 = vmatpush2.msra.mxu0 0.0
      %5120 = vmatprep.subr.mxu0 0.0
      %5121 = vmatpush2.msra.mxu0 0.0
      %5122 = vmatprep.subr.mxu0 0.0
      %5123 = vmatpush2.msra.mxu0 0.0
      %5124 = vmatprep.subr.mxu0 0.0
      %5125 = vmatpush2.msra.mxu0 0.0
      %5126 = vmatprep.subr.mxu0 0.0
      %5127 = vmatpush2.msra.mxu0 0.0
      %5128 = vmatprep.mubr.f32.mxu0 0.0
      %5129 = vmatmul.mubr.f32.gmra.mxu0 %v4968
      %v5130 = vpop.f32.mrf.mxu0
      %v5131 = vadd.f32 %v5046, %v5130
      %v5132 = vpop.f32.mrf.mxu0
      %5133 = vmatprep.mubr.f32.mxu0 0.0
      %5134 = vmatmul.mubr.f32.gmra.mxu0 %v4971
      %v5135 = vpop.f32.mrf.mxu0
      %v5136 = vadd.f32 %v5051, %v5135
      %v5137 = vpop.f32.mrf.mxu0
      %5138 = vmatprep.mubr.f32.mxu0 0.0
      %5139 = vmatmul.mubr.f32.gmra.mxu0 %v4974
      %v5140 = vpop.f32.mrf.mxu0
      %v5141 = vadd.f32 %v5056, %v5140
      %v5142 = vpop.f32.mrf.mxu0
      %5143 = vmatprep.mubr.f32.mxu0 0.0
      %5144 = vmatmul.mubr.f32.gmra.mxu0 %v4977
      %v5145 = vpop.f32.mrf.mxu0
      %v5146 = vadd.f32 %v5061, %v5145
      %v5147 = vpop.f32.mrf.mxu0
      %5148 = vdwg.mxu0
      %v5149 = vmax.f32 %v5131, 0.0
      %v5150 = vmax.f32 %v5136, 0.0
      %v5151 = vmax.f32 %v5141, 0.0
      %v5152 = vmax.f32 %v5146, 0.0
      %v5153 = vsel %vm4105, %v5149, 0.0
      %5154 = vadd.xlane.f32.xlu0 %v5153
      %v5155 = vpop.xlane.xlu0 %5154
      %v5156 = vsel %vm4105, %v5150, 0.0
      %5157 = vadd.xlane.f32.xlu0 %v5156
      %v5158 = vpop.xlane.xlu0 %5157
      %v5159 = vsel %vm4105, %v5151, 0.0
      %5160 = vadd.xlane.f32.xlu0 %v5159
      %v5161 = vpop.xlane.xlu0 %5160
      %v5162 = vsel %vm4105, %v5152, 0.0
      %5163 = vadd.xlane.f32.xlu0 %v5162
      %v5164 = vpop.xlane.xlu0 %5163
      %v5165 = vmul.f32 %v5149, %v5149
      %v5166 = vmul.f32 %v5150, %v5150
      %v5167 = vmul.f32 %v5151, %v5151
      %v5168 = vmul.f32 %v5152, %v5152
      %v5169 = vsel %vm4105, %v5165, 0.0
      %5170 = vadd.xlane.f32.xlu0 %v5169
      %v5171 = vpop.xlane.xlu0 %5170
      %v5172 = vsel %vm4105, %v5166, 0.0
      %5173 = vadd.xlane.f32.xlu0 %v5172
      %v5174 = vpop.xlane.xlu0 %5173
      %v5175 = vsel %vm4105, %v5167, 0.0
      %5176 = vadd.xlane.f32.xlu0 %v5175
      %v5177 = vpop.xlane.xlu0 %5176
      %v5178 = vsel %vm4105, %v5168, 0.0
      %5179 = vadd.xlane.f32.xlu0 %v5178
      %v5180 = vpop.xlane.xlu0 %5179
      %v5181 = vrot.slane %v5155, 1
      %v5182 = vrot.slane %v5158, 1
      %v5183 = vrot.slane %v5161, 1
      %v5184 = vrot.slane %v5164, 1
      %v5185 = vsel %vm829, %v5183, %v5184
      %v5186 = vsel %vm829, %v5182, %v5183
      %v5187 = vsel %vm829, %v5181, %v5182
      %v5188 = vsel %vm829, %v5184, %v5181
      %v5189 = vrot.slane %v5155, 7
      %v5190 = vrot.slane %v5158, 7
      %v5191 = vrot.slane %v5161, 7
      %v5192 = vrot.slane %v5164, 7
      %v5193 = vsel %vm834, %v5191, %v5192
      %v5194 = vsel %vm834, %v5190, %v5191
      %v5195 = vsel %vm834, %v5189, %v5190
      %v5196 = vsel %vm834, %v5192, %v5189
      %v5197 = vsel %vm825, %v5187, %v5196
      %v5198 = vsel %vm826, %v5186, %v5195
      %v5199 = vsel %vm3858, %v5185, %v5194
      %v5200 = vsel %vm3859, %v5188, %v5193
      %v5201 = vadd.f32 %v5155, %v5197
      %v5202 = vadd.f32 %v5158, %v5198
      %v5203 = vadd.f32 %v5161, %v5199
      %v5204 = vadd.f32 %v5164, %v5200
      %v5205 = vrot.slane %v5171, 1
      %v5206 = vrot.slane %v5174, 1
      %v5207 = vrot.slane %v5177, 1
      %v5208 = vrot.slane %v5180, 1
      %v5209 = vsel %vm829, %v5207, %v5208
      %v5210 = vsel %vm829, %v5206, %v5207
      %v5211 = vsel %vm829, %v5205, %v5206
      %v5212 = vsel %vm829, %v5208, %v5205
      %v5213 = vrot.slane %v5171, 7
      %v5214 = vrot.slane %v5174, 7
      %v5215 = vrot.slane %v5177, 7
      %v5216 = vrot.slane %v5180, 7
      %v5217 = vsel %vm834, %v5215, %v5216
      %v5218 = vsel %vm834, %v5214, %v5215
      %v5219 = vsel %vm834, %v5213, %v5214
      %v5220 = vsel %vm834, %v5216, %v5213
      %v5221 = vsel %vm825, %v5211, %v5220
      %v5222 = vsel %vm826, %v5210, %v5219
      %v5223 = vsel %vm3858, %v5209, %v5218
      %v5224 = vsel %vm3859, %v5212, %v5217
      %v5225 = vadd.f32 %v5171, %v5221
      %v5226 = vadd.f32 %v5174, %v5222
      %v5227 = vadd.f32 %v5177, %v5223
      %v5228 = vadd.f32 %v5180, %v5224
      %v5229 = vrcp.pop 72.0
      %v5230 = vmul.f32 %v5201, %v5229
      %v5231 = vmul.f32 %v5202, %v5229
      %v5232 = vmul.f32 %v5203, %v5229
      %v5233 = vmul.f32 %v5204, %v5229
      %v5234 = vmul.f32 %v5225, %v5229
      %v5235 = vmul.f32 %v5226, %v5229
      %v5236 = vmul.f32 %v5227, %v5229
      %v5237 = vmul.f32 %v5228, %v5229
      %v5238 = vmul.f32 %v5230, %v5230
      %v5239 = vmul.f32 %v5231, %v5231
      %v5240 = vmul.f32 %v5232, %v5232
      %v5241 = vmul.f32 %v5233, %v5233
      %v5242 = vsub.f32 %v5234, %v5238
      %v5243 = vsub.f32 %v5235, %v5239
      %v5244 = vsub.f32 %v5236, %v5240
      %v5245 = vsub.f32 %v5237, %v5241
      %v5246 = vadd.f32 %v5242, 1e-05
      %v5247 = vadd.f32 %v5243, 1e-05
      %v5248 = vadd.f32 %v5244, 1e-05
      %v5249 = vadd.f32 %v5245, 1e-05
      %v5250 = vrsqrt.pop %v5246
      %v5251 = vrsqrt.pop %v5247
      %v5252 = vrsqrt.pop %v5248
      %v5253 = vrsqrt.pop %v5249
      %v5254 = vld [vmem:[%s17] sm:$0xff]
      %v5255 = vld [vmem:[%s17 + $0x8] sm:$0xff]
      %v5256 = vld [vmem:[%s17 + $0x10] sm:$0xff]
      %v5257 = vld [vmem:[%s17 + $0x18] sm:$0xff]
      %v5258 = vmul.f32 %v5250, %v5254
      %v5259 = vmul.f32 %v5251, %v5255
      %v5260 = vmul.f32 %v5252, %v5256
      %v5261 = vmul.f32 %v5253, %v5257
      %v5262 = vld [vmem:[%s18] sm:$0xff]
      %v5263 = vld [vmem:[%s18 + $0x8] sm:$0xff]
      %v5264 = vld [vmem:[%s18 + $0x10] sm:$0xff]
      %v5265 = vld [vmem:[%s18 + $0x18] sm:$0xff]
      %v5266 = vmul.f32 %v5230, %v5258
      %v5267 = vmul.f32 %v5231, %v5259
      %v5268 = vmul.f32 %v5232, %v5260
      %v5269 = vmul.f32 %v5233, %v5261
      %v5270 = vsub.f32 %v5262, %v5266
      %v5271 = vsub.f32 %v5263, %v5267
      %v5272 = vsub.f32 %v5264, %v5268
      %v5273 = vsub.f32 %v5265, %v5269
      %5275 = vset.pattern.permute.xlu0 0
      %5276 = vperm.xlu0 %5275, %v5258
      %v5277 = vpop.permute.xlu0 %5276
      %5280 = vset.pattern.permute.xlu0 0
      %5281 = vperm.xlu0 %5280, %v5259
      %v5282 = vpop.permute.xlu0 %5281
      %5285 = vset.pattern.permute.xlu0 0
      %5286 = vperm.xlu0 %5285, %v5260
      %v5287 = vpop.permute.xlu0 %5286
      %5290 = vset.pattern.permute.xlu0 0
      %5291 = vperm.xlu0 %5290, %v5261
      %v5292 = vpop.permute.xlu0 %5291
      %v5294 = vmul.f32 %v5149, %v5277
      %v5295 = vmul.f32 %v5150, %v5282
      %v5296 = vmul.f32 %v5151, %v5287
      %v5297 = vmul.f32 %v5152, %v5292
      %5299 = vset.pattern.permute.xlu0 0
      %5300 = vperm.xlu0 %5299, %v5270
      %v5301 = vpop.permute.xlu0 %5300
      %5304 = vset.pattern.permute.xlu0 0
      %5305 = vperm.xlu0 %5304, %v5271
      %v5306 = vpop.permute.xlu0 %5305
      %5309 = vset.pattern.permute.xlu0 0
      %5310 = vperm.xlu0 %5309, %v5272
      %v5311 = vpop.permute.xlu0 %5310
      %5314 = vset.pattern.permute.xlu0 0
      %5315 = vperm.xlu0 %5314, %v5273
      %v5316 = vpop.permute.xlu0 %5315
      %v5318 = vadd.f32 %v5294, %v5301
      %v5319 = vadd.f32 %v5295, %v5306
      %v5320 = vadd.f32 %v5296, %v5311
      %v5321 = vadd.f32 %v5297, %v5316
      %5322 = vst.msk [vmem:[%s629] sm:$0xff] %vm4105, %v5318
      %5323 = vst.msk [vmem:[%s629 + $0x8] sm:$0xff] %vm4105, %v5319
      %5324 = vst.msk [vmem:[%s629 + $0x10] sm:$0xff] %vm4105, %v5320
      %5325 = vst.msk [vmem:[%s629 + $0x18] sm:$0xff] %vm4105, %v5321
      %p5326 = scmp.lt.s32.totalorder %s31, 1
      %s5327 = scalar_select %p5326, %s31, 1
      %s5328 = smul.addr %s5327, 4
      %s5329 = smul.addr %s5328, 8
      %s5330 = scalar_lea.vmem %s20, %s5329
      // Predicated region
      $region101: #{_lambda_.1} parent=99 // pred_check
        %p5331 = pneg %p474
      $region102: #{_lambda_.1} parent=99 // pred_check_branch
        %5333 = sbr.rel (%p5331) target = $region104
      $region103: #{_lambda_.1} parent=99 // pred_region
        _
      $region104: #{_lambda_.1} parent=99 // pred_fallthru
        _
    $region100: #{_lambda_.1} parent=5 // pred_fallthru
      _
    %p5334 = scmp.le.s32.totalorder 2, %s26
    // Predicated region
    $region105: #{_lambda_.1} parent=5 // pred_check
      %p5335 = pneg %p5334
    $region106: #{_lambda_.1} parent=5 // pred_check_branch
      %5337 = sbr.rel (%p5335) target = $region108
    $region107: #{_lambda_.1} parent=5 // pred_region
      %s5338 = ssub.s32 %s26, 2
      // Predicated region
      $region109: #{_lambda_.1} parent=107 // pred_check
        %p5339 = pneg %p480
      $region110: #{_lambda_.1} parent=107 // pred_check_branch
        %5341 = sbr.rel (%p5339) target = $region112
      $region111: #{_lambda_.1} parent=107 // pred_region
        %p5342 = scmp.lt.s32.totalorder %s32, 1
        %s5343 = scalar_select %p5342, %s32, 1
        %s5344 = smul.addr %s5343, 4
        %s5345 = smul.addr %s5344, 8
        %s5346 = scalar_lea.vmem %s20, %s5345
      $region112: #{_lambda_.1} parent=107 // pred_fallthru
        _
    $region108: #{_lambda_.1} parent=5 // pred_fallthru
      _
  $region6: #{_lambda_.1} parent=0 // loop_footer
    %s30 = sadd.s32 1, %s26
  $region7: #{_lambda_.1} parent=0 // loop_footer_branch
    %25 = sbr.rel target = $region3
  $region8: #{_lambda_.1} parent=0 // loop_exit
    _

</llo_original>
